<compile_context>
chip_gen: v5e
topology: v5e:2x2
jax: 0.10.0
libtpu: 0.0.40
codegen_flags: <defaults>
</compile_context>

<pallas_src>
import functools
import math

import jax
import jax.numpy as jnp
from jax.experimental import pallas as pl
from jax.experimental.pallas import tpu as pltpu

# ----------------------------- config ---------------------------------------
IMG_SIZE = 32
PATCH = 16
IN_CHANS = 3
ENC_DIM = 32
ENC_DEPTH = 2
ENC_HEADS = 2
DEC_DIM = 32
DEC_DEPTH = 2
DEC_HEADS = 2
MLP_RATIO = 4
N_SYM = 16          # kwargs['n_sym_img']
NUM_UE = 2
SHARE_RATIO = 0.5
IMGR_LENGTH = 48
BATCH = 4           # must be divisible by NUM_UE

N_PATCH = (IMG_SIZE // PATCH) ** 2            # 4 tokens (cls dropped before blocks)
S_SHARE = int(N_SYM * SHARE_RATIO)            # 8
S_PRIV = int(N_SYM * (1 - SHARE_RATIO))       # 8
EPS = 1e-6


# --------------------------- in-kernel helpers --------------------------------
def _mm(a, b):
    """MXU matmul: bf16 inputs, f32 accumulation."""
    return jnp.dot(a.astype(jnp.bfloat16), b.astype(jnp.bfloat16),
                   preferred_element_type=jnp.float32)


def _bmm(pattern, a, b):
    """Batched MXU matmul via einsum: bf16 inputs, f32 accumulation."""
    return jnp.einsum(pattern, a.astype(jnp.bfloat16), b.astype(jnp.bfloat16),
                      preferred_element_type=jnp.float32)


def _layernorm(x, g, b, eps):
    x = x.astype(jnp.float32)
    mu = jnp.mean(x, axis=-1, keepdims=True)
    xc = x - mu
    var = jnp.mean(xc * xc, axis=-1, keepdims=True)
    return xc * jax.lax.rsqrt(var + eps) * g.astype(jnp.float32) + b.astype(jnp.float32)


def _erf(x):
    # Abramowitz & Stegun 7.1.26 (max abs err ~1.5e-7).  Uses only
    # exp/abs/mul/add so it never relies on a native erf lowering in Mosaic.
    a1, a2, a3, a4, a5 = (0.254829592, -0.284496736, 1.421413741,
                          -1.453152027, 1.061405429)
    p = 0.3275911
    sign = jnp.where(x >= 0.0, 1.0, -1.0)
    ax = jnp.abs(x)
    t = 1.0 / (1.0 + p * ax)
    poly = ((((a5 * t + a4) * t + a3) * t + a2) * t + a1) * t
    return sign * (1.0 - poly * jnp.exp(-(ax * ax)))


def _gelu(x):
    # exact-erf GELU as in timm ViT (erf via high-accuracy polynomial above)
    return 0.5 * x * (1.0 + _erf(x * (1.0 / math.sqrt(2.0))))


def _softmax(s):
    s = s - jnp.max(s, axis=-1, keepdims=True)
    p = jnp.exp(s)
    return p * pl.reciprocal(jnp.sum(p, axis=-1, keepdims=True), approx=True)


def _attend(q, k, v, heads, scale):
    """q, k, v: (B, T, D).  Per-head attention via static lane slices + batched
    einsums; returns (B, T, D) with heads concatenated along the last dim."""
    B, T, D = q.shape
    Dh = D // heads
    outs = []
    for h in range(heads):
        qh = q[:, :, h * Dh:(h + 1) * Dh]
        kh = k[:, :, h * Dh:(h + 1) * Dh]
        vh = v[:, :, h * Dh:(h + 1) * Dh]
        p = _softmax(_bmm('bqd,bkd->bqk', qh, kh) * scale)
        outs.append(_bmm('bqk,bkd->bqd', p, vh))
    return jnp.concatenate(outs, axis=-1)


# ----------------------------- Pallas kernels --------------------------------
def _patch_embed_kernel(p_ref, w_ref, b_ref, pos_ref, o_ref):
    p = p_ref[...].astype(jnp.float32)                     # (B, N, C*P*P)
    B, N, K = p.shape
    y = _mm(p.reshape(B * N, K), w_ref[...]) + b_ref[...].astype(jnp.float32)
    y = y.reshape(B, N, -1) + pos_ref[...].astype(jnp.float32)   # pos (1, N, D)
    o_ref[...] = y.astype(o_ref.dtype)


def _vit_block_kernel(x_ref, ln1_g, ln1_b, qkv_w, qkv_b, proj_w, proj_b,
                      ln2_g, ln2_b, fc1_w, fc1_b, fc2_w, fc2_b, o_ref,
                      *, heads, eps):
    x = x_ref[...].astype(jnp.float32)                     # (B, N, D)
    B, N, D = x.shape
    Dh = D // heads
    scale = Dh ** -0.5

    # --- attention branch (pre-LN) ---
    h = _layernorm(x, ln1_g[...], ln1_b[...], eps)
    qkv = _mm(h.reshape(B * N, D), qkv_w[...]) + qkv_b[...].astype(jnp.float32)
    qkv = qkv.reshape(B, N, 3 * D)
    a = _attend(qkv[:, :, :D], qkv[:, :, D:2 * D], qkv[:, :, 2 * D:], heads, scale)
    a = _mm(a.reshape(B * N, D), proj_w[...]) + proj_b[...].astype(jnp.float32)
    x2 = x.reshape(B * N, D) + a

    # --- MLP branch (pre-LN, exact-erf GELU as in timm ViT) ---
    h = _layernorm(x2, ln2_g[...], ln2_b[...], eps)
    h = _mm(h, fc1_w[...]) + fc1_b[...].astype(jnp.float32)
    h = _gelu(h)
    h = _mm(h, fc2_w[...]) + fc2_b[...].astype(jnp.float32)
    o_ref[...] = (x2 + h).reshape(B, N, D).astype(o_ref.dtype)


def _channel_kernel(x_ref, ng, nb, e2c_w, e2c_b, c2s_w, c2s_b,
                    c2p_w, c2p_b, c2d_w, c2d_b, o_ref, *, num_ue, eps):
    x = x_ref[...].astype(jnp.float32)                     # (B, N, D)
    B, N, D = x.shape
    G = B // num_ue

    # final encoder LayerNorm (fused here)
    x = _layernorm(x, ng[...], nb[...], eps)

    # encoder_to_channel
    c = _mm(x.reshape(B * N, D), e2c_w[...]) + e2c_b[...].astype(jnp.float32)
    S = c.shape[-1]
    c = c.reshape(B, N, S)

    # shared path: per group, concat symbols of all UEs along the last dim
    # (== permute([0,2,1,3]).reshape(-1, N, UE*S) in the reference)
    shared_in = jnp.concatenate(
        [jnp.concatenate([c[g * num_ue + u][None] for u in range(num_ue)], axis=-1)
         for g in range(G)], axis=0)                        # (G, N, UE*S)
    shared = _mm(shared_in.reshape(G * N, num_ue * S), c2s_w[...]) \
        + c2s_b[...].astype(jnp.float32)
    S_sh = shared.shape[-1]
    shared = shared.reshape(G, N, S_sh)

    # private path
    priv = _mm(c.reshape(B * N, S), c2p_w[...]) + c2p_b[...].astype(jnp.float32)
    S_pr = priv.shape[-1]
    priv = priv.reshape(B, N, S_pr)

    # concat [shared (broadcast over UEs), private] per sample, in batch order
    comb = jnp.concatenate(
        [jnp.concatenate([shared[b // num_ue][None], priv[b][None]], axis=-1)
         for b in range(B)], axis=0)                        # (B, N, S_sh + S_pr)

    # power_norm_batchwise: per-sample, complex-pair convention
    ss = jnp.sum(jnp.sum(comb * comb, axis=-1, keepdims=True), axis=-2, keepdims=True)
    pwr = 2.0 * ss / float(N * (S_sh + S_pr))               # (B, 1, 1)
    comb = comb * jax.lax.rsqrt(pwr)
    # TODO(synk): self.channel / noise_std are never applied in the reference forward (dead code); omitted.

    # channel_to_decoder (reference uses channel_to_decoder[0] for every UE)
    dec = _mm(comb.reshape(B * N, S_sh + S_pr), c2d_w[...]) \
        + c2d_b[...].astype(jnp.float32)
    o_ref[...] = dec.reshape(B, N, -1).astype(o_ref.dtype)


def _dec_layer_body(x, mem,
                    sa_qkv_w, sa_qkv_b, sa_o_w, sa_o_b, ln1_g, ln1_b,
                    ca_q_w, ca_q_b, ca_kv_w, ca_kv_b, ca_o_w, ca_o_b, ln2_g, ln2_b,
                    fc1_w, fc1_b, fc2_w, fc2_b, ln3_g, ln3_b, *, heads, eps):
    # post-LN transformer decoder layer (self-attn, cross-attn, ReLU FFN)
    # TODO(synk): confirm post-LN + ReLU ordering matches the reference Decoder.
    B, T, D = x.shape
    Dh = D // heads
    scale = Dh ** -0.5

    # --- self attention (fused QKV weight) ---
    qkv = _mm(x.reshape(B * T, D), sa_qkv_w[...]) + sa_qkv_b[...].astype(jnp.float32)
    qkv = qkv.reshape(B, T, 3 * D)
    a = _attend(qkv[:, :, :D], qkv[:, :, D:2 * D], qkv[:, :, 2 * D:], heads, scale)
    a = _mm(a.reshape(B * T, D), sa_o_w[...]) + sa_o_b[...].astype(jnp.float32)
    y = _layernorm(x.reshape(B * T, D) + a, ln1_g[...], ln1_b[...], eps)   # (B*T, D)

    # --- cross attention (fused KV weight on memory) ---
    q = _mm(y, ca_q_w[...]) + ca_q_b[...].astype(jnp.float32)
    kv = _mm(mem.reshape(B * T, D), ca_kv_w[...]) + ca_kv_b[...].astype(jnp.float32)
    kv = kv.reshape(B, T, 2 * D)
    a = _attend(q.reshape(B, T, D), kv[:, :, :D], kv[:, :, D:], heads, scale)
    a = _mm(a.reshape(B * T, D), ca_o_w[...]) + ca_o_b[...].astype(jnp.float32)
    y = _layernorm(y + a, ln2_g[...], ln2_b[...], eps)

    # --- FFN (ReLU) ---
    h = _mm(y, fc1_w[...]) + fc1_b[...].astype(jnp.float32)
    h = jnp.maximum(h, 0.0)
    h = _mm(h, fc2_w[...]) + fc2_b[...].astype(jnp.float32)
    y = _layernorm(y + h, ln3_g[...], ln3_b[...], eps)
    return y, B, T, D


def _dec_layer_kernel(x_ref, mem_ref, *rest, heads, eps):
    *w_refs, o_ref = rest
    x = x_ref[...].astype(jnp.float32)
    mem = mem_ref[...].astype(jnp.float32)
    y, B, T, D = _dec_layer_body(x, mem, *w_refs, heads=heads, eps=eps)
    o_ref[...] = y.reshape(B, T, D).astype(o_ref.dtype)


def _dec_layer_head_kernel(x_ref, mem_ref, *rest, heads, eps):
    # last decoder layer with the regression head fused in
    *w_refs, head_w, head_b, o_ref = rest
    x = x_ref[...].astype(jnp.float32)
    mem = mem_ref[...].astype(jnp.float32)
    y, B, T, D = _dec_layer_body(x, mem, *w_refs, heads=heads, eps=eps)
    y = _mm(y, head_w[...]) + head_b[...].astype(jnp.float32)
    o_ref[...] = y.reshape(B, T, -1).astype(o_ref.dtype)


# --------------------------- pallas_call wrapper ------------------------------
def _fused_call(kernel_fn, out_shape, *args):
    """Single-grid-step pallas_call: every operand is one full-array VMEM block
    (all shapes here are tiny, so whole-array blocks fit comfortably)."""

    def full_spec(shape):
        nd = len(shape)
        return pl.BlockSpec(shape, lambda *_: (0,) * nd)

    return pl.pallas_call(
        kernel_fn,
        out_shape=jax.ShapeDtypeStruct(out_shape, jnp.float32),
        grid=(1,),
        in_specs=[full_spec(a.shape) for a in args],
        out_specs=full_spec(out_shape),
        compiler_params=pltpu.CompilerParams(dimension_semantics=("arbitrary",)),
    )(*args)


# ----------------------------- forward pass -----------------------------------
def tdeepsc_imgr_forward(img, params):
    B, C, H, W = img.shape
    nh, nw = H // PATCH, W // PATCH

    # NCHW -> (B, nH*nW, C*P*P) patch rearrangement (plain-JAX glue)
    patches = img.reshape(B, C, nh, PATCH, nw, PATCH)
    patches = patches.transpose(0, 2, 4, 1, 3, 5).reshape(B, nh * nw, C * PATCH * PATCH)

    # patch embed + pos embed (cls token is concatenated then immediately dropped
    # via x[:, 1:] in the reference, so it never affects the output; we add
    # pos_embed[:, 1:] directly to the patch tokens -- numerically identical).
    x = _fused_call(_patch_embed_kernel, (B, N_PATCH, ENC_DIM),
                    patches, params["patch_w"], params["patch_b"],
                    params["pos_embed"][:, 1:, :])
    # pos_drop is identity (eval / drop_rate=0)

    # ---------------- ViT encoder blocks (one fused kernel each) ----------------
    for blk in params["enc_blocks"]:
        x = _fused_call(
            functools.partial(_vit_block_kernel, heads=ENC_HEADS, eps=EPS),
            x.shape, x,
            blk["ln1_g"], blk["ln1_b"], blk["qkv_w"], blk["qkv_b"],
            blk["proj_w"], blk["proj_b"], blk["ln2_g"], blk["ln2_b"],
            blk["fc1_w"], blk["fc1_b"], blk["fc2_w"], blk["fc2_b"])

    # ---------------- fused channel coding (norm + e2c + c2s + c2p + power norm + c2d)
    x = _fused_call(
        functools.partial(_channel_kernel, num_ue=NUM_UE, eps=EPS),
        (B, N_PATCH, DEC_DIM), x,
        params["enc_norm_g"], params["enc_norm_b"],
        params["e2c_w"], params["e2c_b"],
        params["c2s_w"], params["c2s_b"],
        params["c2p_w"], params["c2p_b"],
        params["c2d_w"], params["c2d_b"])

    # ---------------- decoder (one fused kernel per layer; head fused into last)
    mem = x
    n_layers = len(params["dec_layers"])
    for li, lyr in enumerate(params["dec_layers"]):
        layer_args = (
            x, mem,
            lyr["sa_qkv_w"], lyr["sa_qkv_b"], lyr["sa_o_w"], lyr["sa_o_b"],
            lyr["ln1_g"], lyr["ln1_b"],
            lyr["ca_q_w"], lyr["ca_q_b"], lyr["ca_kv_w"], lyr["ca_kv_b"],
            lyr["ca_o_w"], lyr["ca_o_b"], lyr["ln2_g"], lyr["ln2_b"],
            lyr["fc1_w"], lyr["fc1_b"], lyr["fc2_w"], lyr["fc2_b"],
            lyr["ln3_g"], lyr["ln3_b"])
        if li == n_layers - 1:
            x = _fused_call(
                functools.partial(_dec_layer_head_kernel, heads=DEC_HEADS, eps=EPS),
                (B, N_PATCH, IMGR_LENGTH),
                *layer_args, params["head_w"], params["head_b"])
        else:
            x = _fused_call(
                functools.partial(_dec_layer_kernel, heads=DEC_HEADS, eps=EPS),
                x.shape, *layer_args)
    return x


# ----------------------------- param init --------------------------------------
def init_params(key):
    keys = iter(jax.random.split(key, 256))

    def w(shape, scale=0.02):
        return (scale * jax.random.normal(next(keys), shape)).astype(jnp.float32)

    def zeros2(n):
        return jnp.zeros((1, n), jnp.float32)

    def ones2(n):
        return jnp.ones((1, n), jnp.float32)

    def enc_block():
        return dict(
            ln1_g=ones2(ENC_DIM), ln1_b=zeros2(ENC_DIM),
            qkv_w=w((ENC_DIM, 3 * ENC_DIM)), qkv_b=zeros2(3 * ENC_DIM),
            proj_w=w((ENC_DIM, ENC_DIM)), proj_b=zeros2(ENC_DIM),
            ln2_g=ones2(ENC_DIM), ln2_b=zeros2(ENC_DIM),
            fc1_w=w((ENC_DIM, MLP_RATIO * ENC_DIM)), fc1_b=zeros2(MLP_RATIO * ENC_DIM),
            fc2_w=w((MLP_RATIO * ENC_DIM, ENC_DIM)), fc2_b=zeros2(ENC_DIM),
        )

    def dec_layer():
        dff = MLP_RATIO * DEC_DIM
        return dict(
            sa_qkv_w=w((DEC_DIM, 3 * DEC_DIM)), sa_qkv_b=zeros2(3 * DEC_DIM),
            sa_o_w=w((DEC_DIM, DEC_DIM)), sa_o_b=zeros2(DEC_DIM),
            ln1_g=ones2(DEC_DIM), ln1_b=zeros2(DEC_DIM),
            ca_q_w=w((DEC_DIM, DEC_DIM)), ca_q_b=zeros2(DEC_DIM),
            ca_kv_w=w((DEC_DIM, 2 * DEC_DIM)), ca_kv_b=zeros2(2 * DEC_DIM),
            ca_o_w=w((DEC_DIM, DEC_DIM)), ca_o_b=zeros2(DEC_DIM),
            ln2_g=ones2(DEC_DIM), ln2_b=zeros2(DEC_DIM),
            fc1_w=w((DEC_DIM, dff)), fc1_b=zeros2(dff),
            fc2_w=w((dff, DEC_DIM)), fc2_b=zeros2(DEC_DIM),
            ln3_g=ones2(DEC_DIM), ln3_b=zeros2(DEC_DIM),
        )

    return dict(
        patch_w=w((IN_CHANS * PATCH * PATCH, ENC_DIM)), patch_b=zeros2(ENC_DIM),
        cls_token=w((1, 1, ENC_DIM)),          # unused: dropped before blocks
        pos_embed=w((1, N_PATCH + 1, ENC_DIM)),
        enc_blocks=[enc_block() for _ in range(ENC_DEPTH)],
        enc_norm_g=ones2(ENC_DIM), enc_norm_b=zeros2(ENC_DIM),
        e2c_w=w((ENC_DIM, N_SYM)), e2c_b=zeros2(N_SYM),
        c2s_w=w((N_SYM * NUM_UE, S_SHARE)), c2s_b=zeros2(S_SHARE),
        c2p_w=w((N_SYM, S_PRIV)), c2p_b=zeros2(S_PRIV),
        c2d_w=w((N_SYM, DEC_DIM)), c2d_b=zeros2(DEC_DIM),
        dec_layers=[dec_layer() for _ in range(DEC_DEPTH)],
        head_w=w((DEC_DIM, IMGR_LENGTH)), head_b=zeros2(IMGR_LENGTH),
    )


# ----------------------------- main ---------------------------------------------
if __name__ == "__main__":
    assert BATCH % NUM_UE == 0
    key = jax.random.PRNGKey(0)
    k_img, k_par = jax.random.split(key)
    img = jax.random.normal(k_img, (BATCH, IN_CHANS, IMG_SIZE, IMG_SIZE), jnp.float32)
    params = init_params(k_par)

    fwd = jax.jit(tdeepsc_imgr_forward)
    out = fwd(img, params)
    out = jax.block_until_ready(out)

    assert out.shape == (BATCH, N_PATCH, IMGR_LENGTH), out.shape
    assert bool(jnp.all(jnp.isfinite(out)))
    print("KERNEL_OK")
</pallas_src>

<mosaic_0001>
module attributes {stable_mosaic.version = 11 : i64} {
  func.func @_patch_embed_kernel(%arg0: i32, %arg1: memref<4x4x768xf32, #tpu.memory_space<vmem>>, %arg2: memref<768x32xf32, #tpu.memory_space<vmem>>, %arg3: memref<1x32xf32, #tpu.memory_space<vmem>>, %arg4: memref<1x4x32xf32, #tpu.memory_space<vmem>>, %arg5: memref<4x4x32xf32, #tpu.memory_space<vmem>>) attributes {dimension_semantics = [#tpu.dimension_semantics<arbitrary>], iteration_bounds = array<i64: 1>, scalar_prefetch = 0 : i64, scratch_operands = 0 : i64, tpu.core_type = #tpu.core_type<tc>, window_params = [{pipeline_mode = #tpu.pipeline_mode<synchronous>, transform_indices = @transform_0, window_bounds = array<i64: 4, 4, 768>}, {pipeline_mode = #tpu.pipeline_mode<synchronous>, transform_indices = @transform_1, window_bounds = array<i64: 768, 32>}, {pipeline_mode = #tpu.pipeline_mode<synchronous>, transform_indices = @transform_2, window_bounds = array<i64: 1, 32>}, {pipeline_mode = #tpu.pipeline_mode<synchronous>, transform_indices = @transform_3, window_bounds = array<i64: 1, 4, 32>}, {pipeline_mode = #tpu.pipeline_mode<synchronous>, transform_indices = @transform_4, window_bounds = array<i64: 4, 4, 32>}]} {
    %c0 = arith.constant 0 : index
    %c0_0 = arith.constant 0 : index
    %c0_1 = arith.constant 0 : index
    %0 = vector.load %arg1[%c0, %c0_0, %c0_1] : memref<4x4x768xf32, #tpu.memory_space<vmem>>, vector<4x4x768xf32>
    %1 = vector.shape_cast %0 : vector<4x4x768xf32> to vector<16x768xf32>
    %c0_2 = arith.constant 0 : index
    %c0_3 = arith.constant 0 : index
    %2 = vector.load %arg2[%c0_2, %c0_3] : memref<768x32xf32, #tpu.memory_space<vmem>>, vector<768x32xf32>
    %3 = arith.truncf %1 : vector<16x768xf32> to vector<16x768xbf16>
    %4 = arith.truncf %2 : vector<768x32xf32> to vector<768x32xbf16>
    %cst = arith.constant dense<0.000000e+00> : vector<16x32xf32>
    %5 = tpu.matmul %3, %4, %cst {dimension_numbers = #tpu.dot_dimension_numbers<[1], [0], [0], [1], [0, 0, 1, 1], [], []>} : vector<16x768xbf16>, vector<768x32xbf16>, vector<16x32xf32> -> vector<16x32xf32>
    %c0_4 = arith.constant 0 : index
    %c0_5 = arith.constant 0 : index
    %6 = vector.load %arg3[%c0_4, %c0_5] : memref<1x32xf32, #tpu.memory_space<vmem>>, vector<1x32xf32>
    %7 = vector.broadcast %6 : vector<1x32xf32> to vector<16x32xf32>
    %8 = arith.addf %5, %7 : vector<16x32xf32>
    %9 = vector.shape_cast %8 : vector<16x32xf32> to vector<4x4x32xf32>
    %c0_6 = arith.constant 0 : index
    %c0_7 = arith.constant 0 : index
    %c0_8 = arith.constant 0 : index
    %10 = vector.load %arg4[%c0_6, %c0_7, %c0_8] : memref<1x4x32xf32, #tpu.memory_space<vmem>>, vector<1x4x32xf32>
    %11 = vector.broadcast %10 : vector<1x4x32xf32> to vector<4x4x32xf32>
    %12 = arith.addf %9, %11 : vector<4x4x32xf32>
    %c0_9 = arith.constant 0 : index
    %c0_10 = arith.constant 0 : index
    %c0_11 = arith.constant 0 : index
    %13 = vector.load %arg5[%c0_9, %c0_10, %c0_11] : memref<4x4x32xf32, #tpu.memory_space<vmem>>, vector<4x4x32xf32>
    tpu.vector_store %arg5[%c0_9, %c0_10, %c0_11], %12 {strides = array<i32>} : memref<4x4x32xf32, #tpu.memory_space<vmem>>, vector<4x4x32xf32>,
    return
  }
  func.func @transform_0(%arg0: i32) -> (i32, i32, i32) {
    %c0_i32 = arith.constant 0 : i32
    %c0_i32_0 = arith.constant 0 : i32
    %c0_i32_1 = arith.constant 0 : i32
    %c0_i32_2 = arith.constant 0 : i32
    return %c0_i32, %c0_i32_0, %c0_i32_1 : i32, i32, i32
  }
  func.func @transform_1(%arg0: i32) -> (i32, i32) {
    %c0_i32 = arith.constant 0 : i32
    %c0_i32_0 = arith.constant 0 : i32
    %c0_i32_1 = arith.constant 0 : i32
    return %c0_i32, %c0_i32_0 : i32, i32
  }
  func.func @transform_2(%arg0: i32) -> (i32, i32) {
    %c0_i32 = arith.constant 0 : i32
    %c0_i32_0 = arith.constant 0 : i32
    %c0_i32_1 = arith.constant 0 : i32
    return %c0_i32, %c0_i32_0 : i32, i32
  }
  func.func @transform_3(%arg0: i32) -> (i32, i32, i32) {
    %c0_i32 = arith.constant 0 : i32
    %c0_i32_0 = arith.constant 0 : i32
    %c0_i32_1 = arith.constant 0 : i32
    %c0_i32_2 = arith.constant 0 : i32
    return %c0_i32, %c0_i32_0, %c0_i32_1 : i32, i32, i32
  }
  func.func @transform_4(%arg0: i32) -> (i32, i32, i32) {
    %c0_i32 = arith.constant 0 : i32
    %c0_i32_0 = arith.constant 0 : i32
    %c0_i32_1 = arith.constant 0 : i32
    %c0_i32_2 = arith.constant 0 : i32
    return %c0_i32, %c0_i32_0, %c0_i32_1 : i32, i32, i32
  }
}

module attributes {stable_mosaic.version = 11 : i64} {
  func.func @_vit_block_kernel(%arg0: i32, %arg1: memref<4x4x32xf32, #tpu.memory_space<vmem>>, %arg2: memref<1x32xf32, #tpu.memory_space<vmem>>, %arg3: memref<1x32xf32, #tpu.memory_space<vmem>>, %arg4: memref<32x96xf32, #tpu.memory_space<vmem>>, %arg5: memref<1x96xf32, #tpu.memory_space<vmem>>, %arg6: memref<32x32xf32, #tpu.memory_space<vmem>>, %arg7: memref<1x32xf32, #tpu.memory_space<vmem>>, %arg8: memref<1x32xf32, #tpu.memory_space<vmem>>, %arg9: memref<1x32xf32, #tpu.memory_space<vmem>>, %arg10: memref<32x128xf32, #tpu.memory_space<vmem>>, %arg11: memref<1x128xf32, #tpu.memory_space<vmem>>, %arg12: memref<128x32xf32, #tpu.memory_space<vmem>>, %arg13: memref<1x32xf32, #tpu.memory_space<vmem>>, %arg14: memref<4x4x32xf32, #tpu.memory_space<vmem>>) attributes {dimension_semantics = [#tpu.dimension_semantics<arbitrary>], iteration_bounds = array<i64: 1>, scalar_prefetch = 0 : i64, scratch_operands = 0 : i64, tpu.core_type = #tpu.core_type<tc>, window_params = [{pipeline_mode = #tpu.pipeline_mode<synchronous>, transform_indices = @transform_0, window_bounds = array<i64: 4, 4, 32>}, {pipeline_mode = #tpu.pipeline_mode<synchronous>, transform_indices = @transform_1, window_bounds = array<i64: 1, 32>}, {pipeline_mode = #tpu.pipeline_mode<synchronous>, transform_indices = @transform_2, window_bounds = array<i64: 1, 32>}, {pipeline_mode = #tpu.pipeline_mode<synchronous>, transform_indices = @transform_3, window_bounds = array<i64: 32, 96>}, {pipeline_mode = #tpu.pipeline_mode<synchronous>, transform_indices = @transform_4, window_bounds = array<i64: 1, 96>}, {pipeline_mode = #tpu.pipeline_mode<synchronous>, transform_indices = @transform_5, window_bounds = array<i64: 32, 32>}, {pipeline_mode = #tpu.pipeline_mode<synchronous>, transform_indices = @transform_6, window_bounds = array<i64: 1, 32>}, {pipeline_mode = #tpu.pipeline_mode<synchronous>, transform_indices = @transform_7, window_bounds = array<i64: 1, 32>}, {pipeline_mode = #tpu.pipeline_mode<synchronous>, transform_indices = @transform_8, window_bounds = array<i64: 1, 32>}, {pipeline_mode = #tpu.pipeline_mode<synchronous>, transform_indices = @transform_9, window_bounds = array<i64: 32, 128>}, {pipeline_mode = #tpu.pipeline_mode<synchronous>, transform_indices = @transform_10, window_bounds = array<i64: 1, 128>}, {pipeline_mode = #tpu.pipeline_mode<synchronous>, transform_indices = @transform_11, window_bounds = array<i64: 128, 32>}, {pipeline_mode = #tpu.pipeline_mode<synchronous>, transform_indices = @transform_12, window_bounds = array<i64: 1, 32>}, {pipeline_mode = #tpu.pipeline_mode<synchronous>, transform_indices = @transform_13, window_bounds = array<i64: 4, 4, 32>}]} {
    %c0 = arith.constant 0 : index
    %c0_0 = arith.constant 0 : index
    %c0_1 = arith.constant 0 : index
    %0 = vector.load %arg1[%c0, %c0_0, %c0_1] : memref<4x4x32xf32, #tpu.memory_space<vmem>>, vector<4x4x32xf32>
    %c0_2 = arith.constant 0 : index
    %c0_3 = arith.constant 0 : index
    %1 = vector.load %arg2[%c0_2, %c0_3] : memref<1x32xf32, #tpu.memory_space<vmem>>, vector<1x32xf32>
    %c0_4 = arith.constant 0 : index
    %c0_5 = arith.constant 0 : index
    %2 = vector.load %arg3[%c0_4, %c0_5] : memref<1x32xf32, #tpu.memory_space<vmem>>, vector<1x32xf32>
    %cst = arith.constant dense<0.000000e+00> : vector<4x4xf32>
    %3 = vector.multi_reduction <add>, %0, %cst [2] : vector<4x4x32xf32> to vector<4x4xf32>
    %4 = vector.shape_cast %3 : vector<4x4xf32> to vector<4x4x1xf32>
    %cst_6 = arith.constant 3.200000e+01 : f32
    %5 = vector.broadcast %cst_6 : f32 to vector<4x4x1xf32>
    %6 = arith.divf %4, %5 : vector<4x4x1xf32>
    %7 = vector.broadcast %6 : vector<4x4x1xf32> to vector<4x4x32xf32>
    %8 = arith.subf %0, %7 : vector<4x4x32xf32>
    %9 = arith.mulf %8, %8 : vector<4x4x32xf32>
    %cst_7 = arith.constant dense<0.000000e+00> : vector<4x4xf32>
    %10 = vector.multi_reduction <add>, %9, %cst_7 [2] : vector<4x4x32xf32> to vector<4x4xf32>
    %11 = vector.shape_cast %10 : vector<4x4xf32> to vector<4x4x1xf32>
    %cst_8 = arith.constant 3.200000e+01 : f32
    %12 = vector.broadcast %cst_8 : f32 to vector<4x4x1xf32>
    %13 = arith.divf %11, %12 : vector<4x4x1xf32>
    %cst_9 = arith.constant 9.99999997E-7 : f32
    %14 = vector.broadcast %cst_9 : f32 to vector<4x4x1xf32>
    %15 = arith.addf %13, %14 : vector<4x4x1xf32>
    %16 = math.rsqrt %15 : vector<4x4x1xf32>
    %17 = vector.broadcast %16 : vector<4x4x1xf32> to vector<4x4x32xf32>
    %18 = arith.mulf %8, %17 : vector<4x4x32xf32>
    %19 = vector.shape_cast %1 : vector<1x32xf32> to vector<1x1x32xf32>
    %20 = vector.broadcast %19 : vector<1x1x32xf32> to vector<4x4x32xf32>
    %21 = arith.mulf %18, %20 : vector<4x4x32xf32>
    %22 = vector.shape_cast %2 : vector<1x32xf32> to vector<1x1x32xf32>
    %23 = vector.broadcast %22 : vector<1x1x32xf32> to vector<4x4x32xf32>
    %24 = arith.addf %21, %23 : vector<4x4x32xf32>
    %25 = vector.shape_cast %24 : vector<4x4x32xf32> to vector<16x32xf32>
    %c0_10 = arith.constant 0 : index
    %c0_11 = arith.constant 0 : index
    %26 = vector.load %arg4[%c0_10, %c0_11] : memref<32x96xf32, #tpu.memory_space<vmem>>, vector<32x96xf32>
    %27 = arith.truncf %25 : vector<16x32xf32> to vector<16x32xbf16>
    %28 = arith.truncf %26 : vector<32x96xf32> to vector<32x96xbf16>
    %cst_12 = arith.constant dense<0.000000e+00> : vector<16x96xf32>
    %29 = tpu.matmul %27, %28, %cst_12 {dimension_numbers = #tpu.dot_dimension_numbers<[1], [0], [0], [1], [0, 0, 1, 1], [], []>} : vector<16x32xbf16>, vector<32x96xbf16>, vector<16x96xf32> -> vector<16x96xf32>
    %c0_13 = arith.constant 0 : index
    %c0_14 = arith.constant 0 : index
    %30 = vector.load %arg5[%c0_13, %c0_14] : memref<1x96xf32, #tpu.memory_space<vmem>>, vector<1x96xf32>
    %31 = vector.broadcast %30 : vector<1x96xf32> to vector<16x96xf32>
    %32 = arith.addf %29, %31 : vector<16x96xf32>
    %33 = vector.shape_cast %32 : vector<16x96xf32> to vector<4x4x96xf32>
    %34 = vector.extract_strided_slice %33 {offsets = [0, 0, 0], sizes = [4, 4, 32], strides = [1, 1, 1]} : vector<4x4x96xf32> to vector<4x4x32xf32>
    %35 = vector.extract_strided_slice %33 {offsets = [0, 0, 32], sizes = [4, 4, 32], strides = [1, 1, 1]} : vector<4x4x96xf32> to vector<4x4x32xf32>
    %36 = vector.extract_strided_slice %33 {offsets = [0, 0, 64], sizes = [4, 4, 32], strides = [1, 1, 1]} : vector<4x4x96xf32> to vector<4x4x32xf32>
    %37 = vector.extract_strided_slice %34 {offsets = [0, 0, 0], sizes = [4, 4, 16], strides = [1, 1, 1]} : vector<4x4x32xf32> to vector<4x4x16xf32>
    %38 = vector.extract_strided_slice %35 {offsets = [0, 0, 0], sizes = [4, 4, 16], strides = [1, 1, 1]} : vector<4x4x32xf32> to vector<4x4x16xf32>
    %39 = vector.extract_strided_slice %36 {offsets = [0, 0, 0], sizes = [4, 4, 16], strides = [1, 1, 1]} : vector<4x4x32xf32> to vector<4x4x16xf32>
    %40 = arith.truncf %37 : vector<4x4x16xf32> to vector<4x4x16xbf16>
    %41 = arith.truncf %38 : vector<4x4x16xf32> to vector<4x4x16xbf16>
    "tpu.trace_start"() <{level = 10 : i32, message = "bqd,bkd->bqk"}> : () -> ()
    %cst_15 = arith.constant dense<0.000000e+00> : vector<4x4x4xf32>
    %42 = tpu.matmul %40, %41, %cst_15 {dimension_numbers = #tpu.dot_dimension_numbers<[2], [2], [1], [1], [0, 0, 0, 1, 1, 1], [0], [0]>} : vector<4x4x16xbf16>, vector<4x4x16xbf16>, vector<4x4x4xf32> -> vector<4x4x4xf32>
    "tpu.trace_stop"() : () -> ()
    %cst_16 = arith.constant 2.500000e-01 : f32
    %43 = vector.broadcast %cst_16 : f32 to vector<4x4x4xf32>
    %44 = arith.mulf %42, %43 : vector<4x4x4xf32>
    %cst_17 = arith.constant dense<0xFF800000> : vector<4x4xf32>
    %45 = vector.multi_reduction <maximumf>, %44, %cst_17 [2] : vector<4x4x4xf32> to vector<4x4xf32>
    %46 = vector.shape_cast %45 : vector<4x4xf32> to vector<4x4x1xf32>
    %47 = vector.broadcast %46 : vector<4x4x1xf32> to vector<4x4x4xf32>
    %48 = arith.subf %44, %47 : vector<4x4x4xf32>
    %49 = math.exp %48 : vector<4x4x4xf32>
    %cst_18 = arith.constant dense<0.000000e+00> : vector<4x4xf32>
    %50 = vector.multi_reduction <add>, %49, %cst_18 [2] : vector<4x4x4xf32> to vector<4x4xf32>
    %51 = vector.shape_cast %50 : vector<4x4xf32> to vector<4x4x1xf32>
    %52 = tpu.reciprocal %51 {approx = true} : vector<4x4x1xf32> -> vector<4x4x1xf32>
    %53 = vector.broadcast %52 : vector<4x4x1xf32> to vector<4x4x4xf32>
    %54 = arith.mulf %49, %53 : vector<4x4x4xf32>
    %55 = arith.truncf %54 : vector<4x4x4xf32> to vector<4x4x4xbf16>
    %56 = arith.truncf %39 : vector<4x4x16xf32> to vector<4x4x16xbf16>
    "tpu.trace_start"() <{level = 10 : i32, message = "bqk,bkd->bqd"}> : () -> ()
    %cst_19 = arith.constant dense<0.000000e+00> : vector<4x4x16xf32>
    %57 = tpu.matmul %55, %56, %cst_19 {dimension_numbers = #tpu.dot_dimension_numbers<[2], [1], [1], [2], [0, 0, 0, 1, 1, 2], [0], [0]>} : vector<4x4x4xbf16>, vector<4x4x16xbf16>, vector<4x4x16xf32> -> vector<4x4x16xf32>
    "tpu.trace_stop"() : () -> ()
    %58 = vector.extract_strided_slice %34 {offsets = [0, 0, 16], sizes = [4, 4, 16], strides = [1, 1, 1]} : vector<4x4x32xf32> to vector<4x4x16xf32>
    %59 = vector.extract_strided_slice %35 {offsets = [0, 0, 16], sizes = [4, 4, 16], strides = [1, 1, 1]} : vector<4x4x32xf32> to vector<4x4x16xf32>
    %60 = vector.extract_strided_slice %36 {offsets = [0, 0, 16], sizes = [4, 4, 16], strides = [1, 1, 1]} : vector<4x4x32xf32> to vector<4x4x16xf32>
    %61 = arith.truncf %58 : vector<4x4x16xf32> to vector<4x4x16xbf16>
    %62 = arith.truncf %59 : vector<4x4x16xf32> to vector<4x4x16xbf16>
    "tpu.trace_start"() <{level = 10 : i32, message = "bqd,bkd->bqk"}> : () -> ()
    %cst_20 = arith.constant dense<0.000000e+00> : vector<4x4x4xf32>
    %63 = tpu.matmul %61, %62, %cst_20 {dimension_numbers = #tpu.dot_dimension_numbers<[2], [2], [1], [1], [0, 0, 0, 1, 1, 1], [0], [0]>} : vector<4x4x16xbf16>, vector<4x4x16xbf16>, vector<4x4x4xf32> -> vector<4x4x4xf32>
    "tpu.trace_stop"() : () -> ()
    %cst_21 = arith.constant 2.500000e-01 : f32
    %64 = vector.broadcast %cst_21 : f32 to vector<4x4x4xf32>
    %65 = arith.mulf %63, %64 : vector<4x4x4xf32>
    %cst_22 = arith.constant dense<0xFF800000> : vector<4x4xf32>
    %66 = vector.multi_reduction <maximumf>, %65, %cst_22 [2] : vector<4x4x4xf32> to vector<4x4xf32>
    %67 = vector.shape_cast %66 : vector<4x4xf32> to vector<4x4x1xf32>
    %68 = vector.broadcast %67 : vector<4x4x1xf32> to vector<4x4x4xf32>
    %69 = arith.subf %65, %68 : vector<4x4x4xf32>
    %70 = math.exp %69 : vector<4x4x4xf32>
    %cst_23 = arith.constant dense<0.000000e+00> : vector<4x4xf32>
    %71 = vector.multi_reduction <add>, %70, %cst_23 [2] : vector<4x4x4xf32> to vector<4x4xf32>
    %72 = vector.shape_cast %71 : vector<4x4xf32> to vector<4x4x1xf32>
    %73 = tpu.reciprocal %72 {approx = true} : vector<4x4x1xf32> -> vector<4x4x1xf32>
    %74 = vector.broadcast %73 : vector<4x4x1xf32> to vector<4x4x4xf32>
    %75 = arith.mulf %70, %74 : vector<4x4x4xf32>
    %76 = arith.truncf %75 : vector<4x4x4xf32> to vector<4x4x4xbf16>
    %77 = arith.truncf %60 : vector<4x4x16xf32> to vector<4x4x16xbf16>
    "tpu.trace_start"() <{level = 10 : i32, message = "bqk,bkd->bqd"}> : () -> ()
    %cst_24 = arith.constant dense<0.000000e+00> : vector<4x4x16xf32>
    %78 = tpu.matmul %76, %77, %cst_24 {dimension_numbers = #tpu.dot_dimension_numbers<[2], [1], [1], [2], [0, 0, 0, 1, 1, 2], [0], [0]>} : vector<4x4x4xbf16>, vector<4x4x16xbf16>, vector<4x4x16xf32> -> vector<4x4x16xf32>
    "tpu.trace_stop"() : () -> ()
    %79 = tpu.concatenate %57, %78 in 2 : vector<4x4x16xf32>, vector<4x4x16xf32> -> vector<4x4x32xf32>
    %80 = vector.shape_cast %79 : vector<4x4x32xf32> to vector<16x32xf32>
    %c0_25 = arith.constant 0 : index
    %c0_26 = arith.constant 0 : index
    %81 = vector.load %arg6[%c0_25, %c0_26] : memref<32x32xf32, #tpu.memory_space<vmem>>, vector<32x32xf32>
    %82 = arith.truncf %80 : vector<16x32xf32> to vector<16x32xbf16>
    %83 = arith.truncf %81 : vector<32x32xf32> to vector<32x32xbf16>
    %cst_27 = arith.constant dense<0.000000e+00> : vector<16x32xf32>
    %84 = tpu.matmul %82, %83, %cst_27 {dimension_numbers = #tpu.dot_dimension_numbers<[1], [0], [0], [1], [0, 0, 1, 1], [], []>} : vector<16x32xbf16>, vector<32x32xbf16>, vector<16x32xf32> -> vector<16x32xf32>
    %c0_28 = arith.constant 0 : index
    %c0_29 = arith.constant 0 : index
    %85 = vector.load %arg7[%c0_28, %c0_29] : memref<1x32xf32, #tpu.memory_space<vmem>>, vector<1x32xf32>
    %86 = vector.broadcast %85 : vector<1x32xf32> to vector<16x32xf32>
    %87 = arith.addf %84, %86 : vector<16x32xf32>
    %88 = vector.shape_cast %0 : vector<4x4x32xf32> to vector<16x32xf32>
    %89 = arith.addf %88, %87 : vector<16x32xf32>
    %c0_30 = arith.constant 0 : index
    %c0_31 = arith.constant 0 : index
    %90 = vector.load %arg8[%c0_30, %c0_31] : memref<1x32xf32, #tpu.memory_space<vmem>>, vector<1x32xf32>
    %c0_32 = arith.constant 0 : index
    %c0_33 = arith.constant 0 : index
    %91 = vector.load %arg9[%c0_32, %c0_33] : memref<1x32xf32, #tpu.memory_space<vmem>>, vector<1x32xf32>
    %cst_34 = arith.constant dense<0.000000e+00> : vector<16xf32>
    %92 = vector.multi_reduction <add>, %89, %cst_34 [1] : vector<16x32xf32> to vector<16xf32>
    %93 = vector.shape_cast %92 : vector<16xf32> to vector<16x1xf32>
    %cst_35 = arith.constant 3.200000e+01 : f32
    %94 = vector.broadcast %cst_35 : f32 to vector<16x1xf32>
    %95 = arith.divf %93, %94 : vector<16x1xf32>
    %96 = vector.broadcast %95 : vector<16x1xf32> to vector<16x32xf32>
    %97 = arith.subf %89, %96 : vector<16x32xf32>
    %98 = arith.mulf %97, %97 : vector<16x32xf32>
    %cst_36 = arith.constant dense<0.000000e+00> : vector<16xf32>
    %99 = vector.multi_reduction <add>, %98, %cst_36 [1] : vector<16x32xf32> to vector<16xf32>
    %100 = vector.shape_cast %99 : vector<16xf32> to vector<16x1xf32>
    %cst_37 = arith.constant 3.200000e+01 : f32
    %101 = vector.broadcast %cst_37 : f32 to vector<16x1xf32>
    %102 = arith.divf %100, %101 : vector<16x1xf32>
    %cst_38 = arith.constant 9.99999997E-7 : f32
    %103 = vector.broadcast %cst_38 : f32 to vector<16x1xf32>
    %104 = arith.addf %102, %103 : vector<16x1xf32>
    %105 = math.rsqrt %104 : vector<16x1xf32>
    %106 = vector.broadcast %105 : vector<16x1xf32> to vector<16x32xf32>
    %107 = arith.mulf %97, %106 : vector<16x32xf32>
    %108 = vector.broadcast %90 : vector<1x32xf32> to vector<16x32xf32>
    %109 = arith.mulf %107, %108 : vector<16x32xf32>
    %110 = vector.broadcast %91 : vector<1x32xf32> to vector<16x32xf32>
    %111 = arith.addf %109, %110 : vector<16x32xf32>
    %c0_39 = arith.constant 0 : index
    %c0_40 = arith.constant 0 : index
    %112 = vector.load %arg10[%c0_39, %c0_40] : memref<32x128xf32, #tpu.memory_space<vmem>>, vector<32x128xf32>
    %113 = arith.truncf %111 : vector<16x32xf32> to vector<16x32xbf16>
    %114 = arith.truncf %112 : vector<32x128xf32> to vector<32x128xbf16>
    %cst_41 = arith.constant dense<0.000000e+00> : vector<16x128xf32>
    %115 = tpu.matmul %113, %114, %cst_41 {dimension_numbers = #tpu.dot_dimension_numbers<[1], [0], [0], [1], [0, 0, 1, 1], [], []>} : vector<16x32xbf16>, vector<32x128xbf16>, vector<16x128xf32> -> vector<16x128xf32>
    %c0_42 = arith.constant 0 : index
    %c0_43 = arith.constant 0 : index
    %116 = vector.load %arg11[%c0_42, %c0_43] : memref<1x128xf32, #tpu.memory_space<vmem>>, vector<1x128xf32>
    %117 = vector.broadcast %116 : vector<1x128xf32> to vector<16x128xf32>
    %118 = arith.addf %115, %117 : vector<16x128xf32>
    %cst_44 = arith.constant 5.000000e-01 : f32
    %119 = vector.broadcast %cst_44 : f32 to vector<16x128xf32>
    %120 = arith.mulf %119, %118 : vector<16x128xf32>
    %cst_45 = arith.constant 0.707106769 : f32
    %121 = vector.broadcast %cst_45 : f32 to vector<16x128xf32>
    %122 = arith.mulf %118, %121 : vector<16x128xf32>
    %cst_46 = arith.constant 0.000000e+00 : f32
    %123 = vector.broadcast %cst_46 : f32 to vector<16x128xf32>
    %124 = arith.cmpf oge, %122, %123 : vector<16x128xf32>
    %cst_47 = arith.constant 1.000000e+00 : f32
    %cst_48 = arith.constant -1.000000e+00 : f32
    %125 = vector.broadcast %cst_47 : f32 to vector<16x128xf32>
    %126 = vector.broadcast %cst_48 : f32 to vector<16x128xf32>
    %127 = arith.select %124, %125, %126 : vector<16x128xi1>, vector<16x128xf32>
    %128 = math.absf %122 : vector<16x128xf32>
    %cst_49 = arith.constant 0.327591091 : f32
    %129 = vector.broadcast %cst_49 : f32 to vector<16x128xf32>
    %130 = arith.mulf %129, %128 : vector<16x128xf32>
    %cst_50 = arith.constant 1.000000e+00 : f32
    %131 = vector.broadcast %cst_50 : f32 to vector<16x128xf32>
    %132 = arith.addf %131, %130 : vector<16x128xf32>
    %cst_51 = arith.constant 1.000000e+00 : f32
    %133 = vector.broadcast %cst_51 : f32 to vector<16x128xf32>
    %134 = arith.divf %133, %132 : vector<16x128xf32>
    %cst_52 = arith.constant 1.06140542 : f32
    %135 = vector.broadcast %cst_52 : f32 to vector<16x128xf32>
    %136 = arith.mulf %135, %134 : vector<16x128xf32>
    %cst_53 = arith.constant -1.45315206 : f32
    %137 = vector.broadcast %cst_53 : f32 to vector<16x128xf32>
    %138 = arith.addf %136, %137 : vector<16x128xf32>
    %139 = arith.mulf %138, %134 : vector<16x128xf32>
    %cst_54 = arith.constant 1.42141378 : f32
    %140 = vector.broadcast %cst_54 : f32 to vector<16x128xf32>
    %141 = arith.addf %139, %140 : vector<16x128xf32>
    %142 = arith.mulf %141, %134 : vector<16x128xf32>
    %cst_55 = arith.constant -0.284496725 : f32
    %143 = vector.broadcast %cst_55 : f32 to vector<16x128xf32>
    %144 = arith.addf %142, %143 : vector<16x128xf32>
    %145 = arith.mulf %144, %134 : vector<16x128xf32>
    %cst_56 = arith.constant 0.254829586 : f32
    %146 = vector.broadcast %cst_56 : f32 to vector<16x128xf32>
    %147 = arith.addf %145, %146 : vector<16x128xf32>
    %148 = arith.mulf %147, %134 : vector<16x128xf32>
    %149 = arith.mulf %128, %128 : vector<16x128xf32>
    %cst_57 = arith.constant 0.000000e+00 : f32
    %150 = vector.broadcast %cst_57 : f32 to vector<16x128xf32>
    %151 = arith.subf %150, %149 : vector<16x128xf32>
    %152 = math.exp %151 : vector<16x128xf32>
    %153 = arith.mulf %148, %152 : vector<16x128xf32>
    %cst_58 = arith.constant 1.000000e+00 : f32
    %154 = vector.broadcast %cst_58 : f32 to vector<16x128xf32>
    %155 = arith.subf %154, %153 : vector<16x128xf32>
    %156 = arith.mulf %127, %155 : vector<16x128xf32>
    %cst_59 = arith.constant 1.000000e+00 : f32
    %157 = vector.broadcast %cst_59 : f32 to vector<16x128xf32>
    %158 = arith.addf %157, %156 : vector<16x128xf32>
    %159 = arith.mulf %120, %158 : vector<16x128xf32>
    %c0_60 = arith.constant 0 : index
    %c0_61 = arith.constant 0 : index
    %160 = vector.load %arg12[%c0_60, %c0_61] : memref<128x32xf32, #tpu.memory_space<vmem>>, vector<128x32xf32>
    %161 = arith.truncf %159 : vector<16x128xf32> to vector<16x128xbf16>
    %162 = arith.truncf %160 : vector<128x32xf32> to vector<128x32xbf16>
    %cst_62 = arith.constant dense<0.000000e+00> : vector<16x32xf32>
    %163 = tpu.matmul %161, %162, %cst_62 {dimension_numbers = #tpu.dot_dimension_numbers<[1], [0], [0], [1], [0, 0, 1, 1], [], []>} : vector<16x128xbf16>, vector<128x32xbf16>, vector<16x32xf32> -> vector<16x32xf32>
    %c0_63 = arith.constant 0 : index
    %c0_64 = arith.constant 0 : index
    %164 = vector.load %arg13[%c0_63, %c0_64] : memref<1x32xf32, #tpu.memory_space<vmem>>, vector<1x32xf32>
    %165 = vector.broadcast %164 : vector<1x32xf32> to vector<16x32xf32>
    %166 = arith.addf %163, %165 : vector<16x32xf32>
    %167 = arith.addf %89, %166 : vector<16x32xf32>
    %168 = vector.shape_cast %167 : vector<16x32xf32> to vector<4x4x32xf32>
    %c0_65 = arith.constant 0 : index
    %c0_66 = arith.constant 0 : index
    %c0_67 = arith.constant 0 : index
    %169 = vector.load %arg14[%c0_65, %c0_66, %c0_67] : memref<4x4x32xf32, #tpu.memory_space<vmem>>, vector<4x4x32xf32>
    tpu.vector_store %arg14[%c0_65, %c0_66, %c0_67], %168 {strides = array<i32>} : memref<4x4x32xf32, #tpu.memory_space<vmem>>, vector<4x4x32xf32>,
    return
  }
  func.func @transform_0(%arg0: i32) -> (i32, i32, i32) {
    %c0_i32 = arith.constant 0 : i32
    %c0_i32_0 = arith.constant 0 : i32
    %c0_i32_1 = arith.constant 0 : i32
    %c0_i32_2 = arith.constant 0 : i32
    return %c0_i32, %c0_i32_0, %c0_i32_1 : i32, i32, i32
  }
  func.func @transform_1(%arg0: i32) -> (i32, i32) {
    %c0_i32 = arith.constant 0 : i32
    %c0_i32_0 = arith.constant 0 : i32
    %c0_i32_1 = arith.constant 0 : i32
    return %c0_i32, %c0_i32_0 : i32, i32
  }
  func.func @transform_2(%arg0: i32) -> (i32, i32) {
    %c0_i32 = arith.constant 0 : i32
    %c0_i32_0 = arith.constant 0 : i32
    %c0_i32_1 = arith.constant 0 : i32
    return %c0_i32, %c0_i32_0 : i32, i32
  }
  func.func @transform_3(%arg0: i32) -> (i32, i32) {
    %c0_i32 = arith.constant 0 : i32
    %c0_i32_0 = arith.constant 0 : i32
    %c0_i32_1 = arith.constant 0 : i32
    return %c0_i32, %c0_i32_0 : i32, i32
  }
  func.func @transform_4(%arg0: i32) -> (i32, i32) {
    %c0_i32 = arith.constant 0 : i32
    %c0_i32_0 = arith.constant 0 : i32
    %c0_i32_1 = arith.constant 0 : i32
    return %c0_i32, %c0_i32_0 : i32, i32
  }
  func.func @transform_5(%arg0: i32) -> (i32, i32) {
    %c0_i32 = arith.constant 0 : i32
    %c0_i32_0 = arith.constant 0 : i32
    %c0_i32_1 = arith.constant 0 : i32
    return %c0_i32, %c0_i32_0 : i32, i32
  }
  func.func @transform_6(%arg0: i32) -> (i32, i32) {
    %c0_i32 = arith.constant 0 : i32
    %c0_i32_0 = arith.constant 0 : i32
    %c0_i32_1 = arith.constant 0 : i32
    return %c0_i32, %c0_i32_0 : i32, i32
  }
  func.func @transform_7(%arg0: i32) -> (i32, i32) {
    %c0_i32 = arith.constant 0 : i32
    %c0_i32_0 = arith.constant 0 : i32
    %c0_i32_1 = arith.constant 0 : i32
    return %c0_i32, %c0_i32_0 : i32, i32
  }
  func.func @transform_8(%arg0: i32) -> (i32, i32) {
    %c0_i32 = arith.constant 0 : i32
    %c0_i32_0 = arith.constant 0 : i32
    %c0_i32_1 = arith.constant 0 : i32
    return %c0_i32, %c0_i32_0 : i32, i32
  }
  func.func @transform_9(%arg0: i32) -> (i32, i32) {
    %c0_i32 = arith.constant 0 : i32
    %c0_i32_0 = arith.constant 0 : i32
    %c0_i32_1 = arith.constant 0 : i32
    return %c0_i32, %c0_i32_0 : i32, i32
  }
  func.func @transform_10(%arg0: i32) -> (i32, i32) {
    %c0_i32 = arith.constant 0 : i32
    %c0_i32_0 = arith.constant 0 : i32
    %c0_i32_1 = arith.constant 0 : i32
    return %c0_i32, %c0_i32_0 : i32, i32
  }
  func.func @transform_11(%arg0: i32) -> (i32, i32) {
    %c0_i32 = arith.constant 0 : i32
    %c0_i32_0 = arith.constant 0 : i32
    %c0_i32_1 = arith.constant 0 : i32
    return %c0_i32, %c0_i32_0 : i32, i32
  }
  func.func @transform_12(%arg0: i32) -> (i32, i32) {
    %c0_i32 = arith.constant 0 : i32
    %c0_i32_0 = arith.constant 0 : i32
    %c0_i32_1 = arith.constant 0 : i32
    return %c0_i32, %c0_i32_0 : i32, i32
  }
  func.func @transform_13(%arg0: i32) -> (i32, i32, i32) {
    %c0_i32 = arith.constant 0 : i32
    %c0_i32_0 = arith.constant 0 : i32
    %c0_i32_1 = arith.constant 0 : i32
    %c0_i32_2 = arith.constant 0 : i32
    return %c0_i32, %c0_i32_0, %c0_i32_1 : i32, i32, i32
  }
}

module attributes {stable_mosaic.version = 11 : i64} {
  func.func @_channel_kernel(%arg0: i32, %arg1: memref<4x4x32xf32, #tpu.memory_space<vmem>>, %arg2: memref<1x32xf32, #tpu.memory_space<vmem>>, %arg3: memref<1x32xf32, #tpu.memory_space<vmem>>, %arg4: memref<32x16xf32, #tpu.memory_space<vmem>>, %arg5: memref<1x16xf32, #tpu.memory_space<vmem>>, %arg6: memref<32x8xf32, #tpu.memory_space<vmem>>, %arg7: memref<1x8xf32, #tpu.memory_space<vmem>>, %arg8: memref<16x8xf32, #tpu.memory_space<vmem>>, %arg9: memref<1x8xf32, #tpu.memory_space<vmem>>, %arg10: memref<16x32xf32, #tpu.memory_space<vmem>>, %arg11: memref<1x32xf32, #tpu.memory_space<vmem>>, %arg12: memref<4x4x32xf32, #tpu.memory_space<vmem>>) attributes {dimension_semantics = [#tpu.dimension_semantics<arbitrary>], iteration_bounds = array<i64: 1>, scalar_prefetch = 0 : i64, scratch_operands = 0 : i64, tpu.core_type = #tpu.core_type<tc>, window_params = [{pipeline_mode = #tpu.pipeline_mode<synchronous>, transform_indices = @transform_0, window_bounds = array<i64: 4, 4, 32>}, {pipeline_mode = #tpu.pipeline_mode<synchronous>, transform_indices = @transform_1, window_bounds = array<i64: 1, 32>}, {pipeline_mode = #tpu.pipeline_mode<synchronous>, transform_indices = @transform_2, window_bounds = array<i64: 1, 32>}, {pipeline_mode = #tpu.pipeline_mode<synchronous>, transform_indices = @transform_3, window_bounds = array<i64: 32, 16>}, {pipeline_mode = #tpu.pipeline_mode<synchronous>, transform_indices = @transform_4, window_bounds = array<i64: 1, 16>}, {pipeline_mode = #tpu.pipeline_mode<synchronous>, transform_indices = @transform_5, window_bounds = array<i64: 32, 8>}, {pipeline_mode = #tpu.pipeline_mode<synchronous>, transform_indices = @transform_6, window_bounds = array<i64: 1, 8>}, {pipeline_mode = #tpu.pipeline_mode<synchronous>, transform_indices = @transform_7, window_bounds = array<i64: 16, 8>}, {pipeline_mode = #tpu.pipeline_mode<synchronous>, transform_indices = @transform_8, window_bounds = array<i64: 1, 8>}, {pipeline_mode = #tpu.pipeline_mode<synchronous>, transform_indices = @transform_9, window_bounds = array<i64: 16, 32>}, {pipeline_mode = #tpu.pipeline_mode<synchronous>, transform_indices = @transform_10, window_bounds = array<i64: 1, 32>}, {pipeline_mode = #tpu.pipeline_mode<synchronous>, transform_indices = @transform_11, window_bounds = array<i64: 4, 4, 32>}]} {
    %c0 = arith.constant 0 : index
    %c0_0 = arith.constant 0 : index
    %c0_1 = arith.constant 0 : index
    %0 = vector.load %arg1[%c0, %c0_0, %c0_1] : memref<4x4x32xf32, #tpu.memory_space<vmem>>, vector<4x4x32xf32>
    %c0_2 = arith.constant 0 : index
    %c0_3 = arith.constant 0 : index
    %1 = vector.load %arg2[%c0_2, %c0_3] : memref<1x32xf32, #tpu.memory_space<vmem>>, vector<1x32xf32>
    %c0_4 = arith.constant 0 : index
    %c0_5 = arith.constant 0 : index
    %2 = vector.load %arg3[%c0_4, %c0_5] : memref<1x32xf32, #tpu.memory_space<vmem>>, vector<1x32xf32>
    %cst = arith.constant dense<0.000000e+00> : vector<4x4xf32>
    %3 = vector.multi_reduction <add>, %0, %cst [2] : vector<4x4x32xf32> to vector<4x4xf32>
    %4 = vector.shape_cast %3 : vector<4x4xf32> to vector<4x4x1xf32>
    %cst_6 = arith.constant 3.200000e+01 : f32
    %5 = vector.broadcast %cst_6 : f32 to vector<4x4x1xf32>
    %6 = arith.divf %4, %5 : vector<4x4x1xf32>
    %7 = vector.broadcast %6 : vector<4x4x1xf32> to vector<4x4x32xf32>
    %8 = arith.subf %0, %7 : vector<4x4x32xf32>
    %9 = arith.mulf %8, %8 : vector<4x4x32xf32>
    %cst_7 = arith.constant dense<0.000000e+00> : vector<4x4xf32>
    %10 = vector.multi_reduction <add>, %9, %cst_7 [2] : vector<4x4x32xf32> to vector<4x4xf32>
    %11 = vector.shape_cast %10 : vector<4x4xf32> to vector<4x4x1xf32>
    %cst_8 = arith.constant 3.200000e+01 : f32
    %12 = vector.broadcast %cst_8 : f32 to vector<4x4x1xf32>
    %13 = arith.divf %11, %12 : vector<4x4x1xf32>
    %cst_9 = arith.constant 9.99999997E-7 : f32
    %14 = vector.broadcast %cst_9 : f32 to vector<4x4x1xf32>
    %15 = arith.addf %13, %14 : vector<4x4x1xf32>
    %16 = math.rsqrt %15 : vector<4x4x1xf32>
    %17 = vector.broadcast %16 : vector<4x4x1xf32> to vector<4x4x32xf32>
    %18 = arith.mulf %8, %17 : vector<4x4x32xf32>
    %19 = vector.shape_cast %1 : vector<1x32xf32> to vector<1x1x32xf32>
    %20 = vector.broadcast %19 : vector<1x1x32xf32> to vector<4x4x32xf32>
    %21 = arith.mulf %18, %20 : vector<4x4x32xf32>
    %22 = vector.shape_cast %2 : vector<1x32xf32> to vector<1x1x32xf32>
    %23 = vector.broadcast %22 : vector<1x1x32xf32> to vector<4x4x32xf32>
    %24 = arith.addf %21, %23 : vector<4x4x32xf32>
    %25 = vector.shape_cast %24 : vector<4x4x32xf32> to vector<16x32xf32>
    %c0_10 = arith.constant 0 : index
    %c0_11 = arith.constant 0 : index
    %26 = vector.load %arg4[%c0_10, %c0_11] : memref<32x16xf32, #tpu.memory_space<vmem>>, vector<32x16xf32>
    %27 = arith.truncf %25 : vector<16x32xf32> to vector<16x32xbf16>
    %28 = arith.truncf %26 : vector<32x16xf32> to vector<32x16xbf16>
    %cst_12 = arith.constant dense<0.000000e+00> : vector<16x16xf32>
    %29 = tpu.matmul %27, %28, %cst_12 {dimension_numbers = #tpu.dot_dimension_numbers<[1], [0], [0], [1], [0, 0, 1, 1], [], []>} : vector<16x32xbf16>, vector<32x16xbf16>, vector<16x16xf32> -> vector<16x16xf32>
    %c0_13 = arith.constant 0 : index
    %c0_14 = arith.constant 0 : index
    %30 = vector.load %arg5[%c0_13, %c0_14] : memref<1x16xf32, #tpu.memory_space<vmem>>, vector<1x16xf32>
    %31 = vector.broadcast %30 : vector<1x16xf32> to vector<16x16xf32>
    %32 = arith.addf %29, %31 : vector<16x16xf32>
    %33 = vector.shape_cast %32 : vector<16x16xf32> to vector<4x4x16xf32>
    %34 = vector.extract_strided_slice %33 {offsets = [0, 0, 0], sizes = [1, 4, 16], strides = [1, 1, 1]} : vector<4x4x16xf32> to vector<1x4x16xf32>
    %35 = vector.shape_cast %34 : vector<1x4x16xf32> to vector<4x16xf32>
    %36 = vector.shape_cast %35 : vector<4x16xf32> to vector<1x4x16xf32>
    %37 = vector.extract_strided_slice %33 {offsets = [1, 0, 0], sizes = [1, 4, 16], strides = [1, 1, 1]} : vector<4x4x16xf32> to vector<1x4x16xf32>
    %38 = vector.shape_cast %37 : vector<1x4x16xf32> to vector<4x16xf32>
    %39 = vector.shape_cast %38 : vector<4x16xf32> to vector<1x4x16xf32>
    %40 = tpu.concatenate %36, %39 in 2 : vector<1x4x16xf32>, vector<1x4x16xf32> -> vector<1x4x32xf32>
    %41 = vector.extract_strided_slice %33 {offsets = [2, 0, 0], sizes = [1, 4, 16], strides = [1, 1, 1]} : vector<4x4x16xf32> to vector<1x4x16xf32>
    %42 = vector.shape_cast %41 : vector<1x4x16xf32> to vector<4x16xf32>
    %43 = vector.shape_cast %42 : vector<4x16xf32> to vector<1x4x16xf32>
    %44 = vector.extract_strided_slice %33 {offsets = [3, 0, 0], sizes = [1, 4, 16], strides = [1, 1, 1]} : vector<4x4x16xf32> to vector<1x4x16xf32>
    %45 = vector.shape_cast %44 : vector<1x4x16xf32> to vector<4x16xf32>
    %46 = vector.shape_cast %45 : vector<4x16xf32> to vector<1x4x16xf32>
    %47 = tpu.concatenate %43, %46 in 2 : vector<1x4x16xf32>, vector<1x4x16xf32> -> vector<1x4x32xf32>
    %48 = tpu.concatenate %40, %47 in 0 : vector<1x4x32xf32>, vector<1x4x32xf32> -> vector<2x4x32xf32>
    %49 = vector.shape_cast %48 : vector<2x4x32xf32> to vector<8x32xf32>
    %c0_15 = arith.constant 0 : index
    %c0_16 = arith.constant 0 : index
    %50 = vector.load %arg6[%c0_15, %c0_16] : memref<32x8xf32, #tpu.memory_space<vmem>>, vector<32x8xf32>
    %51 = arith.truncf %49 : vector<8x32xf32> to vector<8x32xbf16>
    %52 = arith.truncf %50 : vector<32x8xf32> to vector<32x8xbf16>
    %cst_17 = arith.constant dense<0.000000e+00> : vector<8x8xf32>
    %53 = tpu.matmul %51, %52, %cst_17 {dimension_numbers = #tpu.dot_dimension_numbers<[1], [0], [0], [1], [0, 0, 1, 1], [], []>} : vector<8x32xbf16>, vector<32x8xbf16>, vector<8x8xf32> -> vector<8x8xf32>
    %c0_18 = arith.constant 0 : index
    %c0_19 = arith.constant 0 : index
    %54 = vector.load %arg7[%c0_18, %c0_19] : memref<1x8xf32, #tpu.memory_space<vmem>>, vector<1x8xf32>
    %55 = vector.broadcast %54 : vector<1x8xf32> to vector<8x8xf32>
    %56 = arith.addf %53, %55 : vector<8x8xf32>
    %57 = vector.shape_cast %56 : vector<8x8xf32> to vector<2x4x8xf32>
    %58 = vector.shape_cast %33 : vector<4x4x16xf32> to vector<16x16xf32>
    %c0_20 = arith.constant 0 : index
    %c0_21 = arith.constant 0 : index
    %59 = vector.load %arg8[%c0_20, %c0_21] : memref<16x8xf32, #tpu.memory_space<vmem>>, vector<16x8xf32>
    %60 = arith.truncf %58 : vector<16x16xf32> to vector<16x16xbf16>
    %61 = arith.truncf %59 : vector<16x8xf32> to vector<16x8xbf16>
    %cst_22 = arith.constant dense<0.000000e+00> : vector<16x8xf32>
    %62 = tpu.matmul %60, %61, %cst_22 {dimension_numbers = #tpu.dot_dimension_numbers<[1], [0], [0], [1], [0, 0, 1, 1], [], []>} : vector<16x16xbf16>, vector<16x8xbf16>, vector<16x8xf32> -> vector<16x8xf32>
    %c0_23 = arith.constant 0 : index
    %c0_24 = arith.constant 0 : index
    %63 = vector.load %arg9[%c0_23, %c0_24] : memref<1x8xf32, #tpu.memory_space<vmem>>, vector<1x8xf32>
    %64 = vector.broadcast %63 : vector<1x8xf32> to vector<16x8xf32>
    %65 = arith.addf %62, %64 : vector<16x8xf32>
    %66 = vector.shape_cast %65 : vector<16x8xf32> to vector<4x4x8xf32>
    %67 = vector.extract_strided_slice %57 {offsets = [0, 0, 0], sizes = [1, 4, 8], strides = [1, 1, 1]} : vector<2x4x8xf32> to vector<1x4x8xf32>
    %68 = vector.shape_cast %67 : vector<1x4x8xf32> to vector<4x8xf32>
    %69 = vector.shape_cast %68 : vector<4x8xf32> to vector<1x4x8xf32>
    %70 = vector.extract_strided_slice %66 {offsets = [0, 0, 0], sizes = [1, 4, 8], strides = [1, 1, 1]} : vector<4x4x8xf32> to vector<1x4x8xf32>
    %71 = vector.shape_cast %70 : vector<1x4x8xf32> to vector<4x8xf32>
    %72 = vector.shape_cast %71 : vector<4x8xf32> to vector<1x4x8xf32>
    %73 = tpu.concatenate %69, %72 in 2 : vector<1x4x8xf32>, vector<1x4x8xf32> -> vector<1x4x16xf32>
    %74 = vector.extract_strided_slice %57 {offsets = [0, 0, 0], sizes = [1, 4, 8], strides = [1, 1, 1]} : vector<2x4x8xf32> to vector<1x4x8xf32>
    %75 = vector.shape_cast %74 : vector<1x4x8xf32> to vector<4x8xf32>
    %76 = vector.shape_cast %75 : vector<4x8xf32> to vector<1x4x8xf32>
    %77 = vector.extract_strided_slice %66 {offsets = [1, 0, 0], sizes = [1, 4, 8], strides = [1, 1, 1]} : vector<4x4x8xf32> to vector<1x4x8xf32>
    %78 = vector.shape_cast %77 : vector<1x4x8xf32> to vector<4x8xf32>
    %79 = vector.shape_cast %78 : vector<4x8xf32> to vector<1x4x8xf32>
    %80 = tpu.concatenate %76, %79 in 2 : vector<1x4x8xf32>, vector<1x4x8xf32> -> vector<1x4x16xf32>
    %81 = vector.extract_strided_slice %57 {offsets = [1, 0, 0], sizes = [1, 4, 8], strides = [1, 1, 1]} : vector<2x4x8xf32> to vector<1x4x8xf32>
    %82 = vector.shape_cast %81 : vector<1x4x8xf32> to vector<4x8xf32>
    %83 = vector.shape_cast %82 : vector<4x8xf32> to vector<1x4x8xf32>
    %84 = vector.extract_strided_slice %66 {offsets = [2, 0, 0], sizes = [1, 4, 8], strides = [1, 1, 1]} : vector<4x4x8xf32> to vector<1x4x8xf32>
    %85 = vector.shape_cast %84 : vector<1x4x8xf32> to vector<4x8xf32>
    %86 = vector.shape_cast %85 : vector<4x8xf32> to vector<1x4x8xf32>
    %87 = tpu.concatenate %83, %86 in 2 : vector<1x4x8xf32>, vector<1x4x8xf32> -> vector<1x4x16xf32>
    %88 = vector.extract_strided_slice %57 {offsets = [1, 0, 0], sizes = [1, 4, 8], strides = [1, 1, 1]} : vector<2x4x8xf32> to vector<1x4x8xf32>
    %89 = vector.shape_cast %88 : vector<1x4x8xf32> to vector<4x8xf32>
    %90 = vector.shape_cast %89 : vector<4x8xf32> to vector<1x4x8xf32>
    %91 = vector.extract_strided_slice %66 {offsets = [3, 0, 0], sizes = [1, 4, 8], strides = [1, 1, 1]} : vector<4x4x8xf32> to vector<1x4x8xf32>
    %92 = vector.shape_cast %91 : vector<1x4x8xf32> to vector<4x8xf32>
    %93 = vector.shape_cast %92 : vector<4x8xf32> to vector<1x4x8xf32>
    %94 = tpu.concatenate %90, %93 in 2 : vector<1x4x8xf32>, vector<1x4x8xf32> -> vector<1x4x16xf32>
    %95 = tpu.concatenate %73, %80, %87, %94 in 0 : vector<1x4x16xf32>, vector<1x4x16xf32>, vector<1x4x16xf32>, vector<1x4x16xf32> -> vector<4x4x16xf32>
    %96 = arith.mulf %95, %95 : vector<4x4x16xf32>
    %cst_25 = arith.constant dense<0.000000e+00> : vector<4x4xf32>
    %97 = vector.multi_reduction <add>, %96, %cst_25 [2] : vector<4x4x16xf32> to vector<4x4xf32>
    %98 = vector.shape_cast %97 : vector<4x4xf32> to vector<4x4x1xf32>
    %cst_26 = arith.constant dense<0.000000e+00> : vector<4x1xf32>
    %99 = vector.multi_reduction <add>, %98, %cst_26 [1] : vector<4x4x1xf32> to vector<4x1xf32>
    %100 = vector.shape_cast %99 : vector<4x1xf32> to vector<4x1x1xf32>
    %cst_27 = arith.constant 2.000000e+00 : f32
    %101 = vector.broadcast %cst_27 : f32 to vector<4x1x1xf32>
    %102 = arith.mulf %101, %100 : vector<4x1x1xf32>
    %cst_28 = arith.constant 6.400000e+01 : f32
    %103 = vector.broadcast %cst_28 : f32 to vector<4x1x1xf32>
    %104 = arith.divf %102, %103 : vector<4x1x1xf32>
    %105 = math.rsqrt %104 : vector<4x1x1xf32>
    %106 = vector.broadcast %105 : vector<4x1x1xf32> to vector<4x4x16xf32>
    %107 = arith.mulf %95, %106 : vector<4x4x16xf32>
    %108 = vector.shape_cast %107 : vector<4x4x16xf32> to vector<16x16xf32>
    %c0_29 = arith.constant 0 : index
    %c0_30 = arith.constant 0 : index
    %109 = vector.load %arg10[%c0_29, %c0_30] : memref<16x32xf32, #tpu.memory_space<vmem>>, vector<16x32xf32>
    %110 = arith.truncf %108 : vector<16x16xf32> to vector<16x16xbf16>
    %111 = arith.truncf %109 : vector<16x32xf32> to vector<16x32xbf16>
    %cst_31 = arith.constant dense<0.000000e+00> : vector<16x32xf32>
    %112 = tpu.matmul %110, %111, %cst_31 {dimension_numbers = #tpu.dot_dimension_numbers<[1], [0], [0], [1], [0, 0, 1, 1], [], []>} : vector<16x16xbf16>, vector<16x32xbf16>, vector<16x32xf32> -> vector<16x32xf32>
    %c0_32 = arith.constant 0 : index
    %c0_33 = arith.constant 0 : index
    %113 = vector.load %arg11[%c0_32, %c0_33] : memref<1x32xf32, #tpu.memory_space<vmem>>, vector<1x32xf32>
    %114 = vector.broadcast %113 : vector<1x32xf32> to vector<16x32xf32>
    %115 = arith.addf %112, %114 : vector<16x32xf32>
    %116 = vector.shape_cast %115 : vector<16x32xf32> to vector<4x4x32xf32>
    %c0_34 = arith.constant 0 : index
    %c0_35 = arith.constant 0 : index
    %c0_36 = arith.constant 0 : index
    %117 = vector.load %arg12[%c0_34, %c0_35, %c0_36] : memref<4x4x32xf32, #tpu.memory_space<vmem>>, vector<4x4x32xf32>
    tpu.vector_store %arg12[%c0_34, %c0_35, %c0_36], %116 {strides = array<i32>} : memref<4x4x32xf32, #tpu.memory_space<vmem>>, vector<4x4x32xf32>,
    return
  }
  func.func @transform_0(%arg0: i32) -> (i32, i32, i32) {
    %c0_i32 = arith.constant 0 : i32
    %c0_i32_0 = arith.constant 0 : i32
    %c0_i32_1 = arith.constant 0 : i32
    %c0_i32_2 = arith.constant 0 : i32
    return %c0_i32, %c0_i32_0, %c0_i32_1 : i32, i32, i32
  }
  func.func @transform_1(%arg0: i32) -> (i32, i32) {
    %c0_i32 = arith.constant 0 : i32
    %c0_i32_0 = arith.constant 0 : i32
    %c0_i32_1 = arith.constant 0 : i32
    return %c0_i32, %c0_i32_0 : i32, i32
  }
  func.func @transform_2(%arg0: i32) -> (i32, i32) {
    %c0_i32 = arith.constant 0 : i32
    %c0_i32_0 = arith.constant 0 : i32
    %c0_i32_1 = arith.constant 0 : i32
    return %c0_i32, %c0_i32_0 : i32, i32
  }
  func.func @transform_3(%arg0: i32) -> (i32, i32) {
    %c0_i32 = arith.constant 0 : i32
    %c0_i32_0 = arith.constant 0 : i32
    %c0_i32_1 = arith.constant 0 : i32
    return %c0_i32, %c0_i32_0 : i32, i32
  }
  func.func @transform_4(%arg0: i32) -> (i32, i32) {
    %c0_i32 = arith.constant 0 : i32
    %c0_i32_0 = arith.constant 0 : i32
    %c0_i32_1 = arith.constant 0 : i32
    return %c0_i32, %c0_i32_0 : i32, i32
  }
  func.func @transform_5(%arg0: i32) -> (i32, i32) {
    %c0_i32 = arith.constant 0 : i32
    %c0_i32_0 = arith.constant 0 : i32
    %c0_i32_1 = arith.constant 0 : i32
    return %c0_i32, %c0_i32_0 : i32, i32
  }
  func.func @transform_6(%arg0: i32) -> (i32, i32) {
    %c0_i32 = arith.constant 0 : i32
    %c0_i32_0 = arith.constant 0 : i32
    %c0_i32_1 = arith.constant 0 : i32
    return %c0_i32, %c0_i32_0 : i32, i32
  }
  func.func @transform_7(%arg0: i32) -> (i32, i32) {
    %c0_i32 = arith.constant 0 : i32
    %c0_i32_0 = arith.constant 0 : i32
    %c0_i32_1 = arith.constant 0 : i32
    return %c0_i32, %c0_i32_0 : i32, i32
  }
  func.func @transform_8(%arg0: i32) -> (i32, i32) {
    %c0_i32 = arith.constant 0 : i32
    %c0_i32_0 = arith.constant 0 : i32
    %c0_i32_1 = arith.constant 0 : i32
    return %c0_i32, %c0_i32_0 : i32, i32
  }
  func.func @transform_9(%arg0: i32) -> (i32, i32) {
    %c0_i32 = arith.constant 0 : i32
    %c0_i32_0 = arith.constant 0 : i32
    %c0_i32_1 = arith.constant 0 : i32
    return %c0_i32, %c0_i32_0 : i32, i32
  }
  func.func @transform_10(%arg0: i32) -> (i32, i32) {
    %c0_i32 = arith.constant 0 : i32
    %c0_i32_0 = arith.constant 0 : i32
    %c0_i32_1 = arith.constant 0 : i32
    return %c0_i32, %c0_i32_0 : i32, i32
  }
  func.func @transform_11(%arg0: i32) -> (i32, i32, i32) {
    %c0_i32 = arith.constant 0 : i32
    %c0_i32_0 = arith.constant 0 : i32
    %c0_i32_1 = arith.constant 0 : i32
    %c0_i32_2 = arith.constant 0 : i32
    return %c0_i32, %c0_i32_0, %c0_i32_1 : i32, i32, i32
  }
}

module attributes {stable_mosaic.version = 11 : i64} {
  func.func @_dec_layer_kernel(%arg0: i32, %arg1: memref<4x4x32xf32, #tpu.memory_space<vmem>>, %arg2: memref<4x4x32xf32, #tpu.memory_space<vmem>>, %arg3: memref<32x96xf32, #tpu.memory_space<vmem>>, %arg4: memref<1x96xf32, #tpu.memory_space<vmem>>, %arg5: memref<32x32xf32, #tpu.memory_space<vmem>>, %arg6: memref<1x32xf32, #tpu.memory_space<vmem>>, %arg7: memref<1x32xf32, #tpu.memory_space<vmem>>, %arg8: memref<1x32xf32, #tpu.memory_space<vmem>>, %arg9: memref<32x32xf32, #tpu.memory_space<vmem>>, %arg10: memref<1x32xf32, #tpu.memory_space<vmem>>, %arg11: memref<32x64xf32, #tpu.memory_space<vmem>>, %arg12: memref<1x64xf32, #tpu.memory_space<vmem>>, %arg13: memref<32x32xf32, #tpu.memory_space<vmem>>, %arg14: memref<1x32xf32, #tpu.memory_space<vmem>>, %arg15: memref<1x32xf32, #tpu.memory_space<vmem>>, %arg16: memref<1x32xf32, #tpu.memory_space<vmem>>, %arg17: memref<32x128xf32, #tpu.memory_space<vmem>>, %arg18: memref<1x128xf32, #tpu.memory_space<vmem>>, %arg19: memref<128x32xf32, #tpu.memory_space<vmem>>, %arg20: memref<1x32xf32, #tpu.memory_space<vmem>>, %arg21: memref<1x32xf32, #tpu.memory_space<vmem>>, %arg22: memref<1x32xf32, #tpu.memory_space<vmem>>, %arg23: memref<4x4x32xf32, #tpu.memory_space<vmem>>) attributes {dimension_semantics = [#tpu.dimension_semantics<arbitrary>], iteration_bounds = array<i64: 1>, scalar_prefetch = 0 : i64, scratch_operands = 0 : i64, tpu.core_type = #tpu.core_type<tc>, window_params = [{pipeline_mode = #tpu.pipeline_mode<synchronous>, transform_indices = @transform_0, window_bounds = array<i64: 4, 4, 32>}, {pipeline_mode = #tpu.pipeline_mode<synchronous>, transform_indices = @transform_1, window_bounds = array<i64: 4, 4, 32>}, {pipeline_mode = #tpu.pipeline_mode<synchronous>, transform_indices = @transform_2, window_bounds = array<i64: 32, 96>}, {pipeline_mode = #tpu.pipeline_mode<synchronous>, transform_indices = @transform_3, window_bounds = array<i64: 1, 96>}, {pipeline_mode = #tpu.pipeline_mode<synchronous>, transform_indices = @transform_4, window_bounds = array<i64: 32, 32>}, {pipeline_mode = #tpu.pipeline_mode<synchronous>, transform_indices = @transform_5, window_bounds = array<i64: 1, 32>}, {pipeline_mode = #tpu.pipeline_mode<synchronous>, transform_indices = @transform_6, window_bounds = array<i64: 1, 32>}, {pipeline_mode = #tpu.pipeline_mode<synchronous>, transform_indices = @transform_7, window_bounds = array<i64: 1, 32>}, {pipeline_mode = #tpu.pipeline_mode<synchronous>, transform_indices = @transform_8, window_bounds = array<i64: 32, 32>}, {pipeline_mode = #tpu.pipeline_mode<synchronous>, transform_indices = @transform_9, window_bounds = array<i64: 1, 32>}, {pipeline_mode = #tpu.pipeline_mode<synchronous>, transform_indices = @transform_10, window_bounds = array<i64: 32, 64>}, {pipeline_mode = #tpu.pipeline_mode<synchronous>, transform_indices = @transform_11, window_bounds = array<i64: 1, 64>}, {pipeline_mode = #tpu.pipeline_mode<synchronous>, transform_indices = @transform_12, window_bounds = array<i64: 32, 32>}, {pipeline_mode = #tpu.pipeline_mode<synchronous>, transform_indices = @transform_13, window_bounds = array<i64: 1, 32>}, {pipeline_mode = #tpu.pipeline_mode<synchronous>, transform_indices = @transform_14, window_bounds = array<i64: 1, 32>}, {pipeline_mode = #tpu.pipeline_mode<synchronous>, transform_indices = @transform_15, window_bounds = array<i64: 1, 32>}, {pipeline_mode = #tpu.pipeline_mode<synchronous>, transform_indices = @transform_16, window_bounds = array<i64: 32, 128>}, {pipeline_mode = #tpu.pipeline_mode<synchronous>, transform_indices = @transform_17, window_bounds = array<i64: 1, 128>}, {pipeline_mode = #tpu.pipeline_mode<synchronous>, transform_indices = @transform_18, window_bounds = array<i64: 128, 32>}, {pipeline_mode = #tpu.pipeline_mode<synchronous>, transform_indices = @transform_19, window_bounds = array<i64: 1, 32>}, {pipeline_mode = #tpu.pipeline_mode<synchronous>, transform_indices = @transform_20, window_bounds = array<i64: 1, 32>}, {pipeline_mode = #tpu.pipeline_mode<synchronous>, transform_indices = @transform_21, window_bounds = array<i64: 1, 32>}, {pipeline_mode = #tpu.pipeline_mode<synchronous>, transform_indices = @transform_22, window_bounds = array<i64: 4, 4, 32>}]} {
    %c0 = arith.constant 0 : index
    %c0_0 = arith.constant 0 : index
    %c0_1 = arith.constant 0 : index
    %0 = vector.load %arg1[%c0, %c0_0, %c0_1] : memref<4x4x32xf32, #tpu.memory_space<vmem>>, vector<4x4x32xf32>
    %c0_2 = arith.constant 0 : index
    %c0_3 = arith.constant 0 : index
    %c0_4 = arith.constant 0 : index
    %1 = vector.load %arg2[%c0_2, %c0_3, %c0_4] : memref<4x4x32xf32, #tpu.memory_space<vmem>>, vector<4x4x32xf32>
    %2 = vector.shape_cast %0 : vector<4x4x32xf32> to vector<16x32xf32>
    %c0_5 = arith.constant 0 : index
    %c0_6 = arith.constant 0 : index
    %3 = vector.load %arg3[%c0_5, %c0_6] : memref<32x96xf32, #tpu.memory_space<vmem>>, vector<32x96xf32>
    %4 = arith.truncf %2 : vector<16x32xf32> to vector<16x32xbf16>
    %5 = arith.truncf %3 : vector<32x96xf32> to vector<32x96xbf16>
    %cst = arith.constant dense<0.000000e+00> : vector<16x96xf32>
    %6 = tpu.matmul %4, %5, %cst {dimension_numbers = #tpu.dot_dimension_numbers<[1], [0], [0], [1], [0, 0, 1, 1], [], []>} : vector<16x32xbf16>, vector<32x96xbf16>, vector<16x96xf32> -> vector<16x96xf32>
    %c0_7 = arith.constant 0 : index
    %c0_8 = arith.constant 0 : index
    %7 = vector.load %arg4[%c0_7, %c0_8] : memref<1x96xf32, #tpu.memory_space<vmem>>, vector<1x96xf32>
    %8 = vector.broadcast %7 : vector<1x96xf32> to vector<16x96xf32>
    %9 = arith.addf %6, %8 : vector<16x96xf32>
    %10 = vector.shape_cast %9 : vector<16x96xf32> to vector<4x4x96xf32>
    %11 = vector.extract_strided_slice %10 {offsets = [0, 0, 0], sizes = [4, 4, 32], strides = [1, 1, 1]} : vector<4x4x96xf32> to vector<4x4x32xf32>
    %12 = vector.extract_strided_slice %10 {offsets = [0, 0, 32], sizes = [4, 4, 32], strides = [1, 1, 1]} : vector<4x4x96xf32> to vector<4x4x32xf32>
    %13 = vector.extract_strided_slice %10 {offsets = [0, 0, 64], sizes = [4, 4, 32], strides = [1, 1, 1]} : vector<4x4x96xf32> to vector<4x4x32xf32>
    %14 = vector.extract_strided_slice %11 {offsets = [0, 0, 0], sizes = [4, 4, 16], strides = [1, 1, 1]} : vector<4x4x32xf32> to vector<4x4x16xf32>
    %15 = vector.extract_strided_slice %12 {offsets = [0, 0, 0], sizes = [4, 4, 16], strides = [1, 1, 1]} : vector<4x4x32xf32> to vector<4x4x16xf32>
    %16 = vector.extract_strided_slice %13 {offsets = [0, 0, 0], sizes = [4, 4, 16], strides = [1, 1, 1]} : vector<4x4x32xf32> to vector<4x4x16xf32>
    %17 = arith.truncf %14 : vector<4x4x16xf32> to vector<4x4x16xbf16>
    %18 = arith.truncf %15 : vector<4x4x16xf32> to vector<4x4x16xbf16>
    "tpu.trace_start"() <{level = 10 : i32, message = "bqd,bkd->bqk"}> : () -> ()
    %cst_9 = arith.constant dense<0.000000e+00> : vector<4x4x4xf32>
    %19 = tpu.matmul %17, %18, %cst_9 {dimension_numbers = #tpu.dot_dimension_numbers<[2], [2], [1], [1], [0, 0, 0, 1, 1, 1], [0], [0]>} : vector<4x4x16xbf16>, vector<4x4x16xbf16>, vector<4x4x4xf32> -> vector<4x4x4xf32>
    "tpu.trace_stop"() : () -> ()
    %cst_10 = arith.constant 2.500000e-01 : f32
    %20 = vector.broadcast %cst_10 : f32 to vector<4x4x4xf32>
    %21 = arith.mulf %19, %20 : vector<4x4x4xf32>
    %cst_11 = arith.constant dense<0xFF800000> : vector<4x4xf32>
    %22 = vector.multi_reduction <maximumf>, %21, %cst_11 [2] : vector<4x4x4xf32> to vector<4x4xf32>
    %23 = vector.shape_cast %22 : vector<4x4xf32> to vector<4x4x1xf32>
    %24 = vector.broadcast %23 : vector<4x4x1xf32> to vector<4x4x4xf32>
    %25 = arith.subf %21, %24 : vector<4x4x4xf32>
    %26 = math.exp %25 : vector<4x4x4xf32>
    %cst_12 = arith.constant dense<0.000000e+00> : vector<4x4xf32>
    %27 = vector.multi_reduction <add>, %26, %cst_12 [2] : vector<4x4x4xf32> to vector<4x4xf32>
    %28 = vector.shape_cast %27 : vector<4x4xf32> to vector<4x4x1xf32>
    %29 = tpu.reciprocal %28 {approx = true} : vector<4x4x1xf32> -> vector<4x4x1xf32>
    %30 = vector.broadcast %29 : vector<4x4x1xf32> to vector<4x4x4xf32>
    %31 = arith.mulf %26, %30 : vector<4x4x4xf32>
    %32 = arith.truncf %31 : vector<4x4x4xf32> to vector<4x4x4xbf16>
    %33 = arith.truncf %16 : vector<4x4x16xf32> to vector<4x4x16xbf16>
    "tpu.trace_start"() <{level = 10 : i32, message = "bqk,bkd->bqd"}> : () -> ()
    %cst_13 = arith.constant dense<0.000000e+00> : vector<4x4x16xf32>
    %34 = tpu.matmul %32, %33, %cst_13 {dimension_numbers = #tpu.dot_dimension_numbers<[2], [1], [1], [2], [0, 0, 0, 1, 1, 2], [0], [0]>} : vector<4x4x4xbf16>, vector<4x4x16xbf16>, vector<4x4x16xf32> -> vector<4x4x16xf32>
    "tpu.trace_stop"() : () -> ()
    %35 = vector.extract_strided_slice %11 {offsets = [0, 0, 16], sizes = [4, 4, 16], strides = [1, 1, 1]} : vector<4x4x32xf32> to vector<4x4x16xf32>
    %36 = vector.extract_strided_slice %12 {offsets = [0, 0, 16], sizes = [4, 4, 16], strides = [1, 1, 1]} : vector<4x4x32xf32> to vector<4x4x16xf32>
    %37 = vector.extract_strided_slice %13 {offsets = [0, 0, 16], sizes = [4, 4, 16], strides = [1, 1, 1]} : vector<4x4x32xf32> to vector<4x4x16xf32>
    %38 = arith.truncf %35 : vector<4x4x16xf32> to vector<4x4x16xbf16>
    %39 = arith.truncf %36 : vector<4x4x16xf32> to vector<4x4x16xbf16>
    "tpu.trace_start"() <{level = 10 : i32, message = "bqd,bkd->bqk"}> : () -> ()
    %cst_14 = arith.constant dense<0.000000e+00> : vector<4x4x4xf32>
    %40 = tpu.matmul %38, %39, %cst_14 {dimension_numbers = #tpu.dot_dimension_numbers<[2], [2], [1], [1], [0, 0, 0, 1, 1, 1], [0], [0]>} : vector<4x4x16xbf16>, vector<4x4x16xbf16>, vector<4x4x4xf32> -> vector<4x4x4xf32>
    "tpu.trace_stop"() : () -> ()
    %cst_15 = arith.constant 2.500000e-01 : f32
    %41 = vector.broadcast %cst_15 : f32 to vector<4x4x4xf32>
    %42 = arith.mulf %40, %41 : vector<4x4x4xf32>
    %cst_16 = arith.constant dense<0xFF800000> : vector<4x4xf32>
    %43 = vector.multi_reduction <maximumf>, %42, %cst_16 [2] : vector<4x4x4xf32> to vector<4x4xf32>
    %44 = vector.shape_cast %43 : vector<4x4xf32> to vector<4x4x1xf32>
    %45 = vector.broadcast %44 : vector<4x4x1xf32> to vector<4x4x4xf32>
    %46 = arith.subf %42, %45 : vector<4x4x4xf32>
    %47 = math.exp %46 : vector<4x4x4xf32>
    %cst_17 = arith.constant dense<0.000000e+00> : vector<4x4xf32>
    %48 = vector.multi_reduction <add>, %47, %cst_17 [2] : vector<4x4x4xf32> to vector<4x4xf32>
    %49 = vector.shape_cast %48 : vector<4x4xf32> to vector<4x4x1xf32>
    %50 = tpu.reciprocal %49 {approx = true} : vector<4x4x1xf32> -> vector<4x4x1xf32>
    %51 = vector.broadcast %50 : vector<4x4x1xf32> to vector<4x4x4xf32>
    %52 = arith.mulf %47, %51 : vector<4x4x4xf32>
    %53 = arith.truncf %52 : vector<4x4x4xf32> to vector<4x4x4xbf16>
    %54 = arith.truncf %37 : vector<4x4x16xf32> to vector<4x4x16xbf16>
    "tpu.trace_start"() <{level = 10 : i32, message = "bqk,bkd->bqd"}> : () -> ()
    %cst_18 = arith.constant dense<0.000000e+00> : vector<4x4x16xf32>
    %55 = tpu.matmul %53, %54, %cst_18 {dimension_numbers = #tpu.dot_dimension_numbers<[2], [1], [1], [2], [0, 0, 0, 1, 1, 2], [0], [0]>} : vector<4x4x4xbf16>, vector<4x4x16xbf16>, vector<4x4x16xf32> -> vector<4x4x16xf32>
    "tpu.trace_stop"() : () -> ()
    %56 = tpu.concatenate %34, %55 in 2 : vector<4x4x16xf32>, vector<4x4x16xf32> -> vector<4x4x32xf32>
    %57 = vector.shape_cast %56 : vector<4x4x32xf32> to vector<16x32xf32>
    %c0_19 = arith.constant 0 : index
    %c0_20 = arith.constant 0 : index
    %58 = vector.load %arg5[%c0_19, %c0_20] : memref<32x32xf32, #tpu.memory_space<vmem>>, vector<32x32xf32>
    %59 = arith.truncf %57 : vector<16x32xf32> to vector<16x32xbf16>
    %60 = arith.truncf %58 : vector<32x32xf32> to vector<32x32xbf16>
    %cst_21 = arith.constant dense<0.000000e+00> : vector<16x32xf32>
    %61 = tpu.matmul %59, %60, %cst_21 {dimension_numbers = #tpu.dot_dimension_numbers<[1], [0], [0], [1], [0, 0, 1, 1], [], []>} : vector<16x32xbf16>, vector<32x32xbf16>, vector<16x32xf32> -> vector<16x32xf32>
    %c0_22 = arith.constant 0 : index
    %c0_23 = arith.constant 0 : index
    %62 = vector.load %arg6[%c0_22, %c0_23] : memref<1x32xf32, #tpu.memory_space<vmem>>, vector<1x32xf32>
    %63 = vector.broadcast %62 : vector<1x32xf32> to vector<16x32xf32>
    %64 = arith.addf %61, %63 : vector<16x32xf32>
    %65 = vector.shape_cast %0 : vector<4x4x32xf32> to vector<16x32xf32>
    %66 = arith.addf %65, %64 : vector<16x32xf32>
    %c0_24 = arith.constant 0 : index
    %c0_25 = arith.constant 0 : index
    %67 = vector.load %arg7[%c0_24, %c0_25] : memref<1x32xf32, #tpu.memory_space<vmem>>, vector<1x32xf32>
    %c0_26 = arith.constant 0 : index
    %c0_27 = arith.constant 0 : index
    %68 = vector.load %arg8[%c0_26, %c0_27] : memref<1x32xf32, #tpu.memory_space<vmem>>, vector<1x32xf32>
    %cst_28 = arith.constant dense<0.000000e+00> : vector<16xf32>
    %69 = vector.multi_reduction <add>, %66, %cst_28 [1] : vector<16x32xf32> to vector<16xf32>
    %70 = vector.shape_cast %69 : vector<16xf32> to vector<16x1xf32>
    %cst_29 = arith.constant 3.200000e+01 : f32
    %71 = vector.broadcast %cst_29 : f32 to vector<16x1xf32>
    %72 = arith.divf %70, %71 : vector<16x1xf32>
    %73 = vector.broadcast %72 : vector<16x1xf32> to vector<16x32xf32>
    %74 = arith.subf %66, %73 : vector<16x32xf32>
    %75 = arith.mulf %74, %74 : vector<16x32xf32>
    %cst_30 = arith.constant dense<0.000000e+00> : vector<16xf32>
    %76 = vector.multi_reduction <add>, %75, %cst_30 [1] : vector<16x32xf32> to vector<16xf32>
    %77 = vector.shape_cast %76 : vector<16xf32> to vector<16x1xf32>
    %cst_31 = arith.constant 3.200000e+01 : f32
    %78 = vector.broadcast %cst_31 : f32 to vector<16x1xf32>
    %79 = arith.divf %77, %78 : vector<16x1xf32>
    %cst_32 = arith.constant 9.99999997E-7 : f32
    %80 = vector.broadcast %cst_32 : f32 to vector<16x1xf32>
    %81 = arith.addf %79, %80 : vector<16x1xf32>
    %82 = math.rsqrt %81 : vector<16x1xf32>
    %83 = vector.broadcast %82 : vector<16x1xf32> to vector<16x32xf32>
    %84 = arith.mulf %74, %83 : vector<16x32xf32>
    %85 = vector.broadcast %67 : vector<1x32xf32> to vector<16x32xf32>
    %86 = arith.mulf %84, %85 : vector<16x32xf32>
    %87 = vector.broadcast %68 : vector<1x32xf32> to vector<16x32xf32>
    %88 = arith.addf %86, %87 : vector<16x32xf32>
    %c0_33 = arith.constant 0 : index
    %c0_34 = arith.constant 0 : index
    %89 = vector.load %arg9[%c0_33, %c0_34] : memref<32x32xf32, #tpu.memory_space<vmem>>, vector<32x32xf32>
    %90 = arith.truncf %88 : vector<16x32xf32> to vector<16x32xbf16>
    %91 = arith.truncf %89 : vector<32x32xf32> to vector<32x32xbf16>
    %cst_35 = arith.constant dense<0.000000e+00> : vector<16x32xf32>
    %92 = tpu.matmul %90, %91, %cst_35 {dimension_numbers = #tpu.dot_dimension_numbers<[1], [0], [0], [1], [0, 0, 1, 1], [], []>} : vector<16x32xbf16>, vector<32x32xbf16>, vector<16x32xf32> -> vector<16x32xf32>
    %c0_36 = arith.constant 0 : index
    %c0_37 = arith.constant 0 : index
    %93 = vector.load %arg10[%c0_36, %c0_37] : memref<1x32xf32, #tpu.memory_space<vmem>>, vector<1x32xf32>
    %94 = vector.broadcast %93 : vector<1x32xf32> to vector<16x32xf32>
    %95 = arith.addf %92, %94 : vector<16x32xf32>
    %96 = vector.shape_cast %1 : vector<4x4x32xf32> to vector<16x32xf32>
    %c0_38 = arith.constant 0 : index
    %c0_39 = arith.constant 0 : index
    %97 = vector.load %arg11[%c0_38, %c0_39] : memref<32x64xf32, #tpu.memory_space<vmem>>, vector<32x64xf32>
    %98 = arith.truncf %96 : vector<16x32xf32> to vector<16x32xbf16>
    %99 = arith.truncf %97 : vector<32x64xf32> to vector<32x64xbf16>
    %cst_40 = arith.constant dense<0.000000e+00> : vector<16x64xf32>
    %100 = tpu.matmul %98, %99, %cst_40 {dimension_numbers = #tpu.dot_dimension_numbers<[1], [0], [0], [1], [0, 0, 1, 1], [], []>} : vector<16x32xbf16>, vector<32x64xbf16>, vector<16x64xf32> -> vector<16x64xf32>
    %c0_41 = arith.constant 0 : index
    %c0_42 = arith.constant 0 : index
    %101 = vector.load %arg12[%c0_41, %c0_42] : memref<1x64xf32, #tpu.memory_space<vmem>>, vector<1x64xf32>
    %102 = vector.broadcast %101 : vector<1x64xf32> to vector<16x64xf32>
    %103 = arith.addf %100, %102 : vector<16x64xf32>
    %104 = vector.shape_cast %103 : vector<16x64xf32> to vector<4x4x64xf32>
    %105 = vector.shape_cast %95 : vector<16x32xf32> to vector<4x4x32xf32>
    %106 = vector.extract_strided_slice %104 {offsets = [0, 0, 0], sizes = [4, 4, 32], strides = [1, 1, 1]} : vector<4x4x64xf32> to vector<4x4x32xf32>
    %107 = vector.extract_strided_slice %104 {offsets = [0, 0, 32], sizes = [4, 4, 32], strides = [1, 1, 1]} : vector<4x4x64xf32> to vector<4x4x32xf32>
    %108 = vector.extract_strided_slice %105 {offsets = [0, 0, 0], sizes = [4, 4, 16], strides = [1, 1, 1]} : vector<4x4x32xf32> to vector<4x4x16xf32>
    %109 = vector.extract_strided_slice %106 {offsets = [0, 0, 0], sizes = [4, 4, 16], strides = [1, 1, 1]} : vector<4x4x32xf32> to vector<4x4x16xf32>
    %110 = vector.extract_strided_slice %107 {offsets = [0, 0, 0], sizes = [4, 4, 16], strides = [1, 1, 1]} : vector<4x4x32xf32> to vector<4x4x16xf32>
    %111 = arith.truncf %108 : vector<4x4x16xf32> to vector<4x4x16xbf16>
    %112 = arith.truncf %109 : vector<4x4x16xf32> to vector<4x4x16xbf16>
    "tpu.trace_start"() <{level = 10 : i32, message = "bqd,bkd->bqk"}> : () -> ()
    %cst_43 = arith.constant dense<0.000000e+00> : vector<4x4x4xf32>
    %113 = tpu.matmul %111, %112, %cst_43 {dimension_numbers = #tpu.dot_dimension_numbers<[2], [2], [1], [1], [0, 0, 0, 1, 1, 1], [0], [0]>} : vector<4x4x16xbf16>, vector<4x4x16xbf16>, vector<4x4x4xf32> -> vector<4x4x4xf32>
    "tpu.trace_stop"() : () -> ()
    %cst_44 = arith.constant 2.500000e-01 : f32
    %114 = vector.broadcast %cst_44 : f32 to vector<4x4x4xf32>
    %115 = arith.mulf %113, %114 : vector<4x4x4xf32>
    %cst_45 = arith.constant dense<0xFF800000> : vector<4x4xf32>
    %116 = vector.multi_reduction <maximumf>, %115, %cst_45 [2] : vector<4x4x4xf32> to vector<4x4xf32>
    %117 = vector.shape_cast %116 : vector<4x4xf32> to vector<4x4x1xf32>
    %118 = vector.broadcast %117 : vector<4x4x1xf32> to vector<4x4x4xf32>
    %119 = arith.subf %115, %118 : vector<4x4x4xf32>
    %120 = math.exp %119 : vector<4x4x4xf32>
    %cst_46 = arith.constant dense<0.000000e+00> : vector<4x4xf32>
    %121 = vector.multi_reduction <add>, %120, %cst_46 [2] : vector<4x4x4xf32> to vector<4x4xf32>
    %122 = vector.shape_cast %121 : vector<4x4xf32> to vector<4x4x1xf32>
    %123 = tpu.reciprocal %122 {approx = true} : vector<4x4x1xf32> -> vector<4x4x1xf32>
    %124 = vector.broadcast %123 : vector<4x4x1xf32> to vector<4x4x4xf32>
    %125 = arith.mulf %120, %124 : vector<4x4x4xf32>
    %126 = arith.truncf %125 : vector<4x4x4xf32> to vector<4x4x4xbf16>
    %127 = arith.truncf %110 : vector<4x4x16xf32> to vector<4x4x16xbf16>
    "tpu.trace_start"() <{level = 10 : i32, message = "bqk,bkd->bqd"}> : () -> ()
    %cst_47 = arith.constant dense<0.000000e+00> : vector<4x4x16xf32>
    %128 = tpu.matmul %126, %127, %cst_47 {dimension_numbers = #tpu.dot_dimension_numbers<[2], [1], [1], [2], [0, 0, 0, 1, 1, 2], [0], [0]>} : vector<4x4x4xbf16>, vector<4x4x16xbf16>, vector<4x4x16xf32> -> vector<4x4x16xf32>
    "tpu.trace_stop"() : () -> ()
    %129 = vector.extract_strided_slice %105 {offsets = [0, 0, 16], sizes = [4, 4, 16], strides = [1, 1, 1]} : vector<4x4x32xf32> to vector<4x4x16xf32>
    %130 = vector.extract_strided_slice %106 {offsets = [0, 0, 16], sizes = [4, 4, 16], strides = [1, 1, 1]} : vector<4x4x32xf32> to vector<4x4x16xf32>
    %131 = vector.extract_strided_slice %107 {offsets = [0, 0, 16], sizes = [4, 4, 16], strides = [1, 1, 1]} : vector<4x4x32xf32> to vector<4x4x16xf32>
    %132 = arith.truncf %129 : vector<4x4x16xf32> to vector<4x4x16xbf16>
    %133 = arith.truncf %130 : vector<4x4x16xf32> to vector<4x4x16xbf16>
    "tpu.trace_start"() <{level = 10 : i32, message = "bqd,bkd->bqk"}> : () -> ()
    %cst_48 = arith.constant dense<0.000000e+00> : vector<4x4x4xf32>
    %134 = tpu.matmul %132, %133, %cst_48 {dimension_numbers = #tpu.dot_dimension_numbers<[2], [2], [1], [1], [0, 0, 0, 1, 1, 1], [0], [0]>} : vector<4x4x16xbf16>, vector<4x4x16xbf16>, vector<4x4x4xf32> -> vector<4x4x4xf32>
    "tpu.trace_stop"() : () -> ()
    %cst_49 = arith.constant 2.500000e-01 : f32
    %135 = vector.broadcast %cst_49 : f32 to vector<4x4x4xf32>
    %136 = arith.mulf %134, %135 : vector<4x4x4xf32>
    %cst_50 = arith.constant dense<0xFF800000> : vector<4x4xf32>
    %137 = vector.multi_reduction <maximumf>, %136, %cst_50 [2] : vector<4x4x4xf32> to vector<4x4xf32>
    %138 = vector.shape_cast %137 : vector<4x4xf32> to vector<4x4x1xf32>
    %139 = vector.broadcast %138 : vector<4x4x1xf32> to vector<4x4x4xf32>
    %140 = arith.subf %136, %139 : vector<4x4x4xf32>
    %141 = math.exp %140 : vector<4x4x4xf32>
    %cst_51 = arith.constant dense<0.000000e+00> : vector<4x4xf32>
    %142 = vector.multi_reduction <add>, %141, %cst_51 [2] : vector<4x4x4xf32> to vector<4x4xf32>
    %143 = vector.shape_cast %142 : vector<4x4xf32> to vector<4x4x1xf32>
    %144 = tpu.reciprocal %143 {approx = true} : vector<4x4x1xf32> -> vector<4x4x1xf32>
    %145 = vector.broadcast %144 : vector<4x4x1xf32> to vector<4x4x4xf32>
    %146 = arith.mulf %141, %145 : vector<4x4x4xf32>
    %147 = arith.truncf %146 : vector<4x4x4xf32> to vector<4x4x4xbf16>
    %148 = arith.truncf %131 : vector<4x4x16xf32> to vector<4x4x16xbf16>
    "tpu.trace_start"() <{level = 10 : i32, message = "bqk,bkd->bqd"}> : () -> ()
    %cst_52 = arith.constant dense<0.000000e+00> : vector<4x4x16xf32>
    %149 = tpu.matmul %147, %148, %cst_52 {dimension_numbers = #tpu.dot_dimension_numbers<[2], [1], [1], [2], [0, 0, 0, 1, 1, 2], [0], [0]>} : vector<4x4x4xbf16>, vector<4x4x16xbf16>, vector<4x4x16xf32> -> vector<4x4x16xf32>
    "tpu.trace_stop"() : () -> ()
    %150 = tpu.concatenate %128, %149 in 2 : vector<4x4x16xf32>, vector<4x4x16xf32> -> vector<4x4x32xf32>
    %151 = vector.shape_cast %150 : vector<4x4x32xf32> to vector<16x32xf32>
    %c0_53 = arith.constant 0 : index
    %c0_54 = arith.constant 0 : index
    %152 = vector.load %arg13[%c0_53, %c0_54] : memref<32x32xf32, #tpu.memory_space<vmem>>, vector<32x32xf32>
    %153 = arith.truncf %151 : vector<16x32xf32> to vector<16x32xbf16>
    %154 = arith.truncf %152 : vector<32x32xf32> to vector<32x32xbf16>
    %cst_55 = arith.constant dense<0.000000e+00> : vector<16x32xf32>
    %155 = tpu.matmul %153, %154, %cst_55 {dimension_numbers = #tpu.dot_dimension_numbers<[1], [0], [0], [1], [0, 0, 1, 1], [], []>} : vector<16x32xbf16>, vector<32x32xbf16>, vector<16x32xf32> -> vector<16x32xf32>
    %c0_56 = arith.constant 0 : index
    %c0_57 = arith.constant 0 : index
    %156 = vector.load %arg14[%c0_56, %c0_57] : memref<1x32xf32, #tpu.memory_space<vmem>>, vector<1x32xf32>
    %157 = vector.broadcast %156 : vector<1x32xf32> to vector<16x32xf32>
    %158 = arith.addf %155, %157 : vector<16x32xf32>
    %159 = arith.addf %88, %158 : vector<16x32xf32>
    %c0_58 = arith.constant 0 : index
    %c0_59 = arith.constant 0 : index
    %160 = vector.load %arg15[%c0_58, %c0_59] : memref<1x32xf32, #tpu.memory_space<vmem>>, vector<1x32xf32>
    %c0_60 = arith.constant 0 : index
    %c0_61 = arith.constant 0 : index
    %161 = vector.load %arg16[%c0_60, %c0_61] : memref<1x32xf32, #tpu.memory_space<vmem>>, vector<1x32xf32>
    %cst_62 = arith.constant dense<0.000000e+00> : vector<16xf32>
    %162 = vector.multi_reduction <add>, %159, %cst_62 [1] : vector<16x32xf32> to vector<16xf32>
    %163 = vector.shape_cast %162 : vector<16xf32> to vector<16x1xf32>
    %cst_63 = arith.constant 3.200000e+01 : f32
    %164 = vector.broadcast %cst_63 : f32 to vector<16x1xf32>
    %165 = arith.divf %163, %164 : vector<16x1xf32>
    %166 = vector.broadcast %165 : vector<16x1xf32> to vector<16x32xf32>
    %167 = arith.subf %159, %166 : vector<16x32xf32>
    %168 = arith.mulf %167, %167 : vector<16x32xf32>
    %cst_64 = arith.constant dense<0.000000e+00> : vector<16xf32>
    %169 = vector.multi_reduction <add>, %168, %cst_64 [1] : vector<16x32xf32> to vector<16xf32>
    %170 = vector.shape_cast %169 : vector<16xf32> to vector<16x1xf32>
    %cst_65 = arith.constant 3.200000e+01 : f32
    %171 = vector.broadcast %cst_65 : f32 to vector<16x1xf32>
    %172 = arith.divf %170, %171 : vector<16x1xf32>
    %cst_66 = arith.constant 9.99999997E-7 : f32
    %173 = vector.broadcast %cst_66 : f32 to vector<16x1xf32>
    %174 = arith.addf %172, %173 : vector<16x1xf32>
    %175 = math.rsqrt %174 : vector<16x1xf32>
    %176 = vector.broadcast %175 : vector<16x1xf32> to vector<16x32xf32>
    %177 = arith.mulf %167, %176 : vector<16x32xf32>
    %178 = vector.broadcast %160 : vector<1x32xf32> to vector<16x32xf32>
    %179 = arith.mulf %177, %178 : vector<16x32xf32>
    %180 = vector.broadcast %161 : vector<1x32xf32> to vector<16x32xf32>
    %181 = arith.addf %179, %180 : vector<16x32xf32>
    %c0_67 = arith.constant 0 : index
    %c0_68 = arith.constant 0 : index
    %182 = vector.load %arg17[%c0_67, %c0_68] : memref<32x128xf32, #tpu.memory_space<vmem>>, vector<32x128xf32>
    %183 = arith.truncf %181 : vector<16x32xf32> to vector<16x32xbf16>
    %184 = arith.truncf %182 : vector<32x128xf32> to vector<32x128xbf16>
    %cst_69 = arith.constant dense<0.000000e+00> : vector<16x128xf32>
    %185 = tpu.matmul %183, %184, %cst_69 {dimension_numbers = #tpu.dot_dimension_numbers<[1], [0], [0], [1], [0, 0, 1, 1], [], []>} : vector<16x32xbf16>, vector<32x128xbf16>, vector<16x128xf32> -> vector<16x128xf32>
    %c0_70 = arith.constant 0 : index
    %c0_71 = arith.constant 0 : index
    %186 = vector.load %arg18[%c0_70, %c0_71] : memref<1x128xf32, #tpu.memory_space<vmem>>, vector<1x128xf32>
    %187 = vector.broadcast %186 : vector<1x128xf32> to vector<16x128xf32>
    %188 = arith.addf %185, %187 : vector<16x128xf32>
    %cst_72 = arith.constant 0.000000e+00 : f32
    %189 = vector.broadcast %cst_72 : f32 to vector<16x128xf32>
    %190 = arith.maximumf %188, %189 : vector<16x128xf32>
    %c0_73 = arith.constant 0 : index
    %c0_74 = arith.constant 0 : index
    %191 = vector.load %arg19[%c0_73, %c0_74] : memref<128x32xf32, #tpu.memory_space<vmem>>, vector<128x32xf32>
    %192 = arith.truncf %190 : vector<16x128xf32> to vector<16x128xbf16>
    %193 = arith.truncf %191 : vector<128x32xf32> to vector<128x32xbf16>
    %cst_75 = arith.constant dense<0.000000e+00> : vector<16x32xf32>
    %194 = tpu.matmul %192, %193, %cst_75 {dimension_numbers = #tpu.dot_dimension_numbers<[1], [0], [0], [1], [0, 0, 1, 1], [], []>} : vector<16x128xbf16>, vector<128x32xbf16>, vector<16x32xf32> -> vector<16x32xf32>
    %c0_76 = arith.constant 0 : index
    %c0_77 = arith.constant 0 : index
    %195 = vector.load %arg20[%c0_76, %c0_77] : memref<1x32xf32, #tpu.memory_space<vmem>>, vector<1x32xf32>
    %196 = vector.broadcast %195 : vector<1x32xf32> to vector<16x32xf32>
    %197 = arith.addf %194, %196 : vector<16x32xf32>
    %198 = arith.addf %181, %197 : vector<16x32xf32>
    %c0_78 = arith.constant 0 : index
    %c0_79 = arith.constant 0 : index
    %199 = vector.load %arg21[%c0_78, %c0_79] : memref<1x32xf32, #tpu.memory_space<vmem>>, vector<1x32xf32>
    %c0_80 = arith.constant 0 : index
    %c0_81 = arith.constant 0 : index
    %200 = vector.load %arg22[%c0_80, %c0_81] : memref<1x32xf32, #tpu.memory_space<vmem>>, vector<1x32xf32>
    %cst_82 = arith.constant dense<0.000000e+00> : vector<16xf32>
    %201 = vector.multi_reduction <add>, %198, %cst_82 [1] : vector<16x32xf32> to vector<16xf32>
    %202 = vector.shape_cast %201 : vector<16xf32> to vector<16x1xf32>
    %cst_83 = arith.constant 3.200000e+01 : f32
    %203 = vector.broadcast %cst_83 : f32 to vector<16x1xf32>
    %204 = arith.divf %202, %203 : vector<16x1xf32>
    %205 = vector.broadcast %204 : vector<16x1xf32> to vector<16x32xf32>
    %206 = arith.subf %198, %205 : vector<16x32xf32>
    %207 = arith.mulf %206, %206 : vector<16x32xf32>
    %cst_84 = arith.constant dense<0.000000e+00> : vector<16xf32>
    %208 = vector.multi_reduction <add>, %207, %cst_84 [1] : vector<16x32xf32> to vector<16xf32>
    %209 = vector.shape_cast %208 : vector<16xf32> to vector<16x1xf32>
    %cst_85 = arith.constant 3.200000e+01 : f32
    %210 = vector.broadcast %cst_85 : f32 to vector<16x1xf32>
    %211 = arith.divf %209, %210 : vector<16x1xf32>
    %cst_86 = arith.constant 9.99999997E-7 : f32
    %212 = vector.broadcast %cst_86 : f32 to vector<16x1xf32>
    %213 = arith.addf %211, %212 : vector<16x1xf32>
    %214 = math.rsqrt %213 : vector<16x1xf32>
    %215 = vector.broadcast %214 : vector<16x1xf32> to vector<16x32xf32>
    %216 = arith.mulf %206, %215 : vector<16x32xf32>
    %217 = vector.broadcast %199 : vector<1x32xf32> to vector<16x32xf32>
    %218 = arith.mulf %216, %217 : vector<16x32xf32>
    %219 = vector.broadcast %200 : vector<1x32xf32> to vector<16x32xf32>
    %220 = arith.addf %218, %219 : vector<16x32xf32>
    %221 = vector.shape_cast %220 : vector<16x32xf32> to vector<4x4x32xf32>
    %c0_87 = arith.constant 0 : index
    %c0_88 = arith.constant 0 : index
    %c0_89 = arith.constant 0 : index
    %222 = vector.load %arg23[%c0_87, %c0_88, %c0_89] : memref<4x4x32xf32, #tpu.memory_space<vmem>>, vector<4x4x32xf32>
    tpu.vector_store %arg23[%c0_87, %c0_88, %c0_89], %221 {strides = array<i32>} : memref<4x4x32xf32, #tpu.memory_space<vmem>>, vector<4x4x32xf32>,
    return
  }
  func.func @transform_0(%arg0: i32) -> (i32, i32, i32) {
    %c0_i32 = arith.constant 0 : i32
    %c0_i32_0 = arith.constant 0 : i32
    %c0_i32_1 = arith.constant 0 : i32
    %c0_i32_2 = arith.constant 0 : i32
    return %c0_i32, %c0_i32_0, %c0_i32_1 : i32, i32, i32
  }
  func.func @transform_1(%arg0: i32) -> (i32, i32, i32) {
    %c0_i32 = arith.constant 0 : i32
    %c0_i32_0 = arith.constant 0 : i32
    %c0_i32_1 = arith.constant 0 : i32
    %c0_i32_2 = arith.constant 0 : i32
    return %c0_i32, %c0_i32_0, %c0_i32_1 : i32, i32, i32
  }
  func.func @transform_2(%arg0: i32) -> (i32, i32) {
    %c0_i32 = arith.constant 0 : i32
    %c0_i32_0 = arith.constant 0 : i32
    %c0_i32_1 = arith.constant 0 : i32
    return %c0_i32, %c0_i32_0 : i32, i32
  }
  func.func @transform_3(%arg0: i32) -> (i32, i32) {
    %c0_i32 = arith.constant 0 : i32
    %c0_i32_0 = arith.constant 0 : i32
    %c0_i32_1 = arith.constant 0 : i32
    return %c0_i32, %c0_i32_0 : i32, i32
  }
  func.func @transform_4(%arg0: i32) -> (i32, i32) {
    %c0_i32 = arith.constant 0 : i32
    %c0_i32_0 = arith.constant 0 : i32
    %c0_i32_1 = arith.constant 0 : i32
    return %c0_i32, %c0_i32_0 : i32, i32
  }
  func.func @transform_5(%arg0: i32) -> (i32, i32) {
    %c0_i32 = arith.constant 0 : i32
    %c0_i32_0 = arith.constant 0 : i32
    %c0_i32_1 = arith.constant 0 : i32
    return %c0_i32, %c0_i32_0 : i32, i32
  }
  func.func @transform_6(%arg0: i32) -> (i32, i32) {
    %c0_i32 = arith.constant 0 : i32
    %c0_i32_0 = arith.constant 0 : i32
    %c0_i32_1 = arith.constant 0 : i32
    return %c0_i32, %c0_i32_0 : i32, i32
  }
  func.func @transform_7(%arg0: i32) -> (i32, i32) {
    %c0_i32 = arith.constant 0 : i32
    %c0_i32_0 = arith.constant 0 : i32
    %c0_i32_1 = arith.constant 0 : i32
    return %c0_i32, %c0_i32_0 : i32, i32
  }
  func.func @transform_8(%arg0: i32) -> (i32, i32) {
    %c0_i32 = arith.constant 0 : i32
    %c0_i32_0 = arith.constant 0 : i32
    %c0_i32_1 = arith.constant 0 : i32
    return %c0_i32, %c0_i32_0 : i32, i32
  }
  func.func @transform_9(%arg0: i32) -> (i32, i32) {
    %c0_i32 = arith.constant 0 : i32
    %c0_i32_0 = arith.constant 0 : i32
    %c0_i32_1 = arith.constant 0 : i32
    return %c0_i32, %c0_i32_0 : i32, i32
  }
  func.func @transform_10(%arg0: i32) -> (i32, i32) {
    %c0_i32 = arith.constant 0 : i32
    %c0_i32_0 = arith.constant 0 : i32
    %c0_i32_1 = arith.constant 0 : i32
    return %c0_i32, %c0_i32_0 : i32, i32
  }
  func.func @transform_11(%arg0: i32) -> (i32, i32) {
    %c0_i32 = arith.constant 0 : i32
    %c0_i32_0 = arith.constant 0 : i32
    %c0_i32_1 = arith.constant 0 : i32
    return %c0_i32, %c0_i32_0 : i32, i32
  }
  func.func @transform_12(%arg0: i32) -> (i32, i32) {
    %c0_i32 = arith.constant 0 : i32
    %c0_i32_0 = arith.constant 0 : i32
    %c0_i32_1 = arith.constant 0 : i32
    return %c0_i32, %c0_i32_0 : i32, i32
  }
  func.func @transform_13(%arg0: i32) -> (i32, i32) {
    %c0_i32 = arith.constant 0 : i32
    %c0_i32_0 = arith.constant 0 : i32
    %c0_i32_1 = arith.constant 0 : i32
    return %c0_i32, %c0_i32_0 : i32, i32
  }
  func.func @transform_14(%arg0: i32) -> (i32, i32) {
    %c0_i32 = arith.constant 0 : i32
    %c0_i32_0 = arith.constant 0 : i32
    %c0_i32_1 = arith.constant 0 : i32
    return %c0_i32, %c0_i32_0 : i32, i32
  }
  func.func @transform_15(%arg0: i32) -> (i32, i32) {
    %c0_i32 = arith.constant 0 : i32
    %c0_i32_0 = arith.constant 0 : i32
    %c0_i32_1 = arith.constant 0 : i32
    return %c0_i32, %c0_i32_0 : i32, i32
  }
  func.func @transform_16(%arg0: i32) -> (i32, i32) {
    %c0_i32 = arith.constant 0 : i32
    %c0_i32_0 = arith.constant 0 : i32
    %c0_i32_1 = arith.constant 0 : i32
    return %c0_i32, %c0_i32_0 : i32, i32
  }
  func.func @transform_17(%arg0: i32) -> (i32, i32) {
    %c0_i32 = arith.constant 0 : i32
    %c0_i32_0 = arith.constant 0 : i32
    %c0_i32_1 = arith.constant 0 : i32
    return %c0_i32, %c0_i32_0 : i32, i32
  }
  func.func @transform_18(%arg0: i32) -> (i32, i32) {
    %c0_i32 = arith.constant 0 : i32
    %c0_i32_0 = arith.constant 0 : i32
    %c0_i32_1 = arith.constant 0 : i32
    return %c0_i32, %c0_i32_0 : i32, i32
  }
  func.func @transform_19(%arg0: i32) -> (i32, i32) {
    %c0_i32 = arith.constant 0 : i32
    %c0_i32_0 = arith.constant 0 : i32
    %c0_i32_1 = arith.constant 0 : i32
    return %c0_i32, %c0_i32_0 : i32, i32
  }
  func.func @transform_20(%arg0: i32) -> (i32, i32) {
    %c0_i32 = arith.constant 0 : i32
    %c0_i32_0 = arith.constant 0 : i32
    %c0_i32_1 = arith.constant 0 : i32
    return %c0_i32, %c0_i32_0 : i32, i32
  }
  func.func @transform_21(%arg0: i32) -> (i32, i32) {
    %c0_i32 = arith.constant 0 : i32
    %c0_i32_0 = arith.constant 0 : i32
    %c0_i32_1 = arith.constant 0 : i32
    return %c0_i32, %c0_i32_0 : i32, i32
  }
  func.func @transform_22(%arg0: i32) -> (i32, i32, i32) {
    %c0_i32 = arith.constant 0 : i32
    %c0_i32_0 = arith.constant 0 : i32
    %c0_i32_1 = arith.constant 0 : i32
    %c0_i32_2 = arith.constant 0 : i32
    return %c0_i32, %c0_i32_0, %c0_i32_1 : i32, i32, i32
  }
}

module attributes {stable_mosaic.version = 11 : i64} {
  func.func @_dec_layer_head_kernel(%arg0: i32, %arg1: memref<4x4x32xf32, #tpu.memory_space<vmem>>, %arg2: memref<4x4x32xf32, #tpu.memory_space<vmem>>, %arg3: memref<32x96xf32, #tpu.memory_space<vmem>>, %arg4: memref<1x96xf32, #tpu.memory_space<vmem>>, %arg5: memref<32x32xf32, #tpu.memory_space<vmem>>, %arg6: memref<1x32xf32, #tpu.memory_space<vmem>>, %arg7: memref<1x32xf32, #tpu.memory_space<vmem>>, %arg8: memref<1x32xf32, #tpu.memory_space<vmem>>, %arg9: memref<32x32xf32, #tpu.memory_space<vmem>>, %arg10: memref<1x32xf32, #tpu.memory_space<vmem>>, %arg11: memref<32x64xf32, #tpu.memory_space<vmem>>, %arg12: memref<1x64xf32, #tpu.memory_space<vmem>>, %arg13: memref<32x32xf32, #tpu.memory_space<vmem>>, %arg14: memref<1x32xf32, #tpu.memory_space<vmem>>, %arg15: memref<1x32xf32, #tpu.memory_space<vmem>>, %arg16: memref<1x32xf32, #tpu.memory_space<vmem>>, %arg17: memref<32x128xf32, #tpu.memory_space<vmem>>, %arg18: memref<1x128xf32, #tpu.memory_space<vmem>>, %arg19: memref<128x32xf32, #tpu.memory_space<vmem>>, %arg20: memref<1x32xf32, #tpu.memory_space<vmem>>, %arg21: memref<1x32xf32, #tpu.memory_space<vmem>>, %arg22: memref<1x32xf32, #tpu.memory_space<vmem>>, %arg23: memref<32x48xf32, #tpu.memory_space<vmem>>, %arg24: memref<1x48xf32, #tpu.memory_space<vmem>>, %arg25: memref<4x4x48xf32, #tpu.memory_space<vmem>>) attributes {dimension_semantics = [#tpu.dimension_semantics<arbitrary>], iteration_bounds = array<i64: 1>, scalar_prefetch = 0 : i64, scratch_operands = 0 : i64, tpu.core_type = #tpu.core_type<tc>, window_params = [{pipeline_mode = #tpu.pipeline_mode<synchronous>, transform_indices = @transform_0, window_bounds = array<i64: 4, 4, 32>}, {pipeline_mode = #tpu.pipeline_mode<synchronous>, transform_indices = @transform_1, window_bounds = array<i64: 4, 4, 32>}, {pipeline_mode = #tpu.pipeline_mode<synchronous>, transform_indices = @transform_2, window_bounds = array<i64: 32, 96>}, {pipeline_mode = #tpu.pipeline_mode<synchronous>, transform_indices = @transform_3, window_bounds = array<i64: 1, 96>}, {pipeline_mode = #tpu.pipeline_mode<synchronous>, transform_indices = @transform_4, window_bounds = array<i64: 32, 32>}, {pipeline_mode = #tpu.pipeline_mode<synchronous>, transform_indices = @transform_5, window_bounds = array<i64: 1, 32>}, {pipeline_mode = #tpu.pipeline_mode<synchronous>, transform_indices = @transform_6, window_bounds = array<i64: 1, 32>}, {pipeline_mode = #tpu.pipeline_mode<synchronous>, transform_indices = @transform_7, window_bounds = array<i64: 1, 32>}, {pipeline_mode = #tpu.pipeline_mode<synchronous>, transform_indices = @transform_8, window_bounds = array<i64: 32, 32>}, {pipeline_mode = #tpu.pipeline_mode<synchronous>, transform_indices = @transform_9, window_bounds = array<i64: 1, 32>}, {pipeline_mode = #tpu.pipeline_mode<synchronous>, transform_indices = @transform_10, window_bounds = array<i64: 32, 64>}, {pipeline_mode = #tpu.pipeline_mode<synchronous>, transform_indices = @transform_11, window_bounds = array<i64: 1, 64>}, {pipeline_mode = #tpu.pipeline_mode<synchronous>, transform_indices = @transform_12, window_bounds = array<i64: 32, 32>}, {pipeline_mode = #tpu.pipeline_mode<synchronous>, transform_indices = @transform_13, window_bounds = array<i64: 1, 32>}, {pipeline_mode = #tpu.pipeline_mode<synchronous>, transform_indices = @transform_14, window_bounds = array<i64: 1, 32>}, {pipeline_mode = #tpu.pipeline_mode<synchronous>, transform_indices = @transform_15, window_bounds = array<i64: 1, 32>}, {pipeline_mode = #tpu.pipeline_mode<synchronous>, transform_indices = @transform_16, window_bounds = array<i64: 32, 128>}, {pipeline_mode = #tpu.pipeline_mode<synchronous>, transform_indices = @transform_17, window_bounds = array<i64: 1, 128>}, {pipeline_mode = #tpu.pipeline_mode<synchronous>, transform_indices = @transform_18, window_bounds = array<i64: 128, 32>}, {pipeline_mode = #tpu.pipeline_mode<synchronous>, transform_indices = @transform_19, window_bounds = array<i64: 1, 32>}, {pipeline_mode = #tpu.pipeline_mode<synchronous>, transform_indices = @transform_20, window_bounds = array<i64: 1, 32>}, {pipeline_mode = #tpu.pipeline_mode<synchronous>, transform_indices = @transform_21, window_bounds = array<i64: 1, 32>}, {pipeline_mode = #tpu.pipeline_mode<synchronous>, transform_indices = @transform_22, window_bounds = array<i64: 32, 48>}, {pipeline_mode = #tpu.pipeline_mode<synchronous>, transform_indices = @transform_23, window_bounds = array<i64: 1, 48>}, {pipeline_mode = #tpu.pipeline_mode<synchronous>, transform_indices = @transform_24, window_bounds = array<i64: 4, 4, 48>}]} {
    %c0 = arith.constant 0 : index
    %c0_0 = arith.constant 0 : index
    %c0_1 = arith.constant 0 : index
    %0 = vector.load %arg1[%c0, %c0_0, %c0_1] : memref<4x4x32xf32, #tpu.memory_space<vmem>>, vector<4x4x32xf32>
    %c0_2 = arith.constant 0 : index
    %c0_3 = arith.constant 0 : index
    %c0_4 = arith.constant 0 : index
    %1 = vector.load %arg2[%c0_2, %c0_3, %c0_4] : memref<4x4x32xf32, #tpu.memory_space<vmem>>, vector<4x4x32xf32>
    %2 = vector.shape_cast %0 : vector<4x4x32xf32> to vector<16x32xf32>
    %c0_5 = arith.constant 0 : index
    %c0_6 = arith.constant 0 : index
    %3 = vector.load %arg3[%c0_5, %c0_6] : memref<32x96xf32, #tpu.memory_space<vmem>>, vector<32x96xf32>
    %4 = arith.truncf %2 : vector<16x32xf32> to vector<16x32xbf16>
    %5 = arith.truncf %3 : vector<32x96xf32> to vector<32x96xbf16>
    %cst = arith.constant dense<0.000000e+00> : vector<16x96xf32>
    %6 = tpu.matmul %4, %5, %cst {dimension_numbers = #tpu.dot_dimension_numbers<[1], [0], [0], [1], [0, 0, 1, 1], [], []>} : vector<16x32xbf16>, vector<32x96xbf16>, vector<16x96xf32> -> vector<16x96xf32>
    %c0_7 = arith.constant 0 : index
    %c0_8 = arith.constant 0 : index
    %7 = vector.load %arg4[%c0_7, %c0_8] : memref<1x96xf32, #tpu.memory_space<vmem>>, vector<1x96xf32>
    %8 = vector.broadcast %7 : vector<1x96xf32> to vector<16x96xf32>
    %9 = arith.addf %6, %8 : vector<16x96xf32>
    %10 = vector.shape_cast %9 : vector<16x96xf32> to vector<4x4x96xf32>
    %11 = vector.extract_strided_slice %10 {offsets = [0, 0, 0], sizes = [4, 4, 32], strides = [1, 1, 1]} : vector<4x4x96xf32> to vector<4x4x32xf32>
    %12 = vector.extract_strided_slice %10 {offsets = [0, 0, 32], sizes = [4, 4, 32], strides = [1, 1, 1]} : vector<4x4x96xf32> to vector<4x4x32xf32>
    %13 = vector.extract_strided_slice %10 {offsets = [0, 0, 64], sizes = [4, 4, 32], strides = [1, 1, 1]} : vector<4x4x96xf32> to vector<4x4x32xf32>
    %14 = vector.extract_strided_slice %11 {offsets = [0, 0, 0], sizes = [4, 4, 16], strides = [1, 1, 1]} : vector<4x4x32xf32> to vector<4x4x16xf32>
    %15 = vector.extract_strided_slice %12 {offsets = [0, 0, 0], sizes = [4, 4, 16], strides = [1, 1, 1]} : vector<4x4x32xf32> to vector<4x4x16xf32>
    %16 = vector.extract_strided_slice %13 {offsets = [0, 0, 0], sizes = [4, 4, 16], strides = [1, 1, 1]} : vector<4x4x32xf32> to vector<4x4x16xf32>
    %17 = arith.truncf %14 : vector<4x4x16xf32> to vector<4x4x16xbf16>
    %18 = arith.truncf %15 : vector<4x4x16xf32> to vector<4x4x16xbf16>
    "tpu.trace_start"() <{level = 10 : i32, message = "bqd,bkd->bqk"}> : () -> ()
    %cst_9 = arith.constant dense<0.000000e+00> : vector<4x4x4xf32>
    %19 = tpu.matmul %17, %18, %cst_9 {dimension_numbers = #tpu.dot_dimension_numbers<[2], [2], [1], [1], [0, 0, 0, 1, 1, 1], [0], [0]>} : vector<4x4x16xbf16>, vector<4x4x16xbf16>, vector<4x4x4xf32> -> vector<4x4x4xf32>
    "tpu.trace_stop"() : () -> ()
    %cst_10 = arith.constant 2.500000e-01 : f32
    %20 = vector.broadcast %cst_10 : f32 to vector<4x4x4xf32>
    %21 = arith.mulf %19, %20 : vector<4x4x4xf32>
    %cst_11 = arith.constant dense<0xFF800000> : vector<4x4xf32>
    %22 = vector.multi_reduction <maximumf>, %21, %cst_11 [2] : vector<4x4x4xf32> to vector<4x4xf32>
    %23 = vector.shape_cast %22 : vector<4x4xf32> to vector<4x4x1xf32>
    %24 = vector.broadcast %23 : vector<4x4x1xf32> to vector<4x4x4xf32>
    %25 = arith.subf %21, %24 : vector<4x4x4xf32>
    %26 = math.exp %25 : vector<4x4x4xf32>
    %cst_12 = arith.constant dense<0.000000e+00> : vector<4x4xf32>
    %27 = vector.multi_reduction <add>, %26, %cst_12 [2] : vector<4x4x4xf32> to vector<4x4xf32>
    %28 = vector.shape_cast %27 : vector<4x4xf32> to vector<4x4x1xf32>
    %29 = tpu.reciprocal %28 {approx = true} : vector<4x4x1xf32> -> vector<4x4x1xf32>
    %30 = vector.broadcast %29 : vector<4x4x1xf32> to vector<4x4x4xf32>
    %31 = arith.mulf %26, %30 : vector<4x4x4xf32>
    %32 = arith.truncf %31 : vector<4x4x4xf32> to vector<4x4x4xbf16>
    %33 = arith.truncf %16 : vector<4x4x16xf32> to vector<4x4x16xbf16>
    "tpu.trace_start"() <{level = 10 : i32, message = "bqk,bkd->bqd"}> : () -> ()
    %cst_13 = arith.constant dense<0.000000e+00> : vector<4x4x16xf32>
    %34 = tpu.matmul %32, %33, %cst_13 {dimension_numbers = #tpu.dot_dimension_numbers<[2], [1], [1], [2], [0, 0, 0, 1, 1, 2], [0], [0]>} : vector<4x4x4xbf16>, vector<4x4x16xbf16>, vector<4x4x16xf32> -> vector<4x4x16xf32>
    "tpu.trace_stop"() : () -> ()
    %35 = vector.extract_strided_slice %11 {offsets = [0, 0, 16], sizes = [4, 4, 16], strides = [1, 1, 1]} : vector<4x4x32xf32> to vector<4x4x16xf32>
    %36 = vector.extract_strided_slice %12 {offsets = [0, 0, 16], sizes = [4, 4, 16], strides = [1, 1, 1]} : vector<4x4x32xf32> to vector<4x4x16xf32>
    %37 = vector.extract_strided_slice %13 {offsets = [0, 0, 16], sizes = [4, 4, 16], strides = [1, 1, 1]} : vector<4x4x32xf32> to vector<4x4x16xf32>
    %38 = arith.truncf %35 : vector<4x4x16xf32> to vector<4x4x16xbf16>
    %39 = arith.truncf %36 : vector<4x4x16xf32> to vector<4x4x16xbf16>
    "tpu.trace_start"() <{level = 10 : i32, message = "bqd,bkd->bqk"}> : () -> ()
    %cst_14 = arith.constant dense<0.000000e+00> : vector<4x4x4xf32>
    %40 = tpu.matmul %38, %39, %cst_14 {dimension_numbers = #tpu.dot_dimension_numbers<[2], [2], [1], [1], [0, 0, 0, 1, 1, 1], [0], [0]>} : vector<4x4x16xbf16>, vector<4x4x16xbf16>, vector<4x4x4xf32> -> vector<4x4x4xf32>
    "tpu.trace_stop"() : () -> ()
    %cst_15 = arith.constant 2.500000e-01 : f32
    %41 = vector.broadcast %cst_15 : f32 to vector<4x4x4xf32>
    %42 = arith.mulf %40, %41 : vector<4x4x4xf32>
    %cst_16 = arith.constant dense<0xFF800000> : vector<4x4xf32>
    %43 = vector.multi_reduction <maximumf>, %42, %cst_16 [2] : vector<4x4x4xf32> to vector<4x4xf32>
    %44 = vector.shape_cast %43 : vector<4x4xf32> to vector<4x4x1xf32>
    %45 = vector.broadcast %44 : vector<4x4x1xf32> to vector<4x4x4xf32>
    %46 = arith.subf %42, %45 : vector<4x4x4xf32>
    %47 = math.exp %46 : vector<4x4x4xf32>
    %cst_17 = arith.constant dense<0.000000e+00> : vector<4x4xf32>
    %48 = vector.multi_reduction <add>, %47, %cst_17 [2] : vector<4x4x4xf32> to vector<4x4xf32>
    %49 = vector.shape_cast %48 : vector<4x4xf32> to vector<4x4x1xf32>
    %50 = tpu.reciprocal %49 {approx = true} : vector<4x4x1xf32> -> vector<4x4x1xf32>
    %51 = vector.broadcast %50 : vector<4x4x1xf32> to vector<4x4x4xf32>
    %52 = arith.mulf %47, %51 : vector<4x4x4xf32>
    %53 = arith.truncf %52 : vector<4x4x4xf32> to vector<4x4x4xbf16>
    %54 = arith.truncf %37 : vector<4x4x16xf32> to vector<4x4x16xbf16>
    "tpu.trace_start"() <{level = 10 : i32, message = "bqk,bkd->bqd"}> : () -> ()
    %cst_18 = arith.constant dense<0.000000e+00> : vector<4x4x16xf32>
    %55 = tpu.matmul %53, %54, %cst_18 {dimension_numbers = #tpu.dot_dimension_numbers<[2], [1], [1], [2], [0, 0, 0, 1, 1, 2], [0], [0]>} : vector<4x4x4xbf16>, vector<4x4x16xbf16>, vector<4x4x16xf32> -> vector<4x4x16xf32>
    "tpu.trace_stop"() : () -> ()
    %56 = tpu.concatenate %34, %55 in 2 : vector<4x4x16xf32>, vector<4x4x16xf32> -> vector<4x4x32xf32>
    %57 = vector.shape_cast %56 : vector<4x4x32xf32> to vector<16x32xf32>
    %c0_19 = arith.constant 0 : index
    %c0_20 = arith.constant 0 : index
    %58 = vector.load %arg5[%c0_19, %c0_20] : memref<32x32xf32, #tpu.memory_space<vmem>>, vector<32x32xf32>
    %59 = arith.truncf %57 : vector<16x32xf32> to vector<16x32xbf16>
    %60 = arith.truncf %58 : vector<32x32xf32> to vector<32x32xbf16>
    %cst_21 = arith.constant dense<0.000000e+00> : vector<16x32xf32>
    %61 = tpu.matmul %59, %60, %cst_21 {dimension_numbers = #tpu.dot_dimension_numbers<[1], [0], [0], [1], [0, 0, 1, 1], [], []>} : vector<16x32xbf16>, vector<32x32xbf16>, vector<16x32xf32> -> vector<16x32xf32>
    %c0_22 = arith.constant 0 : index
    %c0_23 = arith.constant 0 : index
    %62 = vector.load %arg6[%c0_22, %c0_23] : memref<1x32xf32, #tpu.memory_space<vmem>>, vector<1x32xf32>
    %63 = vector.broadcast %62 : vector<1x32xf32> to vector<16x32xf32>
    %64 = arith.addf %61, %63 : vector<16x32xf32>
    %65 = vector.shape_cast %0 : vector<4x4x32xf32> to vector<16x32xf32>
    %66 = arith.addf %65, %64 : vector<16x32xf32>
    %c0_24 = arith.constant 0 : index
    %c0_25 = arith.constant 0 : index
    %67 = vector.load %arg7[%c0_24, %c0_25] : memref<1x32xf32, #tpu.memory_space<vmem>>, vector<1x32xf32>
    %c0_26 = arith.constant 0 : index
    %c0_27 = arith.constant 0 : index
    %68 = vector.load %arg8[%c0_26, %c0_27] : memref<1x32xf32, #tpu.memory_space<vmem>>, vector<1x32xf32>
    %cst_28 = arith.constant dense<0.000000e+00> : vector<16xf32>
    %69 = vector.multi_reduction <add>, %66, %cst_28 [1] : vector<16x32xf32> to vector<16xf32>
    %70 = vector.shape_cast %69 : vector<16xf32> to vector<16x1xf32>
    %cst_29 = arith.constant 3.200000e+01 : f32
    %71 = vector.broadcast %cst_29 : f32 to vector<16x1xf32>
    %72 = arith.divf %70, %71 : vector<16x1xf32>
    %73 = vector.broadcast %72 : vector<16x1xf32> to vector<16x32xf32>
    %74 = arith.subf %66, %73 : vector<16x32xf32>
    %75 = arith.mulf %74, %74 : vector<16x32xf32>
    %cst_30 = arith.constant dense<0.000000e+00> : vector<16xf32>
    %76 = vector.multi_reduction <add>, %75, %cst_30 [1] : vector<16x32xf32> to vector<16xf32>
    %77 = vector.shape_cast %76 : vector<16xf32> to vector<16x1xf32>
    %cst_31 = arith.constant 3.200000e+01 : f32
    %78 = vector.broadcast %cst_31 : f32 to vector<16x1xf32>
    %79 = arith.divf %77, %78 : vector<16x1xf32>
    %cst_32 = arith.constant 9.99999997E-7 : f32
    %80 = vector.broadcast %cst_32 : f32 to vector<16x1xf32>
    %81 = arith.addf %79, %80 : vector<16x1xf32>
    %82 = math.rsqrt %81 : vector<16x1xf32>
    %83 = vector.broadcast %82 : vector<16x1xf32> to vector<16x32xf32>
    %84 = arith.mulf %74, %83 : vector<16x32xf32>
    %85 = vector.broadcast %67 : vector<1x32xf32> to vector<16x32xf32>
    %86 = arith.mulf %84, %85 : vector<16x32xf32>
    %87 = vector.broadcast %68 : vector<1x32xf32> to vector<16x32xf32>
    %88 = arith.addf %86, %87 : vector<16x32xf32>
    %c0_33 = arith.constant 0 : index
    %c0_34 = arith.constant 0 : index
    %89 = vector.load %arg9[%c0_33, %c0_34] : memref<32x32xf32, #tpu.memory_space<vmem>>, vector<32x32xf32>
    %90 = arith.truncf %88 : vector<16x32xf32> to vector<16x32xbf16>
    %91 = arith.truncf %89 : vector<32x32xf32> to vector<32x32xbf16>
    %cst_35 = arith.constant dense<0.000000e+00> : vector<16x32xf32>
    %92 = tpu.matmul %90, %91, %cst_35 {dimension_numbers = #tpu.dot_dimension_numbers<[1], [0], [0], [1], [0, 0, 1, 1], [], []>} : vector<16x32xbf16>, vector<32x32xbf16>, vector<16x32xf32> -> vector<16x32xf32>
    %c0_36 = arith.constant 0 : index
    %c0_37 = arith.constant 0 : index
    %93 = vector.load %arg10[%c0_36, %c0_37] : memref<1x32xf32, #tpu.memory_space<vmem>>, vector<1x32xf32>
    %94 = vector.broadcast %93 : vector<1x32xf32> to vector<16x32xf32>
    %95 = arith.addf %92, %94 : vector<16x32xf32>
    %96 = vector.shape_cast %1 : vector<4x4x32xf32> to vector<16x32xf32>
    %c0_38 = arith.constant 0 : index
    %c0_39 = arith.constant 0 : index
    %97 = vector.load %arg11[%c0_38, %c0_39] : memref<32x64xf32, #tpu.memory_space<vmem>>, vector<32x64xf32>
    %98 = arith.truncf %96 : vector<16x32xf32> to vector<16x32xbf16>
    %99 = arith.truncf %97 : vector<32x64xf32> to vector<32x64xbf16>
    %cst_40 = arith.constant dense<0.000000e+00> : vector<16x64xf32>
    %100 = tpu.matmul %98, %99, %cst_40 {dimension_numbers = #tpu.dot_dimension_numbers<[1], [0], [0], [1], [0, 0, 1, 1], [], []>} : vector<16x32xbf16>, vector<32x64xbf16>, vector<16x64xf32> -> vector<16x64xf32>
    %c0_41 = arith.constant 0 : index
    %c0_42 = arith.constant 0 : index
    %101 = vector.load %arg12[%c0_41, %c0_42] : memref<1x64xf32, #tpu.memory_space<vmem>>, vector<1x64xf32>
    %102 = vector.broadcast %101 : vector<1x64xf32> to vector<16x64xf32>
    %103 = arith.addf %100, %102 : vector<16x64xf32>
    %104 = vector.shape_cast %103 : vector<16x64xf32> to vector<4x4x64xf32>
    %105 = vector.shape_cast %95 : vector<16x32xf32> to vector<4x4x32xf32>
    %106 = vector.extract_strided_slice %104 {offsets = [0, 0, 0], sizes = [4, 4, 32], strides = [1, 1, 1]} : vector<4x4x64xf32> to vector<4x4x32xf32>
    %107 = vector.extract_strided_slice %104 {offsets = [0, 0, 32], sizes = [4, 4, 32], strides = [1, 1, 1]} : vector<4x4x64xf32> to vector<4x4x32xf32>
    %108 = vector.extract_strided_slice %105 {offsets = [0, 0, 0], sizes = [4, 4, 16], strides = [1, 1, 1]} : vector<4x4x32xf32> to vector<4x4x16xf32>
    %109 = vector.extract_strided_slice %106 {offsets = [0, 0, 0], sizes = [4, 4, 16], strides = [1, 1, 1]} : vector<4x4x32xf32> to vector<4x4x16xf32>
    %110 = vector.extract_strided_slice %107 {offsets = [0, 0, 0], sizes = [4, 4, 16], strides = [1, 1, 1]} : vector<4x4x32xf32> to vector<4x4x16xf32>
    %111 = arith.truncf %108 : vector<4x4x16xf32> to vector<4x4x16xbf16>
    %112 = arith.truncf %109 : vector<4x4x16xf32> to vector<4x4x16xbf16>
    "tpu.trace_start"() <{level = 10 : i32, message = "bqd,bkd->bqk"}> : () -> ()
    %cst_43 = arith.constant dense<0.000000e+00> : vector<4x4x4xf32>
    %113 = tpu.matmul %111, %112, %cst_43 {dimension_numbers = #tpu.dot_dimension_numbers<[2], [2], [1], [1], [0, 0, 0, 1, 1, 1], [0], [0]>} : vector<4x4x16xbf16>, vector<4x4x16xbf16>, vector<4x4x4xf32> -> vector<4x4x4xf32>
    "tpu.trace_stop"() : () -> ()
    %cst_44 = arith.constant 2.500000e-01 : f32
    %114 = vector.broadcast %cst_44 : f32 to vector<4x4x4xf32>
    %115 = arith.mulf %113, %114 : vector<4x4x4xf32>
    %cst_45 = arith.constant dense<0xFF800000> : vector<4x4xf32>
    %116 = vector.multi_reduction <maximumf>, %115, %cst_45 [2] : vector<4x4x4xf32> to vector<4x4xf32>
    %117 = vector.shape_cast %116 : vector<4x4xf32> to vector<4x4x1xf32>
    %118 = vector.broadcast %117 : vector<4x4x1xf32> to vector<4x4x4xf32>
    %119 = arith.subf %115, %118 : vector<4x4x4xf32>
    %120 = math.exp %119 : vector<4x4x4xf32>
    %cst_46 = arith.constant dense<0.000000e+00> : vector<4x4xf32>
    %121 = vector.multi_reduction <add>, %120, %cst_46 [2] : vector<4x4x4xf32> to vector<4x4xf32>
    %122 = vector.shape_cast %121 : vector<4x4xf32> to vector<4x4x1xf32>
    %123 = tpu.reciprocal %122 {approx = true} : vector<4x4x1xf32> -> vector<4x4x1xf32>
    %124 = vector.broadcast %123 : vector<4x4x1xf32> to vector<4x4x4xf32>
    %125 = arith.mulf %120, %124 : vector<4x4x4xf32>
    %126 = arith.truncf %125 : vector<4x4x4xf32> to vector<4x4x4xbf16>
    %127 = arith.truncf %110 : vector<4x4x16xf32> to vector<4x4x16xbf16>
    "tpu.trace_start"() <{level = 10 : i32, message = "bqk,bkd->bqd"}> : () -> ()
    %cst_47 = arith.constant dense<0.000000e+00> : vector<4x4x16xf32>
    %128 = tpu.matmul %126, %127, %cst_47 {dimension_numbers = #tpu.dot_dimension_numbers<[2], [1], [1], [2], [0, 0, 0, 1, 1, 2], [0], [0]>} : vector<4x4x4xbf16>, vector<4x4x16xbf16>, vector<4x4x16xf32> -> vector<4x4x16xf32>
    "tpu.trace_stop"() : () -> ()
    %129 = vector.extract_strided_slice %105 {offsets = [0, 0, 16], sizes = [4, 4, 16], strides = [1, 1, 1]} : vector<4x4x32xf32> to vector<4x4x16xf32>
    %130 = vector.extract_strided_slice %106 {offsets = [0, 0, 16], sizes = [4, 4, 16], strides = [1, 1, 1]} : vector<4x4x32xf32> to vector<4x4x16xf32>
    %131 = vector.extract_strided_slice %107 {offsets = [0, 0, 16], sizes = [4, 4, 16], strides = [1, 1, 1]} : vector<4x4x32xf32> to vector<4x4x16xf32>
    %132 = arith.truncf %129 : vector<4x4x16xf32> to vector<4x4x16xbf16>
    %133 = arith.truncf %130 : vector<4x4x16xf32> to vector<4x4x16xbf16>
    "tpu.trace_start"() <{level = 10 : i32, message = "bqd,bkd->bqk"}> : () -> ()
    %cst_48 = arith.constant dense<0.000000e+00> : vector<4x4x4xf32>
    %134 = tpu.matmul %132, %133, %cst_48 {dimension_numbers = #tpu.dot_dimension_numbers<[2], [2], [1], [1], [0, 0, 0, 1, 1, 1], [0], [0]>} : vector<4x4x16xbf16>, vector<4x4x16xbf16>, vector<4x4x4xf32> -> vector<4x4x4xf32>
    "tpu.trace_stop"() : () -> ()
    %cst_49 = arith.constant 2.500000e-01 : f32
    %135 = vector.broadcast %cst_49 : f32 to vector<4x4x4xf32>
    %136 = arith.mulf %134, %135 : vector<4x4x4xf32>
    %cst_50 = arith.constant dense<0xFF800000> : vector<4x4xf32>
    %137 = vector.multi_reduction <maximumf>, %136, %cst_50 [2] : vector<4x4x4xf32> to vector<4x4xf32>
    %138 = vector.shape_cast %137 : vector<4x4xf32> to vector<4x4x1xf32>
    %139 = vector.broadcast %138 : vector<4x4x1xf32> to vector<4x4x4xf32>
    %140 = arith.subf %136, %139 : vector<4x4x4xf32>
    %141 = math.exp %140 : vector<4x4x4xf32>
    %cst_51 = arith.constant dense<0.000000e+00> : vector<4x4xf32>
    %142 = vector.multi_reduction <add>, %141, %cst_51 [2] : vector<4x4x4xf32> to vector<4x4xf32>
    %143 = vector.shape_cast %142 : vector<4x4xf32> to vector<4x4x1xf32>
    %144 = tpu.reciprocal %143 {approx = true} : vector<4x4x1xf32> -> vector<4x4x1xf32>
    %145 = vector.broadcast %144 : vector<4x4x1xf32> to vector<4x4x4xf32>
    %146 = arith.mulf %141, %145 : vector<4x4x4xf32>
    %147 = arith.truncf %146 : vector<4x4x4xf32> to vector<4x4x4xbf16>
    %148 = arith.truncf %131 : vector<4x4x16xf32> to vector<4x4x16xbf16>
    "tpu.trace_start"() <{level = 10 : i32, message = "bqk,bkd->bqd"}> : () -> ()
    %cst_52 = arith.constant dense<0.000000e+00> : vector<4x4x16xf32>
    %149 = tpu.matmul %147, %148, %cst_52 {dimension_numbers = #tpu.dot_dimension_numbers<[2], [1], [1], [2], [0, 0, 0, 1, 1, 2], [0], [0]>} : vector<4x4x4xbf16>, vector<4x4x16xbf16>, vector<4x4x16xf32> -> vector<4x4x16xf32>
    "tpu.trace_stop"() : () -> ()
    %150 = tpu.concatenate %128, %149 in 2 : vector<4x4x16xf32>, vector<4x4x16xf32> -> vector<4x4x32xf32>
    %151 = vector.shape_cast %150 : vector<4x4x32xf32> to vector<16x32xf32>
    %c0_53 = arith.constant 0 : index
    %c0_54 = arith.constant 0 : index
    %152 = vector.load %arg13[%c0_53, %c0_54] : memref<32x32xf32, #tpu.memory_space<vmem>>, vector<32x32xf32>
    %153 = arith.truncf %151 : vector<16x32xf32> to vector<16x32xbf16>
    %154 = arith.truncf %152 : vector<32x32xf32> to vector<32x32xbf16>
    %cst_55 = arith.constant dense<0.000000e+00> : vector<16x32xf32>
    %155 = tpu.matmul %153, %154, %cst_55 {dimension_numbers = #tpu.dot_dimension_numbers<[1], [0], [0], [1], [0, 0, 1, 1], [], []>} : vector<16x32xbf16>, vector<32x32xbf16>, vector<16x32xf32> -> vector<16x32xf32>
    %c0_56 = arith.constant 0 : index
    %c0_57 = arith.constant 0 : index
    %156 = vector.load %arg14[%c0_56, %c0_57] : memref<1x32xf32, #tpu.memory_space<vmem>>, vector<1x32xf32>
    %157 = vector.broadcast %156 : vector<1x32xf32> to vector<16x32xf32>
    %158 = arith.addf %155, %157 : vector<16x32xf32>
    %159 = arith.addf %88, %158 : vector<16x32xf32>
    %c0_58 = arith.constant 0 : index
    %c0_59 = arith.constant 0 : index
    %160 = vector.load %arg15[%c0_58, %c0_59] : memref<1x32xf32, #tpu.memory_space<vmem>>, vector<1x32xf32>
    %c0_60 = arith.constant 0 : index
    %c0_61 = arith.constant 0 : index
    %161 = vector.load %arg16[%c0_60, %c0_61] : memref<1x32xf32, #tpu.memory_space<vmem>>, vector<1x32xf32>
    %cst_62 = arith.constant dense<0.000000e+00> : vector<16xf32>
    %162 = vector.multi_reduction <add>, %159, %cst_62 [1] : vector<16x32xf32> to vector<16xf32>
    %163 = vector.shape_cast %162 : vector<16xf32> to vector<16x1xf32>
    %cst_63 = arith.constant 3.200000e+01 : f32
    %164 = vector.broadcast %cst_63 : f32 to vector<16x1xf32>
    %165 = arith.divf %163, %164 : vector<16x1xf32>
    %166 = vector.broadcast %165 : vector<16x1xf32> to vector<16x32xf32>
    %167 = arith.subf %159, %166 : vector<16x32xf32>
    %168 = arith.mulf %167, %167 : vector<16x32xf32>
    %cst_64 = arith.constant dense<0.000000e+00> : vector<16xf32>
    %169 = vector.multi_reduction <add>, %168, %cst_64 [1] : vector<16x32xf32> to vector<16xf32>
    %170 = vector.shape_cast %169 : vector<16xf32> to vector<16x1xf32>
    %cst_65 = arith.constant 3.200000e+01 : f32
    %171 = vector.broadcast %cst_65 : f32 to vector<16x1xf32>
    %172 = arith.divf %170, %171 : vector<16x1xf32>
    %cst_66 = arith.constant 9.99999997E-7 : f32
    %173 = vector.broadcast %cst_66 : f32 to vector<16x1xf32>
    %174 = arith.addf %172, %173 : vector<16x1xf32>
    %175 = math.rsqrt %174 : vector<16x1xf32>
    %176 = vector.broadcast %175 : vector<16x1xf32> to vector<16x32xf32>
    %177 = arith.mulf %167, %176 : vector<16x32xf32>
    %178 = vector.broadcast %160 : vector<1x32xf32> to vector<16x32xf32>
    %179 = arith.mulf %177, %178 : vector<16x32xf32>
    %180 = vector.broadcast %161 : vector<1x32xf32> to vector<16x32xf32>
    %181 = arith.addf %179, %180 : vector<16x32xf32>
    %c0_67 = arith.constant 0 : index
    %c0_68 = arith.constant 0 : index
    %182 = vector.load %arg17[%c0_67, %c0_68] : memref<32x128xf32, #tpu.memory_space<vmem>>, vector<32x128xf32>
    %183 = arith.truncf %181 : vector<16x32xf32> to vector<16x32xbf16>
    %184 = arith.truncf %182 : vector<32x128xf32> to vector<32x128xbf16>
    %cst_69 = arith.constant dense<0.000000e+00> : vector<16x128xf32>
    %185 = tpu.matmul %183, %184, %cst_69 {dimension_numbers = #tpu.dot_dimension_numbers<[1], [0], [0], [1], [0, 0, 1, 1], [], []>} : vector<16x32xbf16>, vector<32x128xbf16>, vector<16x128xf32> -> vector<16x128xf32>
    %c0_70 = arith.constant 0 : index
    %c0_71 = arith.constant 0 : index
    %186 = vector.load %arg18[%c0_70, %c0_71] : memref<1x128xf32, #tpu.memory_space<vmem>>, vector<1x128xf32>
    %187 = vector.broadcast %186 : vector<1x128xf32> to vector<16x128xf32>
    %188 = arith.addf %185, %187 : vector<16x128xf32>
    %cst_72 = arith.constant 0.000000e+00 : f32
    %189 = vector.broadcast %cst_72 : f32 to vector<16x128xf32>
    %190 = arith.maximumf %188, %189 : vector<16x128xf32>
    %c0_73 = arith.constant 0 : index
    %c0_74 = arith.constant 0 : index
    %191 = vector.load %arg19[%c0_73, %c0_74] : memref<128x32xf32, #tpu.memory_space<vmem>>, vector<128x32xf32>
    %192 = arith.truncf %190 : vector<16x128xf32> to vector<16x128xbf16>
    %193 = arith.truncf %191 : vector<128x32xf32> to vector<128x32xbf16>
    %cst_75 = arith.constant dense<0.000000e+00> : vector<16x32xf32>
    %194 = tpu.matmul %192, %193, %cst_75 {dimension_numbers = #tpu.dot_dimension_numbers<[1], [0], [0], [1], [0, 0, 1, 1], [], []>} : vector<16x128xbf16>, vector<128x32xbf16>, vector<16x32xf32> -> vector<16x32xf32>
    %c0_76 = arith.constant 0 : index
    %c0_77 = arith.constant 0 : index
    %195 = vector.load %arg20[%c0_76, %c0_77] : memref<1x32xf32, #tpu.memory_space<vmem>>, vector<1x32xf32>
    %196 = vector.broadcast %195 : vector<1x32xf32> to vector<16x32xf32>
    %197 = arith.addf %194, %196 : vector<16x32xf32>
    %198 = arith.addf %181, %197 : vector<16x32xf32>
    %c0_78 = arith.constant 0 : index
    %c0_79 = arith.constant 0 : index
    %199 = vector.load %arg21[%c0_78, %c0_79] : memref<1x32xf32, #tpu.memory_space<vmem>>, vector<1x32xf32>
    %c0_80 = arith.constant 0 : index
    %c0_81 = arith.constant 0 : index
    %200 = vector.load %arg22[%c0_80, %c0_81] : memref<1x32xf32, #tpu.memory_space<vmem>>, vector<1x32xf32>
    %cst_82 = arith.constant dense<0.000000e+00> : vector<16xf32>
    %201 = vector.multi_reduction <add>, %198, %cst_82 [1] : vector<16x32xf32> to vector<16xf32>
    %202 = vector.shape_cast %201 : vector<16xf32> to vector<16x1xf32>
    %cst_83 = arith.constant 3.200000e+01 : f32
    %203 = vector.broadcast %cst_83 : f32 to vector<16x1xf32>
    %204 = arith.divf %202, %203 : vector<16x1xf32>
    %205 = vector.broadcast %204 : vector<16x1xf32> to vector<16x32xf32>
    %206 = arith.subf %198, %205 : vector<16x32xf32>
    %207 = arith.mulf %206, %206 : vector<16x32xf32>
    %cst_84 = arith.constant dense<0.000000e+00> : vector<16xf32>
    %208 = vector.multi_reduction <add>, %207, %cst_84 [1] : vector<16x32xf32> to vector<16xf32>
    %209 = vector.shape_cast %208 : vector<16xf32> to vector<16x1xf32>
    %cst_85 = arith.constant 3.200000e+01 : f32
    %210 = vector.broadcast %cst_85 : f32 to vector<16x1xf32>
    %211 = arith.divf %209, %210 : vector<16x1xf32>
    %cst_86 = arith.constant 9.99999997E-7 : f32
    %212 = vector.broadcast %cst_86 : f32 to vector<16x1xf32>
    %213 = arith.addf %211, %212 : vector<16x1xf32>
    %214 = math.rsqrt %213 : vector<16x1xf32>
    %215 = vector.broadcast %214 : vector<16x1xf32> to vector<16x32xf32>
    %216 = arith.mulf %206, %215 : vector<16x32xf32>
    %217 = vector.broadcast %199 : vector<1x32xf32> to vector<16x32xf32>
    %218 = arith.mulf %216, %217 : vector<16x32xf32>
    %219 = vector.broadcast %200 : vector<1x32xf32> to vector<16x32xf32>
    %220 = arith.addf %218, %219 : vector<16x32xf32>
    %c0_87 = arith.constant 0 : index
    %c0_88 = arith.constant 0 : index
    %221 = vector.load %arg23[%c0_87, %c0_88] : memref<32x48xf32, #tpu.memory_space<vmem>>, vector<32x48xf32>
    %222 = arith.truncf %220 : vector<16x32xf32> to vector<16x32xbf16>
    %223 = arith.truncf %221 : vector<32x48xf32> to vector<32x48xbf16>
    %cst_89 = arith.constant dense<0.000000e+00> : vector<16x48xf32>
    %224 = tpu.matmul %222, %223, %cst_89 {dimension_numbers = #tpu.dot_dimension_numbers<[1], [0], [0], [1], [0, 0, 1, 1], [], []>} : vector<16x32xbf16>, vector<32x48xbf16>, vector<16x48xf32> -> vector<16x48xf32>
    %c0_90 = arith.constant 0 : index
    %c0_91 = arith.constant 0 : index
    %225 = vector.load %arg24[%c0_90, %c0_91] : memref<1x48xf32, #tpu.memory_space<vmem>>, vector<1x48xf32>
    %226 = vector.broadcast %225 : vector<1x48xf32> to vector<16x48xf32>
    %227 = arith.addf %224, %226 : vector<16x48xf32>
    %228 = vector.shape_cast %227 : vector<16x48xf32> to vector<4x4x48xf32>
    %c0_92 = arith.constant 0 : index
    %c0_93 = arith.constant 0 : index
    %c0_94 = arith.constant 0 : index
    %229 = vector.load %arg25[%c0_92, %c0_93, %c0_94] : memref<4x4x48xf32, #tpu.memory_space<vmem>>, vector<4x4x48xf32>
    tpu.vector_store %arg25[%c0_92, %c0_93, %c0_94], %228 {strides = array<i32>} : memref<4x4x48xf32, #tpu.memory_space<vmem>>, vector<4x4x48xf32>,
    return
  }
  func.func @transform_0(%arg0: i32) -> (i32, i32, i32) {
    %c0_i32 = arith.constant 0 : i32
    %c0_i32_0 = arith.constant 0 : i32
    %c0_i32_1 = arith.constant 0 : i32
    %c0_i32_2 = arith.constant 0 : i32
    return %c0_i32, %c0_i32_0, %c0_i32_1 : i32, i32, i32
  }
  func.func @transform_1(%arg0: i32) -> (i32, i32, i32) {
    %c0_i32 = arith.constant 0 : i32
    %c0_i32_0 = arith.constant 0 : i32
    %c0_i32_1 = arith.constant 0 : i32
    %c0_i32_2 = arith.constant 0 : i32
    return %c0_i32, %c0_i32_0, %c0_i32_1 : i32, i32, i32
  }
  func.func @transform_2(%arg0: i32) -> (i32, i32) {
    %c0_i32 = arith.constant 0 : i32
    %c0_i32_0 = arith.constant 0 : i32
    %c0_i32_1 = arith.constant 0 : i32
    return %c0_i32, %c0_i32_0 : i32, i32
  }
  func.func @transform_3(%arg0: i32) -> (i32, i32) {
    %c0_i32 = arith.constant 0 : i32
    %c0_i32_0 = arith.constant 0 : i32
    %c0_i32_1 = arith.constant 0 : i32
    return %c0_i32, %c0_i32_0 : i32, i32
  }
  func.func @transform_4(%arg0: i32) -> (i32, i32) {
    %c0_i32 = arith.constant 0 : i32
    %c0_i32_0 = arith.constant 0 : i32
    %c0_i32_1 = arith.constant 0 : i32
    return %c0_i32, %c0_i32_0 : i32, i32
  }
  func.func @transform_5(%arg0: i32) -> (i32, i32) {
    %c0_i32 = arith.constant 0 : i32
    %c0_i32_0 = arith.constant 0 : i32
    %c0_i32_1 = arith.constant 0 : i32
    return %c0_i32, %c0_i32_0 : i32, i32
  }
  func.func @transform_6(%arg0: i32) -> (i32, i32) {
    %c0_i32 = arith.constant 0 : i32
    %c0_i32_0 = arith.constant 0 : i32
    %c0_i32_1 = arith.constant 0 : i32
    return %c0_i32, %c0_i32_0 : i32, i32
  }
  func.func @transform_7(%arg0: i32) -> (i32, i32) {
    %c0_i32 = arith.constant 0 : i32
    %c0_i32_0 = arith.constant 0 : i32
    %c0_i32_1 = arith.constant 0 : i32
    return %c0_i32, %c0_i32_0 : i32, i32
  }
  func.func @transform_8(%arg0: i32) -> (i32, i32) {
    %c0_i32 = arith.constant 0 : i32
    %c0_i32_0 = arith.constant 0 : i32
    %c0_i32_1 = arith.constant 0 : i32
    return %c0_i32, %c0_i32_0 : i32, i32
  }
  func.func @transform_9(%arg0: i32) -> (i32, i32) {
    %c0_i32 = arith.constant 0 : i32
    %c0_i32_0 = arith.constant 0 : i32
    %c0_i32_1 = arith.constant 0 : i32
    return %c0_i32, %c0_i32_0 : i32, i32
  }
  func.func @transform_10(%arg0: i32) -> (i32, i32) {
    %c0_i32 = arith.constant 0 : i32
    %c0_i32_0 = arith.constant 0 : i32
    %c0_i32_1 = arith.constant 0 : i32
    return %c0_i32, %c0_i32_0 : i32, i32
  }
  func.func @transform_11(%arg0: i32) -> (i32, i32) {
    %c0_i32 = arith.constant 0 : i32
    %c0_i32_0 = arith.constant 0 : i32
    %c0_i32_1 = arith.constant 0 : i32
    return %c0_i32, %c0_i32_0 : i32, i32
  }
  func.func @transform_12(%arg0: i32) -> (i32, i32) {
    %c0_i32 = arith.constant 0 : i32
    %c0_i32_0 = arith.constant 0 : i32
    %c0_i32_1 = arith.constant 0 : i32
    return %c0_i32, %c0_i32_0 : i32, i32
  }
  func.func @transform_13(%arg0: i32) -> (i32, i32) {
    %c0_i32 = arith.constant 0 : i32
    %c0_i32_0 = arith.constant 0 : i32
    %c0_i32_1 = arith.constant 0 : i32
    return %c0_i32, %c0_i32_0 : i32, i32
  }
  func.func @transform_14(%arg0: i32) -> (i32, i32) {
    %c0_i32 = arith.constant 0 : i32
    %c0_i32_0 = arith.constant 0 : i32
    %c0_i32_1 = arith.constant 0 : i32
    return %c0_i32, %c0_i32_0 : i32, i32
  }
  func.func @transform_15(%arg0: i32) -> (i32, i32) {
    %c0_i32 = arith.constant 0 : i32
    %c0_i32_0 = arith.constant 0 : i32
    %c0_i32_1 = arith.constant 0 : i32
    return %c0_i32, %c0_i32_0 : i32, i32
  }
  func.func @transform_16(%arg0: i32) -> (i32, i32) {
    %c0_i32 = arith.constant 0 : i32
    %c0_i32_0 = arith.constant 0 : i32
    %c0_i32_1 = arith.constant 0 : i32
    return %c0_i32, %c0_i32_0 : i32, i32
  }
  func.func @transform_17(%arg0: i32) -> (i32, i32) {
    %c0_i32 = arith.constant 0 : i32
    %c0_i32_0 = arith.constant 0 : i32
    %c0_i32_1 = arith.constant 0 : i32
    return %c0_i32, %c0_i32_0 : i32, i32
  }
  func.func @transform_18(%arg0: i32) -> (i32, i32) {
    %c0_i32 = arith.constant 0 : i32
    %c0_i32_0 = arith.constant 0 : i32
    %c0_i32_1 = arith.constant 0 : i32
    return %c0_i32, %c0_i32_0 : i32, i32
  }
  func.func @transform_19(%arg0: i32) -> (i32, i32) {
    %c0_i32 = arith.constant 0 : i32
    %c0_i32_0 = arith.constant 0 : i32
    %c0_i32_1 = arith.constant 0 : i32
    return %c0_i32, %c0_i32_0 : i32, i32
  }
  func.func @transform_20(%arg0: i32) -> (i32, i32) {
    %c0_i32 = arith.constant 0 : i32
    %c0_i32_0 = arith.constant 0 : i32
    %c0_i32_1 = arith.constant 0 : i32
    return %c0_i32, %c0_i32_0 : i32, i32
  }
  func.func @transform_21(%arg0: i32) -> (i32, i32) {
    %c0_i32 = arith.constant 0 : i32
    %c0_i32_0 = arith.constant 0 : i32
    %c0_i32_1 = arith.constant 0 : i32
    return %c0_i32, %c0_i32_0 : i32, i32
  }
  func.func @transform_22(%arg0: i32) -> (i32, i32) {
    %c0_i32 = arith.constant 0 : i32
    %c0_i32_0 = arith.constant 0 : i32
    %c0_i32_1 = arith.constant 0 : i32
    return %c0_i32, %c0_i32_0 : i32, i32
  }
  func.func @transform_23(%arg0: i32) -> (i32, i32) {
    %c0_i32 = arith.constant 0 : i32
    %c0_i32_0 = arith.constant 0 : i32
    %c0_i32_1 = arith.constant 0 : i32
    return %c0_i32, %c0_i32_0 : i32, i32
  }
  func.func @transform_24(%arg0: i32) -> (i32, i32, i32) {
    %c0_i32 = arith.constant 0 : i32
    %c0_i32_0 = arith.constant 0 : i32
    %c0_i32_1 = arith.constant 0 : i32
    %c0_i32_2 = arith.constant 0 : i32
    return %c0_i32, %c0_i32_0, %c0_i32_1 : i32, i32, i32
  }
}

</mosaic_0001>

<llo_original>
// kernel: tdeepsc_imgr_forward.6
$region0: #{tdeepsc_imgr_forward.6}
  #allocation0 [shape = 'u32[]', space=smem, size = 0x4, offset = 0x4, fixed_abs, tag = 'smem constant byte address 0x4 - core index']
  #allocation1 [shape = 'u32[72,128]{1,0:T(1,128)}', space=vmem, size = 0x9000, scoped, tag = 'internal scratch']
  %s0 = inlined_call_operand.vmem [shape: f32[4,4,768], index: 0, kind: input, shape index: {}]
  %s1 = inlined_call_operand.vmem [shape: f32[768,32], index: 1, kind: input, shape index: {}]
  %s2 = inlined_call_operand.vmem [shape: f32[1,32], index: 2, kind: input, shape index: {}]
  %s3 = inlined_call_operand.vmem [shape: f32[1,4,32], index: 3, kind: input, shape index: {}]
  %s4 = inlined_call_operand.vmem [shape: f32[4,4,32], index: 4, kind: output, shape index: {}]
  %s5 = sld [smem:[#allocation0]]
  $region26: #{tdeepsc_imgr_forward.6} parent=0
    _
  %s7 = ssub.s32 1, %s5
  %s8 = scalar_select 0, %s7, %s5
  // Predicated region
  $region2: #{tdeepsc_imgr_forward.6} parent=0 // pred_check
    _
  $region3: #{tdeepsc_imgr_forward.6} parent=0 // pred_check_branch
    %10 = sbr.rel (0) target = $region5
  $region4: #{tdeepsc_imgr_forward.6} parent=0 // pred_region
    _
  $region5: #{tdeepsc_imgr_forward.6} parent=0 // pred_fallthru
    _
  // Predicated region
  $region6: #{tdeepsc_imgr_forward.6} parent=0 // pred_check
    _
  $region7: #{tdeepsc_imgr_forward.6} parent=0 // pred_check_branch
    %12 = sbr.rel (0) target = $region9
  $region8: #{tdeepsc_imgr_forward.6} parent=0 // pred_region
    _
  $region9: #{tdeepsc_imgr_forward.6} parent=0 // pred_fallthru
    _
  // Predicated region
  $region10: #{tdeepsc_imgr_forward.6} parent=0 // pred_check
    _
  $region11: #{tdeepsc_imgr_forward.6} parent=0 // pred_check_branch
    %14 = sbr.rel (0) target = $region13
  $region12: #{tdeepsc_imgr_forward.6} parent=0 // pred_region
    _
  $region13: #{tdeepsc_imgr_forward.6} parent=0 // pred_fallthru
    _
  // Predicated region
  $region14: #{tdeepsc_imgr_forward.6} parent=0 // pred_check
    _
  $region15: #{tdeepsc_imgr_forward.6} parent=0 // pred_check_branch
    %16 = sbr.rel (0) target = $region17
  $region16: #{tdeepsc_imgr_forward.6} parent=0 // pred_region
    _
  $region17: #{tdeepsc_imgr_forward.6} parent=0 // pred_fallthru
    _
  %v17 = vld [vmem:[%s0] sm:$0xff]
  %v18 = vld [vmem:[%s0 + $0x8] sm:$0xff]
  %v19 = vld [vmem:[%s0 + $0x10] sm:$0xff]
  %v20 = vld [vmem:[%s0 + $0x18] sm:$0xff]
  %v21 = vld [vmem:[%s0 + $0x20] sm:$0xff]
  %v22 = vld [vmem:[%s0 + $0x28] sm:$0xff]
  %v23 = vld [vmem:[%s0 + $0x30] sm:$0xff]
  %v24 = vld [vmem:[%s0 + $0x38] sm:$0xff]
  %v25 = vld [vmem:[%s0 + $0x40] sm:$0xff]
  %v26 = vld [vmem:[%s0 + $0x48] sm:$0xff]
  %v27 = vld [vmem:[%s0 + $0x50] sm:$0xff]
  %v28 = vld [vmem:[%s0 + $0x58] sm:$0xff]
  %v29 = vld [vmem:[%s1] sm:$0xff]
  %v30 = vld [vmem:[%s1 + $0x8] sm:$0xff]
  %v31 = vld [vmem:[%s1 + $0x10] sm:$0xff]
  %v32 = vld [vmem:[%s1 + $0x18] sm:$0xff]
  %v33 = vld [vmem:[%s1 + $0x20] sm:$0xff]
  %v34 = vld [vmem:[%s1 + $0x28] sm:$0xff]
  %v35 = vld [vmem:[%s1 + $0x30] sm:$0xff]
  %v36 = vld [vmem:[%s1 + $0x38] sm:$0xff]
  %v37 = vld [vmem:[%s1 + $0x40] sm:$0xff]
  %v38 = vld [vmem:[%s1 + $0x48] sm:$0xff]
  %v39 = vld [vmem:[%s1 + $0x50] sm:$0xff]
  %v40 = vld [vmem:[%s1 + $0x58] sm:$0xff]
  %v41 = vld [vmem:[%s1 + $0x60] sm:$0xff]
  %v42 = vld [vmem:[%s1 + $0x68] sm:$0xff]
  %v43 = vld [vmem:[%s1 + $0x70] sm:$0xff]
  %v44 = vld [vmem:[%s1 + $0x78] sm:$0xff]
  %v45 = vld [vmem:[%s1 + $0x80] sm:$0xff]
  %v46 = vld [vmem:[%s1 + $0x88] sm:$0xff]
  %v47 = vld [vmem:[%s1 + $0x90] sm:$0xff]
  %v48 = vld [vmem:[%s1 + $0x98] sm:$0xff]
  %v49 = vld [vmem:[%s1 + $0xa0] sm:$0xff]
  %v50 = vld [vmem:[%s1 + $0xa8] sm:$0xff]
  %v51 = vld [vmem:[%s1 + $0xb0] sm:$0xff]
  %v52 = vld [vmem:[%s1 + $0xb8] sm:$0xff]
  %v53 = vld [vmem:[%s1 + $0xc0] sm:$0xff]
  %v54 = vld [vmem:[%s1 + $0xc8] sm:$0xff]
  %v55 = vld [vmem:[%s1 + $0xd0] sm:$0xff]
  %v56 = vld [vmem:[%s1 + $0xd8] sm:$0xff]
  %v57 = vld [vmem:[%s1 + $0xe0] sm:$0xff]
  %v58 = vld [vmem:[%s1 + $0xe8] sm:$0xff]
  %v59 = vld [vmem:[%s1 + $0xf0] sm:$0xff]
  %v60 = vld [vmem:[%s1 + $0xf8] sm:$0xff]
  %v61 = vld [vmem:[%s1 + $0x100] sm:$0xff]
  %v62 = vld [vmem:[%s1 + $0x108] sm:$0xff]
  %v63 = vld [vmem:[%s1 + $0x110] sm:$0xff]
  %v64 = vld [vmem:[%s1 + $0x118] sm:$0xff]
  %v65 = vld [vmem:[%s1 + $0x120] sm:$0xff]
  %v66 = vld [vmem:[%s1 + $0x128] sm:$0xff]
  %v67 = vld [vmem:[%s1 + $0x130] sm:$0xff]
  %v68 = vld [vmem:[%s1 + $0x138] sm:$0xff]
  %v69 = vld [vmem:[%s1 + $0x140] sm:$0xff]
  %v70 = vld [vmem:[%s1 + $0x148] sm:$0xff]
  %v71 = vld [vmem:[%s1 + $0x150] sm:$0xff]
  %v72 = vld [vmem:[%s1 + $0x158] sm:$0xff]
  %v73 = vld [vmem:[%s1 + $0x160] sm:$0xff]
  %v74 = vld [vmem:[%s1 + $0x168] sm:$0xff]
  %v75 = vld [vmem:[%s1 + $0x170] sm:$0xff]
  %v76 = vld [vmem:[%s1 + $0x178] sm:$0xff]
  %v77 = vld [vmem:[%s1 + $0x180] sm:$0xff]
  %v78 = vld [vmem:[%s1 + $0x188] sm:$0xff]
  %v79 = vld [vmem:[%s1 + $0x190] sm:$0xff]
  %v80 = vld [vmem:[%s1 + $0x198] sm:$0xff]
  %v81 = vld [vmem:[%s1 + $0x1a0] sm:$0xff]
  %v82 = vld [vmem:[%s1 + $0x1a8] sm:$0xff]
  %v83 = vld [vmem:[%s1 + $0x1b0] sm:$0xff]
  %v84 = vld [vmem:[%s1 + $0x1b8] sm:$0xff]
  %v85 = vld [vmem:[%s1 + $0x1c0] sm:$0xff]
  %v86 = vld [vmem:[%s1 + $0x1c8] sm:$0xff]
  %v87 = vld [vmem:[%s1 + $0x1d0] sm:$0xff]
  %v88 = vld [vmem:[%s1 + $0x1d8] sm:$0xff]
  %v89 = vld [vmem:[%s1 + $0x1e0] sm:$0xff]
  %v90 = vld [vmem:[%s1 + $0x1e8] sm:$0xff]
  %v91 = vld [vmem:[%s1 + $0x1f0] sm:$0xff]
  %v92 = vld [vmem:[%s1 + $0x1f8] sm:$0xff]
  %v93 = vld [vmem:[%s1 + $0x200] sm:$0xff]
  %v94 = vld [vmem:[%s1 + $0x208] sm:$0xff]
  %v95 = vld [vmem:[%s1 + $0x210] sm:$0xff]
  %v96 = vld [vmem:[%s1 + $0x218] sm:$0xff]
  %v97 = vld [vmem:[%s1 + $0x220] sm:$0xff]
  %v98 = vld [vmem:[%s1 + $0x228] sm:$0xff]
  %v99 = vld [vmem:[%s1 + $0x230] sm:$0xff]
  %v100 = vld [vmem:[%s1 + $0x238] sm:$0xff]
  %v101 = vld [vmem:[%s1 + $0x240] sm:$0xff]
  %v102 = vld [vmem:[%s1 + $0x248] sm:$0xff]
  %v103 = vld [vmem:[%s1 + $0x250] sm:$0xff]
  %v104 = vld [vmem:[%s1 + $0x258] sm:$0xff]
  %v105 = vld [vmem:[%s1 + $0x260] sm:$0xff]
  %v106 = vld [vmem:[%s1 + $0x268] sm:$0xff]
  %v107 = vld [vmem:[%s1 + $0x270] sm:$0xff]
  %v108 = vld [vmem:[%s1 + $0x278] sm:$0xff]
  %v109 = vld [vmem:[%s1 + $0x280] sm:$0xff]
  %v110 = vld [vmem:[%s1 + $0x288] sm:$0xff]
  %v111 = vld [vmem:[%s1 + $0x290] sm:$0xff]
  %v112 = vld [vmem:[%s1 + $0x298] sm:$0xff]
  %v113 = vld [vmem:[%s1 + $0x2a0] sm:$0xff]
  %v114 = vld [vmem:[%s1 + $0x2a8] sm:$0xff]
  %v115 = vld [vmem:[%s1 + $0x2b0] sm:$0xff]
  %v116 = vld [vmem:[%s1 + $0x2b8] sm:$0xff]
  %v117 = vld [vmem:[%s1 + $0x2c0] sm:$0xff]
  %v118 = vld [vmem:[%s1 + $0x2c8] sm:$0xff]
  %v119 = vld [vmem:[%s1 + $0x2d0] sm:$0xff]
  %v120 = vld [vmem:[%s1 + $0x2d8] sm:$0xff]
  %v121 = vld [vmem:[%s1 + $0x2e0] sm:$0xff]
  %v122 = vld [vmem:[%s1 + $0x2e8] sm:$0xff]
  %v123 = vld [vmem:[%s1 + $0x2f0] sm:$0xff]
  %v124 = vld [vmem:[%s1 + $0x2f8] sm:$0xff]
  %137 = vst [vmem:[#allocation1] ss:$2 sm:$0xff] %v17
  %s138 = scalar_lea.vmem [#allocation1], 1
  %139 = vst [vmem:[%s138] ss:$2 sm:$0xff] %v20
  %s140 = scalar_lea.vmem [#allocation1], 16
  %141 = vst [vmem:[%s140] ss:$2 sm:$0xff] %v18
  %s142 = scalar_lea.vmem [#allocation1], 17
  %143 = vst [vmem:[%s142] ss:$2 sm:$0xff] %v21
  %s144 = scalar_lea.vmem [#allocation1], 32
  %145 = vst [vmem:[%s144] ss:$2 sm:$0xff] %v19
  %s146 = scalar_lea.vmem [#allocation1], 33
  %147 = vst [vmem:[%s146] ss:$2 sm:$0xff] %v22
  %s148 = scalar_lea.vmem [#allocation1], 48
  %149 = vst [vmem:[%s148] ss:$2 sm:$0xff] %v23
  %s150 = scalar_lea.vmem [#allocation1], 49
  %151 = vst [vmem:[%s150] ss:$2 sm:$0xff] %v26
  %v152 = vld.sshfl [vmem:[#allocation1] sm:$0xff pattern:$0x75316420]
  %v153 = vld.sshfl [vmem:[#allocation1 + $0x8] sm:$0xff pattern:$0x75316420]
  %v154 = vld.sshfl [vmem:[#allocation1 + $0x10] sm:$0xff pattern:$0x75316420]
  %v155 = vld.sshfl [vmem:[#allocation1 + $0x18] sm:$0xff pattern:$0x75316420]
  %v156 = vld.sshfl [vmem:[#allocation1 + $0x20] sm:$0xff pattern:$0x75316420]
  %v157 = vld.sshfl [vmem:[#allocation1 + $0x28] sm:$0xff pattern:$0x75316420]
  %v158 = vld.sshfl [vmem:[#allocation1 + $0x30] sm:$0xff pattern:$0x75316420]
  %v159 = vld.sshfl [vmem:[#allocation1 + $0x38] sm:$0xff pattern:$0x75316420]
  %160 = vst [vmem:[#allocation1] ss:$2 sm:$0xff] %v24
  %161 = vst [vmem:[%s138] ss:$2 sm:$0xff] %v27
  %162 = vst [vmem:[%s140] ss:$2 sm:$0xff] %v25
  %163 = vst [vmem:[%s142] ss:$2 sm:$0xff] %v28
  %v164 = vld.sshfl [vmem:[#allocation1] sm:$0xff pattern:$0x75316420]
  %v165 = vld.sshfl [vmem:[#allocation1 + $0x8] sm:$0xff pattern:$0x75316420]
  %v166 = vld.sshfl [vmem:[#allocation1 + $0x10] sm:$0xff pattern:$0x75316420]
  %v167 = vld.sshfl [vmem:[#allocation1 + $0x18] sm:$0xff pattern:$0x75316420]
  %v180 = vpack.c.bf16 %v158, %v152
  %v181 = vpack.c.bf16 %v159, %v153
  %v182 = vpack.c.bf16 %v164, %v154
  %v183 = vpack.c.bf16 %v165, %v155
  %v184 = vpack.c.bf16 %v166, %v156
  %v185 = vpack.c.bf16 %v167, %v157
  %v186 = vpack.c.bf16 %v30, %v29
  %v187 = vpack.c.bf16 %v32, %v31
  %v188 = vpack.c.bf16 %v34, %v33
  %v189 = vpack.c.bf16 %v36, %v35
  %v190 = vpack.c.bf16 %v38, %v37
  %v191 = vpack.c.bf16 %v40, %v39
  %v192 = vpack.c.bf16 %v42, %v41
  %v193 = vpack.c.bf16 %v44, %v43
  %v194 = vpack.c.bf16 %v46, %v45
  %v195 = vpack.c.bf16 %v48, %v47
  %v196 = vpack.c.bf16 %v50, %v49
  %v197 = vpack.c.bf16 %v52, %v51
  %v198 = vpack.c.bf16 %v54, %v53
  %v199 = vpack.c.bf16 %v56, %v55
  %v200 = vpack.c.bf16 %v58, %v57
  %v201 = vpack.c.bf16 %v60, %v59
  %v202 = vpack.c.bf16 %v62, %v61
  %v203 = vpack.c.bf16 %v64, %v63
  %v204 = vpack.c.bf16 %v66, %v65
  %v205 = vpack.c.bf16 %v68, %v67
  %v206 = vpack.c.bf16 %v70, %v69
  %v207 = vpack.c.bf16 %v72, %v71
  %v208 = vpack.c.bf16 %v74, %v73
  %v209 = vpack.c.bf16 %v76, %v75
  %v210 = vpack.c.bf16 %v78, %v77
  %v211 = vpack.c.bf16 %v80, %v79
  %v212 = vpack.c.bf16 %v82, %v81
  %v213 = vpack.c.bf16 %v84, %v83
  %v214 = vpack.c.bf16 %v86, %v85
  %v215 = vpack.c.bf16 %v88, %v87
  %v216 = vpack.c.bf16 %v90, %v89
  %v217 = vpack.c.bf16 %v92, %v91
  %v218 = vpack.c.bf16 %v94, %v93
  %v219 = vpack.c.bf16 %v96, %v95
  %v220 = vpack.c.bf16 %v98, %v97
  %v221 = vpack.c.bf16 %v100, %v99
  %v222 = vpack.c.bf16 %v102, %v101
  %v223 = vpack.c.bf16 %v104, %v103
  %v224 = vpack.c.bf16 %v106, %v105
  %v225 = vpack.c.bf16 %v108, %v107
  %v226 = vpack.c.bf16 %v110, %v109
  %v227 = vpack.c.bf16 %v112, %v111
  %v228 = vpack.c.bf16 %v114, %v113
  %v229 = vpack.c.bf16 %v116, %v115
  %v230 = vpack.c.bf16 %v118, %v117
  %v231 = vpack.c.bf16 %v120, %v119
  %v232 = vpack.c.bf16 %v122, %v121
  %v233 = vpack.c.bf16 %v124, %v123
  %v234 = vld [vmem:[%s2] sm:$0x1]
  %v236 = vperm.slane %v234, 0
  %238 = vmatpush.bf16.msra.mxu0 %v193
  %239 = vmatpush.bf16.msra.mxu0 %v192
  %240 = vmatpush.bf16.msra.mxu0 %v191
  %241 = vmatpush.bf16.msra.mxu0 %v190
  %242 = vmatpush.bf16.msra.mxu0 %v189
  %243 = vmatpush.bf16.msra.mxu0 %v188
  %244 = vmatpush.bf16.msra.mxu0 %v187
  %245 = vmatpush.bf16.msra.mxu0 %v186
  %246 = vmatmul.bf16.gmra.mxu0 %v180
  %v247 = vpop.f32.mrf.mxu0
  %v248 = vadd.f32 %v236, %v247
  %v249 = vpop.f32.mrf.mxu0
  %v250 = vadd.f32 %v236, %v249
  %251 = vdwg.mxu0
  %252 = vmatpush.bf16.msra.mxu0 %v201
  %253 = vmatpush.bf16.msra.mxu0 %v200
  %254 = vmatpush.bf16.msra.mxu0 %v199
  %255 = vmatpush.bf16.msra.mxu0 %v198
  %256 = vmatpush.bf16.msra.mxu0 %v197
  %257 = vmatpush.bf16.msra.mxu0 %v196
  %258 = vmatpush.bf16.msra.mxu0 %v195
  %259 = vmatpush.bf16.msra.mxu0 %v194
  %260 = vmatmul.bf16.gmra.mxu0 %v181
  %v261 = vpop.f32.mrf.mxu0
  %v262 = vadd.f32 %v248, %v261
  %v263 = vpop.f32.mrf.mxu0
  %v264 = vadd.f32 %v250, %v263
  %265 = vdwg.mxu0
  %266 = vmatpush.bf16.msra.mxu0 %v209
  %267 = vmatpush.bf16.msra.mxu0 %v208
  %268 = vmatpush.bf16.msra.mxu0 %v207
  %269 = vmatpush.bf16.msra.mxu0 %v206
  %270 = vmatpush.bf16.msra.mxu0 %v205
  %271 = vmatpush.bf16.msra.mxu0 %v204
  %272 = vmatpush.bf16.msra.mxu0 %v203
  %273 = vmatpush.bf16.msra.mxu0 %v202
  %274 = vmatmul.bf16.gmra.mxu0 %v182
  %v275 = vpop.f32.mrf.mxu0
  %v276 = vadd.f32 %v262, %v275
  %v277 = vpop.f32.mrf.mxu0
  %v278 = vadd.f32 %v264, %v277
  %279 = vdwg.mxu0
  %280 = vmatpush.bf16.msra.mxu0 %v217
  %281 = vmatpush.bf16.msra.mxu0 %v216
  %282 = vmatpush.bf16.msra.mxu0 %v215
  %283 = vmatpush.bf16.msra.mxu0 %v214
  %284 = vmatpush.bf16.msra.mxu0 %v213
  %285 = vmatpush.bf16.msra.mxu0 %v212
  %286 = vmatpush.bf16.msra.mxu0 %v211
  %287 = vmatpush.bf16.msra.mxu0 %v210
  %288 = vmatmul.bf16.gmra.mxu0 %v183
  %v289 = vpop.f32.mrf.mxu0
  %v290 = vadd.f32 %v276, %v289
  %v291 = vpop.f32.mrf.mxu0
  %v292 = vadd.f32 %v278, %v291
  %293 = vdwg.mxu0
  %294 = vmatpush.bf16.msra.mxu0 %v225
  %295 = vmatpush.bf16.msra.mxu0 %v224
  %296 = vmatpush.bf16.msra.mxu0 %v223
  %297 = vmatpush.bf16.msra.mxu0 %v222
  %298 = vmatpush.bf16.msra.mxu0 %v221
  %299 = vmatpush.bf16.msra.mxu0 %v220
  %300 = vmatpush.bf16.msra.mxu0 %v219
  %301 = vmatpush.bf16.msra.mxu0 %v218
  %302 = vmatmul.bf16.gmra.mxu0 %v184
  %v303 = vpop.f32.mrf.mxu0
  %v304 = vadd.f32 %v290, %v303
  %v305 = vpop.f32.mrf.mxu0
  %v306 = vadd.f32 %v292, %v305
  %307 = vdwg.mxu0
  %308 = vmatpush.bf16.msra.mxu0 %v233
  %309 = vmatpush.bf16.msra.mxu0 %v232
  %310 = vmatpush.bf16.msra.mxu0 %v231
  %311 = vmatpush.bf16.msra.mxu0 %v230
  %312 = vmatpush.bf16.msra.mxu0 %v229
  %313 = vmatpush.bf16.msra.mxu0 %v228
  %314 = vmatpush.bf16.msra.mxu0 %v227
  %315 = vmatpush.bf16.msra.mxu0 %v226
  %316 = vmatmul.bf16.gmra.mxu0 %v185
  %v317 = vpop.f32.mrf.mxu0
  %v318 = vadd.f32 %v304, %v317
  %v319 = vpop.f32.mrf.mxu0
  %v320 = vadd.f32 %v306, %v319
  %321 = vdwg.mxu0
  %v324 = vrot.slane %v318, 4
  %v325 = vrot.slane %v320, 4
  %v328 = vld [vmem:[%s3] sm:$0xf]
  %v329 = vadd.f32 %v318, %v328
  %v330 = vadd.f32 %v324, %v328
  %v331 = vadd.f32 %v320, %v328
  %v332 = vadd.f32 %v325, %v328
  %vm333 = vcmask 257024
  %334 = vst.msk [vmem:[%s4] sm:$0xf] %vm333, %v329
  %335 = vst.msk [vmem:[%s4 + $0x4] sm:$0xf] %vm333, %v330
  %336 = vst.msk [vmem:[%s4 + $0x8] sm:$0xf] %vm333, %v331
  %337 = vst.msk [vmem:[%s4 + $0xc] sm:$0xf] %vm333, %v332
  // Predicated region
  $region18: #{tdeepsc_imgr_forward.6} parent=0 // pred_check
    _
  $region19: #{tdeepsc_imgr_forward.6} parent=0 // pred_check_branch
    %339 = sbr.rel (0) target = $region21
  $region20: #{tdeepsc_imgr_forward.6} parent=0 // pred_region
    _
  $region21: #{tdeepsc_imgr_forward.6} parent=0 // pred_fallthru
    _
  // Predicated region
  $region22: #{tdeepsc_imgr_forward.6} parent=0 // pred_check
    _
  $region23: #{tdeepsc_imgr_forward.6} parent=0 // pred_check_branch
    %341 = sbr.rel (0) target = $region25
  $region24: #{tdeepsc_imgr_forward.6} parent=0 // pred_region
    _
  $region25: #{tdeepsc_imgr_forward.6} parent=0 // pred_fallthru
    _

// kernel: tdeepsc_imgr_forward.9
$region0: #{tdeepsc_imgr_forward.9}
  #allocation0 [shape = 'u32[]', space=smem, size = 0x4, offset = 0x4, fixed_abs, tag = 'smem constant byte address 0x4 - core index']
  #allocation1 [shape = 'u32[72,128]{1,0:T(1,128)}', space=vmem, size = 0x9000, scoped, tag = 'internal scratch']
  %s0 = inlined_call_operand.vmem [shape: f32[4,4,32], index: 0, kind: input, shape index: {}]
  %s1 = inlined_call_operand.vmem [shape: f32[1,32], index: 1, kind: input, shape index: {}]
  %s2 = inlined_call_operand.vmem [shape: f32[1,32], index: 2, kind: input, shape index: {}]
  %s3 = inlined_call_operand.vmem [shape: f32[32,16], index: 3, kind: input, shape index: {}]
  %s4 = inlined_call_operand.vmem [shape: f32[1,16], index: 4, kind: input, shape index: {}]
  %s5 = inlined_call_operand.vmem [shape: f32[32,8], index: 5, kind: input, shape index: {}]
  %s6 = inlined_call_operand.vmem [shape: f32[1,8], index: 6, kind: input, shape index: {}]
  %s7 = inlined_call_operand.vmem [shape: f32[16,8], index: 7, kind: input, shape index: {}]
  %s8 = inlined_call_operand.vmem [shape: f32[1,8], index: 8, kind: input, shape index: {}]
  %s9 = inlined_call_operand.vmem [shape: f32[16,32], index: 9, kind: input, shape index: {}]
  %s10 = inlined_call_operand.vmem [shape: f32[1,32], index: 10, kind: input, shape index: {}]
  %s11 = inlined_call_operand.vmem [shape: f32[4,4,32], index: 11, kind: output, shape index: {}]
  %s12 = sld [smem:[#allocation0]]
  $region54: #{tdeepsc_imgr_forward.9} parent=0
    _
  %s14 = ssub.s32 1, %s12
  %s15 = scalar_select 0, %s14, %s12
  // Predicated region
  $region2: #{tdeepsc_imgr_forward.9} parent=0 // pred_check
    _
  $region3: #{tdeepsc_imgr_forward.9} parent=0 // pred_check_branch
    %17 = sbr.rel (0) target = $region5
  $region4: #{tdeepsc_imgr_forward.9} parent=0 // pred_region
    _
  $region5: #{tdeepsc_imgr_forward.9} parent=0 // pred_fallthru
    _
  // Predicated region
  $region6: #{tdeepsc_imgr_forward.9} parent=0 // pred_check
    _
  $region7: #{tdeepsc_imgr_forward.9} parent=0 // pred_check_branch
    %19 = sbr.rel (0) target = $region9
  $region8: #{tdeepsc_imgr_forward.9} parent=0 // pred_region
    _
  $region9: #{tdeepsc_imgr_forward.9} parent=0 // pred_fallthru
    _
  // Predicated region
  $region10: #{tdeepsc_imgr_forward.9} parent=0 // pred_check
    _
  $region11: #{tdeepsc_imgr_forward.9} parent=0 // pred_check_branch
    %21 = sbr.rel (0) target = $region13
  $region12: #{tdeepsc_imgr_forward.9} parent=0 // pred_region
    _
  $region13: #{tdeepsc_imgr_forward.9} parent=0 // pred_fallthru
    _
  // Predicated region
  $region14: #{tdeepsc_imgr_forward.9} parent=0 // pred_check
    _
  $region15: #{tdeepsc_imgr_forward.9} parent=0 // pred_check_branch
    %23 = sbr.rel (0) target = $region17
  $region16: #{tdeepsc_imgr_forward.9} parent=0 // pred_region
    _
  $region17: #{tdeepsc_imgr_forward.9} parent=0 // pred_fallthru
    _
  // Predicated region
  $region18: #{tdeepsc_imgr_forward.9} parent=0 // pred_check
    _
  $region19: #{tdeepsc_imgr_forward.9} parent=0 // pred_check_branch
    %25 = sbr.rel (0) target = $region21
  $region20: #{tdeepsc_imgr_forward.9} parent=0 // pred_region
    _
  $region21: #{tdeepsc_imgr_forward.9} parent=0 // pred_fallthru
    _
  // Predicated region
  $region22: #{tdeepsc_imgr_forward.9} parent=0 // pred_check
    _
  $region23: #{tdeepsc_imgr_forward.9} parent=0 // pred_check_branch
    %27 = sbr.rel (0) target = $region25
  $region24: #{tdeepsc_imgr_forward.9} parent=0 // pred_region
    _
  $region25: #{tdeepsc_imgr_forward.9} parent=0 // pred_fallthru
    _
  // Predicated region
  $region26: #{tdeepsc_imgr_forward.9} parent=0 // pred_check
    _
  $region27: #{tdeepsc_imgr_forward.9} parent=0 // pred_check_branch
    %29 = sbr.rel (0) target = $region29
  $region28: #{tdeepsc_imgr_forward.9} parent=0 // pred_region
    _
  $region29: #{tdeepsc_imgr_forward.9} parent=0 // pred_fallthru
    _
  // Predicated region
  $region30: #{tdeepsc_imgr_forward.9} parent=0 // pred_check
    _
  $region31: #{tdeepsc_imgr_forward.9} parent=0 // pred_check_branch
    %31 = sbr.rel (0) target = $region33
  $region32: #{tdeepsc_imgr_forward.9} parent=0 // pred_region
    _
  $region33: #{tdeepsc_imgr_forward.9} parent=0 // pred_fallthru
    _
  // Predicated region
  $region34: #{tdeepsc_imgr_forward.9} parent=0 // pred_check
    _
  $region35: #{tdeepsc_imgr_forward.9} parent=0 // pred_check_branch
    %33 = sbr.rel (0) target = $region37
  $region36: #{tdeepsc_imgr_forward.9} parent=0 // pred_region
    _
  $region37: #{tdeepsc_imgr_forward.9} parent=0 // pred_fallthru
    _
  // Predicated region
  $region38: #{tdeepsc_imgr_forward.9} parent=0 // pred_check
    _
  $region39: #{tdeepsc_imgr_forward.9} parent=0 // pred_check_branch
    %35 = sbr.rel (0) target = $region41
  $region40: #{tdeepsc_imgr_forward.9} parent=0 // pred_region
    _
  $region41: #{tdeepsc_imgr_forward.9} parent=0 // pred_fallthru
    _
  // Predicated region
  $region42: #{tdeepsc_imgr_forward.9} parent=0 // pred_check
    _
  $region43: #{tdeepsc_imgr_forward.9} parent=0 // pred_check_branch
    %37 = sbr.rel (0) target = $region45
  $region44: #{tdeepsc_imgr_forward.9} parent=0 // pred_region
    _
  $region45: #{tdeepsc_imgr_forward.9} parent=0 // pred_fallthru
    _
  %v39 = vld [vmem:[%s0] sm:$0xf]
  %v40 = vld [vmem:[%s0 + $0x4] sm:$0xf]
  %v41 = vld [vmem:[%s0 + $0x8] sm:$0xf]
  %v42 = vld [vmem:[%s0 + $0xc] sm:$0xf]
  %v43 = vld [vmem:[%s1] sm:$0x1]
  %v44 = vld [vmem:[%s2] sm:$0x1]
  %vm45 = vcmask 257024
  %v46 = vsel %vm45, %v39, 0.0
  %47 = vadd.xlane.f32.xlu0 %v46
  %v48 = vpop.xlane.xlu0 %47
  %v49 = vsel %vm45, %v40, 0.0
  %50 = vadd.xlane.f32.xlu0 %v49
  %v51 = vpop.xlane.xlu0 %50
  %v52 = vsel %vm45, %v41, 0.0
  %53 = vadd.xlane.f32.xlu0 %v52
  %v54 = vpop.xlane.xlu0 %53
  %v55 = vsel %vm45, %v42, 0.0
  %56 = vadd.xlane.f32.xlu0 %v55
  %v57 = vpop.xlane.xlu0 %56
  %v58 = vrcp.pop 32.0
  %v59 = vmul.f32 32.0, %v58
  %v60 = vsub.f32 1.0, %v59
  %v61 = vmul.f32 %v58, %v60
  %v62 = vadd.f32 %v58, %v61
  %vm63 = vweird.f32 %v58
  %v64 = vsel %vm63, %v58, %v62
  %v65 = vmul.f32 %v48, %v64
  %v66 = vmul.f32 %v51, %v64
  %v67 = vmul.f32 %v54, %v64
  %v68 = vmul.f32 %v57, %v64
  %v69 = vsub.f32 %v39, %v65
  %v70 = vsub.f32 %v40, %v66
  %v71 = vsub.f32 %v41, %v67
  %v72 = vsub.f32 %v42, %v68
  %v73 = vmul.f32 %v69, %v69
  %v74 = vmul.f32 %v70, %v70
  %v75 = vmul.f32 %v71, %v71
  %v76 = vmul.f32 %v72, %v72
  %v77 = vsel %vm45, %v73, 0.0
  %78 = vadd.xlane.f32.xlu0 %v77
  %v79 = vpop.xlane.xlu0 %78
  %v80 = vsel %vm45, %v74, 0.0
  %81 = vadd.xlane.f32.xlu0 %v80
  %v82 = vpop.xlane.xlu0 %81
  %v83 = vsel %vm45, %v75, 0.0
  %84 = vadd.xlane.f32.xlu0 %v83
  %v85 = vpop.xlane.xlu0 %84
  %v86 = vsel %vm45, %v76, 0.0
  %87 = vadd.xlane.f32.xlu0 %v86
  %v88 = vpop.xlane.xlu0 %87
  %v89 = vmul.f32 %v79, %v64
  %v90 = vmul.f32 %v82, %v64
  %v91 = vmul.f32 %v85, %v64
  %v92 = vmul.f32 %v88, %v64
  %v93 = vadd.f32 %v89, 1e-06
  %v94 = vadd.f32 %v90, 1e-06
  %v95 = vadd.f32 %v91, 1e-06
  %v96 = vadd.f32 %v92, 1e-06
  %v97 = vrsqrt.pop %v93
  %v98 = vmul.f32 %v97, %v93
  %v99 = vmul.f32 %v98, %v97
  %v100 = vmul.f32 0.5, %v99
  %v101 = vsub.f32 1.5, %v100
  %v102 = vmul.f32 %v97, %v101
  %vm103 = vweird.f32 %v93
  %vm104 = vweird.f32 %v97
  %vm105 = vmor %vm103, %vm104
  %v106 = vsel %vm105, %v97, %v102
  %v107 = vrsqrt.pop %v94
  %v108 = vmul.f32 %v107, %v94
  %v109 = vmul.f32 %v108, %v107
  %v110 = vmul.f32 0.5, %v109
  %v111 = vsub.f32 1.5, %v110
  %v112 = vmul.f32 %v107, %v111
  %vm113 = vweird.f32 %v94
  %vm114 = vweird.f32 %v107
  %vm115 = vmor %vm113, %vm114
  %v116 = vsel %vm115, %v107, %v112
  %v117 = vrsqrt.pop %v95
  %v118 = vmul.f32 %v117, %v95
  %v119 = vmul.f32 %v118, %v117
  %v120 = vmul.f32 0.5, %v119
  %v121 = vsub.f32 1.5, %v120
  %v122 = vmul.f32 %v117, %v121
  %vm123 = vweird.f32 %v95
  %vm124 = vweird.f32 %v117
  %vm125 = vmor %vm123, %vm124
  %v126 = vsel %vm125, %v117, %v122
  %v127 = vrsqrt.pop %v96
  %v128 = vmul.f32 %v127, %v96
  %v129 = vmul.f32 %v128, %v127
  %v130 = vmul.f32 0.5, %v129
  %v131 = vsub.f32 1.5, %v130
  %v132 = vmul.f32 %v127, %v131
  %vm133 = vweird.f32 %v96
  %vm134 = vweird.f32 %v127
  %vm135 = vmor %vm133, %vm134
  %v136 = vsel %vm135, %v127, %v132
  %v137 = vmul.f32 %v69, %v106
  %v138 = vmul.f32 %v70, %v116
  %v139 = vmul.f32 %v71, %v126
  %v140 = vmul.f32 %v72, %v136
  %v142 = vperm.slane %v43, 0
  %v144 = vmul.f32 %v137, %v142
  %v145 = vmul.f32 %v138, %v142
  %v146 = vmul.f32 %v139, %v142
  %v147 = vmul.f32 %v140, %v142
  %v149 = vperm.slane %v44, 0
  %v151 = vadd.f32 %v144, %v149
  %v152 = vadd.f32 %v145, %v149
  %v153 = vadd.f32 %v146, %v149
  %v154 = vadd.f32 %v147, %v149
  %v155 = vld [vmem:[%s3] sm:$0xff]
  %v156 = vld [vmem:[%s3 + $0x8] sm:$0xff]
  %v157 = vld [vmem:[%s3 + $0x10] sm:$0xff]
  %v158 = vld [vmem:[%s3 + $0x18] sm:$0xff]
  %163 = vst [vmem:[#allocation1] ss:$2 sm:$0xff] %v151
  %s164 = scalar_lea.vmem [#allocation1], 1
  %165 = vst [vmem:[%s164] ss:$2 sm:$0xff] %v152
  %s166 = scalar_lea.vmem [#allocation1], 16
  %167 = vst [vmem:[%s166] ss:$2 sm:$0xff] %v153
  %s168 = scalar_lea.vmem [#allocation1], 17
  %169 = vst [vmem:[%s168] ss:$2 sm:$0xff] %v154
  %v170 = vld.sshfl [vmem:[#allocation1] sm:$0xff pattern:$0x75316420]
  %v171 = vld.sshfl [vmem:[#allocation1 + $0x10] sm:$0xff pattern:$0x75316420]
  %v174 = vpack.c.bf16 %v171, %v170
  %v175 = vpack.c.bf16 %v156, %v155
  %v176 = vpack.c.bf16 %v158, %v157
  %v177 = vld [vmem:[%s4] sm:$0x1]
  %v179 = vperm.slane %v177, 0
  %vm181 = vcmask 261120
  %v183 = vsel %vm181, %v174, 0
  %185 = vmatpush.bf16.msra.mxu0 0
  %186 = vmatpush.bf16.msra.mxu0 0
  %187 = vmatpush.bf16.msra.mxu0 0
  %188 = vmatpush.bf16.msra.mxu0 0
  %189 = vmatpush.bf16.msra.mxu0 0
  %190 = vmatpush.bf16.msra.mxu0 0
  %191 = vmatpush.bf16.msra.mxu0 %v176
  %192 = vmatpush.bf16.msra.mxu0 %v175
  %193 = vmatmul.bf16.gmra.mxu0 %v183
  %v194 = vpop.f32.mrf.mxu0
  %v195 = vadd.f32 %v179, %v194
  %v196 = vpop.f32.mrf.mxu0
  %v197 = vadd.f32 %v179, %v196
  %198 = vdwg.mxu0
  %v201 = vrot.slane %v195, 4
  %v202 = vrot.slane %v197, 4
  %203 = vst [vmem:[#allocation1] ss:$2 sm:$0xff] %v201
  %v204 = vld.sshfl [vmem:[#allocation1] sm:$0xff pattern:$0x75316420]
  %205 = vrot.lane.b32.xlu0 %v204, 16
  %v206 = vpop.permute.xlu0 %205
  %vm208 = vcmask 130048
  %v209 = vsel %vm208, %v195, %v206
  %210 = vst [vmem:[#allocation1] ss:$2 sm:$0xff] %v202
  %v211 = vld.sshfl [vmem:[#allocation1] sm:$0xff pattern:$0x75316420]
  %212 = vrot.lane.b32.xlu0 %v211, 16
  %v213 = vpop.permute.xlu0 %212
  %v215 = vsel %vm208, %v197, %v213
  %v216 = vld [vmem:[%s5] sm:$0xff]
  %v217 = vld [vmem:[%s5 + $0x8] sm:$0xff]
  %v218 = vld [vmem:[%s5 + $0x10] sm:$0xff]
  %v219 = vld [vmem:[%s5 + $0x18] sm:$0xff]
  %222 = vst [vmem:[#allocation1] ss:$2 sm:$0xff] %v209
  %s223 = scalar_lea.vmem [#allocation1], 1
  %224 = vst [vmem:[%s223] ss:$2 sm:$0xff] %v215
  %v225 = vld.sshfl [vmem:[#allocation1] sm:$0xff pattern:$0x75316420]
  %v227 = vpack.c.bf16 %v225, %v225
  %v228 = vpack.c.bf16 %v217, %v216
  %v229 = vpack.c.bf16 %v219, %v218
  %v230 = vld [vmem:[%s6] sm:$0x1]
  %v232 = vperm.slane %v230, 0
  %v235 = vsel %vm181, %v227, 0
  %237 = vmatpush.bf16.msra.mxu0 0
  %238 = vmatpush.bf16.msra.mxu0 0
  %239 = vmatpush.bf16.msra.mxu0 0
  %240 = vmatpush.bf16.msra.mxu0 0
  %241 = vmatpush.bf16.msra.mxu0 0
  %242 = vmatpush.bf16.msra.mxu0 0
  %243 = vmatpush.bf16.msra.mxu0 %v229
  %244 = vmatpush.bf16.msra.mxu0 %v228
  %245 = vmatmul.bf16.gmra.mxu0 %v235
  %v246 = vpop.f32.mrf.mxu0
  %v247 = vadd.f32 %v232, %v246
  %v248 = vpop.f32.mrf.mxu0
  %249 = vdwg.mxu0
  %v251 = vrot.slane %v247, 4
  %v253 = vld [vmem:[%s7] sm:$0xff]
  %v254 = vld [vmem:[%s7 + $0x8] sm:$0xff]
  %v255 = vpack.c.bf16 %v197, %v195
  %v256 = vpack.c.bf16 %v254, %v253
  %v257 = vld [vmem:[%s8] sm:$0x1]
  %v259 = vperm.slane %v257, 0
  %v262 = vsel %vm208, %v255, 0
  %264 = vmatpush.bf16.msra.mxu0 0
  %265 = vmatpush.bf16.msra.mxu0 0
  %266 = vmatpush.bf16.msra.mxu0 0
  %267 = vmatpush.bf16.msra.mxu0 0
  %268 = vmatpush.bf16.msra.mxu0 0
  %269 = vmatpush.bf16.msra.mxu0 0
  %270 = vmatpush.bf16.msra.mxu0 0
  %271 = vmatpush.bf16.msra.mxu0 %v256
  %272 = vmatmul.bf16.gmra.mxu0 %v262
  %v273 = vpop.f32.mrf.mxu0
  %v274 = vadd.f32 %v259, %v273
  %v275 = vpop.f32.mrf.mxu0
  %v276 = vadd.f32 %v259, %v275
  %277 = vdwg.mxu0
  %v280 = vrot.slane %v274, 4
  %v281 = vrot.slane %v276, 4
  %282 = vst [vmem:[#allocation1] ss:$2 sm:$0xff] %v274
  %v283 = vld.sshfl [vmem:[#allocation1] sm:$0xff pattern:$0x75316420]
  %284 = vrot.lane.b32.xlu0 %v283, 8
  %v285 = vpop.permute.xlu0 %284
  %vm287 = vcmask 64512
  %v288 = vsel %vm287, %v247, %v285
  %289 = vst [vmem:[#allocation1] ss:$2 sm:$0xff] %v280
  %v290 = vld.sshfl [vmem:[#allocation1] sm:$0xff pattern:$0x75316420]
  %291 = vrot.lane.b32.xlu0 %v290, 8
  %v292 = vpop.permute.xlu0 %291
  %v294 = vsel %vm287, %v247, %v292
  %295 = vst [vmem:[#allocation1] ss:$2 sm:$0xff] %v276
  %v296 = vld.sshfl [vmem:[#allocation1] sm:$0xff pattern:$0x75316420]
  %297 = vrot.lane.b32.xlu0 %v296, 8
  %v298 = vpop.permute.xlu0 %297
  %v300 = vsel %vm287, %v251, %v298
  %301 = vst [vmem:[#allocation1] ss:$2 sm:$0xff] %v281
  %v302 = vld.sshfl [vmem:[#allocation1] sm:$0xff pattern:$0x75316420]
  %303 = vrot.lane.b32.xlu0 %v302, 8
  %v304 = vpop.permute.xlu0 %303
  %v306 = vsel %vm287, %v251, %v304
  %v307 = vmul.f32 %v288, %v288
  %v308 = vmul.f32 %v294, %v294
  %v309 = vmul.f32 %v300, %v300
  %v310 = vmul.f32 %v306, %v306
  %vm311 = vcmask 125952
  %v312 = vsel %vm311, %v307, 0.0
  %313 = vadd.xlane.f32.xlu0 %v312
  %v314 = vpop.xlane.xlu0 %313
  %v315 = vsel %vm311, %v308, 0.0
  %316 = vadd.xlane.f32.xlu0 %v315
  %v317 = vpop.xlane.xlu0 %316
  %v318 = vsel %vm311, %v309, 0.0
  %319 = vadd.xlane.f32.xlu0 %v318
  %v320 = vpop.xlane.xlu0 %319
  %v321 = vsel %vm311, %v310, 0.0
  %322 = vadd.xlane.f32.xlu0 %v321
  %v323 = vpop.xlane.xlu0 %322
  %vm324 = vcmask 1043456
  %v325 = vsel %vm324, %v314, 0.0
  %v326 = vrot.slane %v325, 4
  %v327 = vadd.f32 %v325, %v326
  %v328 = vrot.slane %v327, 2
  %v329 = vadd.f32 %v327, %v328
  %v330 = vrot.slane %v329, 1
  %v331 = vadd.f32 %v329, %v330
  %v332 = vsel %vm324, %v317, 0.0
  %v333 = vrot.slane %v332, 4
  %v334 = vadd.f32 %v332, %v333
  %v335 = vrot.slane %v334, 2
  %v336 = vadd.f32 %v334, %v335
  %v337 = vrot.slane %v336, 1
  %v338 = vadd.f32 %v336, %v337
  %v339 = vsel %vm324, %v320, 0.0
  %v340 = vrot.slane %v339, 4
  %v341 = vadd.f32 %v339, %v340
  %v342 = vrot.slane %v341, 2
  %v343 = vadd.f32 %v341, %v342
  %v344 = vrot.slane %v343, 1
  %v345 = vadd.f32 %v343, %v344
  %v346 = vsel %vm324, %v323, 0.0
  %v347 = vrot.slane %v346, 4
  %v348 = vadd.f32 %v346, %v347
  %v349 = vrot.slane %v348, 2
  %v350 = vadd.f32 %v348, %v349
  %v351 = vrot.slane %v350, 1
  %v352 = vadd.f32 %v350, %v351
  %v353 = vmul.f32 %v331, 2.0
  %v354 = vmul.f32 %v338, 2.0
  %v355 = vmul.f32 %v345, 2.0
  %v356 = vmul.f32 %v352, 2.0
  %v357 = vrcp.pop 64.0
  %v358 = vmul.f32 64.0, %v357
  %v359 = vsub.f32 1.0, %v358
  %v360 = vmul.f32 %v357, %v359
  %v361 = vadd.f32 %v357, %v360
  %vm362 = vweird.f32 %v357
  %v363 = vsel %vm362, %v357, %v361
  %v364 = vmul.f32 %v353, %v363
  %v365 = vmul.f32 %v354, %v363
  %v366 = vmul.f32 %v355, %v363
  %v367 = vmul.f32 %v356, %v363
  %v368 = vrsqrt.pop %v364
  %v369 = vmul.f32 %v368, %v364
  %v370 = vmul.f32 %v369, %v368
  %v371 = vmul.f32 0.5, %v370
  %v372 = vsub.f32 1.5, %v371
  %v373 = vmul.f32 %v368, %v372
  %vm374 = vweird.f32 %v364
  %vm375 = vweird.f32 %v368
  %vm376 = vmor %vm374, %vm375
  %v377 = vsel %vm376, %v368, %v373
  %v378 = vrsqrt.pop %v365
  %v379 = vmul.f32 %v378, %v365
  %v380 = vmul.f32 %v379, %v378
  %v381 = vmul.f32 0.5, %v380
  %v382 = vsub.f32 1.5, %v381
  %v383 = vmul.f32 %v378, %v382
  %vm384 = vweird.f32 %v365
  %vm385 = vweird.f32 %v378
  %vm386 = vmor %vm384, %vm385
  %v387 = vsel %vm386, %v378, %v383
  %v388 = vrsqrt.pop %v366
  %v389 = vmul.f32 %v388, %v366
  %v390 = vmul.f32 %v389, %v388
  %v391 = vmul.f32 0.5, %v390
  %v392 = vsub.f32 1.5, %v391
  %v393 = vmul.f32 %v388, %v392
  %vm394 = vweird.f32 %v366
  %vm395 = vweird.f32 %v388
  %vm396 = vmor %vm394, %vm395
  %v397 = vsel %vm396, %v388, %v393
  %v398 = vrsqrt.pop %v367
  %v399 = vmul.f32 %v398, %v367
  %v400 = vmul.f32 %v399, %v398
  %v401 = vmul.f32 0.5, %v400
  %v402 = vsub.f32 1.5, %v401
  %v403 = vmul.f32 %v398, %v402
  %vm404 = vweird.f32 %v367
  %vm405 = vweird.f32 %v398
  %vm406 = vmor %vm404, %vm405
  %v407 = vsel %vm406, %v398, %v403
  %v408 = vmul.f32 %v288, %v377
  %v409 = vmul.f32 %v294, %v387
  %v410 = vmul.f32 %v300, %v397
  %v411 = vmul.f32 %v306, %v407
  %v412 = vld [vmem:[%s9] sm:$0xff]
  %v413 = vld [vmem:[%s9 + $0x8] sm:$0xff]
  %418 = vst [vmem:[#allocation1] ss:$2 sm:$0xff] %v408
  %s419 = scalar_lea.vmem [#allocation1], 1
  %420 = vst [vmem:[%s419] ss:$2 sm:$0xff] %v409
  %s421 = scalar_lea.vmem [#allocation1], 16
  %422 = vst [vmem:[%s421] ss:$2 sm:$0xff] %v410
  %s423 = scalar_lea.vmem [#allocation1], 17
  %424 = vst [vmem:[%s423] ss:$2 sm:$0xff] %v411
  %v425 = vld.sshfl [vmem:[#allocation1] sm:$0xff pattern:$0x75316420]
  %v426 = vld.sshfl [vmem:[#allocation1 + $0x10] sm:$0xff pattern:$0x75316420]
  %v429 = vpack.c.bf16 %v426, %v425
  %v430 = vpack.c.bf16 %v413, %v412
  %v431 = vld [vmem:[%s10] sm:$0x1]
  %v433 = vperm.slane %v431, 0
  %v436 = vsel %vm208, %v429, 0
  %438 = vmatpush.bf16.msra.mxu0 0
  %439 = vmatpush.bf16.msra.mxu0 0
  %440 = vmatpush.bf16.msra.mxu0 0
  %441 = vmatpush.bf16.msra.mxu0 0
  %442 = vmatpush.bf16.msra.mxu0 0
  %443 = vmatpush.bf16.msra.mxu0 0
  %444 = vmatpush.bf16.msra.mxu0 0
  %445 = vmatpush.bf16.msra.mxu0 %v430
  %446 = vmatmul.bf16.gmra.mxu0 %v436
  %v447 = vpop.f32.mrf.mxu0
  %v448 = vadd.f32 %v433, %v447
  %v449 = vpop.f32.mrf.mxu0
  %v450 = vadd.f32 %v433, %v449
  %451 = vdwg.mxu0
  %v454 = vrot.slane %v448, 4
  %v455 = vrot.slane %v450, 4
  %458 = vst.msk [vmem:[%s11] sm:$0xf] %vm45, %v448
  %459 = vst.msk [vmem:[%s11 + $0x4] sm:$0xf] %vm45, %v454
  %460 = vst.msk [vmem:[%s11 + $0x8] sm:$0xf] %vm45, %v450
  %461 = vst.msk [vmem:[%s11 + $0xc] sm:$0xf] %vm45, %v455
  // Predicated region
  $region46: #{tdeepsc_imgr_forward.9} parent=0 // pred_check
    _
  $region47: #{tdeepsc_imgr_forward.9} parent=0 // pred_check_branch
    %463 = sbr.rel (0) target = $region49
  $region48: #{tdeepsc_imgr_forward.9} parent=0 // pred_region
    _
  $region49: #{tdeepsc_imgr_forward.9} parent=0 // pred_fallthru
    _
  // Predicated region
  $region50: #{tdeepsc_imgr_forward.9} parent=0 // pred_check
    _
  $region51: #{tdeepsc_imgr_forward.9} parent=0 // pred_check_branch
    %465 = sbr.rel (0) target = $region53
  $region52: #{tdeepsc_imgr_forward.9} parent=0 // pred_region
    _
  $region53: #{tdeepsc_imgr_forward.9} parent=0 // pred_fallthru
    _

// kernel: tdeepsc_imgr_forward.7
$region0: #{tdeepsc_imgr_forward.7}
  #allocation0 [shape = 'u32[]', space=smem, size = 0x4, offset = 0x4, fixed_abs, tag = 'smem constant byte address 0x4 - core index']
  #allocation1 [shape = 'u32[72,128]{1,0:T(1,128)}', space=vmem, size = 0x9000, scoped, tag = 'internal scratch']
  %s0 = inlined_call_operand.vmem [shape: f32[4,4,32], index: 0, kind: input, shape index: {}]
  %s1 = inlined_call_operand.vmem [shape: f32[1,32], index: 1, kind: input, shape index: {}]
  %s2 = inlined_call_operand.vmem [shape: f32[1,32], index: 2, kind: input, shape index: {}]
  %s3 = inlined_call_operand.vmem [shape: f32[32,96], index: 3, kind: input, shape index: {}]
  %s4 = inlined_call_operand.vmem [shape: f32[1,96], index: 4, kind: input, shape index: {}]
  %s5 = inlined_call_operand.vmem [shape: f32[32,32], index: 5, kind: input, shape index: {}]
  %s6 = inlined_call_operand.vmem [shape: f32[1,32], index: 6, kind: input, shape index: {}]
  %s7 = inlined_call_operand.vmem [shape: f32[1,32], index: 7, kind: input, shape index: {}]
  %s8 = inlined_call_operand.vmem [shape: f32[1,32], index: 8, kind: input, shape index: {}]
  %s9 = inlined_call_operand.vmem [shape: f32[32,128], index: 9, kind: input, shape index: {}]
  %s10 = inlined_call_operand.vmem [shape: f32[1,128], index: 10, kind: input, shape index: {}]
  %s11 = inlined_call_operand.vmem [shape: f32[128,32], index: 11, kind: input, shape index: {}]
  %s12 = inlined_call_operand.vmem [shape: f32[1,32], index: 12, kind: input, shape index: {}]
  %s13 = inlined_call_operand.vmem [shape: f32[4,4,32], index: 13, kind: output, shape index: {}]
  %s14 = sld [smem:[#allocation0]]
  $region62: #{tdeepsc_imgr_forward.7} parent=0
    _
  %s16 = ssub.s32 1, %s14
  %s17 = scalar_select 0, %s16, %s14
  // Predicated region
  $region2: #{tdeepsc_imgr_forward.7} parent=0 // pred_check
    _
  $region3: #{tdeepsc_imgr_forward.7} parent=0 // pred_check_branch
    %19 = sbr.rel (0) target = $region5
  $region4: #{tdeepsc_imgr_forward.7} parent=0 // pred_region
    _
  $region5: #{tdeepsc_imgr_forward.7} parent=0 // pred_fallthru
    _
  // Predicated region
  $region6: #{tdeepsc_imgr_forward.7} parent=0 // pred_check
    _
  $region7: #{tdeepsc_imgr_forward.7} parent=0 // pred_check_branch
    %21 = sbr.rel (0) target = $region9
  $region8: #{tdeepsc_imgr_forward.7} parent=0 // pred_region
    _
  $region9: #{tdeepsc_imgr_forward.7} parent=0 // pred_fallthru
    _
  // Predicated region
  $region10: #{tdeepsc_imgr_forward.7} parent=0 // pred_check
    _
  $region11: #{tdeepsc_imgr_forward.7} parent=0 // pred_check_branch
    %23 = sbr.rel (0) target = $region13
  $region12: #{tdeepsc_imgr_forward.7} parent=0 // pred_region
    _
  $region13: #{tdeepsc_imgr_forward.7} parent=0 // pred_fallthru
    _
  // Predicated region
  $region14: #{tdeepsc_imgr_forward.7} parent=0 // pred_check
    _
  $region15: #{tdeepsc_imgr_forward.7} parent=0 // pred_check_branch
    %25 = sbr.rel (0) target = $region17
  $region16: #{tdeepsc_imgr_forward.7} parent=0 // pred_region
    _
  $region17: #{tdeepsc_imgr_forward.7} parent=0 // pred_fallthru
    _
  // Predicated region
  $region18: #{tdeepsc_imgr_forward.7} parent=0 // pred_check
    _
  $region19: #{tdeepsc_imgr_forward.7} parent=0 // pred_check_branch
    %27 = sbr.rel (0) target = $region21
  $region20: #{tdeepsc_imgr_forward.7} parent=0 // pred_region
    _
  $region21: #{tdeepsc_imgr_forward.7} parent=0 // pred_fallthru
    _
  // Predicated region
  $region22: #{tdeepsc_imgr_forward.7} parent=0 // pred_check
    _
  $region23: #{tdeepsc_imgr_forward.7} parent=0 // pred_check_branch
    %29 = sbr.rel (0) target = $region25
  $region24: #{tdeepsc_imgr_forward.7} parent=0 // pred_region
    _
  $region25: #{tdeepsc_imgr_forward.7} parent=0 // pred_fallthru
    _
  // Predicated region
  $region26: #{tdeepsc_imgr_forward.7} parent=0 // pred_check
    _
  $region27: #{tdeepsc_imgr_forward.7} parent=0 // pred_check_branch
    %31 = sbr.rel (0) target = $region29
  $region28: #{tdeepsc_imgr_forward.7} parent=0 // pred_region
    _
  $region29: #{tdeepsc_imgr_forward.7} parent=0 // pred_fallthru
    _
  // Predicated region
  $region30: #{tdeepsc_imgr_forward.7} parent=0 // pred_check
    _
  $region31: #{tdeepsc_imgr_forward.7} parent=0 // pred_check_branch
    %33 = sbr.rel (0) target = $region33
  $region32: #{tdeepsc_imgr_forward.7} parent=0 // pred_region
    _
  $region33: #{tdeepsc_imgr_forward.7} parent=0 // pred_fallthru
    _
  // Predicated region
  $region34: #{tdeepsc_imgr_forward.7} parent=0 // pred_check
    _
  $region35: #{tdeepsc_imgr_forward.7} parent=0 // pred_check_branch
    %35 = sbr.rel (0) target = $region37
  $region36: #{tdeepsc_imgr_forward.7} parent=0 // pred_region
    _
  $region37: #{tdeepsc_imgr_forward.7} parent=0 // pred_fallthru
    _
  // Predicated region
  $region38: #{tdeepsc_imgr_forward.7} parent=0 // pred_check
    _
  $region39: #{tdeepsc_imgr_forward.7} parent=0 // pred_check_branch
    %37 = sbr.rel (0) target = $region41
  $region40: #{tdeepsc_imgr_forward.7} parent=0 // pred_region
    _
  $region41: #{tdeepsc_imgr_forward.7} parent=0 // pred_fallthru
    _
  // Predicated region
  $region42: #{tdeepsc_imgr_forward.7} parent=0 // pred_check
    _
  $region43: #{tdeepsc_imgr_forward.7} parent=0 // pred_check_branch
    %39 = sbr.rel (0) target = $region45
  $region44: #{tdeepsc_imgr_forward.7} parent=0 // pred_region
    _
  $region45: #{tdeepsc_imgr_forward.7} parent=0 // pred_fallthru
    _
  // Predicated region
  $region46: #{tdeepsc_imgr_forward.7} parent=0 // pred_check
    _
  $region47: #{tdeepsc_imgr_forward.7} parent=0 // pred_check_branch
    %41 = sbr.rel (0) target = $region49
  $region48: #{tdeepsc_imgr_forward.7} parent=0 // pred_region
    _
  $region49: #{tdeepsc_imgr_forward.7} parent=0 // pred_fallthru
    _
  // Predicated region
  $region50: #{tdeepsc_imgr_forward.7} parent=0 // pred_check
    _
  $region51: #{tdeepsc_imgr_forward.7} parent=0 // pred_check_branch
    %43 = sbr.rel (0) target = $region53
  $region52: #{tdeepsc_imgr_forward.7} parent=0 // pred_region
    _
  $region53: #{tdeepsc_imgr_forward.7} parent=0 // pred_fallthru
    _
  %v45 = vld [vmem:[%s0] sm:$0xf]
  %v46 = vld [vmem:[%s0 + $0x4] sm:$0xf]
  %v47 = vld [vmem:[%s0 + $0x8] sm:$0xf]
  %v48 = vld [vmem:[%s0 + $0xc] sm:$0xf]
  %v49 = vld [vmem:[%s1] sm:$0x1]
  %v50 = vld [vmem:[%s2] sm:$0x1]
  %vm51 = vcmask 257024
  %v52 = vsel %vm51, %v45, 0.0
  %53 = vadd.xlane.f32.xlu0 %v52
  %v54 = vpop.xlane.xlu0 %53
  %v55 = vsel %vm51, %v46, 0.0
  %56 = vadd.xlane.f32.xlu0 %v55
  %v57 = vpop.xlane.xlu0 %56
  %v58 = vsel %vm51, %v47, 0.0
  %59 = vadd.xlane.f32.xlu0 %v58
  %v60 = vpop.xlane.xlu0 %59
  %v61 = vsel %vm51, %v48, 0.0
  %62 = vadd.xlane.f32.xlu0 %v61
  %v63 = vpop.xlane.xlu0 %62
  %v64 = vrcp.pop 32.0
  %v65 = vmul.f32 32.0, %v64
  %v66 = vsub.f32 1.0, %v65
  %v67 = vmul.f32 %v64, %v66
  %v68 = vadd.f32 %v64, %v67
  %vm69 = vweird.f32 %v64
  %v70 = vsel %vm69, %v64, %v68
  %v71 = vmul.f32 %v54, %v70
  %v72 = vmul.f32 %v57, %v70
  %v73 = vmul.f32 %v60, %v70
  %v74 = vmul.f32 %v63, %v70
  %v75 = vsub.f32 %v45, %v71
  %v76 = vsub.f32 %v46, %v72
  %v77 = vsub.f32 %v47, %v73
  %v78 = vsub.f32 %v48, %v74
  %v79 = vmul.f32 %v75, %v75
  %v80 = vmul.f32 %v76, %v76
  %v81 = vmul.f32 %v77, %v77
  %v82 = vmul.f32 %v78, %v78
  %v83 = vsel %vm51, %v79, 0.0
  %84 = vadd.xlane.f32.xlu0 %v83
  %v85 = vpop.xlane.xlu0 %84
  %v86 = vsel %vm51, %v80, 0.0
  %87 = vadd.xlane.f32.xlu0 %v86
  %v88 = vpop.xlane.xlu0 %87
  %v89 = vsel %vm51, %v81, 0.0
  %90 = vadd.xlane.f32.xlu0 %v89
  %v91 = vpop.xlane.xlu0 %90
  %v92 = vsel %vm51, %v82, 0.0
  %93 = vadd.xlane.f32.xlu0 %v92
  %v94 = vpop.xlane.xlu0 %93
  %v95 = vmul.f32 %v85, %v70
  %v96 = vmul.f32 %v88, %v70
  %v97 = vmul.f32 %v91, %v70
  %v98 = vmul.f32 %v94, %v70
  %v99 = vadd.f32 %v95, 1e-06
  %v100 = vadd.f32 %v96, 1e-06
  %v101 = vadd.f32 %v97, 1e-06
  %v102 = vadd.f32 %v98, 1e-06
  %v103 = vrsqrt.pop %v99
  %v104 = vmul.f32 %v103, %v99
  %v105 = vmul.f32 %v104, %v103
  %v106 = vmul.f32 0.5, %v105
  %v107 = vsub.f32 1.5, %v106
  %v108 = vmul.f32 %v103, %v107
  %vm109 = vweird.f32 %v99
  %vm110 = vweird.f32 %v103
  %vm111 = vmor %vm109, %vm110
  %v112 = vsel %vm111, %v103, %v108
  %v113 = vrsqrt.pop %v100
  %v114 = vmul.f32 %v113, %v100
  %v115 = vmul.f32 %v114, %v113
  %v116 = vmul.f32 0.5, %v115
  %v117 = vsub.f32 1.5, %v116
  %v118 = vmul.f32 %v113, %v117
  %vm119 = vweird.f32 %v100
  %vm120 = vweird.f32 %v113
  %vm121 = vmor %vm119, %vm120
  %v122 = vsel %vm121, %v113, %v118
  %v123 = vrsqrt.pop %v101
  %v124 = vmul.f32 %v123, %v101
  %v125 = vmul.f32 %v124, %v123
  %v126 = vmul.f32 0.5, %v125
  %v127 = vsub.f32 1.5, %v126
  %v128 = vmul.f32 %v123, %v127
  %vm129 = vweird.f32 %v101
  %vm130 = vweird.f32 %v123
  %vm131 = vmor %vm129, %vm130
  %v132 = vsel %vm131, %v123, %v128
  %v133 = vrsqrt.pop %v102
  %v134 = vmul.f32 %v133, %v102
  %v135 = vmul.f32 %v134, %v133
  %v136 = vmul.f32 0.5, %v135
  %v137 = vsub.f32 1.5, %v136
  %v138 = vmul.f32 %v133, %v137
  %vm139 = vweird.f32 %v102
  %vm140 = vweird.f32 %v133
  %vm141 = vmor %vm139, %vm140
  %v142 = vsel %vm141, %v133, %v138
  %v143 = vmul.f32 %v75, %v112
  %v144 = vmul.f32 %v76, %v122
  %v145 = vmul.f32 %v77, %v132
  %v146 = vmul.f32 %v78, %v142
  %v148 = vperm.slane %v49, 0
  %v150 = vmul.f32 %v143, %v148
  %v151 = vmul.f32 %v144, %v148
  %v152 = vmul.f32 %v145, %v148
  %v153 = vmul.f32 %v146, %v148
  %v155 = vperm.slane %v50, 0
  %v157 = vadd.f32 %v150, %v155
  %v158 = vadd.f32 %v151, %v155
  %v159 = vadd.f32 %v152, %v155
  %v160 = vadd.f32 %v153, %v155
  %v161 = vld [vmem:[%s3] sm:$0xff]
  %v162 = vld [vmem:[%s3 + $0x8] sm:$0xff]
  %v163 = vld [vmem:[%s3 + $0x10] sm:$0xff]
  %v164 = vld [vmem:[%s3 + $0x18] sm:$0xff]
  %169 = vst [vmem:[#allocation1] ss:$2 sm:$0xff] %v157
  %s170 = scalar_lea.vmem [#allocation1], 1
  %171 = vst [vmem:[%s170] ss:$2 sm:$0xff] %v158
  %s172 = scalar_lea.vmem [#allocation1], 16
  %173 = vst [vmem:[%s172] ss:$2 sm:$0xff] %v159
  %s174 = scalar_lea.vmem [#allocation1], 17
  %175 = vst [vmem:[%s174] ss:$2 sm:$0xff] %v160
  %v176 = vld.sshfl [vmem:[#allocation1] sm:$0xff pattern:$0x75316420]
  %v177 = vld.sshfl [vmem:[#allocation1 + $0x10] sm:$0xff pattern:$0x75316420]
  %v180 = vpack.c.bf16 %v177, %v176
  %v181 = vpack.c.bf16 %v162, %v161
  %v182 = vpack.c.bf16 %v164, %v163
  %v183 = vld [vmem:[%s4] sm:$0x1]
  %v185 = vperm.slane %v183, 0
  %vm187 = vcmask 261120
  %v189 = vsel %vm187, %v180, 0
  %191 = vmatpush.bf16.msra.mxu0 0
  %192 = vmatpush.bf16.msra.mxu0 0
  %193 = vmatpush.bf16.msra.mxu0 0
  %194 = vmatpush.bf16.msra.mxu0 0
  %195 = vmatpush.bf16.msra.mxu0 0
  %196 = vmatpush.bf16.msra.mxu0 0
  %197 = vmatpush.bf16.msra.mxu0 %v182
  %198 = vmatpush.bf16.msra.mxu0 %v181
  %199 = vmatmul.bf16.gmra.mxu0 %v189
  %v200 = vpop.f32.mrf.mxu0
  %v201 = vadd.f32 %v185, %v200
  %v202 = vpop.f32.mrf.mxu0
  %v203 = vadd.f32 %v185, %v202
  %204 = vdwg.mxu0
  %v207 = vrot.slane %v201, 4
  %v208 = vrot.slane %v203, 4
  %v211 = vpack.c.bf16 %v201, %v201
  %v212 = vpack.c.bf16 %v207, %v207
  %v213 = vpack.c.bf16 %v203, %v203
  %v214 = vpack.c.bf16 %v208, %v208
  %v216 = vunpack.c.l.b16 %v211
  %v217 = vpack.c.b16 %v216, %v216
  %218 = vrot.lane.b32.xlu0 %v217, 96
  %v219 = vpop.permute.xlu0 %218
  %vm220 = vcmask 130048
  %v222 = vsel %vm220, %v211, 0
  %v225 = vsel %vm220, %v219, 0
  %227 = vmatpush.bf16.xpose.msra.mxu0 0
  %228 = vmatpush.bf16.xpose.msra.mxu0 0
  %229 = vmatpush.bf16.xpose.msra.mxu0 0
  %230 = vmatpush.bf16.xpose.msra.mxu0 0
  %231 = vmatpush.bf16.xpose.msra.mxu0 0
  %232 = vmatpush.bf16.xpose.msra.mxu0 0
  %233 = vmatpush.bf16.xpose.msra.mxu0 0
  %234 = vmatpush.bf16.xpose.msra.mxu0 %v225
  %235 = vmatmul.bf16.gmra.mxu0 %v222
  %v236 = vpop.f32.mrf.mxu0
  %v237 = vadd.f32 0.0, %v236
  %v238 = vpop.f32.mrf.mxu0
  %239 = vdwg.mxu0
  %v241 = vunpack.c.l.b16 %v212
  %v242 = vpack.c.b16 %v241, %v241
  %243 = vrot.lane.b32.xlu0 %v242, 96
  %v244 = vpop.permute.xlu0 %243
  %v246 = vsel %vm220, %v212, 0
  %v249 = vsel %vm220, %v244, 0
  %251 = vmatpush.bf16.xpose.msra.mxu0 0
  %252 = vmatpush.bf16.xpose.msra.mxu0 0
  %253 = vmatpush.bf16.xpose.msra.mxu0 0
  %254 = vmatpush.bf16.xpose.msra.mxu0 0
  %255 = vmatpush.bf16.xpose.msra.mxu0 0
  %256 = vmatpush.bf16.xpose.msra.mxu0 0
  %257 = vmatpush.bf16.xpose.msra.mxu0 0
  %258 = vmatpush.bf16.xpose.msra.mxu0 %v249
  %259 = vmatmul.bf16.gmra.mxu0 %v246
  %v260 = vpop.f32.mrf.mxu0
  %v261 = vadd.f32 0.0, %v260
  %v262 = vpop.f32.mrf.mxu0
  %263 = vdwg.mxu0
  %v265 = vunpack.c.l.b16 %v213
  %v266 = vpack.c.b16 %v265, %v265
  %267 = vrot.lane.b32.xlu0 %v266, 96
  %v268 = vpop.permute.xlu0 %267
  %v270 = vsel %vm220, %v213, 0
  %v273 = vsel %vm220, %v268, 0
  %275 = vmatpush.bf16.xpose.msra.mxu0 0
  %276 = vmatpush.bf16.xpose.msra.mxu0 0
  %277 = vmatpush.bf16.xpose.msra.mxu0 0
  %278 = vmatpush.bf16.xpose.msra.mxu0 0
  %279 = vmatpush.bf16.xpose.msra.mxu0 0
  %280 = vmatpush.bf16.xpose.msra.mxu0 0
  %281 = vmatpush.bf16.xpose.msra.mxu0 0
  %282 = vmatpush.bf16.xpose.msra.mxu0 %v273
  %283 = vmatmul.bf16.gmra.mxu0 %v270
  %v284 = vpop.f32.mrf.mxu0
  %v285 = vadd.f32 0.0, %v284
  %v286 = vpop.f32.mrf.mxu0
  %287 = vdwg.mxu0
  %v289 = vunpack.c.l.b16 %v214
  %v290 = vpack.c.b16 %v289, %v289
  %291 = vrot.lane.b32.xlu0 %v290, 96
  %v292 = vpop.permute.xlu0 %291
  %v294 = vsel %vm220, %v214, 0
  %v297 = vsel %vm220, %v292, 0
  %299 = vmatpush.bf16.xpose.msra.mxu0 0
  %300 = vmatpush.bf16.xpose.msra.mxu0 0
  %301 = vmatpush.bf16.xpose.msra.mxu0 0
  %302 = vmatpush.bf16.xpose.msra.mxu0 0
  %303 = vmatpush.bf16.xpose.msra.mxu0 0
  %304 = vmatpush.bf16.xpose.msra.mxu0 0
  %305 = vmatpush.bf16.xpose.msra.mxu0 0
  %306 = vmatpush.bf16.xpose.msra.mxu0 %v297
  %307 = vmatmul.bf16.gmra.mxu0 %v294
  %v308 = vpop.f32.mrf.mxu0
  %v309 = vadd.f32 0.0, %v308
  %v310 = vpop.f32.mrf.mxu0
  %311 = vdwg.mxu0
  %v312 = vmul.f32 %v237, 0.25
  %v313 = vmul.f32 %v261, 0.25
  %v314 = vmul.f32 %v285, 0.25
  %v315 = vmul.f32 %v309, 0.25
  %vm316 = vcmask 27648
  %v317 = vsel %vm316, %v312, -inf
  %318 = vmax.xlane.f32.xlu0 %v317
  %v319 = vpop.xlane.xlu0 %318
  %v320 = vsel %vm316, %v313, -inf
  %321 = vmax.xlane.f32.xlu0 %v320
  %v322 = vpop.xlane.xlu0 %321
  %v323 = vsel %vm316, %v314, -inf
  %324 = vmax.xlane.f32.xlu0 %v323
  %v325 = vpop.xlane.xlu0 %324
  %v326 = vsel %vm316, %v315, -inf
  %327 = vmax.xlane.f32.xlu0 %v326
  %v328 = vpop.xlane.xlu0 %327
  %v329 = vsub.f32 %v312, %v319
  %v330 = vsub.f32 %v313, %v322
  %v331 = vsub.f32 %v314, %v325
  %v332 = vsub.f32 %v315, %v328
  %v333 = vmul.f32 %v329, 1.442695
  %v334 = vpow.pop %v333
  %v335 = vmul.f32 %v330, 1.442695
  %v336 = vpow.pop %v335
  %v337 = vmul.f32 %v331, 1.442695
  %v338 = vpow.pop %v337
  %v339 = vmul.f32 %v332, 1.442695
  %v340 = vpow.pop %v339
  %v341 = vsel %vm316, %v334, 0.0
  %342 = vadd.xlane.f32.xlu0 %v341
  %v343 = vpop.xlane.xlu0 %342
  %v344 = vsel %vm316, %v336, 0.0
  %345 = vadd.xlane.f32.xlu0 %v344
  %v346 = vpop.xlane.xlu0 %345
  %v347 = vsel %vm316, %v338, 0.0
  %348 = vadd.xlane.f32.xlu0 %v347
  %v349 = vpop.xlane.xlu0 %348
  %v350 = vsel %vm316, %v340, 0.0
  %351 = vadd.xlane.f32.xlu0 %v350
  %v352 = vpop.xlane.xlu0 %351
  %v353 = vrcp.pop %v343
  %v354 = vrcp.pop %v346
  %v355 = vrcp.pop %v349
  %v356 = vrcp.pop %v352
  %v357 = vmul.f32 %v334, %v353
  %v358 = vmul.f32 %v336, %v354
  %v359 = vmul.f32 %v338, %v355
  %v360 = vmul.f32 %v340, %v356
  %v361 = vpack.c.bf16 %v357, %v357
  %v362 = vpack.c.bf16 %v358, %v358
  %v363 = vpack.c.bf16 %v359, %v359
  %v364 = vpack.c.bf16 %v360, %v360
  %365 = vrot.lane.b32.xlu0 %v217, 64
  %v366 = vpop.permute.xlu0 %365
  %vm367 = vcmask 31744
  %v369 = vsel %vm367, %v361, 0
  %vm371 = vcmask 1041408
  %v373 = vsel %vm371, %v366, 0
  %375 = vmatpush.bf16.msra.mxu0 0
  %376 = vmatpush.bf16.msra.mxu0 0
  %377 = vmatpush.bf16.msra.mxu0 0
  %378 = vmatpush.bf16.msra.mxu0 0
  %379 = vmatpush.bf16.msra.mxu0 0
  %380 = vmatpush.bf16.msra.mxu0 0
  %381 = vmatpush.bf16.msra.mxu0 0
  %382 = vmatpush.bf16.msra.mxu0 %v373
  %383 = vmatmul.bf16.gmra.mxu0 %v369
  %v384 = vpop.f32.mrf.mxu0
  %v385 = vadd.f32 0.0, %v384
  %v386 = vpop.f32.mrf.mxu0
  %387 = vdwg.mxu0
  %388 = vrot.lane.b32.xlu0 %v242, 64
  %v389 = vpop.permute.xlu0 %388
  %v391 = vsel %vm367, %v362, 0
  %v394 = vsel %vm371, %v389, 0
  %396 = vmatpush.bf16.msra.mxu0 0
  %397 = vmatpush.bf16.msra.mxu0 0
  %398 = vmatpush.bf16.msra.mxu0 0
  %399 = vmatpush.bf16.msra.mxu0 0
  %400 = vmatpush.bf16.msra.mxu0 0
  %401 = vmatpush.bf16.msra.mxu0 0
  %402 = vmatpush.bf16.msra.mxu0 0
  %403 = vmatpush.bf16.msra.mxu0 %v394
  %404 = vmatmul.bf16.gmra.mxu0 %v391
  %v405 = vpop.f32.mrf.mxu0
  %v406 = vadd.f32 0.0, %v405
  %v407 = vpop.f32.mrf.mxu0
  %408 = vdwg.mxu0
  %409 = vrot.lane.b32.xlu0 %v266, 64
  %v410 = vpop.permute.xlu0 %409
  %v412 = vsel %vm367, %v363, 0
  %v415 = vsel %vm371, %v410, 0
  %417 = vmatpush.bf16.msra.mxu0 0
  %418 = vmatpush.bf16.msra.mxu0 0
  %419 = vmatpush.bf16.msra.mxu0 0
  %420 = vmatpush.bf16.msra.mxu0 0
  %421 = vmatpush.bf16.msra.mxu0 0
  %422 = vmatpush.bf16.msra.mxu0 0
  %423 = vmatpush.bf16.msra.mxu0 0
  %424 = vmatpush.bf16.msra.mxu0 %v415
  %425 = vmatmul.bf16.gmra.mxu0 %v412
  %v426 = vpop.f32.mrf.mxu0
  %v427 = vadd.f32 0.0, %v426
  %v428 = vpop.f32.mrf.mxu0
  %429 = vdwg.mxu0
  %430 = vrot.lane.b32.xlu0 %v290, 64
  %v431 = vpop.permute.xlu0 %430
  %v433 = vsel %vm367, %v364, 0
  %v436 = vsel %vm371, %v431, 0
  %438 = vmatpush.bf16.msra.mxu0 0
  %439 = vmatpush.bf16.msra.mxu0 0
  %440 = vmatpush.bf16.msra.mxu0 0
  %441 = vmatpush.bf16.msra.mxu0 0
  %442 = vmatpush.bf16.msra.mxu0 0
  %443 = vmatpush.bf16.msra.mxu0 0
  %444 = vmatpush.bf16.msra.mxu0 0
  %445 = vmatpush.bf16.msra.mxu0 %v436
  %446 = vmatmul.bf16.gmra.mxu0 %v433
  %v447 = vpop.f32.mrf.mxu0
  %v448 = vadd.f32 0.0, %v447
  %v449 = vpop.f32.mrf.mxu0
  %450 = vdwg.mxu0
  %451 = vrot.lane.b32.xlu0 %v217, 112
  %v452 = vpop.permute.xlu0 %451
  %453 = vrot.lane.b32.xlu0 %v217, 80
  %v454 = vpop.permute.xlu0 %453
  %v456 = vsel %vm220, %v452, 0
  %v459 = vsel %vm220, %v454, 0
  %461 = vmatpush.bf16.xpose.msra.mxu0 0
  %462 = vmatpush.bf16.xpose.msra.mxu0 0
  %463 = vmatpush.bf16.xpose.msra.mxu0 0
  %464 = vmatpush.bf16.xpose.msra.mxu0 0
  %465 = vmatpush.bf16.xpose.msra.mxu0 0
  %466 = vmatpush.bf16.xpose.msra.mxu0 0
  %467 = vmatpush.bf16.xpose.msra.mxu0 0
  %468 = vmatpush.bf16.xpose.msra.mxu0 %v459
  %469 = vmatmul.bf16.gmra.mxu0 %v456
  %v470 = vpop.f32.mrf.mxu0
  %v471 = vadd.f32 0.0, %v470
  %v472 = vpop.f32.mrf.mxu0
  %473 = vdwg.mxu0
  %474 = vrot.lane.b32.xlu0 %v242, 112
  %v475 = vpop.permute.xlu0 %474
  %476 = vrot.lane.b32.xlu0 %v242, 80
  %v477 = vpop.permute.xlu0 %476
  %v479 = vsel %vm220, %v475, 0
  %v482 = vsel %vm220, %v477, 0
  %484 = vmatpush.bf16.xpose.msra.mxu0 0
  %485 = vmatpush.bf16.xpose.msra.mxu0 0
  %486 = vmatpush.bf16.xpose.msra.mxu0 0
  %487 = vmatpush.bf16.xpose.msra.mxu0 0
  %488 = vmatpush.bf16.xpose.msra.mxu0 0
  %489 = vmatpush.bf16.xpose.msra.mxu0 0
  %490 = vmatpush.bf16.xpose.msra.mxu0 0
  %491 = vmatpush.bf16.xpose.msra.mxu0 %v482
  %492 = vmatmul.bf16.gmra.mxu0 %v479
  %v493 = vpop.f32.mrf.mxu0
  %v494 = vadd.f32 0.0, %v493
  %v495 = vpop.f32.mrf.mxu0
  %496 = vdwg.mxu0
  %497 = vrot.lane.b32.xlu0 %v266, 112
  %v498 = vpop.permute.xlu0 %497
  %499 = vrot.lane.b32.xlu0 %v266, 80
  %v500 = vpop.permute.xlu0 %499
  %v502 = vsel %vm220, %v498, 0
  %v505 = vsel %vm220, %v500, 0
  %507 = vmatpush.bf16.xpose.msra.mxu0 0
  %508 = vmatpush.bf16.xpose.msra.mxu0 0
  %509 = vmatpush.bf16.xpose.msra.mxu0 0
  %510 = vmatpush.bf16.xpose.msra.mxu0 0
  %511 = vmatpush.bf16.xpose.msra.mxu0 0
  %512 = vmatpush.bf16.xpose.msra.mxu0 0
  %513 = vmatpush.bf16.xpose.msra.mxu0 0
  %514 = vmatpush.bf16.xpose.msra.mxu0 %v505
  %515 = vmatmul.bf16.gmra.mxu0 %v502
  %v516 = vpop.f32.mrf.mxu0
  %v517 = vadd.f32 0.0, %v516
  %v518 = vpop.f32.mrf.mxu0
  %519 = vdwg.mxu0
  %520 = vrot.lane.b32.xlu0 %v290, 112
  %v521 = vpop.permute.xlu0 %520
  %522 = vrot.lane.b32.xlu0 %v290, 80
  %v523 = vpop.permute.xlu0 %522
  %v525 = vsel %vm220, %v521, 0
  %v528 = vsel %vm220, %v523, 0
  %530 = vmatpush.bf16.xpose.msra.mxu0 0
  %531 = vmatpush.bf16.xpose.msra.mxu0 0
  %532 = vmatpush.bf16.xpose.msra.mxu0 0
  %533 = vmatpush.bf16.xpose.msra.mxu0 0
  %534 = vmatpush.bf16.xpose.msra.mxu0 0
  %535 = vmatpush.bf16.xpose.msra.mxu0 0
  %536 = vmatpush.bf16.xpose.msra.mxu0 0
  %537 = vmatpush.bf16.xpose.msra.mxu0 %v528
  %538 = vmatmul.bf16.gmra.mxu0 %v525
  %v539 = vpop.f32.mrf.mxu0
  %v540 = vadd.f32 0.0, %v539
  %v541 = vpop.f32.mrf.mxu0
  %542 = vdwg.mxu0
  %v543 = vmul.f32 %v471, 0.25
  %v544 = vmul.f32 %v494, 0.25
  %v545 = vmul.f32 %v517, 0.25
  %v546 = vmul.f32 %v540, 0.25
  %v547 = vsel %vm316, %v543, -inf
  %548 = vmax.xlane.f32.xlu0 %v547
  %v549 = vpop.xlane.xlu0 %548
  %v550 = vsel %vm316, %v544, -inf
  %551 = vmax.xlane.f32.xlu0 %v550
  %v552 = vpop.xlane.xlu0 %551
  %v553 = vsel %vm316, %v545, -inf
  %554 = vmax.xlane.f32.xlu0 %v553
  %v555 = vpop.xlane.xlu0 %554
  %v556 = vsel %vm316, %v546, -inf
  %557 = vmax.xlane.f32.xlu0 %v556
  %v558 = vpop.xlane.xlu0 %557
  %v559 = vsub.f32 %v543, %v549
  %v560 = vsub.f32 %v544, %v552
  %v561 = vsub.f32 %v545, %v555
  %v562 = vsub.f32 %v546, %v558
  %v563 = vmul.f32 %v559, 1.442695
  %v564 = vpow.pop %v563
  %v565 = vmul.f32 %v560, 1.442695
  %v566 = vpow.pop %v565
  %v567 = vmul.f32 %v561, 1.442695
  %v568 = vpow.pop %v567
  %v569 = vmul.f32 %v562, 1.442695
  %v570 = vpow.pop %v569
  %v571 = vsel %vm316, %v564, 0.0
  %572 = vadd.xlane.f32.xlu0 %v571
  %v573 = vpop.xlane.xlu0 %572
  %v574 = vsel %vm316, %v566, 0.0
  %575 = vadd.xlane.f32.xlu0 %v574
  %v576 = vpop.xlane.xlu0 %575
  %v577 = vsel %vm316, %v568, 0.0
  %578 = vadd.xlane.f32.xlu0 %v577
  %v579 = vpop.xlane.xlu0 %578
  %v580 = vsel %vm316, %v570, 0.0
  %581 = vadd.xlane.f32.xlu0 %v580
  %v582 = vpop.xlane.xlu0 %581
  %v583 = vrcp.pop %v573
  %v584 = vrcp.pop %v576
  %v585 = vrcp.pop %v579
  %v586 = vrcp.pop %v582
  %v587 = vmul.f32 %v564, %v583
  %v588 = vmul.f32 %v566, %v584
  %v589 = vmul.f32 %v568, %v585
  %v590 = vmul.f32 %v570, %v586
  %v591 = vpack.c.bf16 %v587, %v587
  %v592 = vpack.c.bf16 %v588, %v588
  %v593 = vpack.c.bf16 %v589, %v589
  %v594 = vpack.c.bf16 %v590, %v590
  %595 = vrot.lane.b32.xlu0 %v217, 48
  %v596 = vpop.permute.xlu0 %595
  %v598 = vsel %vm367, %v591, 0
  %v601 = vsel %vm371, %v596, 0
  %603 = vmatpush.bf16.msra.mxu0 0
  %604 = vmatpush.bf16.msra.mxu0 0
  %605 = vmatpush.bf16.msra.mxu0 0
  %606 = vmatpush.bf16.msra.mxu0 0
  %607 = vmatpush.bf16.msra.mxu0 0
  %608 = vmatpush.bf16.msra.mxu0 0
  %609 = vmatpush.bf16.msra.mxu0 0
  %610 = vmatpush.bf16.msra.mxu0 %v601
  %611 = vmatmul.bf16.gmra.mxu0 %v598
  %v612 = vpop.f32.mrf.mxu0
  %v613 = vadd.f32 0.0, %v612
  %v614 = vpop.f32.mrf.mxu0
  %615 = vdwg.mxu0
  %616 = vrot.lane.b32.xlu0 %v242, 48
  %v617 = vpop.permute.xlu0 %616
  %v619 = vsel %vm367, %v592, 0
  %v622 = vsel %vm371, %v617, 0
  %624 = vmatpush.bf16.msra.mxu0 0
  %625 = vmatpush.bf16.msra.mxu0 0
  %626 = vmatpush.bf16.msra.mxu0 0
  %627 = vmatpush.bf16.msra.mxu0 0
  %628 = vmatpush.bf16.msra.mxu0 0
  %629 = vmatpush.bf16.msra.mxu0 0
  %630 = vmatpush.bf16.msra.mxu0 0
  %631 = vmatpush.bf16.msra.mxu0 %v622
  %632 = vmatmul.bf16.gmra.mxu0 %v619
  %v633 = vpop.f32.mrf.mxu0
  %v634 = vadd.f32 0.0, %v633
  %v635 = vpop.f32.mrf.mxu0
  %636 = vdwg.mxu0
  %637 = vrot.lane.b32.xlu0 %v266, 48
  %v638 = vpop.permute.xlu0 %637
  %v640 = vsel %vm367, %v593, 0
  %v643 = vsel %vm371, %v638, 0
  %645 = vmatpush.bf16.msra.mxu0 0
  %646 = vmatpush.bf16.msra.mxu0 0
  %647 = vmatpush.bf16.msra.mxu0 0
  %648 = vmatpush.bf16.msra.mxu0 0
  %649 = vmatpush.bf16.msra.mxu0 0
  %650 = vmatpush.bf16.msra.mxu0 0
  %651 = vmatpush.bf16.msra.mxu0 0
  %652 = vmatpush.bf16.msra.mxu0 %v643
  %653 = vmatmul.bf16.gmra.mxu0 %v640
  %v654 = vpop.f32.mrf.mxu0
  %v655 = vadd.f32 0.0, %v654
  %v656 = vpop.f32.mrf.mxu0
  %657 = vdwg.mxu0
  %658 = vrot.lane.b32.xlu0 %v290, 48
  %v659 = vpop.permute.xlu0 %658
  %v661 = vsel %vm367, %v594, 0
  %v664 = vsel %vm371, %v659, 0
  %666 = vmatpush.bf16.msra.mxu0 0
  %667 = vmatpush.bf16.msra.mxu0 0
  %668 = vmatpush.bf16.msra.mxu0 0
  %669 = vmatpush.bf16.msra.mxu0 0
  %670 = vmatpush.bf16.msra.mxu0 0
  %671 = vmatpush.bf16.msra.mxu0 0
  %672 = vmatpush.bf16.msra.mxu0 0
  %673 = vmatpush.bf16.msra.mxu0 %v664
  %674 = vmatmul.bf16.gmra.mxu0 %v661
  %v675 = vpop.f32.mrf.mxu0
  %v676 = vadd.f32 0.0, %v675
  %v677 = vpop.f32.mrf.mxu0
  %678 = vdwg.mxu0
  %683 = vrot.lane.b32.xlu0 %v613, 16
  %v684 = vpop.permute.xlu0 %683
  %685 = vrot.lane.b32.xlu0 %v634, 16
  %v686 = vpop.permute.xlu0 %685
  %687 = vrot.lane.b32.xlu0 %v655, 16
  %v688 = vpop.permute.xlu0 %687
  %689 = vrot.lane.b32.xlu0 %v676, 16
  %v690 = vpop.permute.xlu0 %689
  %v695 = vsel %vm220, %v385, %v684
  %v696 = vsel %vm220, %v406, %v686
  %v697 = vsel %vm220, %v427, %v688
  %v698 = vsel %vm220, %v448, %v690
  %v699 = vld [vmem:[%s5] sm:$0xff]
  %v700 = vld [vmem:[%s5 + $0x8] sm:$0xff]
  %v701 = vld [vmem:[%s5 + $0x10] sm:$0xff]
  %v702 = vld [vmem:[%s5 + $0x18] sm:$0xff]
  %707 = vst [vmem:[#allocation1] ss:$2 sm:$0xff] %v695
  %s708 = scalar_lea.vmem [#allocation1], 1
  %709 = vst [vmem:[%s708] ss:$2 sm:$0xff] %v696
  %s710 = scalar_lea.vmem [#allocation1], 16
  %711 = vst [vmem:[%s710] ss:$2 sm:$0xff] %v697
  %s712 = scalar_lea.vmem [#allocation1], 17
  %713 = vst [vmem:[%s712] ss:$2 sm:$0xff] %v698
  %v714 = vld.sshfl [vmem:[#allocation1] sm:$0xff pattern:$0x75316420]
  %v715 = vld.sshfl [vmem:[#allocation1 + $0x10] sm:$0xff pattern:$0x75316420]
  %v718 = vpack.c.bf16 %v715, %v714
  %v719 = vpack.c.bf16 %v700, %v699
  %v720 = vpack.c.bf16 %v702, %v701
  %v721 = vld [vmem:[%s6] sm:$0x1]
  %v723 = vperm.slane %v721, 0
  %v726 = vsel %vm187, %v718, 0
  %728 = vmatpush.bf16.msra.mxu0 0
  %729 = vmatpush.bf16.msra.mxu0 0
  %730 = vmatpush.bf16.msra.mxu0 0
  %731 = vmatpush.bf16.msra.mxu0 0
  %732 = vmatpush.bf16.msra.mxu0 0
  %733 = vmatpush.bf16.msra.mxu0 0
  %734 = vmatpush.bf16.msra.mxu0 %v720
  %735 = vmatpush.bf16.msra.mxu0 %v719
  %736 = vmatmul.bf16.gmra.mxu0 %v726
  %v737 = vpop.f32.mrf.mxu0
  %v738 = vadd.f32 %v723, %v737
  %v739 = vpop.f32.mrf.mxu0
  %v740 = vadd.f32 %v723, %v739
  %741 = vdwg.mxu0
  %v744 = vrot.slane %v738, 4
  %v745 = vrot.slane %v740, 4
  %v748 = vadd.f32 %v45, %v738
  %v749 = vadd.f32 %v46, %v744
  %v750 = vadd.f32 %v47, %v740
  %v751 = vadd.f32 %v48, %v745
  %v752 = vld [vmem:[%s7] sm:$0x1]
  %v753 = vld [vmem:[%s8] sm:$0x1]
  %758 = vst [vmem:[#allocation1] ss:$2 sm:$0xff] %v748
  %s759 = scalar_lea.vmem [#allocation1], 1
  %760 = vst [vmem:[%s759] ss:$2 sm:$0xff] %v749
  %s761 = scalar_lea.vmem [#allocation1], 16
  %762 = vst [vmem:[%s761] ss:$2 sm:$0xff] %v750
  %s763 = scalar_lea.vmem [#allocation1], 17
  %764 = vst [vmem:[%s763] ss:$2 sm:$0xff] %v751
  %v765 = vld.sshfl [vmem:[#allocation1] sm:$0xff pattern:$0x75316420]
  %v766 = vld.sshfl [vmem:[#allocation1 + $0x10] sm:$0xff pattern:$0x75316420]
  %v769 = vsel %vm187, %v765, 0.0
  %770 = vadd.xlane.f32.xlu0 %v769
  %v771 = vpop.xlane.xlu0 %770
  %v772 = vsel %vm187, %v766, 0.0
  %773 = vadd.xlane.f32.xlu0 %v772
  %v774 = vpop.xlane.xlu0 %773
  %v775 = vmul.f32 %v771, %v70
  %v776 = vmul.f32 %v774, %v70
  %v780 = vunpack.c.l.s4 839922192
  %v781 = vunpack.c.0.s8 %v780
  %v782 = vperm.slane %v775, %v781
  %v784 = vunpack.c.l.s4 1985246804
  %v785 = vunpack.c.0.s8 %v784
  %v786 = vperm.slane %v775, %v785
  %v788 = vunpack.c.l.s4 839922192
  %v789 = vunpack.c.0.s8 %v788
  %v790 = vperm.slane %v776, %v789
  %v792 = vunpack.c.l.s4 1985246804
  %v793 = vunpack.c.0.s8 %v792
  %v794 = vperm.slane %v776, %v793
  %v799 = vsub.f32 %v748, %v782
  %v800 = vsub.f32 %v749, %v786
  %v801 = vsub.f32 %v750, %v790
  %v802 = vsub.f32 %v751, %v794
  %v803 = vmul.f32 %v799, %v799
  %v804 = vmul.f32 %v800, %v800
  %v805 = vmul.f32 %v801, %v801
  %v806 = vmul.f32 %v802, %v802
  %811 = vst [vmem:[#allocation1] ss:$2 sm:$0xff] %v803
  %s812 = scalar_lea.vmem [#allocation1], 1
  %813 = vst [vmem:[%s812] ss:$2 sm:$0xff] %v804
  %s814 = scalar_lea.vmem [#allocation1], 16
  %815 = vst [vmem:[%s814] ss:$2 sm:$0xff] %v805
  %s816 = scalar_lea.vmem [#allocation1], 17
  %817 = vst [vmem:[%s816] ss:$2 sm:$0xff] %v806
  %v818 = vld.sshfl [vmem:[#allocation1] sm:$0xff pattern:$0x75316420]
  %v819 = vld.sshfl [vmem:[#allocation1 + $0x10] sm:$0xff pattern:$0x75316420]
  %v822 = vsel %vm187, %v818, 0.0
  %823 = vadd.xlane.f32.xlu0 %v822
  %v824 = vpop.xlane.xlu0 %823
  %v825 = vsel %vm187, %v819, 0.0
  %826 = vadd.xlane.f32.xlu0 %v825
  %v827 = vpop.xlane.xlu0 %826
  %v828 = vmul.f32 %v824, %v70
  %v829 = vmul.f32 %v827, %v70
  %v830 = vadd.f32 %v828, 1e-06
  %v831 = vadd.f32 %v829, 1e-06
  %v832 = vrsqrt.pop %v830
  %v833 = vmul.f32 %v832, %v830
  %v834 = vmul.f32 %v833, %v832
  %v835 = vmul.f32 0.5, %v834
  %v836 = vsub.f32 1.5, %v835
  %v837 = vmul.f32 %v832, %v836
  %vm838 = vweird.f32 %v830
  %vm839 = vweird.f32 %v832
  %vm840 = vmor %vm838, %vm839
  %v841 = vsel %vm840, %v832, %v837
  %v842 = vrsqrt.pop %v831
  %v843 = vmul.f32 %v842, %v831
  %v844 = vmul.f32 %v843, %v842
  %v845 = vmul.f32 0.5, %v844
  %v846 = vsub.f32 1.5, %v845
  %v847 = vmul.f32 %v842, %v846
  %vm848 = vweird.f32 %v831
  %vm849 = vweird.f32 %v842
  %vm850 = vmor %vm848, %vm849
  %v851 = vsel %vm850, %v842, %v847
  %v855 = vunpack.c.l.s4 839922192
  %v856 = vunpack.c.0.s8 %v855
  %v857 = vperm.slane %v841, %v856
  %v859 = vunpack.c.l.s4 1985246804
  %v860 = vunpack.c.0.s8 %v859
  %v861 = vperm.slane %v841, %v860
  %v863 = vunpack.c.l.s4 839922192
  %v864 = vunpack.c.0.s8 %v863
  %v865 = vperm.slane %v851, %v864
  %v867 = vunpack.c.l.s4 1985246804
  %v868 = vunpack.c.0.s8 %v867
  %v869 = vperm.slane %v851, %v868
  %v874 = vmul.f32 %v799, %v857
  %v875 = vmul.f32 %v800, %v861
  %v876 = vmul.f32 %v801, %v865
  %v877 = vmul.f32 %v802, %v869
  %v879 = vperm.slane %v752, 0
  %v881 = vrot.slane %v879, 4
  %v883 = vmul.f32 %v874, %v879
  %v884 = vmul.f32 %v875, %v881
  %v885 = vmul.f32 %v876, %v879
  %v886 = vmul.f32 %v877, %v881
  %v888 = vperm.slane %v753, 0
  %v890 = vrot.slane %v888, 4
  %v892 = vadd.f32 %v883, %v888
  %v893 = vadd.f32 %v884, %v890
  %v894 = vadd.f32 %v885, %v888
  %v895 = vadd.f32 %v886, %v890
  %v896 = vld [vmem:[%s9] sm:$0xff]
  %v897 = vld [vmem:[%s9 + $0x8] sm:$0xff]
  %v898 = vld [vmem:[%s9 + $0x10] sm:$0xff]
  %v899 = vld [vmem:[%s9 + $0x18] sm:$0xff]
  %904 = vst [vmem:[#allocation1] ss:$2 sm:$0xff] %v892
  %s905 = scalar_lea.vmem [#allocation1], 1
  %906 = vst [vmem:[%s905] ss:$2 sm:$0xff] %v893
  %s907 = scalar_lea.vmem [#allocation1], 16
  %908 = vst [vmem:[%s907] ss:$2 sm:$0xff] %v894
  %s909 = scalar_lea.vmem [#allocation1], 17
  %910 = vst [vmem:[%s909] ss:$2 sm:$0xff] %v895
  %v911 = vld.sshfl [vmem:[#allocation1] sm:$0xff pattern:$0x75316420]
  %v912 = vld.sshfl [vmem:[#allocation1 + $0x10] sm:$0xff pattern:$0x75316420]
  %v915 = vpack.c.bf16 %v912, %v911
  %v916 = vpack.c.bf16 %v897, %v896
  %v917 = vpack.c.bf16 %v899, %v898
  %v918 = vld [vmem:[%s10] sm:$0x1]
  %v920 = vperm.slane %v918, 0
  %v923 = vsel %vm187, %v915, 0
  %925 = vmatpush.bf16.msra.mxu0 0
  %926 = vmatpush.bf16.msra.mxu0 0
  %927 = vmatpush.bf16.msra.mxu0 0
  %928 = vmatpush.bf16.msra.mxu0 0
  %929 = vmatpush.bf16.msra.mxu0 0
  %930 = vmatpush.bf16.msra.mxu0 0
  %931 = vmatpush.bf16.msra.mxu0 %v917
  %932 = vmatpush.bf16.msra.mxu0 %v916
  %933 = vmatmul.bf16.gmra.mxu0 %v923
  %v934 = vpop.f32.mrf.mxu0
  %v935 = vadd.f32 %v920, %v934
  %v936 = vpop.f32.mrf.mxu0
  %v937 = vadd.f32 %v920, %v936
  %938 = vdwg.mxu0
  %v939 = vmul.f32 %v935, 0.5
  %v940 = vmul.f32 %v937, 0.5
  %v941 = vmul.f32 %v935, 0.70710677
  %v942 = vmul.f32 %v937, 0.70710677
  %vm943 = vcmp.ge.f32.partialorder %v941, 0.0
  %vm944 = vcmp.ge.f32.partialorder %v942, 0.0
  %v945 = vsel %vm943, 1.0, -1.0
  %v946 = vsel %vm944, 1.0, -1.0
  %v947 = vand.u32 2147483647, %v941
  %v948 = vand.u32 2147483647, %v942
  %v949 = vmul.f32 %v947, 0.3275911
  %v950 = vmul.f32 %v948, 0.3275911
  %v951 = vadd.f32 %v949, 1.0
  %v952 = vadd.f32 %v950, 1.0
  %v953 = vrcp.pop %v951
  %v954 = vmul.f32 %v951, %v953
  %v955 = vsub.f32 1.0, %v954
  %v956 = vmul.f32 %v953, %v955
  %v957 = vadd.f32 %v953, %v956
  %vm958 = vweird.f32 %v951
  %vm959 = vweird.f32 %v953
  %vm960 = vmor %vm958, %vm959
  %v961 = vsel %vm960, %v953, %v957
  %v962 = vand.u32 2147483647, %v951
  %vm963 = vcmp.eq.f32.partialorder %v962, 8.507059e+37
  %v964 = vand.u32 %v951, 2147483648
  %v965 = vor.u32 1.1754944e-38, %v964
  %v966 = vsel %vm963, %v965, %v961
  %v967 = vmul.f32 1.0, %v966
  %v968 = vrcp.pop %v952
  %v969 = vmul.f32 %v952, %v968
  %v970 = vsub.f32 1.0, %v969
  %v971 = vmul.f32 %v968, %v970
  %v972 = vadd.f32 %v968, %v971
  %vm973 = vweird.f32 %v952
  %vm974 = vweird.f32 %v968
  %vm975 = vmor %vm973, %vm974
  %v976 = vsel %vm975, %v968, %v972
  %v977 = vand.u32 2147483647, %v952
  %vm978 = vcmp.eq.f32.partialorder %v977, 8.507059e+37
  %v979 = vand.u32 %v952, 2147483648
  %v980 = vor.u32 1.1754944e-38, %v979
  %v981 = vsel %vm978, %v980, %v976
  %v982 = vmul.f32 1.0, %v981
  %v983 = vmul.f32 %v967, 1.0614054
  %v984 = vmul.f32 %v982, 1.0614054
  %v985 = vadd.f32 %v983, -1.4531521
  %v986 = vadd.f32 %v984, -1.4531521
  %v987 = vmul.f32 %v985, %v967
  %v988 = vmul.f32 %v986, %v982
  %v989 = vadd.f32 %v987, 1.4214138
  %v990 = vadd.f32 %v988, 1.4214138
  %v991 = vmul.f32 %v989, %v967
  %v992 = vmul.f32 %v990, %v982
  %v993 = vadd.f32 %v991, -0.28449672
  %v994 = vadd.f32 %v992, -0.28449672
  %v995 = vmul.f32 %v993, %v967
  %v996 = vmul.f32 %v994, %v982
  %v997 = vadd.f32 %v995, 0.2548296
  %v998 = vadd.f32 %v996, 0.2548296
  %v999 = vmul.f32 %v997, %v967
  %v1000 = vmul.f32 %v998, %v982
  %v1001 = vmul.f32 %v947, %v947
  %v1002 = vmul.f32 %v948, %v948
  %v1003 = vsub.f32 0.0, %v1001
  %v1004 = vsub.f32 0.0, %v1002
  %v1005 = vmul.f32 %v1003, 1.442695
  %v1006 = vpow.pop %v1005
  %v1007 = vmul.f32 %v1004, 1.442695
  %v1008 = vpow.pop %v1007
  %v1009 = vmul.f32 %v999, %v1006
  %v1010 = vmul.f32 %v1000, %v1008
  %v1011 = vsub.f32 1.0, %v1009
  %v1012 = vsub.f32 1.0, %v1010
  %v1013 = vmul.f32 %v945, %v1011
  %v1014 = vmul.f32 %v946, %v1012
  %v1015 = vadd.f32 %v1013, 1.0
  %v1016 = vadd.f32 %v1014, 1.0
  %v1017 = vmul.f32 %v939, %v1015
  %v1018 = vmul.f32 %v940, %v1016
  %v1019 = vld [vmem:[%s11] sm:$0xff]
  %v1020 = vld [vmem:[%s11 + $0x8] sm:$0xff]
  %v1021 = vld [vmem:[%s11 + $0x10] sm:$0xff]
  %v1022 = vld [vmem:[%s11 + $0x18] sm:$0xff]
  %v1023 = vld [vmem:[%s11 + $0x20] sm:$0xff]
  %v1024 = vld [vmem:[%s11 + $0x28] sm:$0xff]
  %v1025 = vld [vmem:[%s11 + $0x30] sm:$0xff]
  %v1026 = vld [vmem:[%s11 + $0x38] sm:$0xff]
  %v1027 = vld [vmem:[%s11 + $0x40] sm:$0xff]
  %v1028 = vld [vmem:[%s11 + $0x48] sm:$0xff]
  %v1029 = vld [vmem:[%s11 + $0x50] sm:$0xff]
  %v1030 = vld [vmem:[%s11 + $0x58] sm:$0xff]
  %v1031 = vld [vmem:[%s11 + $0x60] sm:$0xff]
  %v1032 = vld [vmem:[%s11 + $0x68] sm:$0xff]
  %v1033 = vld [vmem:[%s11 + $0x70] sm:$0xff]
  %v1034 = vld [vmem:[%s11 + $0x78] sm:$0xff]
  %v1035 = vpack.c.bf16 %v1018, %v1017
  %v1036 = vpack.c.bf16 %v1020, %v1019
  %v1037 = vpack.c.bf16 %v1022, %v1021
  %v1038 = vpack.c.bf16 %v1024, %v1023
  %v1039 = vpack.c.bf16 %v1026, %v1025
  %v1040 = vpack.c.bf16 %v1028, %v1027
  %v1041 = vpack.c.bf16 %v1030, %v1029
  %v1042 = vpack.c.bf16 %v1032, %v1031
  %v1043 = vpack.c.bf16 %v1034, %v1033
  %v1044 = vld [vmem:[%s12] sm:$0x1]
  %v1046 = vperm.slane %v1044, 0
  %1048 = vmatpush.bf16.msra.mxu0 %v1043
  %1049 = vmatpush.bf16.msra.mxu0 %v1042
  %1050 = vmatpush.bf16.msra.mxu0 %v1041
  %1051 = vmatpush.bf16.msra.mxu0 %v1040
  %1052 = vmatpush.bf16.msra.mxu0 %v1039
  %1053 = vmatpush.bf16.msra.mxu0 %v1038
  %1054 = vmatpush.bf16.msra.mxu0 %v1037
  %1055 = vmatpush.bf16.msra.mxu0 %v1036
  %1056 = vmatmul.bf16.gmra.mxu0 %v1035
  %v1057 = vpop.f32.mrf.mxu0
  %v1058 = vadd.f32 %v1046, %v1057
  %v1059 = vpop.f32.mrf.mxu0
  %v1060 = vadd.f32 %v1046, %v1059
  %1061 = vdwg.mxu0
  %v1064 = vrot.slane %v1058, 4
  %v1065 = vrot.slane %v1060, 4
  %v1068 = vadd.f32 %v748, %v1058
  %v1069 = vadd.f32 %v749, %v1064
  %v1070 = vadd.f32 %v750, %v1060
  %v1071 = vadd.f32 %v751, %v1065
  %1072 = vst.msk [vmem:[%s13] sm:$0xf] %vm51, %v1068
  %1073 = vst.msk [vmem:[%s13 + $0x4] sm:$0xf] %vm51, %v1069
  %1074 = vst.msk [vmem:[%s13 + $0x8] sm:$0xf] %vm51, %v1070
  %1075 = vst.msk [vmem:[%s13 + $0xc] sm:$0xf] %vm51, %v1071
  // Predicated region
  $region54: #{tdeepsc_imgr_forward.7} parent=0 // pred_check
    _
  $region55: #{tdeepsc_imgr_forward.7} parent=0 // pred_check_branch
    %1077 = sbr.rel (0) target = $region57
  $region56: #{tdeepsc_imgr_forward.7} parent=0 // pred_region
    _
  $region57: #{tdeepsc_imgr_forward.7} parent=0 // pred_fallthru
    _
  // Predicated region
  $region58: #{tdeepsc_imgr_forward.7} parent=0 // pred_check
    _
  $region59: #{tdeepsc_imgr_forward.7} parent=0 // pred_check_branch
    %1079 = sbr.rel (0) target = $region61
  $region60: #{tdeepsc_imgr_forward.7} parent=0 // pred_region
    _
  $region61: #{tdeepsc_imgr_forward.7} parent=0 // pred_fallthru
    _

// kernel: tdeepsc_imgr_forward.10
$region0: #{tdeepsc_imgr_forward.10}
  #allocation0 [shape = 'u32[]', space=smem, size = 0x4, offset = 0x4, fixed_abs, tag = 'smem constant byte address 0x4 - core index']
  #allocation1 [shape = 'u32[72,128]{1,0:T(1,128)}', space=vmem, size = 0x9000, scoped, tag = 'internal scratch']
  %s0 = inlined_call_operand.vmem [shape: f32[4,4,32], index: 0, kind: input, shape index: {}, may-alias: {0,1}]
  %s1 = inlined_call_operand.vmem [shape: f32[4,4,32], index: 1, kind: input, shape index: {}, may-alias: {0,1}]
  %s2 = inlined_call_operand.vmem [shape: f32[32,96], index: 2, kind: input, shape index: {}]
  %s3 = inlined_call_operand.vmem [shape: f32[1,96], index: 3, kind: input, shape index: {}]
  %s4 = inlined_call_operand.vmem [shape: f32[32,32], index: 4, kind: input, shape index: {}]
  %s5 = inlined_call_operand.vmem [shape: f32[1,32], index: 5, kind: input, shape index: {}]
  %s6 = inlined_call_operand.hbm [shape: f32[1,32], index: 6, kind: input, shape index: {}]
  %s7 = inlined_call_operand.hbm [shape: f32[1,32], index: 7, kind: input, shape index: {}]
  %s8 = inlined_call_operand.vmem [shape: f32[32,32], index: 8, kind: input, shape index: {}]
  %s9 = inlined_call_operand.hbm [shape: f32[1,32], index: 9, kind: input, shape index: {}]
  %s10 = inlined_call_operand.vmem [shape: f32[32,64], index: 10, kind: input, shape index: {}]
  %s11 = inlined_call_operand.hbm [shape: f32[1,64], index: 11, kind: input, shape index: {}]
  %s12 = inlined_call_operand.vmem [shape: f32[32,32], index: 12, kind: input, shape index: {}]
  %s13 = inlined_call_operand.hbm [shape: f32[1,32], index: 13, kind: input, shape index: {}]
  %s14 = inlined_call_operand.hbm [shape: f32[1,32], index: 14, kind: input, shape index: {}]
  %s15 = inlined_call_operand.hbm [shape: f32[1,32], index: 15, kind: input, shape index: {}]
  %s16 = inlined_call_operand.vmem [shape: f32[32,128], index: 16, kind: input, shape index: {}]
  %s17 = inlined_call_operand.hbm [shape: f32[1,128], index: 17, kind: input, shape index: {}]
  %s18 = inlined_call_operand.vmem [shape: f32[128,32], index: 18, kind: input, shape index: {}]
  %s19 = inlined_call_operand.hbm [shape: f32[1,32], index: 19, kind: input, shape index: {}]
  %s20 = inlined_call_operand.hbm [shape: f32[1,32], index: 20, kind: input, shape index: {}]
  %s21 = inlined_call_operand.hbm [shape: f32[1,32], index: 21, kind: input, shape index: {}]
  %s22 = inlined_call_operand.vmem [shape: f32[4,4,32], index: 22, kind: output, shape index: {}]
  %s23 = sld [smem:[#allocation0]]
  $region142: #{tdeepsc_imgr_forward.10} parent=0
    _
  %s25 = ssub.s32 1, %s23
  %s26 = scalar_select 0, %s25, %s23
  $region1: #{tdeepsc_imgr_forward.10} parent=0
    #allocation2 [shape = 'u8[512]{0}', space=vmem, size = 0x400, scoped, tag = 'input window, operand 6, single buffered']
    #allocation3 [shape = 's32[1]{0}', space=sflag, size = 0x4, scoped, tag = 'scoped memory for tdeepsc_imgr_forward.10']
    #allocation4 [shape = 'u8[512]{0}', space=vmem, size = 0x400, scoped, tag = 'input window, operand 7, single buffered']
    #allocation5 [shape = 's32[1]{0}', space=sflag, size = 0x4, scoped, tag = 'scoped memory for tdeepsc_imgr_forward.10']
    #allocation6 [shape = 'u8[512]{0}', space=vmem, size = 0x400, scoped, tag = 'input window, operand 9, single buffered']
    #allocation7 [shape = 'u8[512]{0}', space=vmem, size = 0x400, scoped, tag = 'input window, operand 11, single buffered']
    #allocation8 [shape = 's32[1]{0}', space=sflag, size = 0x4, scoped, tag = 'scoped memory for tdeepsc_imgr_forward.10']
    #allocation9 [shape = 'u8[512]{0}', space=vmem, size = 0x400, scoped, tag = 'input window, operand 13, single buffered']
    #allocation10 [shape = 'u8[512]{0}', space=vmem, size = 0x400, scoped, tag = 'input window, operand 14, single buffered']
    #allocation11 [shape = 's32[1]{0}', space=sflag, size = 0x4, scoped, tag = 'scoped memory for tdeepsc_imgr_forward.10']
    #allocation12 [shape = 'u8[512]{0}', space=vmem, size = 0x400, scoped, tag = 'input window, operand 15, single buffered']
    #allocation13 [shape = 'u8[512]{0}', space=vmem, size = 0x400, scoped, tag = 'input window, operand 17, single buffered']
    #allocation14 [shape = 's32[1]{0}', space=sflag, size = 0x4, scoped, tag = 'scoped memory for tdeepsc_imgr_forward.10']
    #allocation15 [shape = 'u8[512]{0}', space=vmem, size = 0x400, scoped, tag = 'input window, operand 19, single buffered']
    #allocation16 [shape = 'u8[512]{0}', space=vmem, size = 0x400, scoped, tag = 'input window, operand 20, single buffered']
    #allocation17 [shape = 's32[1]{0}', space=sflag, size = 0x4, scoped, tag = 'scoped memory for tdeepsc_imgr_forward.10']
    #allocation18 [shape = 'u8[512]{0}', space=vmem, size = 0x400, scoped, tag = 'input window, operand 21, single buffered']
    %27 = vsyncpa [#allocation3], 0
    %28 = vsyncpa [#allocation5], 0
    %29 = vsyncpa [#allocation8], 0
    %30 = vsyncpa [#allocation11], 0
    %31 = vsyncpa [#allocation14], 0
    %32 = vsyncpa [#allocation17], 0
    // Predicated region
    $region2: #{tdeepsc_imgr_forward.10} parent=1 // pred_check
      _
    $region3: #{tdeepsc_imgr_forward.10} parent=1 // pred_check_branch
      %34 = sbr.rel (0) target = $region5
    $region4: #{tdeepsc_imgr_forward.10} parent=1 // pred_region
      _
    $region5: #{tdeepsc_imgr_forward.10} parent=1 // pred_fallthru
      _
    // Predicated region
    $region6: #{tdeepsc_imgr_forward.10} parent=1 // pred_check
      _
    $region7: #{tdeepsc_imgr_forward.10} parent=1 // pred_check_branch
      %36 = sbr.rel (0) target = $region9
    $region8: #{tdeepsc_imgr_forward.10} parent=1 // pred_region
      _
    $region9: #{tdeepsc_imgr_forward.10} parent=1 // pred_fallthru
      _
    // Predicated region
    $region10: #{tdeepsc_imgr_forward.10} parent=1 // pred_check
      _
    $region11: #{tdeepsc_imgr_forward.10} parent=1 // pred_check_branch
      %38 = sbr.rel (0) target = $region13
    $region12: #{tdeepsc_imgr_forward.10} parent=1 // pred_region
      _
    $region13: #{tdeepsc_imgr_forward.10} parent=1 // pred_fallthru
      _
    // Predicated region
    $region14: #{tdeepsc_imgr_forward.10} parent=1 // pred_check
      _
    $region15: #{tdeepsc_imgr_forward.10} parent=1 // pred_check_branch
      %40 = sbr.rel (0) target = $region17
    $region16: #{tdeepsc_imgr_forward.10} parent=1 // pred_region
      _
    $region17: #{tdeepsc_imgr_forward.10} parent=1 // pred_fallthru
      _
    // Predicated region
    $region18: #{tdeepsc_imgr_forward.10} parent=1 // pred_check
      _
    $region19: #{tdeepsc_imgr_forward.10} parent=1 // pred_check_branch
      %42 = sbr.rel (0) target = $region21
    $region20: #{tdeepsc_imgr_forward.10} parent=1 // pred_region
      _
    $region21: #{tdeepsc_imgr_forward.10} parent=1 // pred_fallthru
      _
    // Predicated region
    $region22: #{tdeepsc_imgr_forward.10} parent=1 // pred_check
      _
    $region23: #{tdeepsc_imgr_forward.10} parent=1 // pred_check_branch
      %44 = sbr.rel (0) target = $region25
    $region24: #{tdeepsc_imgr_forward.10} parent=1 // pred_region
      _
    $region25: #{tdeepsc_imgr_forward.10} parent=1 // pred_fallthru
      _
    // Predicated region
    $region26: #{tdeepsc_imgr_forward.10} parent=1 // pred_check
      _
    $region27: #{tdeepsc_imgr_forward.10} parent=1 // pred_check_branch
      %46 = sbr.rel (0) target = $region29
    $region28: #{tdeepsc_imgr_forward.10} parent=1 // pred_region
      %48 = vsyncadd [#allocation3], 0
      %s50 = sshll.u32 %s6, 4
      %s51 = int_to_ptr.hbm [resolvable:$true] %s50
      %s52 = sshll.u32 [#allocation2], 4
      %s53 = int_to_ptr.vmem [resolvable:$true] %s52
      %55 = dma.hbm_to_vmem [thread:$0]  %s51, 16, %s53, [#allocation3]
    $region29: #{tdeepsc_imgr_forward.10} parent=1 // pred_fallthru
      _
    // Predicated region
    $region30: #{tdeepsc_imgr_forward.10} parent=1 // pred_check
      _
    $region31: #{tdeepsc_imgr_forward.10} parent=1 // pred_check_branch
      %57 = sbr.rel (0) target = $region33
    $region32: #{tdeepsc_imgr_forward.10} parent=1 // pred_region
      %59 = vsyncadd [#allocation5], 0
      %s61 = sshll.u32 %s7, 4
      %s62 = int_to_ptr.hbm [resolvable:$true] %s61
      %s63 = sshll.u32 [#allocation4], 4
      %s64 = int_to_ptr.vmem [resolvable:$true] %s63
      %66 = dma.hbm_to_vmem [thread:$0]  %s62, 16, %s64, [#allocation5]
    $region33: #{tdeepsc_imgr_forward.10} parent=1 // pred_fallthru
      _
    // Predicated region
    $region34: #{tdeepsc_imgr_forward.10} parent=1 // pred_check
      _
    $region35: #{tdeepsc_imgr_forward.10} parent=1 // pred_check_branch
      %68 = sbr.rel (0) target = $region37
    $region36: #{tdeepsc_imgr_forward.10} parent=1 // pred_region
      _
    $region37: #{tdeepsc_imgr_forward.10} parent=1 // pred_fallthru
      _
    // Predicated region
    $region38: #{tdeepsc_imgr_forward.10} parent=1 // pred_check
      _
    $region39: #{tdeepsc_imgr_forward.10} parent=1 // pred_check_branch
      %70 = sbr.rel (0) target = $region41
    $region40: #{tdeepsc_imgr_forward.10} parent=1 // pred_region
      %72 = vsyncadd [#allocation5], 0
      %s74 = sshll.u32 %s9, 4
      %s75 = int_to_ptr.hbm [resolvable:$true] %s74
      %s76 = sshll.u32 [#allocation6], 4
      %s77 = int_to_ptr.vmem [resolvable:$true] %s76
      %79 = dma.hbm_to_vmem [thread:$0]  %s75, 16, %s77, [#allocation5]
    $region41: #{tdeepsc_imgr_forward.10} parent=1 // pred_fallthru
      _
    // Predicated region
    $region42: #{tdeepsc_imgr_forward.10} parent=1 // pred_check
      _
    $region43: #{tdeepsc_imgr_forward.10} parent=1 // pred_check_branch
      %81 = sbr.rel (0) target = $region45
    $region44: #{tdeepsc_imgr_forward.10} parent=1 // pred_region
      _
    $region45: #{tdeepsc_imgr_forward.10} parent=1 // pred_fallthru
      _
    // Predicated region
    $region46: #{tdeepsc_imgr_forward.10} parent=1 // pred_check
      _
    $region47: #{tdeepsc_imgr_forward.10} parent=1 // pred_check_branch
      %83 = sbr.rel (0) target = $region49
    $region48: #{tdeepsc_imgr_forward.10} parent=1 // pred_region
      %85 = vsyncadd [#allocation8], 0
      %s87 = sshll.u32 %s11, 4
      %s88 = int_to_ptr.hbm [resolvable:$true] %s87
      %s89 = sshll.u32 [#allocation7], 4
      %s90 = int_to_ptr.vmem [resolvable:$true] %s89
      %92 = dma.hbm_to_vmem [thread:$0]  %s88, 16, %s90, [#allocation8]
    $region49: #{tdeepsc_imgr_forward.10} parent=1 // pred_fallthru
      _
    // Predicated region
    $region50: #{tdeepsc_imgr_forward.10} parent=1 // pred_check
      _
    $region51: #{tdeepsc_imgr_forward.10} parent=1 // pred_check_branch
      %94 = sbr.rel (0) target = $region53
    $region52: #{tdeepsc_imgr_forward.10} parent=1 // pred_region
      _
    $region53: #{tdeepsc_imgr_forward.10} parent=1 // pred_fallthru
      _
    // Predicated region
    $region54: #{tdeepsc_imgr_forward.10} parent=1 // pred_check
      _
    $region55: #{tdeepsc_imgr_forward.10} parent=1 // pred_check_branch
      %96 = sbr.rel (0) target = $region57
    $region56: #{tdeepsc_imgr_forward.10} parent=1 // pred_region
      %98 = vsyncadd [#allocation8], 0
      %s100 = sshll.u32 %s13, 4
      %s101 = int_to_ptr.hbm [resolvable:$true] %s100
      %s102 = sshll.u32 [#allocation9], 4
      %s103 = int_to_ptr.vmem [resolvable:$true] %s102
      %105 = dma.hbm_to_vmem [thread:$0]  %s101, 16, %s103, [#allocation8]
    $region57: #{tdeepsc_imgr_forward.10} parent=1 // pred_fallthru
      _
    // Predicated region
    $region58: #{tdeepsc_imgr_forward.10} parent=1 // pred_check
      _
    $region59: #{tdeepsc_imgr_forward.10} parent=1 // pred_check_branch
      %107 = sbr.rel (0) target = $region61
    $region60: #{tdeepsc_imgr_forward.10} parent=1 // pred_region
      %109 = vsyncadd [#allocation11], 0
      %s111 = sshll.u32 %s14, 4
      %s112 = int_to_ptr.hbm [resolvable:$true] %s111
      %s113 = sshll.u32 [#allocation10], 4
      %s114 = int_to_ptr.vmem [resolvable:$true] %s113
      %116 = dma.hbm_to_vmem [thread:$0]  %s112, 16, %s114, [#allocation11]
    $region61: #{tdeepsc_imgr_forward.10} parent=1 // pred_fallthru
      _
    // Predicated region
    $region62: #{tdeepsc_imgr_forward.10} parent=1 // pred_check
      _
    $region63: #{tdeepsc_imgr_forward.10} parent=1 // pred_check_branch
      %118 = sbr.rel (0) target = $region65
    $region64: #{tdeepsc_imgr_forward.10} parent=1 // pred_region
      %120 = vsyncadd [#allocation11], 0
      %s122 = sshll.u32 %s15, 4
      %s123 = int_to_ptr.hbm [resolvable:$true] %s122
      %s124 = sshll.u32 [#allocation12], 4
      %s125 = int_to_ptr.vmem [resolvable:$true] %s124
      %127 = dma.hbm_to_vmem [thread:$0]  %s123, 16, %s125, [#allocation11]
    $region65: #{tdeepsc_imgr_forward.10} parent=1 // pred_fallthru
      _
    // Predicated region
    $region66: #{tdeepsc_imgr_forward.10} parent=1 // pred_check
      _
    $region67: #{tdeepsc_imgr_forward.10} parent=1 // pred_check_branch
      %129 = sbr.rel (0) target = $region69
    $region68: #{tdeepsc_imgr_forward.10} parent=1 // pred_region
      _
    $region69: #{tdeepsc_imgr_forward.10} parent=1 // pred_fallthru
      _
    // Predicated region
    $region70: #{tdeepsc_imgr_forward.10} parent=1 // pred_check
      _
    $region71: #{tdeepsc_imgr_forward.10} parent=1 // pred_check_branch
      %131 = sbr.rel (0) target = $region73
    $region72: #{tdeepsc_imgr_forward.10} parent=1 // pred_region
      %133 = vsyncadd [#allocation14], 0
      %s135 = sshll.u32 %s17, 4
      %s136 = int_to_ptr.hbm [resolvable:$true] %s135
      %s137 = sshll.u32 [#allocation13], 4
      %s138 = int_to_ptr.vmem [resolvable:$true] %s137
      %140 = dma.hbm_to_vmem [thread:$0]  %s136, 16, %s138, [#allocation14]
    $region73: #{tdeepsc_imgr_forward.10} parent=1 // pred_fallthru
      _
    // Predicated region
    $region74: #{tdeepsc_imgr_forward.10} parent=1 // pred_check
      _
    $region75: #{tdeepsc_imgr_forward.10} parent=1 // pred_check_branch
      %142 = sbr.rel (0) target = $region77
    $region76: #{tdeepsc_imgr_forward.10} parent=1 // pred_region
      _
    $region77: #{tdeepsc_imgr_forward.10} parent=1 // pred_fallthru
      _
    // Predicated region
    $region78: #{tdeepsc_imgr_forward.10} parent=1 // pred_check
      _
    $region79: #{tdeepsc_imgr_forward.10} parent=1 // pred_check_branch
      %144 = sbr.rel (0) target = $region81
    $region80: #{tdeepsc_imgr_forward.10} parent=1 // pred_region
      %146 = vsyncadd [#allocation14], 0
      %s148 = sshll.u32 %s19, 4
      %s149 = int_to_ptr.hbm [resolvable:$true] %s148
      %s150 = sshll.u32 [#allocation15], 4
      %s151 = int_to_ptr.vmem [resolvable:$true] %s150
      %153 = dma.hbm_to_vmem [thread:$0]  %s149, 16, %s151, [#allocation14]
    $region81: #{tdeepsc_imgr_forward.10} parent=1 // pred_fallthru
      _
    // Predicated region
    $region82: #{tdeepsc_imgr_forward.10} parent=1 // pred_check
      _
    $region83: #{tdeepsc_imgr_forward.10} parent=1 // pred_check_branch
      %155 = sbr.rel (0) target = $region85
    $region84: #{tdeepsc_imgr_forward.10} parent=1 // pred_region
      %157 = vsyncadd [#allocation17], 0
      %s159 = sshll.u32 %s20, 4
      %s160 = int_to_ptr.hbm [resolvable:$true] %s159
      %s161 = sshll.u32 [#allocation16], 4
      %s162 = int_to_ptr.vmem [resolvable:$true] %s161
      %164 = dma.hbm_to_vmem [thread:$0]  %s160, 16, %s162, [#allocation17]
    $region85: #{tdeepsc_imgr_forward.10} parent=1 // pred_fallthru
      _
    // Predicated region
    $region86: #{tdeepsc_imgr_forward.10} parent=1 // pred_check
      _
    $region87: #{tdeepsc_imgr_forward.10} parent=1 // pred_check_branch
      %166 = sbr.rel (0) target = $region89
    $region88: #{tdeepsc_imgr_forward.10} parent=1 // pred_region
      %168 = vsyncadd [#allocation17], 0
      %s170 = sshll.u32 %s21, 4
      %s171 = int_to_ptr.hbm [resolvable:$true] %s170
      %s172 = sshll.u32 [#allocation18], 4
      %s173 = int_to_ptr.vmem [resolvable:$true] %s172
      %175 = dma.hbm_to_vmem [thread:$0]  %s171, 16, %s173, [#allocation17]
    $region89: #{tdeepsc_imgr_forward.10} parent=1 // pred_fallthru
      _
    // Predicated region
    $region90: #{tdeepsc_imgr_forward.10} parent=1 // pred_check
      _
    $region91: #{tdeepsc_imgr_forward.10} parent=1 // pred_check_branch
      %177 = sbr.rel (0) target = $region93
    $region92: #{tdeepsc_imgr_forward.10} parent=1 // pred_region
      %179 = dma.done [#allocation3], 16
    $region93: #{tdeepsc_imgr_forward.10} parent=1 // pred_fallthru
      _
    // Predicated region
    $region94: #{tdeepsc_imgr_forward.10} parent=1 // pred_check
      _
    $region95: #{tdeepsc_imgr_forward.10} parent=1 // pred_check_branch
      %181 = sbr.rel (0) target = $region97
    $region96: #{tdeepsc_imgr_forward.10} parent=1 // pred_region
      %183 = dma.done [#allocation5], 16
    $region97: #{tdeepsc_imgr_forward.10} parent=1 // pred_fallthru
      _
    // Predicated region
    $region98: #{tdeepsc_imgr_forward.10} parent=1 // pred_check
      _
    $region99: #{tdeepsc_imgr_forward.10} parent=1 // pred_check_branch
      %185 = sbr.rel (0) target = $region101
    $region100: #{tdeepsc_imgr_forward.10} parent=1 // pred_region
      %187 = dma.done [#allocation5], 16
    $region101: #{tdeepsc_imgr_forward.10} parent=1 // pred_fallthru
      _
    // Predicated region
    $region102: #{tdeepsc_imgr_forward.10} parent=1 // pred_check
      _
    $region103: #{tdeepsc_imgr_forward.10} parent=1 // pred_check_branch
      %189 = sbr.rel (0) target = $region105
    $region104: #{tdeepsc_imgr_forward.10} parent=1 // pred_region
      %191 = dma.done [#allocation8], 16
    $region105: #{tdeepsc_imgr_forward.10} parent=1 // pred_fallthru
      _
    // Predicated region
    $region106: #{tdeepsc_imgr_forward.10} parent=1 // pred_check
      _
    $region107: #{tdeepsc_imgr_forward.10} parent=1 // pred_check_branch
      %193 = sbr.rel (0) target = $region109
    $region108: #{tdeepsc_imgr_forward.10} parent=1 // pred_region
      %195 = dma.done [#allocation8], 16
    $region109: #{tdeepsc_imgr_forward.10} parent=1 // pred_fallthru
      _
    // Predicated region
    $region110: #{tdeepsc_imgr_forward.10} parent=1 // pred_check
      _
    $region111: #{tdeepsc_imgr_forward.10} parent=1 // pred_check_branch
      %197 = sbr.rel (0) target = $region113
    $region112: #{tdeepsc_imgr_forward.10} parent=1 // pred_region
      %199 = dma.done [#allocation11], 16
    $region113: #{tdeepsc_imgr_forward.10} parent=1 // pred_fallthru
      _
    // Predicated region
    $region114: #{tdeepsc_imgr_forward.10} parent=1 // pred_check
      _
    $region115: #{tdeepsc_imgr_forward.10} parent=1 // pred_check_branch
      %201 = sbr.rel (0) target = $region117
    $region116: #{tdeepsc_imgr_forward.10} parent=1 // pred_region
      %203 = dma.done [#allocation11], 16
    $region117: #{tdeepsc_imgr_forward.10} parent=1 // pred_fallthru
      _
    // Predicated region
    $region118: #{tdeepsc_imgr_forward.10} parent=1 // pred_check
      _
    $region119: #{tdeepsc_imgr_forward.10} parent=1 // pred_check_branch
      %205 = sbr.rel (0) target = $region121
    $region120: #{tdeepsc_imgr_forward.10} parent=1 // pred_region
      %207 = dma.done [#allocation14], 16
    $region121: #{tdeepsc_imgr_forward.10} parent=1 // pred_fallthru
      _
    // Predicated region
    $region122: #{tdeepsc_imgr_forward.10} parent=1 // pred_check
      _
    $region123: #{tdeepsc_imgr_forward.10} parent=1 // pred_check_branch
      %209 = sbr.rel (0) target = $region125
    $region124: #{tdeepsc_imgr_forward.10} parent=1 // pred_region
      %211 = dma.done [#allocation14], 16
    $region125: #{tdeepsc_imgr_forward.10} parent=1 // pred_fallthru
      _
    // Predicated region
    $region126: #{tdeepsc_imgr_forward.10} parent=1 // pred_check
      _
    $region127: #{tdeepsc_imgr_forward.10} parent=1 // pred_check_branch
      %213 = sbr.rel (0) target = $region129
    $region128: #{tdeepsc_imgr_forward.10} parent=1 // pred_region
      %215 = dma.done [#allocation17], 16
    $region129: #{tdeepsc_imgr_forward.10} parent=1 // pred_fallthru
      _
    // Predicated region
    $region130: #{tdeepsc_imgr_forward.10} parent=1 // pred_check
      _
    $region131: #{tdeepsc_imgr_forward.10} parent=1 // pred_check_branch
      %217 = sbr.rel (0) target = $region133
    $region132: #{tdeepsc_imgr_forward.10} parent=1 // pred_region
      %219 = dma.done [#allocation17], 16
    $region133: #{tdeepsc_imgr_forward.10} parent=1 // pred_fallthru
      _
    %v221 = vld [vmem:[%s0] sm:$0xf]
    %v222 = vld [vmem:[%s0 + $0x4] sm:$0xf]
    %v223 = vld [vmem:[%s0 + $0x8] sm:$0xf]
    %v224 = vld [vmem:[%s0 + $0xc] sm:$0xf]
    %v225 = vld [vmem:[%s1] sm:$0xf]
    %v226 = vld [vmem:[%s1 + $0x4] sm:$0xf]
    %v227 = vld [vmem:[%s1 + $0x8] sm:$0xf]
    %v228 = vld [vmem:[%s1 + $0xc] sm:$0xf]
    %v229 = vld [vmem:[%s2] sm:$0xff]
    %v230 = vld [vmem:[%s2 + $0x8] sm:$0xff]
    %v231 = vld [vmem:[%s2 + $0x10] sm:$0xff]
    %v232 = vld [vmem:[%s2 + $0x18] sm:$0xff]
    %237 = vst [vmem:[#allocation1] ss:$2 sm:$0xff] %v221
    %s238 = scalar_lea.vmem [#allocation1], 1
    %239 = vst [vmem:[%s238] ss:$2 sm:$0xff] %v222
    %s240 = scalar_lea.vmem [#allocation1], 16
    %241 = vst [vmem:[%s240] ss:$2 sm:$0xff] %v223
    %s242 = scalar_lea.vmem [#allocation1], 17
    %243 = vst [vmem:[%s242] ss:$2 sm:$0xff] %v224
    %v244 = vld.sshfl [vmem:[#allocation1] sm:$0xff pattern:$0x75316420]
    %v245 = vld.sshfl [vmem:[#allocation1 + $0x10] sm:$0xff pattern:$0x75316420]
    %v248 = vpack.c.bf16 %v245, %v244
    %v249 = vpack.c.bf16 %v230, %v229
    %v250 = vpack.c.bf16 %v232, %v231
    %v251 = vld [vmem:[%s3] sm:$0x1]
    %v253 = vperm.slane %v251, 0
    %vm255 = vcmask 261120
    %v257 = vsel %vm255, %v248, 0
    %259 = vmatpush.bf16.msra.mxu0 0
    %260 = vmatpush.bf16.msra.mxu0 0
    %261 = vmatpush.bf16.msra.mxu0 0
    %262 = vmatpush.bf16.msra.mxu0 0
    %263 = vmatpush.bf16.msra.mxu0 0
    %264 = vmatpush.bf16.msra.mxu0 0
    %265 = vmatpush.bf16.msra.mxu0 %v250
    %266 = vmatpush.bf16.msra.mxu0 %v249
    %267 = vmatmul.bf16.gmra.mxu0 %v257
    %v268 = vpop.f32.mrf.mxu0
    %v269 = vadd.f32 %v253, %v268
    %v270 = vpop.f32.mrf.mxu0
    %v271 = vadd.f32 %v253, %v270
    %272 = vdwg.mxu0
    %v275 = vrot.slane %v269, 4
    %v276 = vrot.slane %v271, 4
    %v279 = vpack.c.bf16 %v269, %v269
    %v280 = vpack.c.bf16 %v275, %v275
    %v281 = vpack.c.bf16 %v271, %v271
    %v282 = vpack.c.bf16 %v276, %v276
    %v284 = vunpack.c.l.b16 %v279
    %v285 = vpack.c.b16 %v284, %v284
    %286 = vrot.lane.b32.xlu0 %v285, 96
    %v287 = vpop.permute.xlu0 %286
    %vm288 = vcmask 130048
    %v290 = vsel %vm288, %v279, 0
    %v293 = vsel %vm288, %v287, 0
    %295 = vmatpush.bf16.xpose.msra.mxu0 0
    %296 = vmatpush.bf16.xpose.msra.mxu0 0
    %297 = vmatpush.bf16.xpose.msra.mxu0 0
    %298 = vmatpush.bf16.xpose.msra.mxu0 0
    %299 = vmatpush.bf16.xpose.msra.mxu0 0
    %300 = vmatpush.bf16.xpose.msra.mxu0 0
    %301 = vmatpush.bf16.xpose.msra.mxu0 0
    %302 = vmatpush.bf16.xpose.msra.mxu0 %v293
    %303 = vmatmul.bf16.gmra.mxu0 %v290
    %v304 = vpop.f32.mrf.mxu0
    %v305 = vadd.f32 0.0, %v304
    %v306 = vpop.f32.mrf.mxu0
    %307 = vdwg.mxu0
    %v309 = vunpack.c.l.b16 %v280
    %v310 = vpack.c.b16 %v309, %v309
    %311 = vrot.lane.b32.xlu0 %v310, 96
    %v312 = vpop.permute.xlu0 %311
    %v314 = vsel %vm288, %v280, 0
    %v317 = vsel %vm288, %v312, 0
    %319 = vmatpush.bf16.xpose.msra.mxu0 0
    %320 = vmatpush.bf16.xpose.msra.mxu0 0
    %321 = vmatpush.bf16.xpose.msra.mxu0 0
    %322 = vmatpush.bf16.xpose.msra.mxu0 0
    %323 = vmatpush.bf16.xpose.msra.mxu0 0
    %324 = vmatpush.bf16.xpose.msra.mxu0 0
    %325 = vmatpush.bf16.xpose.msra.mxu0 0
    %326 = vmatpush.bf16.xpose.msra.mxu0 %v317
    %327 = vmatmul.bf16.gmra.mxu0 %v314
    %v328 = vpop.f32.mrf.mxu0
    %v329 = vadd.f32 0.0, %v328
    %v330 = vpop.f32.mrf.mxu0
    %331 = vdwg.mxu0
    %v333 = vunpack.c.l.b16 %v281
    %v334 = vpack.c.b16 %v333, %v333
    %335 = vrot.lane.b32.xlu0 %v334, 96
    %v336 = vpop.permute.xlu0 %335
    %v338 = vsel %vm288, %v281, 0
    %v341 = vsel %vm288, %v336, 0
    %343 = vmatpush.bf16.xpose.msra.mxu0 0
    %344 = vmatpush.bf16.xpose.msra.mxu0 0
    %345 = vmatpush.bf16.xpose.msra.mxu0 0
    %346 = vmatpush.bf16.xpose.msra.mxu0 0
    %347 = vmatpush.bf16.xpose.msra.mxu0 0
    %348 = vmatpush.bf16.xpose.msra.mxu0 0
    %349 = vmatpush.bf16.xpose.msra.mxu0 0
    %350 = vmatpush.bf16.xpose.msra.mxu0 %v341
    %351 = vmatmul.bf16.gmra.mxu0 %v338
    %v352 = vpop.f32.mrf.mxu0
    %v353 = vadd.f32 0.0, %v352
    %v354 = vpop.f32.mrf.mxu0
    %355 = vdwg.mxu0
    %v357 = vunpack.c.l.b16 %v282
    %v358 = vpack.c.b16 %v357, %v357
    %359 = vrot.lane.b32.xlu0 %v358, 96
    %v360 = vpop.permute.xlu0 %359
    %v362 = vsel %vm288, %v282, 0
    %v365 = vsel %vm288, %v360, 0
    %367 = vmatpush.bf16.xpose.msra.mxu0 0
    %368 = vmatpush.bf16.xpose.msra.mxu0 0
    %369 = vmatpush.bf16.xpose.msra.mxu0 0
    %370 = vmatpush.bf16.xpose.msra.mxu0 0
    %371 = vmatpush.bf16.xpose.msra.mxu0 0
    %372 = vmatpush.bf16.xpose.msra.mxu0 0
    %373 = vmatpush.bf16.xpose.msra.mxu0 0
    %374 = vmatpush.bf16.xpose.msra.mxu0 %v365
    %375 = vmatmul.bf16.gmra.mxu0 %v362
    %v376 = vpop.f32.mrf.mxu0
    %v377 = vadd.f32 0.0, %v376
    %v378 = vpop.f32.mrf.mxu0
    %379 = vdwg.mxu0
    %v380 = vmul.f32 %v305, 0.25
    %v381 = vmul.f32 %v329, 0.25
    %v382 = vmul.f32 %v353, 0.25
    %v383 = vmul.f32 %v377, 0.25
    %vm384 = vcmask 27648
    %v385 = vsel %vm384, %v380, -inf
    %386 = vmax.xlane.f32.xlu0 %v385
    %v387 = vpop.xlane.xlu0 %386
    %v388 = vsel %vm384, %v381, -inf
    %389 = vmax.xlane.f32.xlu0 %v388
    %v390 = vpop.xlane.xlu0 %389
    %v391 = vsel %vm384, %v382, -inf
    %392 = vmax.xlane.f32.xlu0 %v391
    %v393 = vpop.xlane.xlu0 %392
    %v394 = vsel %vm384, %v383, -inf
    %395 = vmax.xlane.f32.xlu0 %v394
    %v396 = vpop.xlane.xlu0 %395
    %v397 = vsub.f32 %v380, %v387
    %v398 = vsub.f32 %v381, %v390
    %v399 = vsub.f32 %v382, %v393
    %v400 = vsub.f32 %v383, %v396
    %v401 = vmul.f32 %v397, 1.442695
    %v402 = vpow.pop %v401
    %v403 = vmul.f32 %v398, 1.442695
    %v404 = vpow.pop %v403
    %v405 = vmul.f32 %v399, 1.442695
    %v406 = vpow.pop %v405
    %v407 = vmul.f32 %v400, 1.442695
    %v408 = vpow.pop %v407
    %v409 = vsel %vm384, %v402, 0.0
    %410 = vadd.xlane.f32.xlu0 %v409
    %v411 = vpop.xlane.xlu0 %410
    %v412 = vsel %vm384, %v404, 0.0
    %413 = vadd.xlane.f32.xlu0 %v412
    %v414 = vpop.xlane.xlu0 %413
    %v415 = vsel %vm384, %v406, 0.0
    %416 = vadd.xlane.f32.xlu0 %v415
    %v417 = vpop.xlane.xlu0 %416
    %v418 = vsel %vm384, %v408, 0.0
    %419 = vadd.xlane.f32.xlu0 %v418
    %v420 = vpop.xlane.xlu0 %419
    %v421 = vrcp.pop %v411
    %v422 = vrcp.pop %v414
    %v423 = vrcp.pop %v417
    %v424 = vrcp.pop %v420
    %v425 = vmul.f32 %v402, %v421
    %v426 = vmul.f32 %v404, %v422
    %v427 = vmul.f32 %v406, %v423
    %v428 = vmul.f32 %v408, %v424
    %v429 = vpack.c.bf16 %v425, %v425
    %v430 = vpack.c.bf16 %v426, %v426
    %v431 = vpack.c.bf16 %v427, %v427
    %v432 = vpack.c.bf16 %v428, %v428
    %433 = vrot.lane.b32.xlu0 %v285, 64
    %v434 = vpop.permute.xlu0 %433
    %vm435 = vcmask 31744
    %v437 = vsel %vm435, %v429, 0
    %vm439 = vcmask 1041408
    %v441 = vsel %vm439, %v434, 0
    %443 = vmatpush.bf16.msra.mxu0 0
    %444 = vmatpush.bf16.msra.mxu0 0
    %445 = vmatpush.bf16.msra.mxu0 0
    %446 = vmatpush.bf16.msra.mxu0 0
    %447 = vmatpush.bf16.msra.mxu0 0
    %448 = vmatpush.bf16.msra.mxu0 0
    %449 = vmatpush.bf16.msra.mxu0 0
    %450 = vmatpush.bf16.msra.mxu0 %v441
    %451 = vmatmul.bf16.gmra.mxu0 %v437
    %v452 = vpop.f32.mrf.mxu0
    %v453 = vadd.f32 0.0, %v452
    %v454 = vpop.f32.mrf.mxu0
    %455 = vdwg.mxu0
    %456 = vrot.lane.b32.xlu0 %v310, 64
    %v457 = vpop.permute.xlu0 %456
    %v459 = vsel %vm435, %v430, 0
    %v462 = vsel %vm439, %v457, 0
    %464 = vmatpush.bf16.msra.mxu0 0
    %465 = vmatpush.bf16.msra.mxu0 0
    %466 = vmatpush.bf16.msra.mxu0 0
    %467 = vmatpush.bf16.msra.mxu0 0
    %468 = vmatpush.bf16.msra.mxu0 0
    %469 = vmatpush.bf16.msra.mxu0 0
    %470 = vmatpush.bf16.msra.mxu0 0
    %471 = vmatpush.bf16.msra.mxu0 %v462
    %472 = vmatmul.bf16.gmra.mxu0 %v459
    %v473 = vpop.f32.mrf.mxu0
    %v474 = vadd.f32 0.0, %v473
    %v475 = vpop.f32.mrf.mxu0
    %476 = vdwg.mxu0
    %477 = vrot.lane.b32.xlu0 %v334, 64
    %v478 = vpop.permute.xlu0 %477
    %v480 = vsel %vm435, %v431, 0
    %v483 = vsel %vm439, %v478, 0
    %485 = vmatpush.bf16.msra.mxu0 0
    %486 = vmatpush.bf16.msra.mxu0 0
    %487 = vmatpush.bf16.msra.mxu0 0
    %488 = vmatpush.bf16.msra.mxu0 0
    %489 = vmatpush.bf16.msra.mxu0 0
    %490 = vmatpush.bf16.msra.mxu0 0
    %491 = vmatpush.bf16.msra.mxu0 0
    %492 = vmatpush.bf16.msra.mxu0 %v483
    %493 = vmatmul.bf16.gmra.mxu0 %v480
    %v494 = vpop.f32.mrf.mxu0
    %v495 = vadd.f32 0.0, %v494
    %v496 = vpop.f32.mrf.mxu0
    %497 = vdwg.mxu0
    %498 = vrot.lane.b32.xlu0 %v358, 64
    %v499 = vpop.permute.xlu0 %498
    %v501 = vsel %vm435, %v432, 0
    %v504 = vsel %vm439, %v499, 0
    %506 = vmatpush.bf16.msra.mxu0 0
    %507 = vmatpush.bf16.msra.mxu0 0
    %508 = vmatpush.bf16.msra.mxu0 0
    %509 = vmatpush.bf16.msra.mxu0 0
    %510 = vmatpush.bf16.msra.mxu0 0
    %511 = vmatpush.bf16.msra.mxu0 0
    %512 = vmatpush.bf16.msra.mxu0 0
    %513 = vmatpush.bf16.msra.mxu0 %v504
    %514 = vmatmul.bf16.gmra.mxu0 %v501
    %v515 = vpop.f32.mrf.mxu0
    %v516 = vadd.f32 0.0, %v515
    %v517 = vpop.f32.mrf.mxu0
    %518 = vdwg.mxu0
    %519 = vrot.lane.b32.xlu0 %v285, 112
    %v520 = vpop.permute.xlu0 %519
    %521 = vrot.lane.b32.xlu0 %v285, 80
    %v522 = vpop.permute.xlu0 %521
    %v524 = vsel %vm288, %v520, 0
    %v527 = vsel %vm288, %v522, 0
    %529 = vmatpush.bf16.xpose.msra.mxu0 0
    %530 = vmatpush.bf16.xpose.msra.mxu0 0
    %531 = vmatpush.bf16.xpose.msra.mxu0 0
    %532 = vmatpush.bf16.xpose.msra.mxu0 0
    %533 = vmatpush.bf16.xpose.msra.mxu0 0
    %534 = vmatpush.bf16.xpose.msra.mxu0 0
    %535 = vmatpush.bf16.xpose.msra.mxu0 0
    %536 = vmatpush.bf16.xpose.msra.mxu0 %v527
    %537 = vmatmul.bf16.gmra.mxu0 %v524
    %v538 = vpop.f32.mrf.mxu0
    %v539 = vadd.f32 0.0, %v538
    %v540 = vpop.f32.mrf.mxu0
    %541 = vdwg.mxu0
    %542 = vrot.lane.b32.xlu0 %v310, 112
    %v543 = vpop.permute.xlu0 %542
    %544 = vrot.lane.b32.xlu0 %v310, 80
    %v545 = vpop.permute.xlu0 %544
    %v547 = vsel %vm288, %v543, 0
    %v550 = vsel %vm288, %v545, 0
    %552 = vmatpush.bf16.xpose.msra.mxu0 0
    %553 = vmatpush.bf16.xpose.msra.mxu0 0
    %554 = vmatpush.bf16.xpose.msra.mxu0 0
    %555 = vmatpush.bf16.xpose.msra.mxu0 0
    %556 = vmatpush.bf16.xpose.msra.mxu0 0
    %557 = vmatpush.bf16.xpose.msra.mxu0 0
    %558 = vmatpush.bf16.xpose.msra.mxu0 0
    %559 = vmatpush.bf16.xpose.msra.mxu0 %v550
    %560 = vmatmul.bf16.gmra.mxu0 %v547
    %v561 = vpop.f32.mrf.mxu0
    %v562 = vadd.f32 0.0, %v561
    %v563 = vpop.f32.mrf.mxu0
    %564 = vdwg.mxu0
    %565 = vrot.lane.b32.xlu0 %v334, 112
    %v566 = vpop.permute.xlu0 %565
    %567 = vrot.lane.b32.xlu0 %v334, 80
    %v568 = vpop.permute.xlu0 %567
    %v570 = vsel %vm288, %v566, 0
    %v573 = vsel %vm288, %v568, 0
    %575 = vmatpush.bf16.xpose.msra.mxu0 0
    %576 = vmatpush.bf16.xpose.msra.mxu0 0
    %577 = vmatpush.bf16.xpose.msra.mxu0 0
    %578 = vmatpush.bf16.xpose.msra.mxu0 0
    %579 = vmatpush.bf16.xpose.msra.mxu0 0
    %580 = vmatpush.bf16.xpose.msra.mxu0 0
    %581 = vmatpush.bf16.xpose.msra.mxu0 0
    %582 = vmatpush.bf16.xpose.msra.mxu0 %v573
    %583 = vmatmul.bf16.gmra.mxu0 %v570
    %v584 = vpop.f32.mrf.mxu0
    %v585 = vadd.f32 0.0, %v584
    %v586 = vpop.f32.mrf.mxu0
    %587 = vdwg.mxu0
    %588 = vrot.lane.b32.xlu0 %v358, 112
    %v589 = vpop.permute.xlu0 %588
    %590 = vrot.lane.b32.xlu0 %v358, 80
    %v591 = vpop.permute.xlu0 %590
    %v593 = vsel %vm288, %v589, 0
    %v596 = vsel %vm288, %v591, 0
    %598 = vmatpush.bf16.xpose.msra.mxu0 0
    %599 = vmatpush.bf16.xpose.msra.mxu0 0
    %600 = vmatpush.bf16.xpose.msra.mxu0 0
    %601 = vmatpush.bf16.xpose.msra.mxu0 0
    %602 = vmatpush.bf16.xpose.msra.mxu0 0
    %603 = vmatpush.bf16.xpose.msra.mxu0 0
    %604 = vmatpush.bf16.xpose.msra.mxu0 0
    %605 = vmatpush.bf16.xpose.msra.mxu0 %v596
    %606 = vmatmul.bf16.gmra.mxu0 %v593
    %v607 = vpop.f32.mrf.mxu0
    %v608 = vadd.f32 0.0, %v607
    %v609 = vpop.f32.mrf.mxu0
    %610 = vdwg.mxu0
    %v611 = vmul.f32 %v539, 0.25
    %v612 = vmul.f32 %v562, 0.25
    %v613 = vmul.f32 %v585, 0.25
    %v614 = vmul.f32 %v608, 0.25
    %v615 = vsel %vm384, %v611, -inf
    %616 = vmax.xlane.f32.xlu0 %v615
    %v617 = vpop.xlane.xlu0 %616
    %v618 = vsel %vm384, %v612, -inf
    %619 = vmax.xlane.f32.xlu0 %v618
    %v620 = vpop.xlane.xlu0 %619
    %v621 = vsel %vm384, %v613, -inf
    %622 = vmax.xlane.f32.xlu0 %v621
    %v623 = vpop.xlane.xlu0 %622
    %v624 = vsel %vm384, %v614, -inf
    %625 = vmax.xlane.f32.xlu0 %v624
    %v626 = vpop.xlane.xlu0 %625
    %v627 = vsub.f32 %v611, %v617
    %v628 = vsub.f32 %v612, %v620
    %v629 = vsub.f32 %v613, %v623
    %v630 = vsub.f32 %v614, %v626
    %v631 = vmul.f32 %v627, 1.442695
    %v632 = vpow.pop %v631
    %v633 = vmul.f32 %v628, 1.442695
    %v634 = vpow.pop %v633
    %v635 = vmul.f32 %v629, 1.442695
    %v636 = vpow.pop %v635
    %v637 = vmul.f32 %v630, 1.442695
    %v638 = vpow.pop %v637
    %v639 = vsel %vm384, %v632, 0.0
    %640 = vadd.xlane.f32.xlu0 %v639
    %v641 = vpop.xlane.xlu0 %640
    %v642 = vsel %vm384, %v634, 0.0
    %643 = vadd.xlane.f32.xlu0 %v642
    %v644 = vpop.xlane.xlu0 %643
    %v645 = vsel %vm384, %v636, 0.0
    %646 = vadd.xlane.f32.xlu0 %v645
    %v647 = vpop.xlane.xlu0 %646
    %v648 = vsel %vm384, %v638, 0.0
    %649 = vadd.xlane.f32.xlu0 %v648
    %v650 = vpop.xlane.xlu0 %649
    %v651 = vrcp.pop %v641
    %v652 = vrcp.pop %v644
    %v653 = vrcp.pop %v647
    %v654 = vrcp.pop %v650
    %v655 = vmul.f32 %v632, %v651
    %v656 = vmul.f32 %v634, %v652
    %v657 = vmul.f32 %v636, %v653
    %v658 = vmul.f32 %v638, %v654
    %v659 = vpack.c.bf16 %v655, %v655
    %v660 = vpack.c.bf16 %v656, %v656
    %v661 = vpack.c.bf16 %v657, %v657
    %v662 = vpack.c.bf16 %v658, %v658
    %663 = vrot.lane.b32.xlu0 %v285, 48
    %v664 = vpop.permute.xlu0 %663
    %v666 = vsel %vm435, %v659, 0
    %v669 = vsel %vm439, %v664, 0
    %671 = vmatpush.bf16.msra.mxu0 0
    %672 = vmatpush.bf16.msra.mxu0 0
    %673 = vmatpush.bf16.msra.mxu0 0
    %674 = vmatpush.bf16.msra.mxu0 0
    %675 = vmatpush.bf16.msra.mxu0 0
    %676 = vmatpush.bf16.msra.mxu0 0
    %677 = vmatpush.bf16.msra.mxu0 0
    %678 = vmatpush.bf16.msra.mxu0 %v669
    %679 = vmatmul.bf16.gmra.mxu0 %v666
    %v680 = vpop.f32.mrf.mxu0
    %v681 = vadd.f32 0.0, %v680
    %v682 = vpop.f32.mrf.mxu0
    %683 = vdwg.mxu0
    %684 = vrot.lane.b32.xlu0 %v310, 48
    %v685 = vpop.permute.xlu0 %684
    %v687 = vsel %vm435, %v660, 0
    %v690 = vsel %vm439, %v685, 0
    %692 = vmatpush.bf16.msra.mxu0 0
    %693 = vmatpush.bf16.msra.mxu0 0
    %694 = vmatpush.bf16.msra.mxu0 0
    %695 = vmatpush.bf16.msra.mxu0 0
    %696 = vmatpush.bf16.msra.mxu0 0
    %697 = vmatpush.bf16.msra.mxu0 0
    %698 = vmatpush.bf16.msra.mxu0 0
    %699 = vmatpush.bf16.msra.mxu0 %v690
    %700 = vmatmul.bf16.gmra.mxu0 %v687
    %v701 = vpop.f32.mrf.mxu0
    %v702 = vadd.f32 0.0, %v701
    %v703 = vpop.f32.mrf.mxu0
    %704 = vdwg.mxu0
    %705 = vrot.lane.b32.xlu0 %v334, 48
    %v706 = vpop.permute.xlu0 %705
    %v708 = vsel %vm435, %v661, 0
    %v711 = vsel %vm439, %v706, 0
    %713 = vmatpush.bf16.msra.mxu0 0
    %714 = vmatpush.bf16.msra.mxu0 0
    %715 = vmatpush.bf16.msra.mxu0 0
    %716 = vmatpush.bf16.msra.mxu0 0
    %717 = vmatpush.bf16.msra.mxu0 0
    %718 = vmatpush.bf16.msra.mxu0 0
    %719 = vmatpush.bf16.msra.mxu0 0
    %720 = vmatpush.bf16.msra.mxu0 %v711
    %721 = vmatmul.bf16.gmra.mxu0 %v708
    %v722 = vpop.f32.mrf.mxu0
    %v723 = vadd.f32 0.0, %v722
    %v724 = vpop.f32.mrf.mxu0
    %725 = vdwg.mxu0
    %726 = vrot.lane.b32.xlu0 %v358, 48
    %v727 = vpop.permute.xlu0 %726
    %v729 = vsel %vm435, %v662, 0
    %v732 = vsel %vm439, %v727, 0
    %734 = vmatpush.bf16.msra.mxu0 0
    %735 = vmatpush.bf16.msra.mxu0 0
    %736 = vmatpush.bf16.msra.mxu0 0
    %737 = vmatpush.bf16.msra.mxu0 0
    %738 = vmatpush.bf16.msra.mxu0 0
    %739 = vmatpush.bf16.msra.mxu0 0
    %740 = vmatpush.bf16.msra.mxu0 0
    %741 = vmatpush.bf16.msra.mxu0 %v732
    %742 = vmatmul.bf16.gmra.mxu0 %v729
    %v743 = vpop.f32.mrf.mxu0
    %v744 = vadd.f32 0.0, %v743
    %v745 = vpop.f32.mrf.mxu0
    %746 = vdwg.mxu0
    %751 = vrot.lane.b32.xlu0 %v681, 16
    %v752 = vpop.permute.xlu0 %751
    %753 = vrot.lane.b32.xlu0 %v702, 16
    %v754 = vpop.permute.xlu0 %753
    %755 = vrot.lane.b32.xlu0 %v723, 16
    %v756 = vpop.permute.xlu0 %755
    %757 = vrot.lane.b32.xlu0 %v744, 16
    %v758 = vpop.permute.xlu0 %757
    %v763 = vsel %vm288, %v453, %v752
    %v764 = vsel %vm288, %v474, %v754
    %v765 = vsel %vm288, %v495, %v756
    %v766 = vsel %vm288, %v516, %v758
    %v767 = vld [vmem:[%s4] sm:$0xff]
    %v768 = vld [vmem:[%s4 + $0x8] sm:$0xff]
    %v769 = vld [vmem:[%s4 + $0x10] sm:$0xff]
    %v770 = vld [vmem:[%s4 + $0x18] sm:$0xff]
    %775 = vst [vmem:[#allocation1] ss:$2 sm:$0xff] %v763
    %s776 = scalar_lea.vmem [#allocation1], 1
    %777 = vst [vmem:[%s776] ss:$2 sm:$0xff] %v764
    %s778 = scalar_lea.vmem [#allocation1], 16
    %779 = vst [vmem:[%s778] ss:$2 sm:$0xff] %v765
    %s780 = scalar_lea.vmem [#allocation1], 17
    %781 = vst [vmem:[%s780] ss:$2 sm:$0xff] %v766
    %v782 = vld.sshfl [vmem:[#allocation1] sm:$0xff pattern:$0x75316420]
    %v783 = vld.sshfl [vmem:[#allocation1 + $0x10] sm:$0xff pattern:$0x75316420]
    %v786 = vpack.c.bf16 %v783, %v782
    %v787 = vpack.c.bf16 %v768, %v767
    %v788 = vpack.c.bf16 %v770, %v769
    %v789 = vld [vmem:[%s5] sm:$0x1]
    %v791 = vperm.slane %v789, 0
    %v794 = vsel %vm255, %v786, 0
    %796 = vmatpush.bf16.msra.mxu0 0
    %797 = vmatpush.bf16.msra.mxu0 0
    %798 = vmatpush.bf16.msra.mxu0 0
    %799 = vmatpush.bf16.msra.mxu0 0
    %800 = vmatpush.bf16.msra.mxu0 0
    %801 = vmatpush.bf16.msra.mxu0 0
    %802 = vmatpush.bf16.msra.mxu0 %v788
    %803 = vmatpush.bf16.msra.mxu0 %v787
    %804 = vmatmul.bf16.gmra.mxu0 %v794
    %v805 = vpop.f32.mrf.mxu0
    %v806 = vadd.f32 %v791, %v805
    %v807 = vpop.f32.mrf.mxu0
    %v808 = vadd.f32 %v791, %v807
    %809 = vdwg.mxu0
    %v812 = vrot.slane %v806, 4
    %v813 = vrot.slane %v808, 4
    %v816 = vadd.f32 %v221, %v806
    %v817 = vadd.f32 %v222, %v812
    %v818 = vadd.f32 %v223, %v808
    %v819 = vadd.f32 %v224, %v813
    %v820 = vld [vmem:[#allocation2] sm:$0x1]
    %v821 = vld [vmem:[#allocation4] sm:$0x1]
    %826 = vst [vmem:[#allocation1] ss:$2 sm:$0xff] %v816
    %s827 = scalar_lea.vmem [#allocation1], 1
    %828 = vst [vmem:[%s827] ss:$2 sm:$0xff] %v817
    %s829 = scalar_lea.vmem [#allocation1], 16
    %830 = vst [vmem:[%s829] ss:$2 sm:$0xff] %v818
    %s831 = scalar_lea.vmem [#allocation1], 17
    %832 = vst [vmem:[%s831] ss:$2 sm:$0xff] %v819
    %v833 = vld.sshfl [vmem:[#allocation1] sm:$0xff pattern:$0x75316420]
    %v834 = vld.sshfl [vmem:[#allocation1 + $0x10] sm:$0xff pattern:$0x75316420]
    %v837 = vsel %vm255, %v833, 0.0
    %838 = vadd.xlane.f32.xlu0 %v837
    %v839 = vpop.xlane.xlu0 %838
    %v840 = vsel %vm255, %v834, 0.0
    %841 = vadd.xlane.f32.xlu0 %v840
    %v842 = vpop.xlane.xlu0 %841
    %v843 = vrcp.pop 32.0
    %v844 = vmul.f32 32.0, %v843
    %v845 = vsub.f32 1.0, %v844
    %v846 = vmul.f32 %v843, %v845
    %v847 = vadd.f32 %v843, %v846
    %vm848 = vweird.f32 %v843
    %v849 = vsel %vm848, %v843, %v847
    %v850 = vmul.f32 %v839, %v849
    %v851 = vmul.f32 %v842, %v849
    %v855 = vunpack.c.l.s4 839922192
    %v856 = vunpack.c.0.s8 %v855
    %v857 = vperm.slane %v850, %v856
    %v859 = vunpack.c.l.s4 1985246804
    %v860 = vunpack.c.0.s8 %v859
    %v861 = vperm.slane %v850, %v860
    %v863 = vunpack.c.l.s4 839922192
    %v864 = vunpack.c.0.s8 %v863
    %v865 = vperm.slane %v851, %v864
    %v867 = vunpack.c.l.s4 1985246804
    %v868 = vunpack.c.0.s8 %v867
    %v869 = vperm.slane %v851, %v868
    %v874 = vsub.f32 %v816, %v857
    %v875 = vsub.f32 %v817, %v861
    %v876 = vsub.f32 %v818, %v865
    %v877 = vsub.f32 %v819, %v869
    %v878 = vmul.f32 %v874, %v874
    %v879 = vmul.f32 %v875, %v875
    %v880 = vmul.f32 %v876, %v876
    %v881 = vmul.f32 %v877, %v877
    %886 = vst [vmem:[#allocation1] ss:$2 sm:$0xff] %v878
    %s887 = scalar_lea.vmem [#allocation1], 1
    %888 = vst [vmem:[%s887] ss:$2 sm:$0xff] %v879
    %s889 = scalar_lea.vmem [#allocation1], 16
    %890 = vst [vmem:[%s889] ss:$2 sm:$0xff] %v880
    %s891 = scalar_lea.vmem [#allocation1], 17
    %892 = vst [vmem:[%s891] ss:$2 sm:$0xff] %v881
    %v893 = vld.sshfl [vmem:[#allocation1] sm:$0xff pattern:$0x75316420]
    %v894 = vld.sshfl [vmem:[#allocation1 + $0x10] sm:$0xff pattern:$0x75316420]
    %v897 = vsel %vm255, %v893, 0.0
    %898 = vadd.xlane.f32.xlu0 %v897
    %v899 = vpop.xlane.xlu0 %898
    %v900 = vsel %vm255, %v894, 0.0
    %901 = vadd.xlane.f32.xlu0 %v900
    %v902 = vpop.xlane.xlu0 %901
    %v903 = vmul.f32 %v899, %v849
    %v904 = vmul.f32 %v902, %v849
    %v905 = vadd.f32 %v903, 1e-06
    %v906 = vadd.f32 %v904, 1e-06
    %v907 = vrsqrt.pop %v905
    %v908 = vmul.f32 %v907, %v905
    %v909 = vmul.f32 %v908, %v907
    %v910 = vmul.f32 0.5, %v909
    %v911 = vsub.f32 1.5, %v910
    %v912 = vmul.f32 %v907, %v911
    %vm913 = vweird.f32 %v905
    %vm914 = vweird.f32 %v907
    %vm915 = vmor %vm913, %vm914
    %v916 = vsel %vm915, %v907, %v912
    %v917 = vrsqrt.pop %v906
    %v918 = vmul.f32 %v917, %v906
    %v919 = vmul.f32 %v918, %v917
    %v920 = vmul.f32 0.5, %v919
    %v921 = vsub.f32 1.5, %v920
    %v922 = vmul.f32 %v917, %v921
    %vm923 = vweird.f32 %v906
    %vm924 = vweird.f32 %v917
    %vm925 = vmor %vm923, %vm924
    %v926 = vsel %vm925, %v917, %v922
    %v930 = vunpack.c.l.s4 839922192
    %v931 = vunpack.c.0.s8 %v930
    %v932 = vperm.slane %v916, %v931
    %v934 = vunpack.c.l.s4 1985246804
    %v935 = vunpack.c.0.s8 %v934
    %v936 = vperm.slane %v916, %v935
    %v938 = vunpack.c.l.s4 839922192
    %v939 = vunpack.c.0.s8 %v938
    %v940 = vperm.slane %v926, %v939
    %v942 = vunpack.c.l.s4 1985246804
    %v943 = vunpack.c.0.s8 %v942
    %v944 = vperm.slane %v926, %v943
    %v949 = vmul.f32 %v874, %v932
    %v950 = vmul.f32 %v875, %v936
    %v951 = vmul.f32 %v876, %v940
    %v952 = vmul.f32 %v877, %v944
    %v954 = vperm.slane %v820, 0
    %v956 = vrot.slane %v954, 4
    %v958 = vmul.f32 %v949, %v954
    %v959 = vmul.f32 %v950, %v956
    %v960 = vmul.f32 %v951, %v954
    %v961 = vmul.f32 %v952, %v956
    %v963 = vperm.slane %v821, 0
    %v965 = vrot.slane %v963, 4
    %v967 = vadd.f32 %v958, %v963
    %v968 = vadd.f32 %v959, %v965
    %v969 = vadd.f32 %v960, %v963
    %v970 = vadd.f32 %v961, %v965
    %v971 = vld [vmem:[%s8] sm:$0xff]
    %v972 = vld [vmem:[%s8 + $0x8] sm:$0xff]
    %v973 = vld [vmem:[%s8 + $0x10] sm:$0xff]
    %v974 = vld [vmem:[%s8 + $0x18] sm:$0xff]
    %979 = vst [vmem:[#allocation1] ss:$2 sm:$0xff] %v967
    %s980 = scalar_lea.vmem [#allocation1], 1
    %981 = vst [vmem:[%s980] ss:$2 sm:$0xff] %v968
    %s982 = scalar_lea.vmem [#allocation1], 16
    %983 = vst [vmem:[%s982] ss:$2 sm:$0xff] %v969
    %s984 = scalar_lea.vmem [#allocation1], 17
    %985 = vst [vmem:[%s984] ss:$2 sm:$0xff] %v970
    %v986 = vld.sshfl [vmem:[#allocation1] sm:$0xff pattern:$0x75316420]
    %v987 = vld.sshfl [vmem:[#allocation1 + $0x10] sm:$0xff pattern:$0x75316420]
    %v990 = vpack.c.bf16 %v987, %v986
    %v991 = vpack.c.bf16 %v972, %v971
    %v992 = vpack.c.bf16 %v974, %v973
    %v993 = vld [vmem:[#allocation6] sm:$0x1]
    %v995 = vperm.slane %v993, 0
    %v998 = vsel %vm255, %v990, 0
    %1000 = vmatpush.bf16.msra.mxu0 0
    %1001 = vmatpush.bf16.msra.mxu0 0
    %1002 = vmatpush.bf16.msra.mxu0 0
    %1003 = vmatpush.bf16.msra.mxu0 0
    %1004 = vmatpush.bf16.msra.mxu0 0
    %1005 = vmatpush.bf16.msra.mxu0 0
    %1006 = vmatpush.bf16.msra.mxu0 %v992
    %1007 = vmatpush.bf16.msra.mxu0 %v991
    %1008 = vmatmul.bf16.gmra.mxu0 %v998
    %v1009 = vpop.f32.mrf.mxu0
    %v1010 = vadd.f32 %v995, %v1009
    %v1011 = vpop.f32.mrf.mxu0
    %v1012 = vadd.f32 %v995, %v1011
    %1013 = vdwg.mxu0
    %v1014 = vld [vmem:[%s10] sm:$0xff]
    %v1015 = vld [vmem:[%s10 + $0x8] sm:$0xff]
    %v1016 = vld [vmem:[%s10 + $0x10] sm:$0xff]
    %v1017 = vld [vmem:[%s10 + $0x18] sm:$0xff]
    %1022 = vst [vmem:[#allocation1] ss:$2 sm:$0xff] %v225
    %s1023 = scalar_lea.vmem [#allocation1], 1
    %1024 = vst [vmem:[%s1023] ss:$2 sm:$0xff] %v226
    %s1025 = scalar_lea.vmem [#allocation1], 16
    %1026 = vst [vmem:[%s1025] ss:$2 sm:$0xff] %v227
    %s1027 = scalar_lea.vmem [#allocation1], 17
    %1028 = vst [vmem:[%s1027] ss:$2 sm:$0xff] %v228
    %v1029 = vld.sshfl [vmem:[#allocation1] sm:$0xff pattern:$0x75316420]
    %v1030 = vld.sshfl [vmem:[#allocation1 + $0x10] sm:$0xff pattern:$0x75316420]
    %v1033 = vpack.c.bf16 %v1030, %v1029
    %v1034 = vpack.c.bf16 %v1015, %v1014
    %v1035 = vpack.c.bf16 %v1017, %v1016
    %v1036 = vld [vmem:[#allocation7] sm:$0x1]
    %v1038 = vperm.slane %v1036, 0
    %v1041 = vsel %vm255, %v1033, 0
    %1043 = vmatpush.bf16.msra.mxu0 0
    %1044 = vmatpush.bf16.msra.mxu0 0
    %1045 = vmatpush.bf16.msra.mxu0 0
    %1046 = vmatpush.bf16.msra.mxu0 0
    %1047 = vmatpush.bf16.msra.mxu0 0
    %1048 = vmatpush.bf16.msra.mxu0 0
    %1049 = vmatpush.bf16.msra.mxu0 %v1035
    %1050 = vmatpush.bf16.msra.mxu0 %v1034
    %1051 = vmatmul.bf16.gmra.mxu0 %v1041
    %v1052 = vpop.f32.mrf.mxu0
    %v1053 = vadd.f32 %v1038, %v1052
    %v1054 = vpop.f32.mrf.mxu0
    %v1055 = vadd.f32 %v1038, %v1054
    %1056 = vdwg.mxu0
    %v1059 = vrot.slane %v1053, 4
    %v1060 = vrot.slane %v1055, 4
    %v1065 = vrot.slane %v1010, 4
    %v1066 = vrot.slane %v1012, 4
    %v1069 = vpack.c.bf16 %v1010, %v1010
    %v1070 = vpack.c.bf16 %v1065, %v1065
    %v1071 = vpack.c.bf16 %v1012, %v1012
    %v1072 = vpack.c.bf16 %v1066, %v1066
    %v1073 = vpack.c.bf16 %v1053, %v1053
    %v1074 = vpack.c.bf16 %v1059, %v1059
    %v1075 = vpack.c.bf16 %v1055, %v1055
    %v1076 = vpack.c.bf16 %v1060, %v1060
    %v1078 = vsel %vm288, %v1069, 0
    %v1081 = vsel %vm288, %v1073, 0
    %1083 = vmatpush.bf16.xpose.msra.mxu0 0
    %1084 = vmatpush.bf16.xpose.msra.mxu0 0
    %1085 = vmatpush.bf16.xpose.msra.mxu0 0
    %1086 = vmatpush.bf16.xpose.msra.mxu0 0
    %1087 = vmatpush.bf16.xpose.msra.mxu0 0
    %1088 = vmatpush.bf16.xpose.msra.mxu0 0
    %1089 = vmatpush.bf16.xpose.msra.mxu0 0
    %1090 = vmatpush.bf16.xpose.msra.mxu0 %v1081
    %1091 = vmatmul.bf16.gmra.mxu0 %v1078
    %v1092 = vpop.f32.mrf.mxu0
    %v1093 = vadd.f32 0.0, %v1092
    %v1094 = vpop.f32.mrf.mxu0
    %1095 = vdwg.mxu0
    %v1097 = vsel %vm288, %v1070, 0
    %v1100 = vsel %vm288, %v1074, 0
    %1102 = vmatpush.bf16.xpose.msra.mxu0 0
    %1103 = vmatpush.bf16.xpose.msra.mxu0 0
    %1104 = vmatpush.bf16.xpose.msra.mxu0 0
    %1105 = vmatpush.bf16.xpose.msra.mxu0 0
    %1106 = vmatpush.bf16.xpose.msra.mxu0 0
    %1107 = vmatpush.bf16.xpose.msra.mxu0 0
    %1108 = vmatpush.bf16.xpose.msra.mxu0 0
    %1109 = vmatpush.bf16.xpose.msra.mxu0 %v1100
    %1110 = vmatmul.bf16.gmra.mxu0 %v1097
    %v1111 = vpop.f32.mrf.mxu0
    %v1112 = vadd.f32 0.0, %v1111
    %v1113 = vpop.f32.mrf.mxu0
    %1114 = vdwg.mxu0
    %v1116 = vsel %vm288, %v1071, 0
    %v1119 = vsel %vm288, %v1075, 0
    %1121 = vmatpush.bf16.xpose.msra.mxu0 0
    %1122 = vmatpush.bf16.xpose.msra.mxu0 0
    %1123 = vmatpush.bf16.xpose.msra.mxu0 0
    %1124 = vmatpush.bf16.xpose.msra.mxu0 0
    %1125 = vmatpush.bf16.xpose.msra.mxu0 0
    %1126 = vmatpush.bf16.xpose.msra.mxu0 0
    %1127 = vmatpush.bf16.xpose.msra.mxu0 0
    %1128 = vmatpush.bf16.xpose.msra.mxu0 %v1119
    %1129 = vmatmul.bf16.gmra.mxu0 %v1116
    %v1130 = vpop.f32.mrf.mxu0
    %v1131 = vadd.f32 0.0, %v1130
    %v1132 = vpop.f32.mrf.mxu0
    %1133 = vdwg.mxu0
    %v1135 = vsel %vm288, %v1072, 0
    %v1138 = vsel %vm288, %v1076, 0
    %1140 = vmatpush.bf16.xpose.msra.mxu0 0
    %1141 = vmatpush.bf16.xpose.msra.mxu0 0
    %1142 = vmatpush.bf16.xpose.msra.mxu0 0
    %1143 = vmatpush.bf16.xpose.msra.mxu0 0
    %1144 = vmatpush.bf16.xpose.msra.mxu0 0
    %1145 = vmatpush.bf16.xpose.msra.mxu0 0
    %1146 = vmatpush.bf16.xpose.msra.mxu0 0
    %1147 = vmatpush.bf16.xpose.msra.mxu0 %v1138
    %1148 = vmatmul.bf16.gmra.mxu0 %v1135
    %v1149 = vpop.f32.mrf.mxu0
    %v1150 = vadd.f32 0.0, %v1149
    %v1151 = vpop.f32.mrf.mxu0
    %1152 = vdwg.mxu0
    %v1153 = vmul.f32 %v1093, 0.25
    %v1154 = vmul.f32 %v1112, 0.25
    %v1155 = vmul.f32 %v1131, 0.25
    %v1156 = vmul.f32 %v1150, 0.25
    %v1157 = vsel %vm384, %v1153, -inf
    %1158 = vmax.xlane.f32.xlu0 %v1157
    %v1159 = vpop.xlane.xlu0 %1158
    %v1160 = vsel %vm384, %v1154, -inf
    %1161 = vmax.xlane.f32.xlu0 %v1160
    %v1162 = vpop.xlane.xlu0 %1161
    %v1163 = vsel %vm384, %v1155, -inf
    %1164 = vmax.xlane.f32.xlu0 %v1163
    %v1165 = vpop.xlane.xlu0 %1164
    %v1166 = vsel %vm384, %v1156, -inf
    %1167 = vmax.xlane.f32.xlu0 %v1166
    %v1168 = vpop.xlane.xlu0 %1167
    %v1169 = vsub.f32 %v1153, %v1159
    %v1170 = vsub.f32 %v1154, %v1162
    %v1171 = vsub.f32 %v1155, %v1165
    %v1172 = vsub.f32 %v1156, %v1168
    %v1173 = vmul.f32 %v1169, 1.442695
    %v1174 = vpow.pop %v1173
    %v1175 = vmul.f32 %v1170, 1.442695
    %v1176 = vpow.pop %v1175
    %v1177 = vmul.f32 %v1171, 1.442695
    %v1178 = vpow.pop %v1177
    %v1179 = vmul.f32 %v1172, 1.442695
    %v1180 = vpow.pop %v1179
    %v1181 = vsel %vm384, %v1174, 0.0
    %1182 = vadd.xlane.f32.xlu0 %v1181
    %v1183 = vpop.xlane.xlu0 %1182
    %v1184 = vsel %vm384, %v1176, 0.0
    %1185 = vadd.xlane.f32.xlu0 %v1184
    %v1186 = vpop.xlane.xlu0 %1185
    %v1187 = vsel %vm384, %v1178, 0.0
    %1188 = vadd.xlane.f32.xlu0 %v1187
    %v1189 = vpop.xlane.xlu0 %1188
    %v1190 = vsel %vm384, %v1180, 0.0
    %1191 = vadd.xlane.f32.xlu0 %v1190
    %v1192 = vpop.xlane.xlu0 %1191
    %v1193 = vrcp.pop %v1183
    %v1194 = vrcp.pop %v1186
    %v1195 = vrcp.pop %v1189
    %v1196 = vrcp.pop %v1192
    %v1197 = vmul.f32 %v1174, %v1193
    %v1198 = vmul.f32 %v1176, %v1194
    %v1199 = vmul.f32 %v1178, %v1195
    %v1200 = vmul.f32 %v1180, %v1196
    %v1201 = vpack.c.bf16 %v1197, %v1197
    %v1202 = vpack.c.bf16 %v1198, %v1198
    %v1203 = vpack.c.bf16 %v1199, %v1199
    %v1204 = vpack.c.bf16 %v1200, %v1200
    %v1206 = vunpack.c.l.b16 %v1073
    %v1207 = vpack.c.b16 %v1206, %v1206
    %1208 = vrot.lane.b32.xlu0 %v1207, 96
    %v1209 = vpop.permute.xlu0 %1208
    %v1211 = vsel %vm435, %v1201, 0
    %v1214 = vsel %vm439, %v1209, 0
    %1216 = vmatpush.bf16.msra.mxu0 0
    %1217 = vmatpush.bf16.msra.mxu0 0
    %1218 = vmatpush.bf16.msra.mxu0 0
    %1219 = vmatpush.bf16.msra.mxu0 0
    %1220 = vmatpush.bf16.msra.mxu0 0
    %1221 = vmatpush.bf16.msra.mxu0 0
    %1222 = vmatpush.bf16.msra.mxu0 0
    %1223 = vmatpush.bf16.msra.mxu0 %v1214
    %1224 = vmatmul.bf16.gmra.mxu0 %v1211
    %v1225 = vpop.f32.mrf.mxu0
    %v1226 = vadd.f32 0.0, %v1225
    %v1227 = vpop.f32.mrf.mxu0
    %1228 = vdwg.mxu0
    %v1230 = vunpack.c.l.b16 %v1074
    %v1231 = vpack.c.b16 %v1230, %v1230
    %1232 = vrot.lane.b32.xlu0 %v1231, 96
    %v1233 = vpop.permute.xlu0 %1232
    %v1235 = vsel %vm435, %v1202, 0
    %v1238 = vsel %vm439, %v1233, 0
    %1240 = vmatpush.bf16.msra.mxu0 0
    %1241 = vmatpush.bf16.msra.mxu0 0
    %1242 = vmatpush.bf16.msra.mxu0 0
    %1243 = vmatpush.bf16.msra.mxu0 0
    %1244 = vmatpush.bf16.msra.mxu0 0
    %1245 = vmatpush.bf16.msra.mxu0 0
    %1246 = vmatpush.bf16.msra.mxu0 0
    %1247 = vmatpush.bf16.msra.mxu0 %v1238
    %1248 = vmatmul.bf16.gmra.mxu0 %v1235
    %v1249 = vpop.f32.mrf.mxu0
    %v1250 = vadd.f32 0.0, %v1249
    %v1251 = vpop.f32.mrf.mxu0
    %1252 = vdwg.mxu0
    %v1254 = vunpack.c.l.b16 %v1075
    %v1255 = vpack.c.b16 %v1254, %v1254
    %1256 = vrot.lane.b32.xlu0 %v1255, 96
    %v1257 = vpop.permute.xlu0 %1256
    %v1259 = vsel %vm435, %v1203, 0
    %v1262 = vsel %vm439, %v1257, 0
    %1264 = vmatpush.bf16.msra.mxu0 0
    %1265 = vmatpush.bf16.msra.mxu0 0
    %1266 = vmatpush.bf16.msra.mxu0 0
    %1267 = vmatpush.bf16.msra.mxu0 0
    %1268 = vmatpush.bf16.msra.mxu0 0
    %1269 = vmatpush.bf16.msra.mxu0 0
    %1270 = vmatpush.bf16.msra.mxu0 0
    %1271 = vmatpush.bf16.msra.mxu0 %v1262
    %1272 = vmatmul.bf16.gmra.mxu0 %v1259
    %v1273 = vpop.f32.mrf.mxu0
    %v1274 = vadd.f32 0.0, %v1273
    %v1275 = vpop.f32.mrf.mxu0
    %1276 = vdwg.mxu0
    %v1278 = vunpack.c.l.b16 %v1076
    %v1279 = vpack.c.b16 %v1278, %v1278
    %1280 = vrot.lane.b32.xlu0 %v1279, 96
    %v1281 = vpop.permute.xlu0 %1280
    %v1283 = vsel %vm435, %v1204, 0
    %v1286 = vsel %vm439, %v1281, 0
    %1288 = vmatpush.bf16.msra.mxu0 0
    %1289 = vmatpush.bf16.msra.mxu0 0
    %1290 = vmatpush.bf16.msra.mxu0 0
    %1291 = vmatpush.bf16.msra.mxu0 0
    %1292 = vmatpush.bf16.msra.mxu0 0
    %1293 = vmatpush.bf16.msra.mxu0 0
    %1294 = vmatpush.bf16.msra.mxu0 0
    %1295 = vmatpush.bf16.msra.mxu0 %v1286
    %1296 = vmatmul.bf16.gmra.mxu0 %v1283
    %v1297 = vpop.f32.mrf.mxu0
    %v1298 = vadd.f32 0.0, %v1297
    %v1299 = vpop.f32.mrf.mxu0
    %1300 = vdwg.mxu0
    %v1302 = vunpack.c.l.b16 %v1069
    %v1303 = vpack.c.b16 %v1302, %v1302
    %1304 = vrot.lane.b32.xlu0 %v1303, 112
    %v1305 = vpop.permute.xlu0 %1304
    %1306 = vrot.lane.b32.xlu0 %v1207, 112
    %v1307 = vpop.permute.xlu0 %1306
    %v1309 = vsel %vm288, %v1305, 0
    %v1312 = vsel %vm288, %v1307, 0
    %1314 = vmatpush.bf16.xpose.msra.mxu0 0
    %1315 = vmatpush.bf16.xpose.msra.mxu0 0
    %1316 = vmatpush.bf16.xpose.msra.mxu0 0
    %1317 = vmatpush.bf16.xpose.msra.mxu0 0
    %1318 = vmatpush.bf16.xpose.msra.mxu0 0
    %1319 = vmatpush.bf16.xpose.msra.mxu0 0
    %1320 = vmatpush.bf16.xpose.msra.mxu0 0
    %1321 = vmatpush.bf16.xpose.msra.mxu0 %v1312
    %1322 = vmatmul.bf16.gmra.mxu0 %v1309
    %v1323 = vpop.f32.mrf.mxu0
    %v1324 = vadd.f32 0.0, %v1323
    %v1325 = vpop.f32.mrf.mxu0
    %1326 = vdwg.mxu0
    %v1328 = vunpack.c.l.b16 %v1070
    %v1329 = vpack.c.b16 %v1328, %v1328
    %1330 = vrot.lane.b32.xlu0 %v1329, 112
    %v1331 = vpop.permute.xlu0 %1330
    %1332 = vrot.lane.b32.xlu0 %v1231, 112
    %v1333 = vpop.permute.xlu0 %1332
    %v1335 = vsel %vm288, %v1331, 0
    %v1338 = vsel %vm288, %v1333, 0
    %1340 = vmatpush.bf16.xpose.msra.mxu0 0
    %1341 = vmatpush.bf16.xpose.msra.mxu0 0
    %1342 = vmatpush.bf16.xpose.msra.mxu0 0
    %1343 = vmatpush.bf16.xpose.msra.mxu0 0
    %1344 = vmatpush.bf16.xpose.msra.mxu0 0
    %1345 = vmatpush.bf16.xpose.msra.mxu0 0
    %1346 = vmatpush.bf16.xpose.msra.mxu0 0
    %1347 = vmatpush.bf16.xpose.msra.mxu0 %v1338
    %1348 = vmatmul.bf16.gmra.mxu0 %v1335
    %v1349 = vpop.f32.mrf.mxu0
    %v1350 = vadd.f32 0.0, %v1349
    %v1351 = vpop.f32.mrf.mxu0
    %1352 = vdwg.mxu0
    %v1354 = vunpack.c.l.b16 %v1071
    %v1355 = vpack.c.b16 %v1354, %v1354
    %1356 = vrot.lane.b32.xlu0 %v1355, 112
    %v1357 = vpop.permute.xlu0 %1356
    %1358 = vrot.lane.b32.xlu0 %v1255, 112
    %v1359 = vpop.permute.xlu0 %1358
    %v1361 = vsel %vm288, %v1357, 0
    %v1364 = vsel %vm288, %v1359, 0
    %1366 = vmatpush.bf16.xpose.msra.mxu0 0
    %1367 = vmatpush.bf16.xpose.msra.mxu0 0
    %1368 = vmatpush.bf16.xpose.msra.mxu0 0
    %1369 = vmatpush.bf16.xpose.msra.mxu0 0
    %1370 = vmatpush.bf16.xpose.msra.mxu0 0
    %1371 = vmatpush.bf16.xpose.msra.mxu0 0
    %1372 = vmatpush.bf16.xpose.msra.mxu0 0
    %1373 = vmatpush.bf16.xpose.msra.mxu0 %v1364
    %1374 = vmatmul.bf16.gmra.mxu0 %v1361
    %v1375 = vpop.f32.mrf.mxu0
    %v1376 = vadd.f32 0.0, %v1375
    %v1377 = vpop.f32.mrf.mxu0
    %1378 = vdwg.mxu0
    %v1380 = vunpack.c.l.b16 %v1072
    %v1381 = vpack.c.b16 %v1380, %v1380
    %1382 = vrot.lane.b32.xlu0 %v1381, 112
    %v1383 = vpop.permute.xlu0 %1382
    %1384 = vrot.lane.b32.xlu0 %v1279, 112
    %v1385 = vpop.permute.xlu0 %1384
    %v1387 = vsel %vm288, %v1383, 0
    %v1390 = vsel %vm288, %v1385, 0
    %1392 = vmatpush.bf16.xpose.msra.mxu0 0
    %1393 = vmatpush.bf16.xpose.msra.mxu0 0
    %1394 = vmatpush.bf16.xpose.msra.mxu0 0
    %1395 = vmatpush.bf16.xpose.msra.mxu0 0
    %1396 = vmatpush.bf16.xpose.msra.mxu0 0
    %1397 = vmatpush.bf16.xpose.msra.mxu0 0
    %1398 = vmatpush.bf16.xpose.msra.mxu0 0
    %1399 = vmatpush.bf16.xpose.msra.mxu0 %v1390
    %1400 = vmatmul.bf16.gmra.mxu0 %v1387
    %v1401 = vpop.f32.mrf.mxu0
    %v1402 = vadd.f32 0.0, %v1401
    %v1403 = vpop.f32.mrf.mxu0
    %1404 = vdwg.mxu0
    %v1405 = vmul.f32 %v1324, 0.25
    %v1406 = vmul.f32 %v1350, 0.25
    %v1407 = vmul.f32 %v1376, 0.25
    %v1408 = vmul.f32 %v1402, 0.25
    %v1409 = vsel %vm384, %v1405, -inf
    %1410 = vmax.xlane.f32.xlu0 %v1409
    %v1411 = vpop.xlane.xlu0 %1410
    %v1412 = vsel %vm384, %v1406, -inf
    %1413 = vmax.xlane.f32.xlu0 %v1412
    %v1414 = vpop.xlane.xlu0 %1413
    %v1415 = vsel %vm384, %v1407, -inf
    %1416 = vmax.xlane.f32.xlu0 %v1415
    %v1417 = vpop.xlane.xlu0 %1416
    %v1418 = vsel %vm384, %v1408, -inf
    %1419 = vmax.xlane.f32.xlu0 %v1418
    %v1420 = vpop.xlane.xlu0 %1419
    %v1421 = vsub.f32 %v1405, %v1411
    %v1422 = vsub.f32 %v1406, %v1414
    %v1423 = vsub.f32 %v1407, %v1417
    %v1424 = vsub.f32 %v1408, %v1420
    %v1425 = vmul.f32 %v1421, 1.442695
    %v1426 = vpow.pop %v1425
    %v1427 = vmul.f32 %v1422, 1.442695
    %v1428 = vpow.pop %v1427
    %v1429 = vmul.f32 %v1423, 1.442695
    %v1430 = vpow.pop %v1429
    %v1431 = vmul.f32 %v1424, 1.442695
    %v1432 = vpow.pop %v1431
    %v1433 = vsel %vm384, %v1426, 0.0
    %1434 = vadd.xlane.f32.xlu0 %v1433
    %v1435 = vpop.xlane.xlu0 %1434
    %v1436 = vsel %vm384, %v1428, 0.0
    %1437 = vadd.xlane.f32.xlu0 %v1436
    %v1438 = vpop.xlane.xlu0 %1437
    %v1439 = vsel %vm384, %v1430, 0.0
    %1440 = vadd.xlane.f32.xlu0 %v1439
    %v1441 = vpop.xlane.xlu0 %1440
    %v1442 = vsel %vm384, %v1432, 0.0
    %1443 = vadd.xlane.f32.xlu0 %v1442
    %v1444 = vpop.xlane.xlu0 %1443
    %v1445 = vrcp.pop %v1435
    %v1446 = vrcp.pop %v1438
    %v1447 = vrcp.pop %v1441
    %v1448 = vrcp.pop %v1444
    %v1449 = vmul.f32 %v1426, %v1445
    %v1450 = vmul.f32 %v1428, %v1446
    %v1451 = vmul.f32 %v1430, %v1447
    %v1452 = vmul.f32 %v1432, %v1448
    %v1453 = vpack.c.bf16 %v1449, %v1449
    %v1454 = vpack.c.bf16 %v1450, %v1450
    %v1455 = vpack.c.bf16 %v1451, %v1451
    %v1456 = vpack.c.bf16 %v1452, %v1452
    %1457 = vrot.lane.b32.xlu0 %v1207, 80
    %v1458 = vpop.permute.xlu0 %1457
    %v1460 = vsel %vm435, %v1453, 0
    %v1463 = vsel %vm439, %v1458, 0
    %1465 = vmatpush.bf16.msra.mxu0 0
    %1466 = vmatpush.bf16.msra.mxu0 0
    %1467 = vmatpush.bf16.msra.mxu0 0
    %1468 = vmatpush.bf16.msra.mxu0 0
    %1469 = vmatpush.bf16.msra.mxu0 0
    %1470 = vmatpush.bf16.msra.mxu0 0
    %1471 = vmatpush.bf16.msra.mxu0 0
    %1472 = vmatpush.bf16.msra.mxu0 %v1463
    %1473 = vmatmul.bf16.gmra.mxu0 %v1460
    %v1474 = vpop.f32.mrf.mxu0
    %v1475 = vadd.f32 0.0, %v1474
    %v1476 = vpop.f32.mrf.mxu0
    %1477 = vdwg.mxu0
    %1478 = vrot.lane.b32.xlu0 %v1231, 80
    %v1479 = vpop.permute.xlu0 %1478
    %v1481 = vsel %vm435, %v1454, 0
    %v1484 = vsel %vm439, %v1479, 0
    %1486 = vmatpush.bf16.msra.mxu0 0
    %1487 = vmatpush.bf16.msra.mxu0 0
    %1488 = vmatpush.bf16.msra.mxu0 0
    %1489 = vmatpush.bf16.msra.mxu0 0
    %1490 = vmatpush.bf16.msra.mxu0 0
    %1491 = vmatpush.bf16.msra.mxu0 0
    %1492 = vmatpush.bf16.msra.mxu0 0
    %1493 = vmatpush.bf16.msra.mxu0 %v1484
    %1494 = vmatmul.bf16.gmra.mxu0 %v1481
    %v1495 = vpop.f32.mrf.mxu0
    %v1496 = vadd.f32 0.0, %v1495
    %v1497 = vpop.f32.mrf.mxu0
    %1498 = vdwg.mxu0
    %1499 = vrot.lane.b32.xlu0 %v1255, 80
    %v1500 = vpop.permute.xlu0 %1499
    %v1502 = vsel %vm435, %v1455, 0
    %v1505 = vsel %vm439, %v1500, 0
    %1507 = vmatpush.bf16.msra.mxu0 0
    %1508 = vmatpush.bf16.msra.mxu0 0
    %1509 = vmatpush.bf16.msra.mxu0 0
    %1510 = vmatpush.bf16.msra.mxu0 0
    %1511 = vmatpush.bf16.msra.mxu0 0
    %1512 = vmatpush.bf16.msra.mxu0 0
    %1513 = vmatpush.bf16.msra.mxu0 0
    %1514 = vmatpush.bf16.msra.mxu0 %v1505
    %1515 = vmatmul.bf16.gmra.mxu0 %v1502
    %v1516 = vpop.f32.mrf.mxu0
    %v1517 = vadd.f32 0.0, %v1516
    %v1518 = vpop.f32.mrf.mxu0
    %1519 = vdwg.mxu0
    %1520 = vrot.lane.b32.xlu0 %v1279, 80
    %v1521 = vpop.permute.xlu0 %1520
    %v1523 = vsel %vm435, %v1456, 0
    %v1526 = vsel %vm439, %v1521, 0
    %1528 = vmatpush.bf16.msra.mxu0 0
    %1529 = vmatpush.bf16.msra.mxu0 0
    %1530 = vmatpush.bf16.msra.mxu0 0
    %1531 = vmatpush.bf16.msra.mxu0 0
    %1532 = vmatpush.bf16.msra.mxu0 0
    %1533 = vmatpush.bf16.msra.mxu0 0
    %1534 = vmatpush.bf16.msra.mxu0 0
    %1535 = vmatpush.bf16.msra.mxu0 %v1526
    %1536 = vmatmul.bf16.gmra.mxu0 %v1523
    %v1537 = vpop.f32.mrf.mxu0
    %v1538 = vadd.f32 0.0, %v1537
    %v1539 = vpop.f32.mrf.mxu0
    %1540 = vdwg.mxu0
    %1545 = vrot.lane.b32.xlu0 %v1475, 16
    %v1546 = vpop.permute.xlu0 %1545
    %1547 = vrot.lane.b32.xlu0 %v1496, 16
    %v1548 = vpop.permute.xlu0 %1547
    %1549 = vrot.lane.b32.xlu0 %v1517, 16
    %v1550 = vpop.permute.xlu0 %1549
    %1551 = vrot.lane.b32.xlu0 %v1538, 16
    %v1552 = vpop.permute.xlu0 %1551
    %v1557 = vsel %vm288, %v1226, %v1546
    %v1558 = vsel %vm288, %v1250, %v1548
    %v1559 = vsel %vm288, %v1274, %v1550
    %v1560 = vsel %vm288, %v1298, %v1552
    %v1561 = vld [vmem:[%s12] sm:$0xff]
    %v1562 = vld [vmem:[%s12 + $0x8] sm:$0xff]
    %v1563 = vld [vmem:[%s12 + $0x10] sm:$0xff]
    %v1564 = vld [vmem:[%s12 + $0x18] sm:$0xff]
    %1569 = vst [vmem:[#allocation1] ss:$2 sm:$0xff] %v1557
    %s1570 = scalar_lea.vmem [#allocation1], 1
    %1571 = vst [vmem:[%s1570] ss:$2 sm:$0xff] %v1558
    %s1572 = scalar_lea.vmem [#allocation1], 16
    %1573 = vst [vmem:[%s1572] ss:$2 sm:$0xff] %v1559
    %s1574 = scalar_lea.vmem [#allocation1], 17
    %1575 = vst [vmem:[%s1574] ss:$2 sm:$0xff] %v1560
    %v1576 = vld.sshfl [vmem:[#allocation1] sm:$0xff pattern:$0x75316420]
    %v1577 = vld.sshfl [vmem:[#allocation1 + $0x10] sm:$0xff pattern:$0x75316420]
    %v1580 = vpack.c.bf16 %v1577, %v1576
    %v1581 = vpack.c.bf16 %v1562, %v1561
    %v1582 = vpack.c.bf16 %v1564, %v1563
    %v1583 = vld [vmem:[#allocation9] sm:$0x1]
    %v1585 = vperm.slane %v1583, 0
    %v1588 = vsel %vm255, %v1580, 0
    %1590 = vmatpush.bf16.msra.mxu0 0
    %1591 = vmatpush.bf16.msra.mxu0 0
    %1592 = vmatpush.bf16.msra.mxu0 0
    %1593 = vmatpush.bf16.msra.mxu0 0
    %1594 = vmatpush.bf16.msra.mxu0 0
    %1595 = vmatpush.bf16.msra.mxu0 0
    %1596 = vmatpush.bf16.msra.mxu0 %v1582
    %1597 = vmatpush.bf16.msra.mxu0 %v1581
    %1598 = vmatmul.bf16.gmra.mxu0 %v1588
    %v1599 = vpop.f32.mrf.mxu0
    %v1600 = vadd.f32 %v1585, %v1599
    %v1601 = vpop.f32.mrf.mxu0
    %v1602 = vadd.f32 %v1585, %v1601
    %1603 = vdwg.mxu0
    %v1606 = vrot.slane %v1600, 4
    %v1607 = vrot.slane %v1602, 4
    %v1610 = vadd.f32 %v967, %v1600
    %v1611 = vadd.f32 %v968, %v1606
    %v1612 = vadd.f32 %v969, %v1602
    %v1613 = vadd.f32 %v970, %v1607
    %v1614 = vld [vmem:[#allocation10] sm:$0x1]
    %v1615 = vld [vmem:[#allocation12] sm:$0x1]
    %1620 = vst [vmem:[#allocation1] ss:$2 sm:$0xff] %v1610
    %s1621 = scalar_lea.vmem [#allocation1], 1
    %1622 = vst [vmem:[%s1621] ss:$2 sm:$0xff] %v1611
    %s1623 = scalar_lea.vmem [#allocation1], 16
    %1624 = vst [vmem:[%s1623] ss:$2 sm:$0xff] %v1612
    %s1625 = scalar_lea.vmem [#allocation1], 17
    %1626 = vst [vmem:[%s1625] ss:$2 sm:$0xff] %v1613
    %v1627 = vld.sshfl [vmem:[#allocation1] sm:$0xff pattern:$0x75316420]
    %v1628 = vld.sshfl [vmem:[#allocation1 + $0x10] sm:$0xff pattern:$0x75316420]
    %v1631 = vsel %vm255, %v1627, 0.0
    %1632 = vadd.xlane.f32.xlu0 %v1631
    %v1633 = vpop.xlane.xlu0 %1632
    %v1634 = vsel %vm255, %v1628, 0.0
    %1635 = vadd.xlane.f32.xlu0 %v1634
    %v1636 = vpop.xlane.xlu0 %1635
    %v1637 = vmul.f32 %v1633, %v849
    %v1638 = vmul.f32 %v1636, %v849
    %v1642 = vunpack.c.l.s4 839922192
    %v1643 = vunpack.c.0.s8 %v1642
    %v1644 = vperm.slane %v1637, %v1643
    %v1646 = vunpack.c.l.s4 1985246804
    %v1647 = vunpack.c.0.s8 %v1646
    %v1648 = vperm.slane %v1637, %v1647
    %v1650 = vunpack.c.l.s4 839922192
    %v1651 = vunpack.c.0.s8 %v1650
    %v1652 = vperm.slane %v1638, %v1651
    %v1654 = vunpack.c.l.s4 1985246804
    %v1655 = vunpack.c.0.s8 %v1654
    %v1656 = vperm.slane %v1638, %v1655
    %v1661 = vsub.f32 %v1610, %v1644
    %v1662 = vsub.f32 %v1611, %v1648
    %v1663 = vsub.f32 %v1612, %v1652
    %v1664 = vsub.f32 %v1613, %v1656
    %v1665 = vmul.f32 %v1661, %v1661
    %v1666 = vmul.f32 %v1662, %v1662
    %v1667 = vmul.f32 %v1663, %v1663
    %v1668 = vmul.f32 %v1664, %v1664
    %1673 = vst [vmem:[#allocation1] ss:$2 sm:$0xff] %v1665
    %s1674 = scalar_lea.vmem [#allocation1], 1
    %1675 = vst [vmem:[%s1674] ss:$2 sm:$0xff] %v1666
    %s1676 = scalar_lea.vmem [#allocation1], 16
    %1677 = vst [vmem:[%s1676] ss:$2 sm:$0xff] %v1667
    %s1678 = scalar_lea.vmem [#allocation1], 17
    %1679 = vst [vmem:[%s1678] ss:$2 sm:$0xff] %v1668
    %v1680 = vld.sshfl [vmem:[#allocation1] sm:$0xff pattern:$0x75316420]
    %v1681 = vld.sshfl [vmem:[#allocation1 + $0x10] sm:$0xff pattern:$0x75316420]
    %v1684 = vsel %vm255, %v1680, 0.0
    %1685 = vadd.xlane.f32.xlu0 %v1684
    %v1686 = vpop.xlane.xlu0 %1685
    %v1687 = vsel %vm255, %v1681, 0.0
    %1688 = vadd.xlane.f32.xlu0 %v1687
    %v1689 = vpop.xlane.xlu0 %1688
    %v1690 = vmul.f32 %v1686, %v849
    %v1691 = vmul.f32 %v1689, %v849
    %v1692 = vadd.f32 %v1690, 1e-06
    %v1693 = vadd.f32 %v1691, 1e-06
    %v1694 = vrsqrt.pop %v1692
    %v1695 = vmul.f32 %v1694, %v1692
    %v1696 = vmul.f32 %v1695, %v1694
    %v1697 = vmul.f32 0.5, %v1696
    %v1698 = vsub.f32 1.5, %v1697
    %v1699 = vmul.f32 %v1694, %v1698
    %vm1700 = vweird.f32 %v1692
    %vm1701 = vweird.f32 %v1694
    %vm1702 = vmor %vm1700, %vm1701
    %v1703 = vsel %vm1702, %v1694, %v1699
    %v1704 = vrsqrt.pop %v1693
    %v1705 = vmul.f32 %v1704, %v1693
    %v1706 = vmul.f32 %v1705, %v1704
    %v1707 = vmul.f32 0.5, %v1706
    %v1708 = vsub.f32 1.5, %v1707
    %v1709 = vmul.f32 %v1704, %v1708
    %vm1710 = vweird.f32 %v1693
    %vm1711 = vweird.f32 %v1704
    %vm1712 = vmor %vm1710, %vm1711
    %v1713 = vsel %vm1712, %v1704, %v1709
    %v1717 = vunpack.c.l.s4 839922192
    %v1718 = vunpack.c.0.s8 %v1717
    %v1719 = vperm.slane %v1703, %v1718
    %v1721 = vunpack.c.l.s4 1985246804
    %v1722 = vunpack.c.0.s8 %v1721
    %v1723 = vperm.slane %v1703, %v1722
    %v1725 = vunpack.c.l.s4 839922192
    %v1726 = vunpack.c.0.s8 %v1725
    %v1727 = vperm.slane %v1713, %v1726
    %v1729 = vunpack.c.l.s4 1985246804
    %v1730 = vunpack.c.0.s8 %v1729
    %v1731 = vperm.slane %v1713, %v1730
    %v1736 = vmul.f32 %v1661, %v1719
    %v1737 = vmul.f32 %v1662, %v1723
    %v1738 = vmul.f32 %v1663, %v1727
    %v1739 = vmul.f32 %v1664, %v1731
    %v1741 = vperm.slane %v1614, 0
    %v1743 = vrot.slane %v1741, 4
    %v1745 = vmul.f32 %v1736, %v1741
    %v1746 = vmul.f32 %v1737, %v1743
    %v1747 = vmul.f32 %v1738, %v1741
    %v1748 = vmul.f32 %v1739, %v1743
    %v1750 = vperm.slane %v1615, 0
    %v1752 = vrot.slane %v1750, 4
    %v1754 = vadd.f32 %v1745, %v1750
    %v1755 = vadd.f32 %v1746, %v1752
    %v1756 = vadd.f32 %v1747, %v1750
    %v1757 = vadd.f32 %v1748, %v1752
    %v1758 = vld [vmem:[%s16] sm:$0xff]
    %v1759 = vld [vmem:[%s16 + $0x8] sm:$0xff]
    %v1760 = vld [vmem:[%s16 + $0x10] sm:$0xff]
    %v1761 = vld [vmem:[%s16 + $0x18] sm:$0xff]
    %1766 = vst [vmem:[#allocation1] ss:$2 sm:$0xff] %v1754
    %s1767 = scalar_lea.vmem [#allocation1], 1
    %1768 = vst [vmem:[%s1767] ss:$2 sm:$0xff] %v1755
    %s1769 = scalar_lea.vmem [#allocation1], 16
    %1770 = vst [vmem:[%s1769] ss:$2 sm:$0xff] %v1756
    %s1771 = scalar_lea.vmem [#allocation1], 17
    %1772 = vst [vmem:[%s1771] ss:$2 sm:$0xff] %v1757
    %v1773 = vld.sshfl [vmem:[#allocation1] sm:$0xff pattern:$0x75316420]
    %v1774 = vld.sshfl [vmem:[#allocation1 + $0x10] sm:$0xff pattern:$0x75316420]
    %v1777 = vpack.c.bf16 %v1774, %v1773
    %v1778 = vpack.c.bf16 %v1759, %v1758
    %v1779 = vpack.c.bf16 %v1761, %v1760
    %v1780 = vld [vmem:[#allocation13] sm:$0x1]
    %v1782 = vperm.slane %v1780, 0
    %v1785 = vsel %vm255, %v1777, 0
    %1787 = vmatpush.bf16.msra.mxu0 0
    %1788 = vmatpush.bf16.msra.mxu0 0
    %1789 = vmatpush.bf16.msra.mxu0 0
    %1790 = vmatpush.bf16.msra.mxu0 0
    %1791 = vmatpush.bf16.msra.mxu0 0
    %1792 = vmatpush.bf16.msra.mxu0 0
    %1793 = vmatpush.bf16.msra.mxu0 %v1779
    %1794 = vmatpush.bf16.msra.mxu0 %v1778
    %1795 = vmatmul.bf16.gmra.mxu0 %v1785
    %v1796 = vpop.f32.mrf.mxu0
    %v1797 = vadd.f32 %v1782, %v1796
    %v1798 = vpop.f32.mrf.mxu0
    %v1799 = vadd.f32 %v1782, %v1798
    %1800 = vdwg.mxu0
    %v1801 = vmax.f32 %v1797, 0.0
    %v1802 = vmax.f32 %v1799, 0.0
    %v1803 = vld [vmem:[%s18] sm:$0xff]
    %v1804 = vld [vmem:[%s18 + $0x8] sm:$0xff]
    %v1805 = vld [vmem:[%s18 + $0x10] sm:$0xff]
    %v1806 = vld [vmem:[%s18 + $0x18] sm:$0xff]
    %v1807 = vld [vmem:[%s18 + $0x20] sm:$0xff]
    %v1808 = vld [vmem:[%s18 + $0x28] sm:$0xff]
    %v1809 = vld [vmem:[%s18 + $0x30] sm:$0xff]
    %v1810 = vld [vmem:[%s18 + $0x38] sm:$0xff]
    %v1811 = vld [vmem:[%s18 + $0x40] sm:$0xff]
    %v1812 = vld [vmem:[%s18 + $0x48] sm:$0xff]
    %v1813 = vld [vmem:[%s18 + $0x50] sm:$0xff]
    %v1814 = vld [vmem:[%s18 + $0x58] sm:$0xff]
    %v1815 = vld [vmem:[%s18 + $0x60] sm:$0xff]
    %v1816 = vld [vmem:[%s18 + $0x68] sm:$0xff]
    %v1817 = vld [vmem:[%s18 + $0x70] sm:$0xff]
    %v1818 = vld [vmem:[%s18 + $0x78] sm:$0xff]
    %v1819 = vpack.c.bf16 %v1802, %v1801
    %v1820 = vpack.c.bf16 %v1804, %v1803
    %v1821 = vpack.c.bf16 %v1806, %v1805
    %v1822 = vpack.c.bf16 %v1808, %v1807
    %v1823 = vpack.c.bf16 %v1810, %v1809
    %v1824 = vpack.c.bf16 %v1812, %v1811
    %v1825 = vpack.c.bf16 %v1814, %v1813
    %v1826 = vpack.c.bf16 %v1816, %v1815
    %v1827 = vpack.c.bf16 %v1818, %v1817
    %v1828 = vld [vmem:[#allocation15] sm:$0x1]
    %v1830 = vperm.slane %v1828, 0
    %1832 = vmatpush.bf16.msra.mxu0 %v1827
    %1833 = vmatpush.bf16.msra.mxu0 %v1826
    %1834 = vmatpush.bf16.msra.mxu0 %v1825
    %1835 = vmatpush.bf16.msra.mxu0 %v1824
    %1836 = vmatpush.bf16.msra.mxu0 %v1823
    %1837 = vmatpush.bf16.msra.mxu0 %v1822
    %1838 = vmatpush.bf16.msra.mxu0 %v1821
    %1839 = vmatpush.bf16.msra.mxu0 %v1820
    %1840 = vmatmul.bf16.gmra.mxu0 %v1819
    %v1841 = vpop.f32.mrf.mxu0
    %v1842 = vadd.f32 %v1830, %v1841
    %v1843 = vpop.f32.mrf.mxu0
    %v1844 = vadd.f32 %v1830, %v1843
    %1845 = vdwg.mxu0
    %v1848 = vrot.slane %v1842, 4
    %v1849 = vrot.slane %v1844, 4
    %v1852 = vadd.f32 %v1754, %v1842
    %v1853 = vadd.f32 %v1755, %v1848
    %v1854 = vadd.f32 %v1756, %v1844
    %v1855 = vadd.f32 %v1757, %v1849
    %v1856 = vld [vmem:[#allocation16] sm:$0x1]
    %v1857 = vld [vmem:[#allocation18] sm:$0x1]
    %1862 = vst [vmem:[#allocation1] ss:$2 sm:$0xff] %v1852
    %s1863 = scalar_lea.vmem [#allocation1], 1
    %1864 = vst [vmem:[%s1863] ss:$2 sm:$0xff] %v1853
    %s1865 = scalar_lea.vmem [#allocation1], 16
    %1866 = vst [vmem:[%s1865] ss:$2 sm:$0xff] %v1854
    %s1867 = scalar_lea.vmem [#allocation1], 17
    %1868 = vst [vmem:[%s1867] ss:$2 sm:$0xff] %v1855
    %v1869 = vld.sshfl [vmem:[#allocation1] sm:$0xff pattern:$0x75316420]
    %v1870 = vld.sshfl [vmem:[#allocation1 + $0x10] sm:$0xff pattern:$0x75316420]
    %v1873 = vsel %vm255, %v1869, 0.0
    %1874 = vadd.xlane.f32.xlu0 %v1873
    %v1875 = vpop.xlane.xlu0 %1874
    %v1876 = vsel %vm255, %v1870, 0.0
    %1877 = vadd.xlane.f32.xlu0 %v1876
    %v1878 = vpop.xlane.xlu0 %1877
    %v1879 = vmul.f32 %v1875, %v849
    %v1880 = vmul.f32 %v1878, %v849
    %v1884 = vunpack.c.l.s4 839922192
    %v1885 = vunpack.c.0.s8 %v1884
    %v1886 = vperm.slane %v1879, %v1885
    %v1888 = vunpack.c.l.s4 1985246804
    %v1889 = vunpack.c.0.s8 %v1888
    %v1890 = vperm.slane %v1879, %v1889
    %v1892 = vunpack.c.l.s4 839922192
    %v1893 = vunpack.c.0.s8 %v1892
    %v1894 = vperm.slane %v1880, %v1893
    %v1896 = vunpack.c.l.s4 1985246804
    %v1897 = vunpack.c.0.s8 %v1896
    %v1898 = vperm.slane %v1880, %v1897
    %v1903 = vsub.f32 %v1852, %v1886
    %v1904 = vsub.f32 %v1853, %v1890
    %v1905 = vsub.f32 %v1854, %v1894
    %v1906 = vsub.f32 %v1855, %v1898
    %v1907 = vmul.f32 %v1903, %v1903
    %v1908 = vmul.f32 %v1904, %v1904
    %v1909 = vmul.f32 %v1905, %v1905
    %v1910 = vmul.f32 %v1906, %v1906
    %1915 = vst [vmem:[#allocation1] ss:$2 sm:$0xff] %v1907
    %s1916 = scalar_lea.vmem [#allocation1], 1
    %1917 = vst [vmem:[%s1916] ss:$2 sm:$0xff] %v1908
    %s1918 = scalar_lea.vmem [#allocation1], 16
    %1919 = vst [vmem:[%s1918] ss:$2 sm:$0xff] %v1909
    %s1920 = scalar_lea.vmem [#allocation1], 17
    %1921 = vst [vmem:[%s1920] ss:$2 sm:$0xff] %v1910
    %v1922 = vld.sshfl [vmem:[#allocation1] sm:$0xff pattern:$0x75316420]
    %v1923 = vld.sshfl [vmem:[#allocation1 + $0x10] sm:$0xff pattern:$0x75316420]
    %v1926 = vsel %vm255, %v1922, 0.0
    %1927 = vadd.xlane.f32.xlu0 %v1926
    %v1928 = vpop.xlane.xlu0 %1927
    %v1929 = vsel %vm255, %v1923, 0.0
    %1930 = vadd.xlane.f32.xlu0 %v1929
    %v1931 = vpop.xlane.xlu0 %1930
    %v1932 = vmul.f32 %v1928, %v849
    %v1933 = vmul.f32 %v1931, %v849
    %v1934 = vadd.f32 %v1932, 1e-06
    %v1935 = vadd.f32 %v1933, 1e-06
    %v1936 = vrsqrt.pop %v1934
    %v1937 = vmul.f32 %v1936, %v1934
    %v1938 = vmul.f32 %v1937, %v1936
    %v1939 = vmul.f32 0.5, %v1938
    %v1940 = vsub.f32 1.5, %v1939
    %v1941 = vmul.f32 %v1936, %v1940
    %vm1942 = vweird.f32 %v1934
    %vm1943 = vweird.f32 %v1936
    %vm1944 = vmor %vm1942, %vm1943
    %v1945 = vsel %vm1944, %v1936, %v1941
    %v1946 = vrsqrt.pop %v1935
    %v1947 = vmul.f32 %v1946, %v1935
    %v1948 = vmul.f32 %v1947, %v1946
    %v1949 = vmul.f32 0.5, %v1948
    %v1950 = vsub.f32 1.5, %v1949
    %v1951 = vmul.f32 %v1946, %v1950
    %vm1952 = vweird.f32 %v1935
    %vm1953 = vweird.f32 %v1946
    %vm1954 = vmor %vm1952, %vm1953
    %v1955 = vsel %vm1954, %v1946, %v1951
    %v1959 = vunpack.c.l.s4 839922192
    %v1960 = vunpack.c.0.s8 %v1959
    %v1961 = vperm.slane %v1945, %v1960
    %v1963 = vunpack.c.l.s4 1985246804
    %v1964 = vunpack.c.0.s8 %v1963
    %v1965 = vperm.slane %v1945, %v1964
    %v1967 = vunpack.c.l.s4 839922192
    %v1968 = vunpack.c.0.s8 %v1967
    %v1969 = vperm.slane %v1955, %v1968
    %v1971 = vunpack.c.l.s4 1985246804
    %v1972 = vunpack.c.0.s8 %v1971
    %v1973 = vperm.slane %v1955, %v1972
    %v1978 = vmul.f32 %v1903, %v1961
    %v1979 = vmul.f32 %v1904, %v1965
    %v1980 = vmul.f32 %v1905, %v1969
    %v1981 = vmul.f32 %v1906, %v1973
    %v1983 = vperm.slane %v1856, 0
    %v1985 = vrot.slane %v1983, 4
    %v1987 = vmul.f32 %v1978, %v1983
    %v1988 = vmul.f32 %v1979, %v1985
    %v1989 = vmul.f32 %v1980, %v1983
    %v1990 = vmul.f32 %v1981, %v1985
    %v1992 = vperm.slane %v1857, 0
    %v1994 = vrot.slane %v1992, 4
    %v1996 = vadd.f32 %v1987, %v1992
    %v1997 = vadd.f32 %v1988, %v1994
    %v1998 = vadd.f32 %v1989, %v1992
    %v1999 = vadd.f32 %v1990, %v1994
    %vm2000 = vcmask 257024
    %2001 = vst.msk [vmem:[%s22] sm:$0xf] %vm2000, %v1996
    %2002 = vst.msk [vmem:[%s22 + $0x4] sm:$0xf] %vm2000, %v1997
    %2003 = vst.msk [vmem:[%s22 + $0x8] sm:$0xf] %vm2000, %v1998
    %2004 = vst.msk [vmem:[%s22 + $0xc] sm:$0xf] %vm2000, %v1999
    // Predicated region
    $region134: #{tdeepsc_imgr_forward.10} parent=1 // pred_check
      _
    $region135: #{tdeepsc_imgr_forward.10} parent=1 // pred_check_branch
      %2006 = sbr.rel (0) target = $region137
    $region136: #{tdeepsc_imgr_forward.10} parent=1 // pred_region
      _
    $region137: #{tdeepsc_imgr_forward.10} parent=1 // pred_fallthru
      _
    // Predicated region
    $region138: #{tdeepsc_imgr_forward.10} parent=1 // pred_check
      _
    $region139: #{tdeepsc_imgr_forward.10} parent=1 // pred_check_branch
      %2008 = sbr.rel (0) target = $region141
    $region140: #{tdeepsc_imgr_forward.10} parent=1 // pred_region
      _
    $region141: #{tdeepsc_imgr_forward.10} parent=1 // pred_fallthru
      _
    %2009 = vsyncpa [#allocation3], 1
    %2010 = vsyncpa [#allocation5], 1
    %2011 = vsyncpa [#allocation8], 1
    %2012 = vsyncpa [#allocation11], 1
    %2013 = vsyncpa [#allocation14], 1
    %2014 = vsyncpa [#allocation17], 1

// kernel: tdeepsc_imgr_forward.11
$region0: #{tdeepsc_imgr_forward.11}
  #allocation0 [shape = 'u32[]', space=smem, size = 0x4, offset = 0x4, fixed_abs, tag = 'smem constant byte address 0x4 - core index']
  #allocation1 [shape = 'u32[72,128]{1,0:T(1,128)}', space=vmem, size = 0x9000, scoped, tag = 'internal scratch']
  %s0 = inlined_call_operand.vmem [shape: f32[4,4,32], index: 0, kind: input, shape index: {}]
  %s1 = inlined_call_operand.vmem [shape: f32[4,4,32], index: 1, kind: input, shape index: {}]
  %s2 = inlined_call_operand.vmem [shape: f32[32,96], index: 2, kind: input, shape index: {}]
  %s3 = inlined_call_operand.hbm [shape: f32[1,96], index: 3, kind: input, shape index: {}]
  %s4 = inlined_call_operand.vmem [shape: f32[32,32], index: 4, kind: input, shape index: {}]
  %s5 = inlined_call_operand.hbm [shape: f32[1,32], index: 5, kind: input, shape index: {}]
  %s6 = inlined_call_operand.hbm [shape: f32[1,32], index: 6, kind: input, shape index: {}]
  %s7 = inlined_call_operand.hbm [shape: f32[1,32], index: 7, kind: input, shape index: {}]
  %s8 = inlined_call_operand.vmem [shape: f32[32,32], index: 8, kind: input, shape index: {}]
  %s9 = inlined_call_operand.hbm [shape: f32[1,32], index: 9, kind: input, shape index: {}]
  %s10 = inlined_call_operand.vmem [shape: f32[32,64], index: 10, kind: input, shape index: {}]
  %s11 = inlined_call_operand.hbm [shape: f32[1,64], index: 11, kind: input, shape index: {}]
  %s12 = inlined_call_operand.vmem [shape: f32[32,32], index: 12, kind: input, shape index: {}]
  %s13 = inlined_call_operand.hbm [shape: f32[1,32], index: 13, kind: input, shape index: {}]
  %s14 = inlined_call_operand.hbm [shape: f32[1,32], index: 14, kind: input, shape index: {}]
  %s15 = inlined_call_operand.hbm [shape: f32[1,32], index: 15, kind: input, shape index: {}]
  %s16 = inlined_call_operand.vmem [shape: f32[32,128], index: 16, kind: input, shape index: {}]
  %s17 = inlined_call_operand.hbm [shape: f32[1,128], index: 17, kind: input, shape index: {}]
  %s18 = inlined_call_operand.vmem [shape: f32[128,32], index: 18, kind: input, shape index: {}]
  %s19 = inlined_call_operand.hbm [shape: f32[1,32], index: 19, kind: input, shape index: {}]
  %s20 = inlined_call_operand.hbm [shape: f32[1,32], index: 20, kind: input, shape index: {}]
  %s21 = inlined_call_operand.hbm [shape: f32[1,32], index: 21, kind: input, shape index: {}]
  %s22 = inlined_call_operand.vmem [shape: f32[32,48], index: 22, kind: input, shape index: {}]
  %s23 = inlined_call_operand.hbm [shape: f32[1,48], index: 23, kind: input, shape index: {}]
  %s24 = inlined_call_operand.hbm [shape: f32[4,4,48], index: 24, kind: output, shape index: {}]
  %s25 = sld [smem:[#allocation0]]
  $region162: #{tdeepsc_imgr_forward.11} parent=0
    _
  %s27 = ssub.s32 1, %s25
  %s28 = scalar_select 0, %s27, %s25
  $region1: #{tdeepsc_imgr_forward.11} parent=0
    #allocation2 [shape = 'u8[512]{0}', space=vmem, size = 0x400, scoped, tag = 'input window, operand 3, single buffered']
    #allocation3 [shape = 's32[1]{0}', space=sflag, size = 0x4, scoped, tag = 'scoped memory for tdeepsc_imgr_forward.11']
    #allocation4 [shape = 's32[1]{0}', space=sflag, size = 0x4, scoped, tag = 'scoped memory for tdeepsc_imgr_forward.11']
    #allocation5 [shape = 'u8[512]{0}', space=vmem, size = 0x400, scoped, tag = 'input window, operand 5, single buffered']
    #allocation6 [shape = 's32[1]{0}', space=sflag, size = 0x4, scoped, tag = 'scoped memory for tdeepsc_imgr_forward.11']
    #allocation7 [shape = 'u8[512]{0}', space=vmem, size = 0x400, scoped, tag = 'input window, operand 6, single buffered']
    #allocation8 [shape = 'u8[512]{0}', space=vmem, size = 0x400, scoped, tag = 'input window, operand 7, single buffered']
    #allocation9 [shape = 's32[1]{0}', space=sflag, size = 0x4, scoped, tag = 'scoped memory for tdeepsc_imgr_forward.11']
    #allocation10 [shape = 'u8[512]{0}', space=vmem, size = 0x400, scoped, tag = 'input window, operand 9, single buffered']
    #allocation11 [shape = 'u8[512]{0}', space=vmem, size = 0x400, scoped, tag = 'input window, operand 11, single buffered']
    #allocation12 [shape = 's32[1]{0}', space=sflag, size = 0x4, scoped, tag = 'scoped memory for tdeepsc_imgr_forward.11']
    #allocation13 [shape = 'u8[512]{0}', space=vmem, size = 0x400, scoped, tag = 'input window, operand 13, single buffered']
    #allocation14 [shape = 'u8[512]{0}', space=vmem, size = 0x400, scoped, tag = 'input window, operand 14, single buffered']
    #allocation15 [shape = 's32[1]{0}', space=sflag, size = 0x4, scoped, tag = 'scoped memory for tdeepsc_imgr_forward.11']
    #allocation16 [shape = 'u8[512]{0}', space=vmem, size = 0x400, scoped, tag = 'input window, operand 15, single buffered']
    #allocation17 [shape = 'u8[512]{0}', space=vmem, size = 0x400, scoped, tag = 'input window, operand 17, single buffered']
    #allocation18 [shape = 's32[1]{0}', space=sflag, size = 0x4, scoped, tag = 'scoped memory for tdeepsc_imgr_forward.11']
    #allocation19 [shape = 'u8[512]{0}', space=vmem, size = 0x400, scoped, tag = 'input window, operand 19, single buffered']
    #allocation20 [shape = 'u8[512]{0}', space=vmem, size = 0x400, scoped, tag = 'input window, operand 20, single buffered']
    #allocation21 [shape = 's32[1]{0}', space=sflag, size = 0x4, scoped, tag = 'scoped memory for tdeepsc_imgr_forward.11']
    #allocation22 [shape = 'u8[512]{0}', space=vmem, size = 0x400, scoped, tag = 'input window, operand 21, single buffered']
    #allocation23 [shape = 'u8[512]{0}', space=vmem, size = 0x400, scoped, tag = 'input window, operand 23, single buffered']
    #allocation24 [shape = 's32[1]{0}', space=sflag, size = 0x4, scoped, tag = 'scoped memory for tdeepsc_imgr_forward.11']
    #allocation25 [shape = 'u8[8192]{0}', space=vmem, size = 0x2000, scoped, tag = 'output window, operand 0, single buffered']
    %29 = vsyncpa [#allocation3], 0
    %30 = vsyncpa [#allocation6], 0
    %31 = vsyncpa [#allocation9], 0
    %32 = vsyncpa [#allocation12], 0
    %33 = vsyncpa [#allocation15], 0
    %34 = vsyncpa [#allocation18], 0
    %35 = vsyncpa [#allocation21], 0
    %36 = vsyncpa [#allocation24], 0
    %37 = vsyncpa [#allocation4], 0
    // Predicated region
    $region2: #{tdeepsc_imgr_forward.11} parent=1 // pred_check
      _
    $region3: #{tdeepsc_imgr_forward.11} parent=1 // pred_check_branch
      %39 = sbr.rel (0) target = $region5
    $region4: #{tdeepsc_imgr_forward.11} parent=1 // pred_region
      _
    $region5: #{tdeepsc_imgr_forward.11} parent=1 // pred_fallthru
      _
    // Predicated region
    $region6: #{tdeepsc_imgr_forward.11} parent=1 // pred_check
      _
    $region7: #{tdeepsc_imgr_forward.11} parent=1 // pred_check_branch
      %41 = sbr.rel (0) target = $region9
    $region8: #{tdeepsc_imgr_forward.11} parent=1 // pred_region
      _
    $region9: #{tdeepsc_imgr_forward.11} parent=1 // pred_fallthru
      _
    // Predicated region
    $region10: #{tdeepsc_imgr_forward.11} parent=1 // pred_check
      _
    $region11: #{tdeepsc_imgr_forward.11} parent=1 // pred_check_branch
      %43 = sbr.rel (0) target = $region13
    $region12: #{tdeepsc_imgr_forward.11} parent=1 // pred_region
      _
    $region13: #{tdeepsc_imgr_forward.11} parent=1 // pred_fallthru
      _
    // Predicated region
    $region14: #{tdeepsc_imgr_forward.11} parent=1 // pred_check
      _
    $region15: #{tdeepsc_imgr_forward.11} parent=1 // pred_check_branch
      %45 = sbr.rel (0) target = $region17
    $region16: #{tdeepsc_imgr_forward.11} parent=1 // pred_region
      %47 = vsyncadd [#allocation3], 0
      %s49 = sshll.u32 %s3, 4
      %s50 = int_to_ptr.hbm [resolvable:$true] %s49
      %s51 = sshll.u32 [#allocation2], 4
      %s52 = int_to_ptr.vmem [resolvable:$true] %s51
      %54 = dma.hbm_to_vmem [thread:$0]  %s50, 16, %s52, [#allocation3]
    $region17: #{tdeepsc_imgr_forward.11} parent=1 // pred_fallthru
      _
    // Predicated region
    $region18: #{tdeepsc_imgr_forward.11} parent=1 // pred_check
      _
    $region19: #{tdeepsc_imgr_forward.11} parent=1 // pred_check_branch
      %56 = sbr.rel (0) target = $region21
    $region20: #{tdeepsc_imgr_forward.11} parent=1 // pred_region
      _
    $region21: #{tdeepsc_imgr_forward.11} parent=1 // pred_fallthru
      _
    // Predicated region
    $region22: #{tdeepsc_imgr_forward.11} parent=1 // pred_check
      _
    $region23: #{tdeepsc_imgr_forward.11} parent=1 // pred_check_branch
      %58 = sbr.rel (0) target = $region25
    $region24: #{tdeepsc_imgr_forward.11} parent=1 // pred_region
      %60 = vsyncadd [#allocation6], 0
      %s62 = sshll.u32 %s5, 4
      %s63 = int_to_ptr.hbm [resolvable:$true] %s62
      %s64 = sshll.u32 [#allocation5], 4
      %s65 = int_to_ptr.vmem [resolvable:$true] %s64
      %67 = dma.hbm_to_vmem [thread:$0]  %s63, 16, %s65, [#allocation6]
    $region25: #{tdeepsc_imgr_forward.11} parent=1 // pred_fallthru
      _
    // Predicated region
    $region26: #{tdeepsc_imgr_forward.11} parent=1 // pred_check
      _
    $region27: #{tdeepsc_imgr_forward.11} parent=1 // pred_check_branch
      %69 = sbr.rel (0) target = $region29
    $region28: #{tdeepsc_imgr_forward.11} parent=1 // pred_region
      %71 = vsyncadd [#allocation6], 0
      %s73 = sshll.u32 %s6, 4
      %s74 = int_to_ptr.hbm [resolvable:$true] %s73
      %s75 = sshll.u32 [#allocation7], 4
      %s76 = int_to_ptr.vmem [resolvable:$true] %s75
      %78 = dma.hbm_to_vmem [thread:$0]  %s74, 16, %s76, [#allocation6]
    $region29: #{tdeepsc_imgr_forward.11} parent=1 // pred_fallthru
      _
    // Predicated region
    $region30: #{tdeepsc_imgr_forward.11} parent=1 // pred_check
      _
    $region31: #{tdeepsc_imgr_forward.11} parent=1 // pred_check_branch
      %80 = sbr.rel (0) target = $region33
    $region32: #{tdeepsc_imgr_forward.11} parent=1 // pred_region
      %82 = vsyncadd [#allocation9], 0
      %s84 = sshll.u32 %s7, 4
      %s85 = int_to_ptr.hbm [resolvable:$true] %s84
      %s86 = sshll.u32 [#allocation8], 4
      %s87 = int_to_ptr.vmem [resolvable:$true] %s86
      %89 = dma.hbm_to_vmem [thread:$0]  %s85, 16, %s87, [#allocation9]
    $region33: #{tdeepsc_imgr_forward.11} parent=1 // pred_fallthru
      _
    // Predicated region
    $region34: #{tdeepsc_imgr_forward.11} parent=1 // pred_check
      _
    $region35: #{tdeepsc_imgr_forward.11} parent=1 // pred_check_branch
      %91 = sbr.rel (0) target = $region37
    $region36: #{tdeepsc_imgr_forward.11} parent=1 // pred_region
      _
    $region37: #{tdeepsc_imgr_forward.11} parent=1 // pred_fallthru
      _
    // Predicated region
    $region38: #{tdeepsc_imgr_forward.11} parent=1 // pred_check
      _
    $region39: #{tdeepsc_imgr_forward.11} parent=1 // pred_check_branch
      %93 = sbr.rel (0) target = $region41
    $region40: #{tdeepsc_imgr_forward.11} parent=1 // pred_region
      %95 = vsyncadd [#allocation9], 0
      %s97 = sshll.u32 %s9, 4
      %s98 = int_to_ptr.hbm [resolvable:$true] %s97
      %s99 = sshll.u32 [#allocation10], 4
      %s100 = int_to_ptr.vmem [resolvable:$true] %s99
      %102 = dma.hbm_to_vmem [thread:$0]  %s98, 16, %s100, [#allocation9]
    $region41: #{tdeepsc_imgr_forward.11} parent=1 // pred_fallthru
      _
    // Predicated region
    $region42: #{tdeepsc_imgr_forward.11} parent=1 // pred_check
      _
    $region43: #{tdeepsc_imgr_forward.11} parent=1 // pred_check_branch
      %104 = sbr.rel (0) target = $region45
    $region44: #{tdeepsc_imgr_forward.11} parent=1 // pred_region
      _
    $region45: #{tdeepsc_imgr_forward.11} parent=1 // pred_fallthru
      _
    // Predicated region
    $region46: #{tdeepsc_imgr_forward.11} parent=1 // pred_check
      _
    $region47: #{tdeepsc_imgr_forward.11} parent=1 // pred_check_branch
      %106 = sbr.rel (0) target = $region49
    $region48: #{tdeepsc_imgr_forward.11} parent=1 // pred_region
      %108 = vsyncadd [#allocation12], 0
      %s110 = sshll.u32 %s11, 4
      %s111 = int_to_ptr.hbm [resolvable:$true] %s110
      %s112 = sshll.u32 [#allocation11], 4
      %s113 = int_to_ptr.vmem [resolvable:$true] %s112
      %115 = dma.hbm_to_vmem [thread:$0]  %s111, 16, %s113, [#allocation12]
    $region49: #{tdeepsc_imgr_forward.11} parent=1 // pred_fallthru
      _
    // Predicated region
    $region50: #{tdeepsc_imgr_forward.11} parent=1 // pred_check
      _
    $region51: #{tdeepsc_imgr_forward.11} parent=1 // pred_check_branch
      %117 = sbr.rel (0) target = $region53
    $region52: #{tdeepsc_imgr_forward.11} parent=1 // pred_region
      _
    $region53: #{tdeepsc_imgr_forward.11} parent=1 // pred_fallthru
      _
    // Predicated region
    $region54: #{tdeepsc_imgr_forward.11} parent=1 // pred_check
      _
    $region55: #{tdeepsc_imgr_forward.11} parent=1 // pred_check_branch
      %119 = sbr.rel (0) target = $region57
    $region56: #{tdeepsc_imgr_forward.11} parent=1 // pred_region
      %121 = vsyncadd [#allocation12], 0
      %s123 = sshll.u32 %s13, 4
      %s124 = int_to_ptr.hbm [resolvable:$true] %s123
      %s125 = sshll.u32 [#allocation13], 4
      %s126 = int_to_ptr.vmem [resolvable:$true] %s125
      %128 = dma.hbm_to_vmem [thread:$0]  %s124, 16, %s126, [#allocation12]
    $region57: #{tdeepsc_imgr_forward.11} parent=1 // pred_fallthru
      _
    // Predicated region
    $region58: #{tdeepsc_imgr_forward.11} parent=1 // pred_check
      _
    $region59: #{tdeepsc_imgr_forward.11} parent=1 // pred_check_branch
      %130 = sbr.rel (0) target = $region61
    $region60: #{tdeepsc_imgr_forward.11} parent=1 // pred_region
      %132 = vsyncadd [#allocation15], 0
      %s134 = sshll.u32 %s14, 4
      %s135 = int_to_ptr.hbm [resolvable:$true] %s134
      %s136 = sshll.u32 [#allocation14], 4
      %s137 = int_to_ptr.vmem [resolvable:$true] %s136
      %139 = dma.hbm_to_vmem [thread:$0]  %s135, 16, %s137, [#allocation15]
    $region61: #{tdeepsc_imgr_forward.11} parent=1 // pred_fallthru
      _
    // Predicated region
    $region62: #{tdeepsc_imgr_forward.11} parent=1 // pred_check
      _
    $region63: #{tdeepsc_imgr_forward.11} parent=1 // pred_check_branch
      %141 = sbr.rel (0) target = $region65
    $region64: #{tdeepsc_imgr_forward.11} parent=1 // pred_region
      %143 = vsyncadd [#allocation15], 0
      %s145 = sshll.u32 %s15, 4
      %s146 = int_to_ptr.hbm [resolvable:$true] %s145
      %s147 = sshll.u32 [#allocation16], 4
      %s148 = int_to_ptr.vmem [resolvable:$true] %s147
      %150 = dma.hbm_to_vmem [thread:$0]  %s146, 16, %s148, [#allocation15]
    $region65: #{tdeepsc_imgr_forward.11} parent=1 // pred_fallthru
      _
    // Predicated region
    $region66: #{tdeepsc_imgr_forward.11} parent=1 // pred_check
      _
    $region67: #{tdeepsc_imgr_forward.11} parent=1 // pred_check_branch
      %152 = sbr.rel (0) target = $region69
    $region68: #{tdeepsc_imgr_forward.11} parent=1 // pred_region
      _
    $region69: #{tdeepsc_imgr_forward.11} parent=1 // pred_fallthru
      _
    // Predicated region
    $region70: #{tdeepsc_imgr_forward.11} parent=1 // pred_check
      _
    $region71: #{tdeepsc_imgr_forward.11} parent=1 // pred_check_branch
      %154 = sbr.rel (0) target = $region73
    $region72: #{tdeepsc_imgr_forward.11} parent=1 // pred_region
      %156 = vsyncadd [#allocation18], 0
      %s158 = sshll.u32 %s17, 4
      %s159 = int_to_ptr.hbm [resolvable:$true] %s158
      %s160 = sshll.u32 [#allocation17], 4
      %s161 = int_to_ptr.vmem [resolvable:$true] %s160
      %163 = dma.hbm_to_vmem [thread:$0]  %s159, 16, %s161, [#allocation18]
    $region73: #{tdeepsc_imgr_forward.11} parent=1 // pred_fallthru
      _
    // Predicated region
    $region74: #{tdeepsc_imgr_forward.11} parent=1 // pred_check
      _
    $region75: #{tdeepsc_imgr_forward.11} parent=1 // pred_check_branch
      %165 = sbr.rel (0) target = $region77
    $region76: #{tdeepsc_imgr_forward.11} parent=1 // pred_region
      _
    $region77: #{tdeepsc_imgr_forward.11} parent=1 // pred_fallthru
      _
    // Predicated region
    $region78: #{tdeepsc_imgr_forward.11} parent=1 // pred_check
      _
    $region79: #{tdeepsc_imgr_forward.11} parent=1 // pred_check_branch
      %167 = sbr.rel (0) target = $region81
    $region80: #{tdeepsc_imgr_forward.11} parent=1 // pred_region
      %169 = vsyncadd [#allocation18], 0
      %s171 = sshll.u32 %s19, 4
      %s172 = int_to_ptr.hbm [resolvable:$true] %s171
      %s173 = sshll.u32 [#allocation19], 4
      %s174 = int_to_ptr.vmem [resolvable:$true] %s173
      %176 = dma.hbm_to_vmem [thread:$0]  %s172, 16, %s174, [#allocation18]
    $region81: #{tdeepsc_imgr_forward.11} parent=1 // pred_fallthru
      _
    // Predicated region
    $region82: #{tdeepsc_imgr_forward.11} parent=1 // pred_check
      _
    $region83: #{tdeepsc_imgr_forward.11} parent=1 // pred_check_branch
      %178 = sbr.rel (0) target = $region85
    $region84: #{tdeepsc_imgr_forward.11} parent=1 // pred_region
      %180 = vsyncadd [#allocation21], 0
      %s182 = sshll.u32 %s20, 4
      %s183 = int_to_ptr.hbm [resolvable:$true] %s182
      %s184 = sshll.u32 [#allocation20], 4
      %s185 = int_to_ptr.vmem [resolvable:$true] %s184
      %187 = dma.hbm_to_vmem [thread:$0]  %s183, 16, %s185, [#allocation21]
    $region85: #{tdeepsc_imgr_forward.11} parent=1 // pred_fallthru
      _
    // Predicated region
    $region86: #{tdeepsc_imgr_forward.11} parent=1 // pred_check
      _
    $region87: #{tdeepsc_imgr_forward.11} parent=1 // pred_check_branch
      %189 = sbr.rel (0) target = $region89
    $region88: #{tdeepsc_imgr_forward.11} parent=1 // pred_region
      %191 = vsyncadd [#allocation21], 0
      %s193 = sshll.u32 %s21, 4
      %s194 = int_to_ptr.hbm [resolvable:$true] %s193
      %s195 = sshll.u32 [#allocation22], 4
      %s196 = int_to_ptr.vmem [resolvable:$true] %s195
      %198 = dma.hbm_to_vmem [thread:$0]  %s194, 16, %s196, [#allocation21]
    $region89: #{tdeepsc_imgr_forward.11} parent=1 // pred_fallthru
      _
    // Predicated region
    $region90: #{tdeepsc_imgr_forward.11} parent=1 // pred_check
      _
    $region91: #{tdeepsc_imgr_forward.11} parent=1 // pred_check_branch
      %200 = sbr.rel (0) target = $region93
    $region92: #{tdeepsc_imgr_forward.11} parent=1 // pred_region
      _
    $region93: #{tdeepsc_imgr_forward.11} parent=1 // pred_fallthru
      _
    // Predicated region
    $region94: #{tdeepsc_imgr_forward.11} parent=1 // pred_check
      _
    $region95: #{tdeepsc_imgr_forward.11} parent=1 // pred_check_branch
      %202 = sbr.rel (0) target = $region97
    $region96: #{tdeepsc_imgr_forward.11} parent=1 // pred_region
      %204 = vsyncadd [#allocation24], 0
      %s206 = sshll.u32 %s23, 4
      %s207 = int_to_ptr.hbm [resolvable:$true] %s206
      %s208 = sshll.u32 [#allocation23], 4
      %s209 = int_to_ptr.vmem [resolvable:$true] %s208
      %211 = dma.hbm_to_vmem [thread:$0]  %s207, 16, %s209, [#allocation24]
    $region97: #{tdeepsc_imgr_forward.11} parent=1 // pred_fallthru
      _
    // Predicated region
    $region98: #{tdeepsc_imgr_forward.11} parent=1 // pred_check
      _
    $region99: #{tdeepsc_imgr_forward.11} parent=1 // pred_check_branch
      %213 = sbr.rel (0) target = $region101
    $region100: #{tdeepsc_imgr_forward.11} parent=1 // pred_region
      %215 = dma.done [#allocation3], 16
    $region101: #{tdeepsc_imgr_forward.11} parent=1 // pred_fallthru
      _
    // Predicated region
    $region102: #{tdeepsc_imgr_forward.11} parent=1 // pred_check
      _
    $region103: #{tdeepsc_imgr_forward.11} parent=1 // pred_check_branch
      %217 = sbr.rel (0) target = $region105
    $region104: #{tdeepsc_imgr_forward.11} parent=1 // pred_region
      %219 = dma.done [#allocation6], 16
    $region105: #{tdeepsc_imgr_forward.11} parent=1 // pred_fallthru
      _
    // Predicated region
    $region106: #{tdeepsc_imgr_forward.11} parent=1 // pred_check
      _
    $region107: #{tdeepsc_imgr_forward.11} parent=1 // pred_check_branch
      %221 = sbr.rel (0) target = $region109
    $region108: #{tdeepsc_imgr_forward.11} parent=1 // pred_region
      %223 = dma.done [#allocation6], 16
    $region109: #{tdeepsc_imgr_forward.11} parent=1 // pred_fallthru
      _
    // Predicated region
    $region110: #{tdeepsc_imgr_forward.11} parent=1 // pred_check
      _
    $region111: #{tdeepsc_imgr_forward.11} parent=1 // pred_check_branch
      %225 = sbr.rel (0) target = $region113
    $region112: #{tdeepsc_imgr_forward.11} parent=1 // pred_region
      %227 = dma.done [#allocation9], 16
    $region113: #{tdeepsc_imgr_forward.11} parent=1 // pred_fallthru
      _
    // Predicated region
    $region114: #{tdeepsc_imgr_forward.11} parent=1 // pred_check
      _
    $region115: #{tdeepsc_imgr_forward.11} parent=1 // pred_check_branch
      %229 = sbr.rel (0) target = $region117
    $region116: #{tdeepsc_imgr_forward.11} parent=1 // pred_region
      %231 = dma.done [#allocation9], 16
    $region117: #{tdeepsc_imgr_forward.11} parent=1 // pred_fallthru
      _
    // Predicated region
    $region118: #{tdeepsc_imgr_forward.11} parent=1 // pred_check
      _
    $region119: #{tdeepsc_imgr_forward.11} parent=1 // pred_check_branch
      %233 = sbr.rel (0) target = $region121
    $region120: #{tdeepsc_imgr_forward.11} parent=1 // pred_region
      %235 = dma.done [#allocation12], 16
    $region121: #{tdeepsc_imgr_forward.11} parent=1 // pred_fallthru
      _
    // Predicated region
    $region122: #{tdeepsc_imgr_forward.11} parent=1 // pred_check
      _
    $region123: #{tdeepsc_imgr_forward.11} parent=1 // pred_check_branch
      %237 = sbr.rel (0) target = $region125
    $region124: #{tdeepsc_imgr_forward.11} parent=1 // pred_region
      %239 = dma.done [#allocation12], 16
    $region125: #{tdeepsc_imgr_forward.11} parent=1 // pred_fallthru
      _
    // Predicated region
    $region126: #{tdeepsc_imgr_forward.11} parent=1 // pred_check
      _
    $region127: #{tdeepsc_imgr_forward.11} parent=1 // pred_check_branch
      %241 = sbr.rel (0) target = $region129
    $region128: #{tdeepsc_imgr_forward.11} parent=1 // pred_region
      %243 = dma.done [#allocation15], 16
    $region129: #{tdeepsc_imgr_forward.11} parent=1 // pred_fallthru
      _
    // Predicated region
    $region130: #{tdeepsc_imgr_forward.11} parent=1 // pred_check
      _
    $region131: #{tdeepsc_imgr_forward.11} parent=1 // pred_check_branch
      %245 = sbr.rel (0) target = $region133
    $region132: #{tdeepsc_imgr_forward.11} parent=1 // pred_region
      %247 = dma.done [#allocation15], 16
    $region133: #{tdeepsc_imgr_forward.11} parent=1 // pred_fallthru
      _
    // Predicated region
    $region134: #{tdeepsc_imgr_forward.11} parent=1 // pred_check
      _
    $region135: #{tdeepsc_imgr_forward.11} parent=1 // pred_check_branch
      %249 = sbr.rel (0) target = $region137
    $region136: #{tdeepsc_imgr_forward.11} parent=1 // pred_region
      %251 = dma.done [#allocation18], 16
    $region137: #{tdeepsc_imgr_forward.11} parent=1 // pred_fallthru
      _
    // Predicated region
    $region138: #{tdeepsc_imgr_forward.11} parent=1 // pred_check
      _
    $region139: #{tdeepsc_imgr_forward.11} parent=1 // pred_check_branch
      %253 = sbr.rel (0) target = $region141
    $region140: #{tdeepsc_imgr_forward.11} parent=1 // pred_region
      %255 = dma.done [#allocation18], 16
    $region141: #{tdeepsc_imgr_forward.11} parent=1 // pred_fallthru
      _
    // Predicated region
    $region142: #{tdeepsc_imgr_forward.11} parent=1 // pred_check
      _
    $region143: #{tdeepsc_imgr_forward.11} parent=1 // pred_check_branch
      %257 = sbr.rel (0) target = $region145
    $region144: #{tdeepsc_imgr_forward.11} parent=1 // pred_region
      %259 = dma.done [#allocation21], 16
    $region145: #{tdeepsc_imgr_forward.11} parent=1 // pred_fallthru
      _
    // Predicated region
    $region146: #{tdeepsc_imgr_forward.11} parent=1 // pred_check
      _
    $region147: #{tdeepsc_imgr_forward.11} parent=1 // pred_check_branch
      %261 = sbr.rel (0) target = $region149
    $region148: #{tdeepsc_imgr_forward.11} parent=1 // pred_region
      %263 = dma.done [#allocation21], 16
    $region149: #{tdeepsc_imgr_forward.11} parent=1 // pred_fallthru
      _
    // Predicated region
    $region150: #{tdeepsc_imgr_forward.11} parent=1 // pred_check
      _
    $region151: #{tdeepsc_imgr_forward.11} parent=1 // pred_check_branch
      %265 = sbr.rel (0) target = $region153
    $region152: #{tdeepsc_imgr_forward.11} parent=1 // pred_region
      %267 = dma.done [#allocation24], 16
    $region153: #{tdeepsc_imgr_forward.11} parent=1 // pred_fallthru
      _
    %v269 = vld [vmem:[%s0] sm:$0xf]
    %v270 = vld [vmem:[%s0 + $0x4] sm:$0xf]
    %v271 = vld [vmem:[%s0 + $0x8] sm:$0xf]
    %v272 = vld [vmem:[%s0 + $0xc] sm:$0xf]
    %v273 = vld [vmem:[%s1] sm:$0xf]
    %v274 = vld [vmem:[%s1 + $0x4] sm:$0xf]
    %v275 = vld [vmem:[%s1 + $0x8] sm:$0xf]
    %v276 = vld [vmem:[%s1 + $0xc] sm:$0xf]
    %v277 = vld [vmem:[%s2] sm:$0xff]
    %v278 = vld [vmem:[%s2 + $0x8] sm:$0xff]
    %v279 = vld [vmem:[%s2 + $0x10] sm:$0xff]
    %v280 = vld [vmem:[%s2 + $0x18] sm:$0xff]
    %285 = vst [vmem:[#allocation1] ss:$2 sm:$0xff] %v269
    %s286 = scalar_lea.vmem [#allocation1], 1
    %287 = vst [vmem:[%s286] ss:$2 sm:$0xff] %v270
    %s288 = scalar_lea.vmem [#allocation1], 16
    %289 = vst [vmem:[%s288] ss:$2 sm:$0xff] %v271
    %s290 = scalar_lea.vmem [#allocation1], 17
    %291 = vst [vmem:[%s290] ss:$2 sm:$0xff] %v272
    %v292 = vld.sshfl [vmem:[#allocation1] sm:$0xff pattern:$0x75316420]
    %v293 = vld.sshfl [vmem:[#allocation1 + $0x10] sm:$0xff pattern:$0x75316420]
    %v296 = vpack.c.bf16 %v293, %v292
    %v297 = vpack.c.bf16 %v278, %v277
    %v298 = vpack.c.bf16 %v280, %v279
    %v299 = vld [vmem:[#allocation2] sm:$0x1]
    %v301 = vperm.slane %v299, 0
    %vm303 = vcmask 261120
    %v305 = vsel %vm303, %v296, 0
    %307 = vmatpush.bf16.msra.mxu0 0
    %308 = vmatpush.bf16.msra.mxu0 0
    %309 = vmatpush.bf16.msra.mxu0 0
    %310 = vmatpush.bf16.msra.mxu0 0
    %311 = vmatpush.bf16.msra.mxu0 0
    %312 = vmatpush.bf16.msra.mxu0 0
    %313 = vmatpush.bf16.msra.mxu0 %v298
    %314 = vmatpush.bf16.msra.mxu0 %v297
    %315 = vmatmul.bf16.gmra.mxu0 %v305
    %v316 = vpop.f32.mrf.mxu0
    %v317 = vadd.f32 %v301, %v316
    %v318 = vpop.f32.mrf.mxu0
    %v319 = vadd.f32 %v301, %v318
    %320 = vdwg.mxu0
    %v323 = vrot.slane %v317, 4
    %v324 = vrot.slane %v319, 4
    %v327 = vpack.c.bf16 %v317, %v317
    %v328 = vpack.c.bf16 %v323, %v323
    %v329 = vpack.c.bf16 %v319, %v319
    %v330 = vpack.c.bf16 %v324, %v324
    %v332 = vunpack.c.l.b16 %v327
    %v333 = vpack.c.b16 %v332, %v332
    %334 = vrot.lane.b32.xlu0 %v333, 96
    %v335 = vpop.permute.xlu0 %334
    %vm336 = vcmask 130048
    %v338 = vsel %vm336, %v327, 0
    %v341 = vsel %vm336, %v335, 0
    %343 = vmatpush.bf16.xpose.msra.mxu0 0
    %344 = vmatpush.bf16.xpose.msra.mxu0 0
    %345 = vmatpush.bf16.xpose.msra.mxu0 0
    %346 = vmatpush.bf16.xpose.msra.mxu0 0
    %347 = vmatpush.bf16.xpose.msra.mxu0 0
    %348 = vmatpush.bf16.xpose.msra.mxu0 0
    %349 = vmatpush.bf16.xpose.msra.mxu0 0
    %350 = vmatpush.bf16.xpose.msra.mxu0 %v341
    %351 = vmatmul.bf16.gmra.mxu0 %v338
    %v352 = vpop.f32.mrf.mxu0
    %v353 = vadd.f32 0.0, %v352
    %v354 = vpop.f32.mrf.mxu0
    %355 = vdwg.mxu0
    %v357 = vunpack.c.l.b16 %v328
    %v358 = vpack.c.b16 %v357, %v357
    %359 = vrot.lane.b32.xlu0 %v358, 96
    %v360 = vpop.permute.xlu0 %359
    %v362 = vsel %vm336, %v328, 0
    %v365 = vsel %vm336, %v360, 0
    %367 = vmatpush.bf16.xpose.msra.mxu0 0
    %368 = vmatpush.bf16.xpose.msra.mxu0 0
    %369 = vmatpush.bf16.xpose.msra.mxu0 0
    %370 = vmatpush.bf16.xpose.msra.mxu0 0
    %371 = vmatpush.bf16.xpose.msra.mxu0 0
    %372 = vmatpush.bf16.xpose.msra.mxu0 0
    %373 = vmatpush.bf16.xpose.msra.mxu0 0
    %374 = vmatpush.bf16.xpose.msra.mxu0 %v365
    %375 = vmatmul.bf16.gmra.mxu0 %v362
    %v376 = vpop.f32.mrf.mxu0
    %v377 = vadd.f32 0.0, %v376
    %v378 = vpop.f32.mrf.mxu0
    %379 = vdwg.mxu0
    %v381 = vunpack.c.l.b16 %v329
    %v382 = vpack.c.b16 %v381, %v381
    %383 = vrot.lane.b32.xlu0 %v382, 96
    %v384 = vpop.permute.xlu0 %383
    %v386 = vsel %vm336, %v329, 0
    %v389 = vsel %vm336, %v384, 0
    %391 = vmatpush.bf16.xpose.msra.mxu0 0
    %392 = vmatpush.bf16.xpose.msra.mxu0 0
    %393 = vmatpush.bf16.xpose.msra.mxu0 0
    %394 = vmatpush.bf16.xpose.msra.mxu0 0
    %395 = vmatpush.bf16.xpose.msra.mxu0 0
    %396 = vmatpush.bf16.xpose.msra.mxu0 0
    %397 = vmatpush.bf16.xpose.msra.mxu0 0
    %398 = vmatpush.bf16.xpose.msra.mxu0 %v389
    %399 = vmatmul.bf16.gmra.mxu0 %v386
    %v400 = vpop.f32.mrf.mxu0
    %v401 = vadd.f32 0.0, %v400
    %v402 = vpop.f32.mrf.mxu0
    %403 = vdwg.mxu0
    %v405 = vunpack.c.l.b16 %v330
    %v406 = vpack.c.b16 %v405, %v405
    %407 = vrot.lane.b32.xlu0 %v406, 96
    %v408 = vpop.permute.xlu0 %407
    %v410 = vsel %vm336, %v330, 0
    %v413 = vsel %vm336, %v408, 0
    %415 = vmatpush.bf16.xpose.msra.mxu0 0
    %416 = vmatpush.bf16.xpose.msra.mxu0 0
    %417 = vmatpush.bf16.xpose.msra.mxu0 0
    %418 = vmatpush.bf16.xpose.msra.mxu0 0
    %419 = vmatpush.bf16.xpose.msra.mxu0 0
    %420 = vmatpush.bf16.xpose.msra.mxu0 0
    %421 = vmatpush.bf16.xpose.msra.mxu0 0
    %422 = vmatpush.bf16.xpose.msra.mxu0 %v413
    %423 = vmatmul.bf16.gmra.mxu0 %v410
    %v424 = vpop.f32.mrf.mxu0
    %v425 = vadd.f32 0.0, %v424
    %v426 = vpop.f32.mrf.mxu0
    %427 = vdwg.mxu0
    %v428 = vmul.f32 %v353, 0.25
    %v429 = vmul.f32 %v377, 0.25
    %v430 = vmul.f32 %v401, 0.25
    %v431 = vmul.f32 %v425, 0.25
    %vm432 = vcmask 27648
    %v433 = vsel %vm432, %v428, -inf
    %434 = vmax.xlane.f32.xlu0 %v433
    %v435 = vpop.xlane.xlu0 %434
    %v436 = vsel %vm432, %v429, -inf
    %437 = vmax.xlane.f32.xlu0 %v436
    %v438 = vpop.xlane.xlu0 %437
    %v439 = vsel %vm432, %v430, -inf
    %440 = vmax.xlane.f32.xlu0 %v439
    %v441 = vpop.xlane.xlu0 %440
    %v442 = vsel %vm432, %v431, -inf
    %443 = vmax.xlane.f32.xlu0 %v442
    %v444 = vpop.xlane.xlu0 %443
    %v445 = vsub.f32 %v428, %v435
    %v446 = vsub.f32 %v429, %v438
    %v447 = vsub.f32 %v430, %v441
    %v448 = vsub.f32 %v431, %v444
    %v449 = vmul.f32 %v445, 1.442695
    %v450 = vpow.pop %v449
    %v451 = vmul.f32 %v446, 1.442695
    %v452 = vpow.pop %v451
    %v453 = vmul.f32 %v447, 1.442695
    %v454 = vpow.pop %v453
    %v455 = vmul.f32 %v448, 1.442695
    %v456 = vpow.pop %v455
    %v457 = vsel %vm432, %v450, 0.0
    %458 = vadd.xlane.f32.xlu0 %v457
    %v459 = vpop.xlane.xlu0 %458
    %v460 = vsel %vm432, %v452, 0.0
    %461 = vadd.xlane.f32.xlu0 %v460
    %v462 = vpop.xlane.xlu0 %461
    %v463 = vsel %vm432, %v454, 0.0
    %464 = vadd.xlane.f32.xlu0 %v463
    %v465 = vpop.xlane.xlu0 %464
    %v466 = vsel %vm432, %v456, 0.0
    %467 = vadd.xlane.f32.xlu0 %v466
    %v468 = vpop.xlane.xlu0 %467
    %v469 = vrcp.pop %v459
    %v470 = vrcp.pop %v462
    %v471 = vrcp.pop %v465
    %v472 = vrcp.pop %v468
    %v473 = vmul.f32 %v450, %v469
    %v474 = vmul.f32 %v452, %v470
    %v475 = vmul.f32 %v454, %v471
    %v476 = vmul.f32 %v456, %v472
    %v477 = vpack.c.bf16 %v473, %v473
    %v478 = vpack.c.bf16 %v474, %v474
    %v479 = vpack.c.bf16 %v475, %v475
    %v480 = vpack.c.bf16 %v476, %v476
    %481 = vrot.lane.b32.xlu0 %v333, 64
    %v482 = vpop.permute.xlu0 %481
    %vm483 = vcmask 31744
    %v485 = vsel %vm483, %v477, 0
    %vm487 = vcmask 1041408
    %v489 = vsel %vm487, %v482, 0
    %491 = vmatpush.bf16.msra.mxu0 0
    %492 = vmatpush.bf16.msra.mxu0 0
    %493 = vmatpush.bf16.msra.mxu0 0
    %494 = vmatpush.bf16.msra.mxu0 0
    %495 = vmatpush.bf16.msra.mxu0 0
    %496 = vmatpush.bf16.msra.mxu0 0
    %497 = vmatpush.bf16.msra.mxu0 0
    %498 = vmatpush.bf16.msra.mxu0 %v489
    %499 = vmatmul.bf16.gmra.mxu0 %v485
    %v500 = vpop.f32.mrf.mxu0
    %v501 = vadd.f32 0.0, %v500
    %v502 = vpop.f32.mrf.mxu0
    %503 = vdwg.mxu0
    %504 = vrot.lane.b32.xlu0 %v358, 64
    %v505 = vpop.permute.xlu0 %504
    %v507 = vsel %vm483, %v478, 0
    %v510 = vsel %vm487, %v505, 0
    %512 = vmatpush.bf16.msra.mxu0 0
    %513 = vmatpush.bf16.msra.mxu0 0
    %514 = vmatpush.bf16.msra.mxu0 0
    %515 = vmatpush.bf16.msra.mxu0 0
    %516 = vmatpush.bf16.msra.mxu0 0
    %517 = vmatpush.bf16.msra.mxu0 0
    %518 = vmatpush.bf16.msra.mxu0 0
    %519 = vmatpush.bf16.msra.mxu0 %v510
    %520 = vmatmul.bf16.gmra.mxu0 %v507
    %v521 = vpop.f32.mrf.mxu0
    %v522 = vadd.f32 0.0, %v521
    %v523 = vpop.f32.mrf.mxu0
    %524 = vdwg.mxu0
    %525 = vrot.lane.b32.xlu0 %v382, 64
    %v526 = vpop.permute.xlu0 %525
    %v528 = vsel %vm483, %v479, 0
    %v531 = vsel %vm487, %v526, 0
    %533 = vmatpush.bf16.msra.mxu0 0
    %534 = vmatpush.bf16.msra.mxu0 0
    %535 = vmatpush.bf16.msra.mxu0 0
    %536 = vmatpush.bf16.msra.mxu0 0
    %537 = vmatpush.bf16.msra.mxu0 0
    %538 = vmatpush.bf16.msra.mxu0 0
    %539 = vmatpush.bf16.msra.mxu0 0
    %540 = vmatpush.bf16.msra.mxu0 %v531
    %541 = vmatmul.bf16.gmra.mxu0 %v528
    %v542 = vpop.f32.mrf.mxu0
    %v543 = vadd.f32 0.0, %v542
    %v544 = vpop.f32.mrf.mxu0
    %545 = vdwg.mxu0
    %546 = vrot.lane.b32.xlu0 %v406, 64
    %v547 = vpop.permute.xlu0 %546
    %v549 = vsel %vm483, %v480, 0
    %v552 = vsel %vm487, %v547, 0
    %554 = vmatpush.bf16.msra.mxu0 0
    %555 = vmatpush.bf16.msra.mxu0 0
    %556 = vmatpush.bf16.msra.mxu0 0
    %557 = vmatpush.bf16.msra.mxu0 0
    %558 = vmatpush.bf16.msra.mxu0 0
    %559 = vmatpush.bf16.msra.mxu0 0
    %560 = vmatpush.bf16.msra.mxu0 0
    %561 = vmatpush.bf16.msra.mxu0 %v552
    %562 = vmatmul.bf16.gmra.mxu0 %v549
    %v563 = vpop.f32.mrf.mxu0
    %v564 = vadd.f32 0.0, %v563
    %v565 = vpop.f32.mrf.mxu0
    %566 = vdwg.mxu0
    %567 = vrot.lane.b32.xlu0 %v333, 112
    %v568 = vpop.permute.xlu0 %567
    %569 = vrot.lane.b32.xlu0 %v333, 80
    %v570 = vpop.permute.xlu0 %569
    %v572 = vsel %vm336, %v568, 0
    %v575 = vsel %vm336, %v570, 0
    %577 = vmatpush.bf16.xpose.msra.mxu0 0
    %578 = vmatpush.bf16.xpose.msra.mxu0 0
    %579 = vmatpush.bf16.xpose.msra.mxu0 0
    %580 = vmatpush.bf16.xpose.msra.mxu0 0
    %581 = vmatpush.bf16.xpose.msra.mxu0 0
    %582 = vmatpush.bf16.xpose.msra.mxu0 0
    %583 = vmatpush.bf16.xpose.msra.mxu0 0
    %584 = vmatpush.bf16.xpose.msra.mxu0 %v575
    %585 = vmatmul.bf16.gmra.mxu0 %v572
    %v586 = vpop.f32.mrf.mxu0
    %v587 = vadd.f32 0.0, %v586
    %v588 = vpop.f32.mrf.mxu0
    %589 = vdwg.mxu0
    %590 = vrot.lane.b32.xlu0 %v358, 112
    %v591 = vpop.permute.xlu0 %590
    %592 = vrot.lane.b32.xlu0 %v358, 80
    %v593 = vpop.permute.xlu0 %592
    %v595 = vsel %vm336, %v591, 0
    %v598 = vsel %vm336, %v593, 0
    %600 = vmatpush.bf16.xpose.msra.mxu0 0
    %601 = vmatpush.bf16.xpose.msra.mxu0 0
    %602 = vmatpush.bf16.xpose.msra.mxu0 0
    %603 = vmatpush.bf16.xpose.msra.mxu0 0
    %604 = vmatpush.bf16.xpose.msra.mxu0 0
    %605 = vmatpush.bf16.xpose.msra.mxu0 0
    %606 = vmatpush.bf16.xpose.msra.mxu0 0
    %607 = vmatpush.bf16.xpose.msra.mxu0 %v598
    %608 = vmatmul.bf16.gmra.mxu0 %v595
    %v609 = vpop.f32.mrf.mxu0
    %v610 = vadd.f32 0.0, %v609
    %v611 = vpop.f32.mrf.mxu0
    %612 = vdwg.mxu0
    %613 = vrot.lane.b32.xlu0 %v382, 112
    %v614 = vpop.permute.xlu0 %613
    %615 = vrot.lane.b32.xlu0 %v382, 80
    %v616 = vpop.permute.xlu0 %615
    %v618 = vsel %vm336, %v614, 0
    %v621 = vsel %vm336, %v616, 0
    %623 = vmatpush.bf16.xpose.msra.mxu0 0
    %624 = vmatpush.bf16.xpose.msra.mxu0 0
    %625 = vmatpush.bf16.xpose.msra.mxu0 0
    %626 = vmatpush.bf16.xpose.msra.mxu0 0
    %627 = vmatpush.bf16.xpose.msra.mxu0 0
    %628 = vmatpush.bf16.xpose.msra.mxu0 0
    %629 = vmatpush.bf16.xpose.msra.mxu0 0
    %630 = vmatpush.bf16.xpose.msra.mxu0 %v621
    %631 = vmatmul.bf16.gmra.mxu0 %v618
    %v632 = vpop.f32.mrf.mxu0
    %v633 = vadd.f32 0.0, %v632
    %v634 = vpop.f32.mrf.mxu0
    %635 = vdwg.mxu0
    %636 = vrot.lane.b32.xlu0 %v406, 112
    %v637 = vpop.permute.xlu0 %636
    %638 = vrot.lane.b32.xlu0 %v406, 80
    %v639 = vpop.permute.xlu0 %638
    %v641 = vsel %vm336, %v637, 0
    %v644 = vsel %vm336, %v639, 0
    %646 = vmatpush.bf16.xpose.msra.mxu0 0
    %647 = vmatpush.bf16.xpose.msra.mxu0 0
    %648 = vmatpush.bf16.xpose.msra.mxu0 0
    %649 = vmatpush.bf16.xpose.msra.mxu0 0
    %650 = vmatpush.bf16.xpose.msra.mxu0 0
    %651 = vmatpush.bf16.xpose.msra.mxu0 0
    %652 = vmatpush.bf16.xpose.msra.mxu0 0
    %653 = vmatpush.bf16.xpose.msra.mxu0 %v644
    %654 = vmatmul.bf16.gmra.mxu0 %v641
    %v655 = vpop.f32.mrf.mxu0
    %v656 = vadd.f32 0.0, %v655
    %v657 = vpop.f32.mrf.mxu0
    %658 = vdwg.mxu0
    %v659 = vmul.f32 %v587, 0.25
    %v660 = vmul.f32 %v610, 0.25
    %v661 = vmul.f32 %v633, 0.25
    %v662 = vmul.f32 %v656, 0.25
    %v663 = vsel %vm432, %v659, -inf
    %664 = vmax.xlane.f32.xlu0 %v663
    %v665 = vpop.xlane.xlu0 %664
    %v666 = vsel %vm432, %v660, -inf
    %667 = vmax.xlane.f32.xlu0 %v666
    %v668 = vpop.xlane.xlu0 %667
    %v669 = vsel %vm432, %v661, -inf
    %670 = vmax.xlane.f32.xlu0 %v669
    %v671 = vpop.xlane.xlu0 %670
    %v672 = vsel %vm432, %v662, -inf
    %673 = vmax.xlane.f32.xlu0 %v672
    %v674 = vpop.xlane.xlu0 %673
    %v675 = vsub.f32 %v659, %v665
    %v676 = vsub.f32 %v660, %v668
    %v677 = vsub.f32 %v661, %v671
    %v678 = vsub.f32 %v662, %v674
    %v679 = vmul.f32 %v675, 1.442695
    %v680 = vpow.pop %v679
    %v681 = vmul.f32 %v676, 1.442695
    %v682 = vpow.pop %v681
    %v683 = vmul.f32 %v677, 1.442695
    %v684 = vpow.pop %v683
    %v685 = vmul.f32 %v678, 1.442695
    %v686 = vpow.pop %v685
    %v687 = vsel %vm432, %v680, 0.0
    %688 = vadd.xlane.f32.xlu0 %v687
    %v689 = vpop.xlane.xlu0 %688
    %v690 = vsel %vm432, %v682, 0.0
    %691 = vadd.xlane.f32.xlu0 %v690
    %v692 = vpop.xlane.xlu0 %691
    %v693 = vsel %vm432, %v684, 0.0
    %694 = vadd.xlane.f32.xlu0 %v693
    %v695 = vpop.xlane.xlu0 %694
    %v696 = vsel %vm432, %v686, 0.0
    %697 = vadd.xlane.f32.xlu0 %v696
    %v698 = vpop.xlane.xlu0 %697
    %v699 = vrcp.pop %v689
    %v700 = vrcp.pop %v692
    %v701 = vrcp.pop %v695
    %v702 = vrcp.pop %v698
    %v703 = vmul.f32 %v680, %v699
    %v704 = vmul.f32 %v682, %v700
    %v705 = vmul.f32 %v684, %v701
    %v706 = vmul.f32 %v686, %v702
    %v707 = vpack.c.bf16 %v703, %v703
    %v708 = vpack.c.bf16 %v704, %v704
    %v709 = vpack.c.bf16 %v705, %v705
    %v710 = vpack.c.bf16 %v706, %v706
    %711 = vrot.lane.b32.xlu0 %v333, 48
    %v712 = vpop.permute.xlu0 %711
    %v714 = vsel %vm483, %v707, 0
    %v717 = vsel %vm487, %v712, 0
    %719 = vmatpush.bf16.msra.mxu0 0
    %720 = vmatpush.bf16.msra.mxu0 0
    %721 = vmatpush.bf16.msra.mxu0 0
    %722 = vmatpush.bf16.msra.mxu0 0
    %723 = vmatpush.bf16.msra.mxu0 0
    %724 = vmatpush.bf16.msra.mxu0 0
    %725 = vmatpush.bf16.msra.mxu0 0
    %726 = vmatpush.bf16.msra.mxu0 %v717
    %727 = vmatmul.bf16.gmra.mxu0 %v714
    %v728 = vpop.f32.mrf.mxu0
    %v729 = vadd.f32 0.0, %v728
    %v730 = vpop.f32.mrf.mxu0
    %731 = vdwg.mxu0
    %732 = vrot.lane.b32.xlu0 %v358, 48
    %v733 = vpop.permute.xlu0 %732
    %v735 = vsel %vm483, %v708, 0
    %v738 = vsel %vm487, %v733, 0
    %740 = vmatpush.bf16.msra.mxu0 0
    %741 = vmatpush.bf16.msra.mxu0 0
    %742 = vmatpush.bf16.msra.mxu0 0
    %743 = vmatpush.bf16.msra.mxu0 0
    %744 = vmatpush.bf16.msra.mxu0 0
    %745 = vmatpush.bf16.msra.mxu0 0
    %746 = vmatpush.bf16.msra.mxu0 0
    %747 = vmatpush.bf16.msra.mxu0 %v738
    %748 = vmatmul.bf16.gmra.mxu0 %v735
    %v749 = vpop.f32.mrf.mxu0
    %v750 = vadd.f32 0.0, %v749
    %v751 = vpop.f32.mrf.mxu0
    %752 = vdwg.mxu0
    %753 = vrot.lane.b32.xlu0 %v382, 48
    %v754 = vpop.permute.xlu0 %753
    %v756 = vsel %vm483, %v709, 0
    %v759 = vsel %vm487, %v754, 0
    %761 = vmatpush.bf16.msra.mxu0 0
    %762 = vmatpush.bf16.msra.mxu0 0
    %763 = vmatpush.bf16.msra.mxu0 0
    %764 = vmatpush.bf16.msra.mxu0 0
    %765 = vmatpush.bf16.msra.mxu0 0
    %766 = vmatpush.bf16.msra.mxu0 0
    %767 = vmatpush.bf16.msra.mxu0 0
    %768 = vmatpush.bf16.msra.mxu0 %v759
    %769 = vmatmul.bf16.gmra.mxu0 %v756
    %v770 = vpop.f32.mrf.mxu0
    %v771 = vadd.f32 0.0, %v770
    %v772 = vpop.f32.mrf.mxu0
    %773 = vdwg.mxu0
    %774 = vrot.lane.b32.xlu0 %v406, 48
    %v775 = vpop.permute.xlu0 %774
    %v777 = vsel %vm483, %v710, 0
    %v780 = vsel %vm487, %v775, 0
    %782 = vmatpush.bf16.msra.mxu0 0
    %783 = vmatpush.bf16.msra.mxu0 0
    %784 = vmatpush.bf16.msra.mxu0 0
    %785 = vmatpush.bf16.msra.mxu0 0
    %786 = vmatpush.bf16.msra.mxu0 0
    %787 = vmatpush.bf16.msra.mxu0 0
    %788 = vmatpush.bf16.msra.mxu0 0
    %789 = vmatpush.bf16.msra.mxu0 %v780
    %790 = vmatmul.bf16.gmra.mxu0 %v777
    %v791 = vpop.f32.mrf.mxu0
    %v792 = vadd.f32 0.0, %v791
    %v793 = vpop.f32.mrf.mxu0
    %794 = vdwg.mxu0
    %799 = vrot.lane.b32.xlu0 %v729, 16
    %v800 = vpop.permute.xlu0 %799
    %801 = vrot.lane.b32.xlu0 %v750, 16
    %v802 = vpop.permute.xlu0 %801
    %803 = vrot.lane.b32.xlu0 %v771, 16
    %v804 = vpop.permute.xlu0 %803
    %805 = vrot.lane.b32.xlu0 %v792, 16
    %v806 = vpop.permute.xlu0 %805
    %v811 = vsel %vm336, %v501, %v800
    %v812 = vsel %vm336, %v522, %v802
    %v813 = vsel %vm336, %v543, %v804
    %v814 = vsel %vm336, %v564, %v806
    %v815 = vld [vmem:[%s4] sm:$0xff]
    %v816 = vld [vmem:[%s4 + $0x8] sm:$0xff]
    %v817 = vld [vmem:[%s4 + $0x10] sm:$0xff]
    %v818 = vld [vmem:[%s4 + $0x18] sm:$0xff]
    %823 = vst [vmem:[#allocation1] ss:$2 sm:$0xff] %v811
    %s824 = scalar_lea.vmem [#allocation1], 1
    %825 = vst [vmem:[%s824] ss:$2 sm:$0xff] %v812
    %s826 = scalar_lea.vmem [#allocation1], 16
    %827 = vst [vmem:[%s826] ss:$2 sm:$0xff] %v813
    %s828 = scalar_lea.vmem [#allocation1], 17
    %829 = vst [vmem:[%s828] ss:$2 sm:$0xff] %v814
    %v830 = vld.sshfl [vmem:[#allocation1] sm:$0xff pattern:$0x75316420]
    %v831 = vld.sshfl [vmem:[#allocation1 + $0x10] sm:$0xff pattern:$0x75316420]
    %v834 = vpack.c.bf16 %v831, %v830
    %v835 = vpack.c.bf16 %v816, %v815
    %v836 = vpack.c.bf16 %v818, %v817
    %v837 = vld [vmem:[#allocation5] sm:$0x1]
    %v839 = vperm.slane %v837, 0
    %v842 = vsel %vm303, %v834, 0
    %844 = vmatpush.bf16.msra.mxu0 0
    %845 = vmatpush.bf16.msra.mxu0 0
    %846 = vmatpush.bf16.msra.mxu0 0
    %847 = vmatpush.bf16.msra.mxu0 0
    %848 = vmatpush.bf16.msra.mxu0 0
    %849 = vmatpush.bf16.msra.mxu0 0
    %850 = vmatpush.bf16.msra.mxu0 %v836
    %851 = vmatpush.bf16.msra.mxu0 %v835
    %852 = vmatmul.bf16.gmra.mxu0 %v842
    %v853 = vpop.f32.mrf.mxu0
    %v854 = vadd.f32 %v839, %v853
    %v855 = vpop.f32.mrf.mxu0
    %v856 = vadd.f32 %v839, %v855
    %857 = vdwg.mxu0
    %v860 = vrot.slane %v854, 4
    %v861 = vrot.slane %v856, 4
    %v864 = vadd.f32 %v269, %v854
    %v865 = vadd.f32 %v270, %v860
    %v866 = vadd.f32 %v271, %v856
    %v867 = vadd.f32 %v272, %v861
    %v868 = vld [vmem:[#allocation7] sm:$0x1]
    %v869 = vld [vmem:[#allocation8] sm:$0x1]
    %874 = vst [vmem:[#allocation1] ss:$2 sm:$0xff] %v864
    %s875 = scalar_lea.vmem [#allocation1], 1
    %876 = vst [vmem:[%s875] ss:$2 sm:$0xff] %v865
    %s877 = scalar_lea.vmem [#allocation1], 16
    %878 = vst [vmem:[%s877] ss:$2 sm:$0xff] %v866
    %s879 = scalar_lea.vmem [#allocation1], 17
    %880 = vst [vmem:[%s879] ss:$2 sm:$0xff] %v867
    %v881 = vld.sshfl [vmem:[#allocation1] sm:$0xff pattern:$0x75316420]
    %v882 = vld.sshfl [vmem:[#allocation1 + $0x10] sm:$0xff pattern:$0x75316420]
    %v885 = vsel %vm303, %v881, 0.0
    %886 = vadd.xlane.f32.xlu0 %v885
    %v887 = vpop.xlane.xlu0 %886
    %v888 = vsel %vm303, %v882, 0.0
    %889 = vadd.xlane.f32.xlu0 %v888
    %v890 = vpop.xlane.xlu0 %889
    %v891 = vrcp.pop 32.0
    %v892 = vmul.f32 32.0, %v891
    %v893 = vsub.f32 1.0, %v892
    %v894 = vmul.f32 %v891, %v893
    %v895 = vadd.f32 %v891, %v894
    %vm896 = vweird.f32 %v891
    %v897 = vsel %vm896, %v891, %v895
    %v898 = vmul.f32 %v887, %v897
    %v899 = vmul.f32 %v890, %v897
    %v903 = vunpack.c.l.s4 839922192
    %v904 = vunpack.c.0.s8 %v903
    %v905 = vperm.slane %v898, %v904
    %v907 = vunpack.c.l.s4 1985246804
    %v908 = vunpack.c.0.s8 %v907
    %v909 = vperm.slane %v898, %v908
    %v911 = vunpack.c.l.s4 839922192
    %v912 = vunpack.c.0.s8 %v911
    %v913 = vperm.slane %v899, %v912
    %v915 = vunpack.c.l.s4 1985246804
    %v916 = vunpack.c.0.s8 %v915
    %v917 = vperm.slane %v899, %v916
    %v922 = vsub.f32 %v864, %v905
    %v923 = vsub.f32 %v865, %v909
    %v924 = vsub.f32 %v866, %v913
    %v925 = vsub.f32 %v867, %v917
    %v926 = vmul.f32 %v922, %v922
    %v927 = vmul.f32 %v923, %v923
    %v928 = vmul.f32 %v924, %v924
    %v929 = vmul.f32 %v925, %v925
    %934 = vst [vmem:[#allocation1] ss:$2 sm:$0xff] %v926
    %s935 = scalar_lea.vmem [#allocation1], 1
    %936 = vst [vmem:[%s935] ss:$2 sm:$0xff] %v927
    %s937 = scalar_lea.vmem [#allocation1], 16
    %938 = vst [vmem:[%s937] ss:$2 sm:$0xff] %v928
    %s939 = scalar_lea.vmem [#allocation1], 17
    %940 = vst [vmem:[%s939] ss:$2 sm:$0xff] %v929
    %v941 = vld.sshfl [vmem:[#allocation1] sm:$0xff pattern:$0x75316420]
    %v942 = vld.sshfl [vmem:[#allocation1 + $0x10] sm:$0xff pattern:$0x75316420]
    %v945 = vsel %vm303, %v941, 0.0
    %946 = vadd.xlane.f32.xlu0 %v945
    %v947 = vpop.xlane.xlu0 %946
    %v948 = vsel %vm303, %v942, 0.0
    %949 = vadd.xlane.f32.xlu0 %v948
    %v950 = vpop.xlane.xlu0 %949
    %v951 = vmul.f32 %v947, %v897
    %v952 = vmul.f32 %v950, %v897
    %v953 = vadd.f32 %v951, 1e-06
    %v954 = vadd.f32 %v952, 1e-06
    %v955 = vrsqrt.pop %v953
    %v956 = vmul.f32 %v955, %v953
    %v957 = vmul.f32 %v956, %v955
    %v958 = vmul.f32 0.5, %v957
    %v959 = vsub.f32 1.5, %v958
    %v960 = vmul.f32 %v955, %v959
    %vm961 = vweird.f32 %v953
    %vm962 = vweird.f32 %v955
    %vm963 = vmor %vm961, %vm962
    %v964 = vsel %vm963, %v955, %v960
    %v965 = vrsqrt.pop %v954
    %v966 = vmul.f32 %v965, %v954
    %v967 = vmul.f32 %v966, %v965
    %v968 = vmul.f32 0.5, %v967
    %v969 = vsub.f32 1.5, %v968
    %v970 = vmul.f32 %v965, %v969
    %vm971 = vweird.f32 %v954
    %vm972 = vweird.f32 %v965
    %vm973 = vmor %vm971, %vm972
    %v974 = vsel %vm973, %v965, %v970
    %v978 = vunpack.c.l.s4 839922192
    %v979 = vunpack.c.0.s8 %v978
    %v980 = vperm.slane %v964, %v979
    %v982 = vunpack.c.l.s4 1985246804
    %v983 = vunpack.c.0.s8 %v982
    %v984 = vperm.slane %v964, %v983
    %v986 = vunpack.c.l.s4 839922192
    %v987 = vunpack.c.0.s8 %v986
    %v988 = vperm.slane %v974, %v987
    %v990 = vunpack.c.l.s4 1985246804
    %v991 = vunpack.c.0.s8 %v990
    %v992 = vperm.slane %v974, %v991
    %v997 = vmul.f32 %v922, %v980
    %v998 = vmul.f32 %v923, %v984
    %v999 = vmul.f32 %v924, %v988
    %v1000 = vmul.f32 %v925, %v992
    %v1002 = vperm.slane %v868, 0
    %v1004 = vrot.slane %v1002, 4
    %v1006 = vmul.f32 %v997, %v1002
    %v1007 = vmul.f32 %v998, %v1004
    %v1008 = vmul.f32 %v999, %v1002
    %v1009 = vmul.f32 %v1000, %v1004
    %v1011 = vperm.slane %v869, 0
    %v1013 = vrot.slane %v1011, 4
    %v1015 = vadd.f32 %v1006, %v1011
    %v1016 = vadd.f32 %v1007, %v1013
    %v1017 = vadd.f32 %v1008, %v1011
    %v1018 = vadd.f32 %v1009, %v1013
    %v1019 = vld [vmem:[%s8] sm:$0xff]
    %v1020 = vld [vmem:[%s8 + $0x8] sm:$0xff]
    %v1021 = vld [vmem:[%s8 + $0x10] sm:$0xff]
    %v1022 = vld [vmem:[%s8 + $0x18] sm:$0xff]
    %1027 = vst [vmem:[#allocation1] ss:$2 sm:$0xff] %v1015
    %s1028 = scalar_lea.vmem [#allocation1], 1
    %1029 = vst [vmem:[%s1028] ss:$2 sm:$0xff] %v1016
    %s1030 = scalar_lea.vmem [#allocation1], 16
    %1031 = vst [vmem:[%s1030] ss:$2 sm:$0xff] %v1017
    %s1032 = scalar_lea.vmem [#allocation1], 17
    %1033 = vst [vmem:[%s1032] ss:$2 sm:$0xff] %v1018
    %v1034 = vld.sshfl [vmem:[#allocation1] sm:$0xff pattern:$0x75316420]
    %v1035 = vld.sshfl [vmem:[#allocation1 + $0x10] sm:$0xff pattern:$0x75316420]
    %v1038 = vpack.c.bf16 %v1035, %v1034
    %v1039 = vpack.c.bf16 %v1020, %v1019
    %v1040 = vpack.c.bf16 %v1022, %v1021
    %v1041 = vld [vmem:[#allocation10] sm:$0x1]
    %v1043 = vperm.slane %v1041, 0
    %v1046 = vsel %vm303, %v1038, 0
    %1048 = vmatpush.bf16.msra.mxu0 0
    %1049 = vmatpush.bf16.msra.mxu0 0
    %1050 = vmatpush.bf16.msra.mxu0 0
    %1051 = vmatpush.bf16.msra.mxu0 0
    %1052 = vmatpush.bf16.msra.mxu0 0
    %1053 = vmatpush.bf16.msra.mxu0 0
    %1054 = vmatpush.bf16.msra.mxu0 %v1040
    %1055 = vmatpush.bf16.msra.mxu0 %v1039
    %1056 = vmatmul.bf16.gmra.mxu0 %v1046
    %v1057 = vpop.f32.mrf.mxu0
    %v1058 = vadd.f32 %v1043, %v1057
    %v1059 = vpop.f32.mrf.mxu0
    %v1060 = vadd.f32 %v1043, %v1059
    %1061 = vdwg.mxu0
    %v1062 = vld [vmem:[%s10] sm:$0xff]
    %v1063 = vld [vmem:[%s10 + $0x8] sm:$0xff]
    %v1064 = vld [vmem:[%s10 + $0x10] sm:$0xff]
    %v1065 = vld [vmem:[%s10 + $0x18] sm:$0xff]
    %1070 = vst [vmem:[#allocation1] ss:$2 sm:$0xff] %v273
    %s1071 = scalar_lea.vmem [#allocation1], 1
    %1072 = vst [vmem:[%s1071] ss:$2 sm:$0xff] %v274
    %s1073 = scalar_lea.vmem [#allocation1], 16
    %1074 = vst [vmem:[%s1073] ss:$2 sm:$0xff] %v275
    %s1075 = scalar_lea.vmem [#allocation1], 17
    %1076 = vst [vmem:[%s1075] ss:$2 sm:$0xff] %v276
    %v1077 = vld.sshfl [vmem:[#allocation1] sm:$0xff pattern:$0x75316420]
    %v1078 = vld.sshfl [vmem:[#allocation1 + $0x10] sm:$0xff pattern:$0x75316420]
    %v1081 = vpack.c.bf16 %v1078, %v1077
    %v1082 = vpack.c.bf16 %v1063, %v1062
    %v1083 = vpack.c.bf16 %v1065, %v1064
    %v1084 = vld [vmem:[#allocation11] sm:$0x1]
    %v1086 = vperm.slane %v1084, 0
    %v1089 = vsel %vm303, %v1081, 0
    %1091 = vmatpush.bf16.msra.mxu0 0
    %1092 = vmatpush.bf16.msra.mxu0 0
    %1093 = vmatpush.bf16.msra.mxu0 0
    %1094 = vmatpush.bf16.msra.mxu0 0
    %1095 = vmatpush.bf16.msra.mxu0 0
    %1096 = vmatpush.bf16.msra.mxu0 0
    %1097 = vmatpush.bf16.msra.mxu0 %v1083
    %1098 = vmatpush.bf16.msra.mxu0 %v1082
    %1099 = vmatmul.bf16.gmra.mxu0 %v1089
    %v1100 = vpop.f32.mrf.mxu0
    %v1101 = vadd.f32 %v1086, %v1100
    %v1102 = vpop.f32.mrf.mxu0
    %v1103 = vadd.f32 %v1086, %v1102
    %1104 = vdwg.mxu0
    %v1107 = vrot.slane %v1101, 4
    %v1108 = vrot.slane %v1103, 4
    %v1113 = vrot.slane %v1058, 4
    %v1114 = vrot.slane %v1060, 4
    %v1117 = vpack.c.bf16 %v1058, %v1058
    %v1118 = vpack.c.bf16 %v1113, %v1113
    %v1119 = vpack.c.bf16 %v1060, %v1060
    %v1120 = vpack.c.bf16 %v1114, %v1114
    %v1121 = vpack.c.bf16 %v1101, %v1101
    %v1122 = vpack.c.bf16 %v1107, %v1107
    %v1123 = vpack.c.bf16 %v1103, %v1103
    %v1124 = vpack.c.bf16 %v1108, %v1108
    %v1126 = vsel %vm336, %v1117, 0
    %v1129 = vsel %vm336, %v1121, 0
    %1131 = vmatpush.bf16.xpose.msra.mxu0 0
    %1132 = vmatpush.bf16.xpose.msra.mxu0 0
    %1133 = vmatpush.bf16.xpose.msra.mxu0 0
    %1134 = vmatpush.bf16.xpose.msra.mxu0 0
    %1135 = vmatpush.bf16.xpose.msra.mxu0 0
    %1136 = vmatpush.bf16.xpose.msra.mxu0 0
    %1137 = vmatpush.bf16.xpose.msra.mxu0 0
    %1138 = vmatpush.bf16.xpose.msra.mxu0 %v1129
    %1139 = vmatmul.bf16.gmra.mxu0 %v1126
    %v1140 = vpop.f32.mrf.mxu0
    %v1141 = vadd.f32 0.0, %v1140
    %v1142 = vpop.f32.mrf.mxu0
    %1143 = vdwg.mxu0
    %v1145 = vsel %vm336, %v1118, 0
    %v1148 = vsel %vm336, %v1122, 0
    %1150 = vmatpush.bf16.xpose.msra.mxu0 0
    %1151 = vmatpush.bf16.xpose.msra.mxu0 0
    %1152 = vmatpush.bf16.xpose.msra.mxu0 0
    %1153 = vmatpush.bf16.xpose.msra.mxu0 0
    %1154 = vmatpush.bf16.xpose.msra.mxu0 0
    %1155 = vmatpush.bf16.xpose.msra.mxu0 0
    %1156 = vmatpush.bf16.xpose.msra.mxu0 0
    %1157 = vmatpush.bf16.xpose.msra.mxu0 %v1148
    %1158 = vmatmul.bf16.gmra.mxu0 %v1145
    %v1159 = vpop.f32.mrf.mxu0
    %v1160 = vadd.f32 0.0, %v1159
    %v1161 = vpop.f32.mrf.mxu0
    %1162 = vdwg.mxu0
    %v1164 = vsel %vm336, %v1119, 0
    %v1167 = vsel %vm336, %v1123, 0
    %1169 = vmatpush.bf16.xpose.msra.mxu0 0
    %1170 = vmatpush.bf16.xpose.msra.mxu0 0
    %1171 = vmatpush.bf16.xpose.msra.mxu0 0
    %1172 = vmatpush.bf16.xpose.msra.mxu0 0
    %1173 = vmatpush.bf16.xpose.msra.mxu0 0
    %1174 = vmatpush.bf16.xpose.msra.mxu0 0
    %1175 = vmatpush.bf16.xpose.msra.mxu0 0
    %1176 = vmatpush.bf16.xpose.msra.mxu0 %v1167
    %1177 = vmatmul.bf16.gmra.mxu0 %v1164
    %v1178 = vpop.f32.mrf.mxu0
    %v1179 = vadd.f32 0.0, %v1178
    %v1180 = vpop.f32.mrf.mxu0
    %1181 = vdwg.mxu0
    %v1183 = vsel %vm336, %v1120, 0
    %v1186 = vsel %vm336, %v1124, 0
    %1188 = vmatpush.bf16.xpose.msra.mxu0 0
    %1189 = vmatpush.bf16.xpose.msra.mxu0 0
    %1190 = vmatpush.bf16.xpose.msra.mxu0 0
    %1191 = vmatpush.bf16.xpose.msra.mxu0 0
    %1192 = vmatpush.bf16.xpose.msra.mxu0 0
    %1193 = vmatpush.bf16.xpose.msra.mxu0 0
    %1194 = vmatpush.bf16.xpose.msra.mxu0 0
    %1195 = vmatpush.bf16.xpose.msra.mxu0 %v1186
    %1196 = vmatmul.bf16.gmra.mxu0 %v1183
    %v1197 = vpop.f32.mrf.mxu0
    %v1198 = vadd.f32 0.0, %v1197
    %v1199 = vpop.f32.mrf.mxu0
    %1200 = vdwg.mxu0
    %v1201 = vmul.f32 %v1141, 0.25
    %v1202 = vmul.f32 %v1160, 0.25
    %v1203 = vmul.f32 %v1179, 0.25
    %v1204 = vmul.f32 %v1198, 0.25
    %v1205 = vsel %vm432, %v1201, -inf
    %1206 = vmax.xlane.f32.xlu0 %v1205
    %v1207 = vpop.xlane.xlu0 %1206
    %v1208 = vsel %vm432, %v1202, -inf
    %1209 = vmax.xlane.f32.xlu0 %v1208
    %v1210 = vpop.xlane.xlu0 %1209
    %v1211 = vsel %vm432, %v1203, -inf
    %1212 = vmax.xlane.f32.xlu0 %v1211
    %v1213 = vpop.xlane.xlu0 %1212
    %v1214 = vsel %vm432, %v1204, -inf
    %1215 = vmax.xlane.f32.xlu0 %v1214
    %v1216 = vpop.xlane.xlu0 %1215
    %v1217 = vsub.f32 %v1201, %v1207
    %v1218 = vsub.f32 %v1202, %v1210
    %v1219 = vsub.f32 %v1203, %v1213
    %v1220 = vsub.f32 %v1204, %v1216
    %v1221 = vmul.f32 %v1217, 1.442695
    %v1222 = vpow.pop %v1221
    %v1223 = vmul.f32 %v1218, 1.442695
    %v1224 = vpow.pop %v1223
    %v1225 = vmul.f32 %v1219, 1.442695
    %v1226 = vpow.pop %v1225
    %v1227 = vmul.f32 %v1220, 1.442695
    %v1228 = vpow.pop %v1227
    %v1229 = vsel %vm432, %v1222, 0.0
    %1230 = vadd.xlane.f32.xlu0 %v1229
    %v1231 = vpop.xlane.xlu0 %1230
    %v1232 = vsel %vm432, %v1224, 0.0
    %1233 = vadd.xlane.f32.xlu0 %v1232
    %v1234 = vpop.xlane.xlu0 %1233
    %v1235 = vsel %vm432, %v1226, 0.0
    %1236 = vadd.xlane.f32.xlu0 %v1235
    %v1237 = vpop.xlane.xlu0 %1236
    %v1238 = vsel %vm432, %v1228, 0.0
    %1239 = vadd.xlane.f32.xlu0 %v1238
    %v1240 = vpop.xlane.xlu0 %1239
    %v1241 = vrcp.pop %v1231
    %v1242 = vrcp.pop %v1234
    %v1243 = vrcp.pop %v1237
    %v1244 = vrcp.pop %v1240
    %v1245 = vmul.f32 %v1222, %v1241
    %v1246 = vmul.f32 %v1224, %v1242
    %v1247 = vmul.f32 %v1226, %v1243
    %v1248 = vmul.f32 %v1228, %v1244
    %v1249 = vpack.c.bf16 %v1245, %v1245
    %v1250 = vpack.c.bf16 %v1246, %v1246
    %v1251 = vpack.c.bf16 %v1247, %v1247
    %v1252 = vpack.c.bf16 %v1248, %v1248
    %v1254 = vunpack.c.l.b16 %v1121
    %v1255 = vpack.c.b16 %v1254, %v1254
    %1256 = vrot.lane.b32.xlu0 %v1255, 96
    %v1257 = vpop.permute.xlu0 %1256
    %v1259 = vsel %vm483, %v1249, 0
    %v1262 = vsel %vm487, %v1257, 0
    %1264 = vmatpush.bf16.msra.mxu0 0
    %1265 = vmatpush.bf16.msra.mxu0 0
    %1266 = vmatpush.bf16.msra.mxu0 0
    %1267 = vmatpush.bf16.msra.mxu0 0
    %1268 = vmatpush.bf16.msra.mxu0 0
    %1269 = vmatpush.bf16.msra.mxu0 0
    %1270 = vmatpush.bf16.msra.mxu0 0
    %1271 = vmatpush.bf16.msra.mxu0 %v1262
    %1272 = vmatmul.bf16.gmra.mxu0 %v1259
    %v1273 = vpop.f32.mrf.mxu0
    %v1274 = vadd.f32 0.0, %v1273
    %v1275 = vpop.f32.mrf.mxu0
    %1276 = vdwg.mxu0
    %v1278 = vunpack.c.l.b16 %v1122
    %v1279 = vpack.c.b16 %v1278, %v1278
    %1280 = vrot.lane.b32.xlu0 %v1279, 96
    %v1281 = vpop.permute.xlu0 %1280
    %v1283 = vsel %vm483, %v1250, 0
    %v1286 = vsel %vm487, %v1281, 0
    %1288 = vmatpush.bf16.msra.mxu0 0
    %1289 = vmatpush.bf16.msra.mxu0 0
    %1290 = vmatpush.bf16.msra.mxu0 0
    %1291 = vmatpush.bf16.msra.mxu0 0
    %1292 = vmatpush.bf16.msra.mxu0 0
    %1293 = vmatpush.bf16.msra.mxu0 0
    %1294 = vmatpush.bf16.msra.mxu0 0
    %1295 = vmatpush.bf16.msra.mxu0 %v1286
    %1296 = vmatmul.bf16.gmra.mxu0 %v1283
    %v1297 = vpop.f32.mrf.mxu0
    %v1298 = vadd.f32 0.0, %v1297
    %v1299 = vpop.f32.mrf.mxu0
    %1300 = vdwg.mxu0
    %v1302 = vunpack.c.l.b16 %v1123
    %v1303 = vpack.c.b16 %v1302, %v1302
    %1304 = vrot.lane.b32.xlu0 %v1303, 96
    %v1305 = vpop.permute.xlu0 %1304
    %v1307 = vsel %vm483, %v1251, 0
    %v1310 = vsel %vm487, %v1305, 0
    %1312 = vmatpush.bf16.msra.mxu0 0
    %1313 = vmatpush.bf16.msra.mxu0 0
    %1314 = vmatpush.bf16.msra.mxu0 0
    %1315 = vmatpush.bf16.msra.mxu0 0
    %1316 = vmatpush.bf16.msra.mxu0 0
    %1317 = vmatpush.bf16.msra.mxu0 0
    %1318 = vmatpush.bf16.msra.mxu0 0
    %1319 = vmatpush.bf16.msra.mxu0 %v1310
    %1320 = vmatmul.bf16.gmra.mxu0 %v1307
    %v1321 = vpop.f32.mrf.mxu0
    %v1322 = vadd.f32 0.0, %v1321
    %v1323 = vpop.f32.mrf.mxu0
    %1324 = vdwg.mxu0
    %v1326 = vunpack.c.l.b16 %v1124
    %v1327 = vpack.c.b16 %v1326, %v1326
    %1328 = vrot.lane.b32.xlu0 %v1327, 96
    %v1329 = vpop.permute.xlu0 %1328
    %v1331 = vsel %vm483, %v1252, 0
    %v1334 = vsel %vm487, %v1329, 0
    %1336 = vmatpush.bf16.msra.mxu0 0
    %1337 = vmatpush.bf16.msra.mxu0 0
    %1338 = vmatpush.bf16.msra.mxu0 0
    %1339 = vmatpush.bf16.msra.mxu0 0
    %1340 = vmatpush.bf16.msra.mxu0 0
    %1341 = vmatpush.bf16.msra.mxu0 0
    %1342 = vmatpush.bf16.msra.mxu0 0
    %1343 = vmatpush.bf16.msra.mxu0 %v1334
    %1344 = vmatmul.bf16.gmra.mxu0 %v1331
    %v1345 = vpop.f32.mrf.mxu0
    %v1346 = vadd.f32 0.0, %v1345
    %v1347 = vpop.f32.mrf.mxu0
    %1348 = vdwg.mxu0
    %v1350 = vunpack.c.l.b16 %v1117
    %v1351 = vpack.c.b16 %v1350, %v1350
    %1352 = vrot.lane.b32.xlu0 %v1351, 112
    %v1353 = vpop.permute.xlu0 %1352
    %1354 = vrot.lane.b32.xlu0 %v1255, 112
    %v1355 = vpop.permute.xlu0 %1354
    %v1357 = vsel %vm336, %v1353, 0
    %v1360 = vsel %vm336, %v1355, 0
    %1362 = vmatpush.bf16.xpose.msra.mxu0 0
    %1363 = vmatpush.bf16.xpose.msra.mxu0 0
    %1364 = vmatpush.bf16.xpose.msra.mxu0 0
    %1365 = vmatpush.bf16.xpose.msra.mxu0 0
    %1366 = vmatpush.bf16.xpose.msra.mxu0 0
    %1367 = vmatpush.bf16.xpose.msra.mxu0 0
    %1368 = vmatpush.bf16.xpose.msra.mxu0 0
    %1369 = vmatpush.bf16.xpose.msra.mxu0 %v1360
    %1370 = vmatmul.bf16.gmra.mxu0 %v1357
    %v1371 = vpop.f32.mrf.mxu0
    %v1372 = vadd.f32 0.0, %v1371
    %v1373 = vpop.f32.mrf.mxu0
    %1374 = vdwg.mxu0
    %v1376 = vunpack.c.l.b16 %v1118
    %v1377 = vpack.c.b16 %v1376, %v1376
    %1378 = vrot.lane.b32.xlu0 %v1377, 112
    %v1379 = vpop.permute.xlu0 %1378
    %1380 = vrot.lane.b32.xlu0 %v1279, 112
    %v1381 = vpop.permute.xlu0 %1380
    %v1383 = vsel %vm336, %v1379, 0
    %v1386 = vsel %vm336, %v1381, 0
    %1388 = vmatpush.bf16.xpose.msra.mxu0 0
    %1389 = vmatpush.bf16.xpose.msra.mxu0 0
    %1390 = vmatpush.bf16.xpose.msra.mxu0 0
    %1391 = vmatpush.bf16.xpose.msra.mxu0 0
    %1392 = vmatpush.bf16.xpose.msra.mxu0 0
    %1393 = vmatpush.bf16.xpose.msra.mxu0 0
    %1394 = vmatpush.bf16.xpose.msra.mxu0 0
    %1395 = vmatpush.bf16.xpose.msra.mxu0 %v1386
    %1396 = vmatmul.bf16.gmra.mxu0 %v1383
    %v1397 = vpop.f32.mrf.mxu0
    %v1398 = vadd.f32 0.0, %v1397
    %v1399 = vpop.f32.mrf.mxu0
    %1400 = vdwg.mxu0
    %v1402 = vunpack.c.l.b16 %v1119
    %v1403 = vpack.c.b16 %v1402, %v1402
    %1404 = vrot.lane.b32.xlu0 %v1403, 112
    %v1405 = vpop.permute.xlu0 %1404
    %1406 = vrot.lane.b32.xlu0 %v1303, 112
    %v1407 = vpop.permute.xlu0 %1406
    %v1409 = vsel %vm336, %v1405, 0
    %v1412 = vsel %vm336, %v1407, 0
    %1414 = vmatpush.bf16.xpose.msra.mxu0 0
    %1415 = vmatpush.bf16.xpose.msra.mxu0 0
    %1416 = vmatpush.bf16.xpose.msra.mxu0 0
    %1417 = vmatpush.bf16.xpose.msra.mxu0 0
    %1418 = vmatpush.bf16.xpose.msra.mxu0 0
    %1419 = vmatpush.bf16.xpose.msra.mxu0 0
    %1420 = vmatpush.bf16.xpose.msra.mxu0 0
    %1421 = vmatpush.bf16.xpose.msra.mxu0 %v1412
    %1422 = vmatmul.bf16.gmra.mxu0 %v1409
    %v1423 = vpop.f32.mrf.mxu0
    %v1424 = vadd.f32 0.0, %v1423
    %v1425 = vpop.f32.mrf.mxu0
    %1426 = vdwg.mxu0
    %v1428 = vunpack.c.l.b16 %v1120
    %v1429 = vpack.c.b16 %v1428, %v1428
    %1430 = vrot.lane.b32.xlu0 %v1429, 112
    %v1431 = vpop.permute.xlu0 %1430
    %1432 = vrot.lane.b32.xlu0 %v1327, 112
    %v1433 = vpop.permute.xlu0 %1432
    %v1435 = vsel %vm336, %v1431, 0
    %v1438 = vsel %vm336, %v1433, 0
    %1440 = vmatpush.bf16.xpose.msra.mxu0 0
    %1441 = vmatpush.bf16.xpose.msra.mxu0 0
    %1442 = vmatpush.bf16.xpose.msra.mxu0 0
    %1443 = vmatpush.bf16.xpose.msra.mxu0 0
    %1444 = vmatpush.bf16.xpose.msra.mxu0 0
    %1445 = vmatpush.bf16.xpose.msra.mxu0 0
    %1446 = vmatpush.bf16.xpose.msra.mxu0 0
    %1447 = vmatpush.bf16.xpose.msra.mxu0 %v1438
    %1448 = vmatmul.bf16.gmra.mxu0 %v1435
    %v1449 = vpop.f32.mrf.mxu0
    %v1450 = vadd.f32 0.0, %v1449
    %v1451 = vpop.f32.mrf.mxu0
    %1452 = vdwg.mxu0
    %v1453 = vmul.f32 %v1372, 0.25
    %v1454 = vmul.f32 %v1398, 0.25
    %v1455 = vmul.f32 %v1424, 0.25
    %v1456 = vmul.f32 %v1450, 0.25
    %v1457 = vsel %vm432, %v1453, -inf
    %1458 = vmax.xlane.f32.xlu0 %v1457
    %v1459 = vpop.xlane.xlu0 %1458
    %v1460 = vsel %vm432, %v1454, -inf
    %1461 = vmax.xlane.f32.xlu0 %v1460
    %v1462 = vpop.xlane.xlu0 %1461
    %v1463 = vsel %vm432, %v1455, -inf
    %1464 = vmax.xlane.f32.xlu0 %v1463
    %v1465 = vpop.xlane.xlu0 %1464
    %v1466 = vsel %vm432, %v1456, -inf
    %1467 = vmax.xlane.f32.xlu0 %v1466
    %v1468 = vpop.xlane.xlu0 %1467
    %v1469 = vsub.f32 %v1453, %v1459
    %v1470 = vsub.f32 %v1454, %v1462
    %v1471 = vsub.f32 %v1455, %v1465
    %v1472 = vsub.f32 %v1456, %v1468
    %v1473 = vmul.f32 %v1469, 1.442695
    %v1474 = vpow.pop %v1473
    %v1475 = vmul.f32 %v1470, 1.442695
    %v1476 = vpow.pop %v1475
    %v1477 = vmul.f32 %v1471, 1.442695
    %v1478 = vpow.pop %v1477
    %v1479 = vmul.f32 %v1472, 1.442695
    %v1480 = vpow.pop %v1479
    %v1481 = vsel %vm432, %v1474, 0.0
    %1482 = vadd.xlane.f32.xlu0 %v1481
    %v1483 = vpop.xlane.xlu0 %1482
    %v1484 = vsel %vm432, %v1476, 0.0
    %1485 = vadd.xlane.f32.xlu0 %v1484
    %v1486 = vpop.xlane.xlu0 %1485
    %v1487 = vsel %vm432, %v1478, 0.0
    %1488 = vadd.xlane.f32.xlu0 %v1487
    %v1489 = vpop.xlane.xlu0 %1488
    %v1490 = vsel %vm432, %v1480, 0.0
    %1491 = vadd.xlane.f32.xlu0 %v1490
    %v1492 = vpop.xlane.xlu0 %1491
    %v1493 = vrcp.pop %v1483
    %v1494 = vrcp.pop %v1486
    %v1495 = vrcp.pop %v1489
    %v1496 = vrcp.pop %v1492
    %v1497 = vmul.f32 %v1474, %v1493
    %v1498 = vmul.f32 %v1476, %v1494
    %v1499 = vmul.f32 %v1478, %v1495
    %v1500 = vmul.f32 %v1480, %v1496
    %v1501 = vpack.c.bf16 %v1497, %v1497
    %v1502 = vpack.c.bf16 %v1498, %v1498
    %v1503 = vpack.c.bf16 %v1499, %v1499
    %v1504 = vpack.c.bf16 %v1500, %v1500
    %1505 = vrot.lane.b32.xlu0 %v1255, 80
    %v1506 = vpop.permute.xlu0 %1505
    %v1508 = vsel %vm483, %v1501, 0
    %v1511 = vsel %vm487, %v1506, 0
    %1513 = vmatpush.bf16.msra.mxu0 0
    %1514 = vmatpush.bf16.msra.mxu0 0
    %1515 = vmatpush.bf16.msra.mxu0 0
    %1516 = vmatpush.bf16.msra.mxu0 0
    %1517 = vmatpush.bf16.msra.mxu0 0
    %1518 = vmatpush.bf16.msra.mxu0 0
    %1519 = vmatpush.bf16.msra.mxu0 0
    %1520 = vmatpush.bf16.msra.mxu0 %v1511
    %1521 = vmatmul.bf16.gmra.mxu0 %v1508
    %v1522 = vpop.f32.mrf.mxu0
    %v1523 = vadd.f32 0.0, %v1522
    %v1524 = vpop.f32.mrf.mxu0
    %1525 = vdwg.mxu0
    %1526 = vrot.lane.b32.xlu0 %v1279, 80
    %v1527 = vpop.permute.xlu0 %1526
    %v1529 = vsel %vm483, %v1502, 0
    %v1532 = vsel %vm487, %v1527, 0
    %1534 = vmatpush.bf16.msra.mxu0 0
    %1535 = vmatpush.bf16.msra.mxu0 0
    %1536 = vmatpush.bf16.msra.mxu0 0
    %1537 = vmatpush.bf16.msra.mxu0 0
    %1538 = vmatpush.bf16.msra.mxu0 0
    %1539 = vmatpush.bf16.msra.mxu0 0
    %1540 = vmatpush.bf16.msra.mxu0 0
    %1541 = vmatpush.bf16.msra.mxu0 %v1532
    %1542 = vmatmul.bf16.gmra.mxu0 %v1529
    %v1543 = vpop.f32.mrf.mxu0
    %v1544 = vadd.f32 0.0, %v1543
    %v1545 = vpop.f32.mrf.mxu0
    %1546 = vdwg.mxu0
    %1547 = vrot.lane.b32.xlu0 %v1303, 80
    %v1548 = vpop.permute.xlu0 %1547
    %v1550 = vsel %vm483, %v1503, 0
    %v1553 = vsel %vm487, %v1548, 0
    %1555 = vmatpush.bf16.msra.mxu0 0
    %1556 = vmatpush.bf16.msra.mxu0 0
    %1557 = vmatpush.bf16.msra.mxu0 0
    %1558 = vmatpush.bf16.msra.mxu0 0
    %1559 = vmatpush.bf16.msra.mxu0 0
    %1560 = vmatpush.bf16.msra.mxu0 0
    %1561 = vmatpush.bf16.msra.mxu0 0
    %1562 = vmatpush.bf16.msra.mxu0 %v1553
    %1563 = vmatmul.bf16.gmra.mxu0 %v1550
    %v1564 = vpop.f32.mrf.mxu0
    %v1565 = vadd.f32 0.0, %v1564
    %v1566 = vpop.f32.mrf.mxu0
    %1567 = vdwg.mxu0
    %1568 = vrot.lane.b32.xlu0 %v1327, 80
    %v1569 = vpop.permute.xlu0 %1568
    %v1571 = vsel %vm483, %v1504, 0
    %v1574 = vsel %vm487, %v1569, 0
    %1576 = vmatpush.bf16.msra.mxu0 0
    %1577 = vmatpush.bf16.msra.mxu0 0
    %1578 = vmatpush.bf16.msra.mxu0 0
    %1579 = vmatpush.bf16.msra.mxu0 0
    %1580 = vmatpush.bf16.msra.mxu0 0
    %1581 = vmatpush.bf16.msra.mxu0 0
    %1582 = vmatpush.bf16.msra.mxu0 0
    %1583 = vmatpush.bf16.msra.mxu0 %v1574
    %1584 = vmatmul.bf16.gmra.mxu0 %v1571
    %v1585 = vpop.f32.mrf.mxu0
    %v1586 = vadd.f32 0.0, %v1585
    %v1587 = vpop.f32.mrf.mxu0
    %1588 = vdwg.mxu0
    %1593 = vrot.lane.b32.xlu0 %v1523, 16
    %v1594 = vpop.permute.xlu0 %1593
    %1595 = vrot.lane.b32.xlu0 %v1544, 16
    %v1596 = vpop.permute.xlu0 %1595
    %1597 = vrot.lane.b32.xlu0 %v1565, 16
    %v1598 = vpop.permute.xlu0 %1597
    %1599 = vrot.lane.b32.xlu0 %v1586, 16
    %v1600 = vpop.permute.xlu0 %1599
    %v1605 = vsel %vm336, %v1274, %v1594
    %v1606 = vsel %vm336, %v1298, %v1596
    %v1607 = vsel %vm336, %v1322, %v1598
    %v1608 = vsel %vm336, %v1346, %v1600
    %v1609 = vld [vmem:[%s12] sm:$0xff]
    %v1610 = vld [vmem:[%s12 + $0x8] sm:$0xff]
    %v1611 = vld [vmem:[%s12 + $0x10] sm:$0xff]
    %v1612 = vld [vmem:[%s12 + $0x18] sm:$0xff]
    %1617 = vst [vmem:[#allocation1] ss:$2 sm:$0xff] %v1605
    %s1618 = scalar_lea.vmem [#allocation1], 1
    %1619 = vst [vmem:[%s1618] ss:$2 sm:$0xff] %v1606
    %s1620 = scalar_lea.vmem [#allocation1], 16
    %1621 = vst [vmem:[%s1620] ss:$2 sm:$0xff] %v1607
    %s1622 = scalar_lea.vmem [#allocation1], 17
    %1623 = vst [vmem:[%s1622] ss:$2 sm:$0xff] %v1608
    %v1624 = vld.sshfl [vmem:[#allocation1] sm:$0xff pattern:$0x75316420]
    %v1625 = vld.sshfl [vmem:[#allocation1 + $0x10] sm:$0xff pattern:$0x75316420]
    %v1628 = vpack.c.bf16 %v1625, %v1624
    %v1629 = vpack.c.bf16 %v1610, %v1609
    %v1630 = vpack.c.bf16 %v1612, %v1611
    %v1631 = vld [vmem:[#allocation13] sm:$0x1]
    %v1633 = vperm.slane %v1631, 0
    %v1636 = vsel %vm303, %v1628, 0
    %1638 = vmatpush.bf16.msra.mxu0 0
    %1639 = vmatpush.bf16.msra.mxu0 0
    %1640 = vmatpush.bf16.msra.mxu0 0
    %1641 = vmatpush.bf16.msra.mxu0 0
    %1642 = vmatpush.bf16.msra.mxu0 0
    %1643 = vmatpush.bf16.msra.mxu0 0
    %1644 = vmatpush.bf16.msra.mxu0 %v1630
    %1645 = vmatpush.bf16.msra.mxu0 %v1629
    %1646 = vmatmul.bf16.gmra.mxu0 %v1636
    %v1647 = vpop.f32.mrf.mxu0
    %v1648 = vadd.f32 %v1633, %v1647
    %v1649 = vpop.f32.mrf.mxu0
    %v1650 = vadd.f32 %v1633, %v1649
    %1651 = vdwg.mxu0
    %v1654 = vrot.slane %v1648, 4
    %v1655 = vrot.slane %v1650, 4
    %v1658 = vadd.f32 %v1015, %v1648
    %v1659 = vadd.f32 %v1016, %v1654
    %v1660 = vadd.f32 %v1017, %v1650
    %v1661 = vadd.f32 %v1018, %v1655
    %v1662 = vld [vmem:[#allocation14] sm:$0x1]
    %v1663 = vld [vmem:[#allocation16] sm:$0x1]
    %1668 = vst [vmem:[#allocation1] ss:$2 sm:$0xff] %v1658
    %s1669 = scalar_lea.vmem [#allocation1], 1
    %1670 = vst [vmem:[%s1669] ss:$2 sm:$0xff] %v1659
    %s1671 = scalar_lea.vmem [#allocation1], 16
    %1672 = vst [vmem:[%s1671] ss:$2 sm:$0xff] %v1660
    %s1673 = scalar_lea.vmem [#allocation1], 17
    %1674 = vst [vmem:[%s1673] ss:$2 sm:$0xff] %v1661
    %v1675 = vld.sshfl [vmem:[#allocation1] sm:$0xff pattern:$0x75316420]
    %v1676 = vld.sshfl [vmem:[#allocation1 + $0x10] sm:$0xff pattern:$0x75316420]
    %v1679 = vsel %vm303, %v1675, 0.0
    %1680 = vadd.xlane.f32.xlu0 %v1679
    %v1681 = vpop.xlane.xlu0 %1680
    %v1682 = vsel %vm303, %v1676, 0.0
    %1683 = vadd.xlane.f32.xlu0 %v1682
    %v1684 = vpop.xlane.xlu0 %1683
    %v1685 = vmul.f32 %v1681, %v897
    %v1686 = vmul.f32 %v1684, %v897
    %v1690 = vunpack.c.l.s4 839922192
    %v1691 = vunpack.c.0.s8 %v1690
    %v1692 = vperm.slane %v1685, %v1691
    %v1694 = vunpack.c.l.s4 1985246804
    %v1695 = vunpack.c.0.s8 %v1694
    %v1696 = vperm.slane %v1685, %v1695
    %v1698 = vunpack.c.l.s4 839922192
    %v1699 = vunpack.c.0.s8 %v1698
    %v1700 = vperm.slane %v1686, %v1699
    %v1702 = vunpack.c.l.s4 1985246804
    %v1703 = vunpack.c.0.s8 %v1702
    %v1704 = vperm.slane %v1686, %v1703
    %v1709 = vsub.f32 %v1658, %v1692
    %v1710 = vsub.f32 %v1659, %v1696
    %v1711 = vsub.f32 %v1660, %v1700
    %v1712 = vsub.f32 %v1661, %v1704
    %v1713 = vmul.f32 %v1709, %v1709
    %v1714 = vmul.f32 %v1710, %v1710
    %v1715 = vmul.f32 %v1711, %v1711
    %v1716 = vmul.f32 %v1712, %v1712
    %1721 = vst [vmem:[#allocation1] ss:$2 sm:$0xff] %v1713
    %s1722 = scalar_lea.vmem [#allocation1], 1
    %1723 = vst [vmem:[%s1722] ss:$2 sm:$0xff] %v1714
    %s1724 = scalar_lea.vmem [#allocation1], 16
    %1725 = vst [vmem:[%s1724] ss:$2 sm:$0xff] %v1715
    %s1726 = scalar_lea.vmem [#allocation1], 17
    %1727 = vst [vmem:[%s1726] ss:$2 sm:$0xff] %v1716
    %v1728 = vld.sshfl [vmem:[#allocation1] sm:$0xff pattern:$0x75316420]
    %v1729 = vld.sshfl [vmem:[#allocation1 + $0x10] sm:$0xff pattern:$0x75316420]
    %v1732 = vsel %vm303, %v1728, 0.0
    %1733 = vadd.xlane.f32.xlu0 %v1732
    %v1734 = vpop.xlane.xlu0 %1733
    %v1735 = vsel %vm303, %v1729, 0.0
    %1736 = vadd.xlane.f32.xlu0 %v1735
    %v1737 = vpop.xlane.xlu0 %1736
    %v1738 = vmul.f32 %v1734, %v897
    %v1739 = vmul.f32 %v1737, %v897
    %v1740 = vadd.f32 %v1738, 1e-06
    %v1741 = vadd.f32 %v1739, 1e-06
    %v1742 = vrsqrt.pop %v1740
    %v1743 = vmul.f32 %v1742, %v1740
    %v1744 = vmul.f32 %v1743, %v1742
    %v1745 = vmul.f32 0.5, %v1744
    %v1746 = vsub.f32 1.5, %v1745
    %v1747 = vmul.f32 %v1742, %v1746
    %vm1748 = vweird.f32 %v1740
    %vm1749 = vweird.f32 %v1742
    %vm1750 = vmor %vm1748, %vm1749
    %v1751 = vsel %vm1750, %v1742, %v1747
    %v1752 = vrsqrt.pop %v1741
    %v1753 = vmul.f32 %v1752, %v1741
    %v1754 = vmul.f32 %v1753, %v1752
    %v1755 = vmul.f32 0.5, %v1754
    %v1756 = vsub.f32 1.5, %v1755
    %v1757 = vmul.f32 %v1752, %v1756
    %vm1758 = vweird.f32 %v1741
    %vm1759 = vweird.f32 %v1752
    %vm1760 = vmor %vm1758, %vm1759
    %v1761 = vsel %vm1760, %v1752, %v1757
    %v1765 = vunpack.c.l.s4 839922192
    %v1766 = vunpack.c.0.s8 %v1765
    %v1767 = vperm.slane %v1751, %v1766
    %v1769 = vunpack.c.l.s4 1985246804
    %v1770 = vunpack.c.0.s8 %v1769
    %v1771 = vperm.slane %v1751, %v1770
    %v1773 = vunpack.c.l.s4 839922192
    %v1774 = vunpack.c.0.s8 %v1773
    %v1775 = vperm.slane %v1761, %v1774
    %v1777 = vunpack.c.l.s4 1985246804
    %v1778 = vunpack.c.0.s8 %v1777
    %v1779 = vperm.slane %v1761, %v1778
    %v1784 = vmul.f32 %v1709, %v1767
    %v1785 = vmul.f32 %v1710, %v1771
    %v1786 = vmul.f32 %v1711, %v1775
    %v1787 = vmul.f32 %v1712, %v1779
    %v1789 = vperm.slane %v1662, 0
    %v1791 = vrot.slane %v1789, 4
    %v1793 = vmul.f32 %v1784, %v1789
    %v1794 = vmul.f32 %v1785, %v1791
    %v1795 = vmul.f32 %v1786, %v1789
    %v1796 = vmul.f32 %v1787, %v1791
    %v1798 = vperm.slane %v1663, 0
    %v1800 = vrot.slane %v1798, 4
    %v1802 = vadd.f32 %v1793, %v1798
    %v1803 = vadd.f32 %v1794, %v1800
    %v1804 = vadd.f32 %v1795, %v1798
    %v1805 = vadd.f32 %v1796, %v1800
    %v1806 = vld [vmem:[%s16] sm:$0xff]
    %v1807 = vld [vmem:[%s16 + $0x8] sm:$0xff]
    %v1808 = vld [vmem:[%s16 + $0x10] sm:$0xff]
    %v1809 = vld [vmem:[%s16 + $0x18] sm:$0xff]
    %1814 = vst [vmem:[#allocation1] ss:$2 sm:$0xff] %v1802
    %s1815 = scalar_lea.vmem [#allocation1], 1
    %1816 = vst [vmem:[%s1815] ss:$2 sm:$0xff] %v1803
    %s1817 = scalar_lea.vmem [#allocation1], 16
    %1818 = vst [vmem:[%s1817] ss:$2 sm:$0xff] %v1804
    %s1819 = scalar_lea.vmem [#allocation1], 17
    %1820 = vst [vmem:[%s1819] ss:$2 sm:$0xff] %v1805
    %v1821 = vld.sshfl [vmem:[#allocation1] sm:$0xff pattern:$0x75316420]
    %v1822 = vld.sshfl [vmem:[#allocation1 + $0x10] sm:$0xff pattern:$0x75316420]
    %v1825 = vpack.c.bf16 %v1822, %v1821
    %v1826 = vpack.c.bf16 %v1807, %v1806
    %v1827 = vpack.c.bf16 %v1809, %v1808
    %v1828 = vld [vmem:[#allocation17] sm:$0x1]
    %v1830 = vperm.slane %v1828, 0
    %v1833 = vsel %vm303, %v1825, 0
    %1835 = vmatpush.bf16.msra.mxu0 0
    %1836 = vmatpush.bf16.msra.mxu0 0
    %1837 = vmatpush.bf16.msra.mxu0 0
    %1838 = vmatpush.bf16.msra.mxu0 0
    %1839 = vmatpush.bf16.msra.mxu0 0
    %1840 = vmatpush.bf16.msra.mxu0 0
    %1841 = vmatpush.bf16.msra.mxu0 %v1827
    %1842 = vmatpush.bf16.msra.mxu0 %v1826
    %1843 = vmatmul.bf16.gmra.mxu0 %v1833
    %v1844 = vpop.f32.mrf.mxu0
    %v1845 = vadd.f32 %v1830, %v1844
    %v1846 = vpop.f32.mrf.mxu0
    %v1847 = vadd.f32 %v1830, %v1846
    %1848 = vdwg.mxu0
    %v1849 = vmax.f32 %v1845, 0.0
    %v1850 = vmax.f32 %v1847, 0.0
    %v1851 = vld [vmem:[%s18] sm:$0xff]
    %v1852 = vld [vmem:[%s18 + $0x8] sm:$0xff]
    %v1853 = vld [vmem:[%s18 + $0x10] sm:$0xff]
    %v1854 = vld [vmem:[%s18 + $0x18] sm:$0xff]
    %v1855 = vld [vmem:[%s18 + $0x20] sm:$0xff]
    %v1856 = vld [vmem:[%s18 + $0x28] sm:$0xff]
    %v1857 = vld [vmem:[%s18 + $0x30] sm:$0xff]
    %v1858 = vld [vmem:[%s18 + $0x38] sm:$0xff]
    %v1859 = vld [vmem:[%s18 + $0x40] sm:$0xff]
    %v1860 = vld [vmem:[%s18 + $0x48] sm:$0xff]
    %v1861 = vld [vmem:[%s18 + $0x50] sm:$0xff]
    %v1862 = vld [vmem:[%s18 + $0x58] sm:$0xff]
    %v1863 = vld [vmem:[%s18 + $0x60] sm:$0xff]
    %v1864 = vld [vmem:[%s18 + $0x68] sm:$0xff]
    %v1865 = vld [vmem:[%s18 + $0x70] sm:$0xff]
    %v1866 = vld [vmem:[%s18 + $0x78] sm:$0xff]
    %v1867 = vpack.c.bf16 %v1850, %v1849
    %v1868 = vpack.c.bf16 %v1852, %v1851
    %v1869 = vpack.c.bf16 %v1854, %v1853
    %v1870 = vpack.c.bf16 %v1856, %v1855
    %v1871 = vpack.c.bf16 %v1858, %v1857
    %v1872 = vpack.c.bf16 %v1860, %v1859
    %v1873 = vpack.c.bf16 %v1862, %v1861
    %v1874 = vpack.c.bf16 %v1864, %v1863
    %v1875 = vpack.c.bf16 %v1866, %v1865
    %v1876 = vld [vmem:[#allocation19] sm:$0x1]
    %v1878 = vperm.slane %v1876, 0
    %1880 = vmatpush.bf16.msra.mxu0 %v1875
    %1881 = vmatpush.bf16.msra.mxu0 %v1874
    %1882 = vmatpush.bf16.msra.mxu0 %v1873
    %1883 = vmatpush.bf16.msra.mxu0 %v1872
    %1884 = vmatpush.bf16.msra.mxu0 %v1871
    %1885 = vmatpush.bf16.msra.mxu0 %v1870
    %1886 = vmatpush.bf16.msra.mxu0 %v1869
    %1887 = vmatpush.bf16.msra.mxu0 %v1868
    %1888 = vmatmul.bf16.gmra.mxu0 %v1867
    %v1889 = vpop.f32.mrf.mxu0
    %v1890 = vadd.f32 %v1878, %v1889
    %v1891 = vpop.f32.mrf.mxu0
    %v1892 = vadd.f32 %v1878, %v1891
    %1893 = vdwg.mxu0
    %v1896 = vrot.slane %v1890, 4
    %v1897 = vrot.slane %v1892, 4
    %v1900 = vadd.f32 %v1802, %v1890
    %v1901 = vadd.f32 %v1803, %v1896
    %v1902 = vadd.f32 %v1804, %v1892
    %v1903 = vadd.f32 %v1805, %v1897
    %v1904 = vld [vmem:[#allocation20] sm:$0x1]
    %v1905 = vld [vmem:[#allocation22] sm:$0x1]
    %1910 = vst [vmem:[#allocation1] ss:$2 sm:$0xff] %v1900
    %s1911 = scalar_lea.vmem [#allocation1], 1
    %1912 = vst [vmem:[%s1911] ss:$2 sm:$0xff] %v1901
    %s1913 = scalar_lea.vmem [#allocation1], 16
    %1914 = vst [vmem:[%s1913] ss:$2 sm:$0xff] %v1902
    %s1915 = scalar_lea.vmem [#allocation1], 17
    %1916 = vst [vmem:[%s1915] ss:$2 sm:$0xff] %v1903
    %v1917 = vld.sshfl [vmem:[#allocation1] sm:$0xff pattern:$0x75316420]
    %v1918 = vld.sshfl [vmem:[#allocation1 + $0x10] sm:$0xff pattern:$0x75316420]
    %v1921 = vsel %vm303, %v1917, 0.0
    %1922 = vadd.xlane.f32.xlu0 %v1921
    %v1923 = vpop.xlane.xlu0 %1922
    %v1924 = vsel %vm303, %v1918, 0.0
    %1925 = vadd.xlane.f32.xlu0 %v1924
    %v1926 = vpop.xlane.xlu0 %1925
    %v1927 = vmul.f32 %v1923, %v897
    %v1928 = vmul.f32 %v1926, %v897
    %v1932 = vunpack.c.l.s4 839922192
    %v1933 = vunpack.c.0.s8 %v1932
    %v1934 = vperm.slane %v1927, %v1933
    %v1936 = vunpack.c.l.s4 1985246804
    %v1937 = vunpack.c.0.s8 %v1936
    %v1938 = vperm.slane %v1927, %v1937
    %v1940 = vunpack.c.l.s4 839922192
    %v1941 = vunpack.c.0.s8 %v1940
    %v1942 = vperm.slane %v1928, %v1941
    %v1944 = vunpack.c.l.s4 1985246804
    %v1945 = vunpack.c.0.s8 %v1944
    %v1946 = vperm.slane %v1928, %v1945
    %v1951 = vsub.f32 %v1900, %v1934
    %v1952 = vsub.f32 %v1901, %v1938
    %v1953 = vsub.f32 %v1902, %v1942
    %v1954 = vsub.f32 %v1903, %v1946
    %v1955 = vmul.f32 %v1951, %v1951
    %v1956 = vmul.f32 %v1952, %v1952
    %v1957 = vmul.f32 %v1953, %v1953
    %v1958 = vmul.f32 %v1954, %v1954
    %1963 = vst [vmem:[#allocation1] ss:$2 sm:$0xff] %v1955
    %s1964 = scalar_lea.vmem [#allocation1], 1
    %1965 = vst [vmem:[%s1964] ss:$2 sm:$0xff] %v1956
    %s1966 = scalar_lea.vmem [#allocation1], 16
    %1967 = vst [vmem:[%s1966] ss:$2 sm:$0xff] %v1957
    %s1968 = scalar_lea.vmem [#allocation1], 17
    %1969 = vst [vmem:[%s1968] ss:$2 sm:$0xff] %v1958
    %v1970 = vld.sshfl [vmem:[#allocation1] sm:$0xff pattern:$0x75316420]
    %v1971 = vld.sshfl [vmem:[#allocation1 + $0x10] sm:$0xff pattern:$0x75316420]
    %v1974 = vsel %vm303, %v1970, 0.0
    %1975 = vadd.xlane.f32.xlu0 %v1974
    %v1976 = vpop.xlane.xlu0 %1975
    %v1977 = vsel %vm303, %v1971, 0.0
    %1978 = vadd.xlane.f32.xlu0 %v1977
    %v1979 = vpop.xlane.xlu0 %1978
    %v1980 = vmul.f32 %v1976, %v897
    %v1981 = vmul.f32 %v1979, %v897
    %v1982 = vadd.f32 %v1980, 1e-06
    %v1983 = vadd.f32 %v1981, 1e-06
    %v1984 = vrsqrt.pop %v1982
    %v1985 = vmul.f32 %v1984, %v1982
    %v1986 = vmul.f32 %v1985, %v1984
    %v1987 = vmul.f32 0.5, %v1986
    %v1988 = vsub.f32 1.5, %v1987
    %v1989 = vmul.f32 %v1984, %v1988
    %vm1990 = vweird.f32 %v1982
    %vm1991 = vweird.f32 %v1984
    %vm1992 = vmor %vm1990, %vm1991
    %v1993 = vsel %vm1992, %v1984, %v1989
    %v1994 = vrsqrt.pop %v1983
    %v1995 = vmul.f32 %v1994, %v1983
    %v1996 = vmul.f32 %v1995, %v1994
    %v1997 = vmul.f32 0.5, %v1996
    %v1998 = vsub.f32 1.5, %v1997
    %v1999 = vmul.f32 %v1994, %v1998
    %vm2000 = vweird.f32 %v1983
    %vm2001 = vweird.f32 %v1994
    %vm2002 = vmor %vm2000, %vm2001
    %v2003 = vsel %vm2002, %v1994, %v1999
    %v2007 = vunpack.c.l.s4 839922192
    %v2008 = vunpack.c.0.s8 %v2007
    %v2009 = vperm.slane %v1993, %v2008
    %v2011 = vunpack.c.l.s4 1985246804
    %v2012 = vunpack.c.0.s8 %v2011
    %v2013 = vperm.slane %v1993, %v2012
    %v2015 = vunpack.c.l.s4 839922192
    %v2016 = vunpack.c.0.s8 %v2015
    %v2017 = vperm.slane %v2003, %v2016
    %v2019 = vunpack.c.l.s4 1985246804
    %v2020 = vunpack.c.0.s8 %v2019
    %v2021 = vperm.slane %v2003, %v2020
    %v2026 = vmul.f32 %v1951, %v2009
    %v2027 = vmul.f32 %v1952, %v2013
    %v2028 = vmul.f32 %v1953, %v2017
    %v2029 = vmul.f32 %v1954, %v2021
    %v2031 = vperm.slane %v1904, 0
    %v2033 = vrot.slane %v2031, 4
    %v2035 = vmul.f32 %v2026, %v2031
    %v2036 = vmul.f32 %v2027, %v2033
    %v2037 = vmul.f32 %v2028, %v2031
    %v2038 = vmul.f32 %v2029, %v2033
    %v2040 = vperm.slane %v1905, 0
    %v2042 = vrot.slane %v2040, 4
    %v2044 = vadd.f32 %v2035, %v2040
    %v2045 = vadd.f32 %v2036, %v2042
    %v2046 = vadd.f32 %v2037, %v2040
    %v2047 = vadd.f32 %v2038, %v2042
    %v2048 = vld [vmem:[%s22] sm:$0xff]
    %v2049 = vld [vmem:[%s22 + $0x8] sm:$0xff]
    %v2050 = vld [vmem:[%s22 + $0x10] sm:$0xff]
    %v2051 = vld [vmem:[%s22 + $0x18] sm:$0xff]
    %2056 = vst [vmem:[#allocation1] ss:$2 sm:$0xff] %v2044
    %s2057 = scalar_lea.vmem [#allocation1], 1
    %2058 = vst [vmem:[%s2057] ss:$2 sm:$0xff] %v2045
    %s2059 = scalar_lea.vmem [#allocation1], 16
    %2060 = vst [vmem:[%s2059] ss:$2 sm:$0xff] %v2046
    %s2061 = scalar_lea.vmem [#allocation1], 17
    %2062 = vst [vmem:[%s2061] ss:$2 sm:$0xff] %v2047
    %v2063 = vld.sshfl [vmem:[#allocation1] sm:$0xff pattern:$0x75316420]
    %v2064 = vld.sshfl [vmem:[#allocation1 + $0x10] sm:$0xff pattern:$0x75316420]
    %v2067 = vpack.c.bf16 %v2064, %v2063
    %v2068 = vpack.c.bf16 %v2049, %v2048
    %v2069 = vpack.c.bf16 %v2051, %v2050
    %v2070 = vld [vmem:[#allocation23] sm:$0x1]
    %v2072 = vperm.slane %v2070, 0
    %v2075 = vsel %vm303, %v2067, 0
    %2077 = vmatpush.bf16.msra.mxu0 0
    %2078 = vmatpush.bf16.msra.mxu0 0
    %2079 = vmatpush.bf16.msra.mxu0 0
    %2080 = vmatpush.bf16.msra.mxu0 0
    %2081 = vmatpush.bf16.msra.mxu0 0
    %2082 = vmatpush.bf16.msra.mxu0 0
    %2083 = vmatpush.bf16.msra.mxu0 %v2069
    %2084 = vmatpush.bf16.msra.mxu0 %v2068
    %2085 = vmatmul.bf16.gmra.mxu0 %v2075
    %v2086 = vpop.f32.mrf.mxu0
    %v2087 = vadd.f32 %v2072, %v2086
    %v2088 = vpop.f32.mrf.mxu0
    %v2089 = vadd.f32 %v2072, %v2088
    %2090 = vdwg.mxu0
    %v2093 = vrot.slane %v2087, 4
    %v2094 = vrot.slane %v2089, 4
    %vm2097 = vcmask 388096
    %2098 = vst.msk [vmem:[#allocation25] sm:$0xf] %vm2097, %v2087
    %2099 = vst.msk [vmem:[#allocation25 + $0x4] sm:$0xf] %vm2097, %v2093
    %2100 = vst.msk [vmem:[#allocation25 + $0x8] sm:$0xf] %vm2097, %v2089
    %2101 = vst.msk [vmem:[#allocation25 + $0xc] sm:$0xf] %vm2097, %v2094
    // Predicated region
    $region154: #{tdeepsc_imgr_forward.11} parent=1 // pred_check
      _
    $region155: #{tdeepsc_imgr_forward.11} parent=1 // pred_check_branch
      %2103 = sbr.rel (0) target = $region157
    $region156: #{tdeepsc_imgr_forward.11} parent=1 // pred_region
      %2105 = vsyncadd [#allocation4], 0
      %s2106 = sshll.u32 [#allocation25], 4
      %s2107 = int_to_ptr.vmem [resolvable:$true] %s2106
      %s2108 = sshll.u32 %s24, 4
      %s2109 = int_to_ptr.hbm [resolvable:$true] %s2108
      %2114 = dma.vmem_to_hbm [thread:$0]  %s2107, 256, %s2109, [#allocation4], 64, 64, 4
    $region157: #{tdeepsc_imgr_forward.11} parent=1 // pred_fallthru
      _
    // Predicated region
    $region158: #{tdeepsc_imgr_forward.11} parent=1 // pred_check
      _
    $region159: #{tdeepsc_imgr_forward.11} parent=1 // pred_check_branch
      %2116 = sbr.rel (0) target = $region161
    $region160: #{tdeepsc_imgr_forward.11} parent=1 // pred_region
      %2118 = dma.done [#allocation4], 256
    $region161: #{tdeepsc_imgr_forward.11} parent=1 // pred_fallthru
      _
    %2119 = vsyncpa [#allocation3], 1
    %2120 = vsyncpa [#allocation6], 1
    %2121 = vsyncpa [#allocation9], 1
    %2122 = vsyncpa [#allocation12], 1
    %2123 = vsyncpa [#allocation15], 1
    %2124 = vsyncpa [#allocation18], 1
    %2125 = vsyncpa [#allocation21], 1
    %2126 = vsyncpa [#allocation24], 1
    %2127 = vsyncpa [#allocation4], 1

</llo_original>
